<compile_context>
chip_gen: v5e
topology: v5e:2x2
jax: 0.10.0
libtpu: 0.0.40
codegen_flags: <defaults>
</compile_context>

<pallas_src>
import functools

import jax
import jax.numpy as jnp
from jax import lax
from jax.experimental import pallas as pl
from jax.experimental.pallas import tpu as pltpu


# ---------------------------------------------------------------------------
# Fused forward kernel: one grid step == one full forward over one window.
# Everything stays resident in VMEM/SMEM/vregs; no scratch buffers needed.
# ---------------------------------------------------------------------------
def fused_forward_kernel(
    # ---- SMEM scalar params
    scal_ref,      # (2,)   [alpha, mlp_b3]
    lin_ref,       # (2,)   GAT head-mixing nn.Linear(1, 1): [weight, bias]
    lstm_ref,      # (2,16) per layer: [w_ih(4) | w_hh(4) | b_ih(4) | b_hh(4)], gates i,f,g,o
    # ---- VMEM tensor params / activations
    x_ref,         # (N, s)  input node sequences (one window)
    v1_ref,        # (s, 1)  = W @ a[:, :s].T   (GAT W folded into attention vectors)
    v2r_ref,       # (1, s)  = a[:, s:] @ W.T
    eye_ref,       # (s, s)  identity (MXU-based transpose)
    adj_ref,       # (N, N)  dense 0/1 adjacency (a_sparse values are all 1.0)
    gcn_wt_ref,    # (s, s)  gcn.weight.T
    gcn_b_ref,     # (1, s)  gcn.bias
    mw1_ref,       # (H, s)  MLP layer-1 weight (consumed column-wise in the recurrence)
    mb1_ref,       # (H, 1)
    mw2_ref,       # (H2, H)
    mb2_ref,       # (H2, 1)
    mw3_ref,       # (1, H2)
    # ---- output
    out_ref,       # (1, N)  prediction row for this window
):
    N, s = x_ref.shape
    H = mw1_ref.shape[0]
    alpha = scal_ref[0]
    mlp_b3 = scal_ref[1]
    lin_w = lin_ref[0]
    lin_b = lin_ref[1]

    v1 = v1_ref[...]
    v2r = v2r_ref[...]
    adj = adj_ref[...]
    gcn_wt = gcn_wt_ref[...]
    gcn_b = gcn_b_ref[...]

    def gat_gcn(xx):
        """One GAT-attention + GCN-residual step (dense equivalent of the
        PyTorch edge gather/scatter)."""
        # score[i,j] = lin_w * leakyrelu_0.2(f[i] + g[j]) + lin_b on edges, -1e9 off edges
        # with f = x @ W @ a1 = x @ v1 and g = (x @ W @ a2.T)^T computed as a row.
        f = jnp.dot(xx, v1, preferred_element_type=jnp.float32)              # (N, 1)
        g = lax.dot_general(v2r, xx, (((1,), (1,)), ((), ())),
                            preferred_element_type=jnp.float32)              # (1, N)
        e = f + g                                                            # (N, N)
        e = jnp.maximum(e, 0.2 * e)                                          # LeakyReLU(0.2)
        # Mask fused into a single select (adjacency assumed 0/1): removes the
        # separate NxN mask input and its HBM->VMEM DMA.
        score = jnp.where(adj > 0.0, lin_w * e + lin_b, -1e9)
        m = jnp.max(score, axis=0, keepdims=True)                            # softmax(dim=0)
        p = jnp.exp(score - m)
        # EUP approx reciprocal instead of a VALU divide.
        atts = p * pl.reciprocal(jnp.sum(p, axis=0, keepdims=True), approx=True)
        # GCN: LeakyReLU_0.01((atts @ xx) @ Wg^T + bg), then residual mix.
        agg = jnp.dot(atts, xx, preferred_element_type=jnp.float32)
        z = jnp.dot(agg, gcn_wt, preferred_element_type=jnp.float32) + gcn_b
        z = jnp.maximum(z, 0.01 * z)                                         # LeakyReLU(0.01)
        # TODO(synk): nn.Dropout(p=0.2) implemented as identity (eval-mode semantics).
        return z * (1.0 - alpha) + xx * alpha

    conv1 = gat_gcn(x_ref[...])
    conv2 = gat_gcn(conv1)

    # --- time-major transpose of conv2 via an identity matmul on the (idle)
    # MXU; pinned to HIGHEST precision so conv2 is not silently truncated.
    xT = lax.dot_general(eye_ref[...], conv2, (((1,), (1,)), ((), ())),
                         preferred_element_type=jnp.float32,
                         precision=lax.Precision.HIGHEST)                    # (s, N)

    # --- 2-layer LSTM (input_size = hidden_size = 1); batch = N nodes in lanes,
    # time-major.  All SMEM scalar loads and bias sums hoisted out of the
    # recurrence; x-dependent layer-0 gate inputs precomputed as register values.
    wa = [lstm_ref[0, k] for k in range(4)]            # layer-0 w_ih (i, f, g, o)
    ua = [lstm_ref[0, 4 + k] for k in range(4)]        # layer-0 w_hh
    ba = [lstm_ref[0, 8 + k] + lstm_ref[0, 12 + k] for k in range(4)]
    wb = [lstm_ref[1, k] for k in range(4)]            # layer-1 w_ih
    ub = [lstm_ref[1, 4 + k] for k in range(4)]        # layer-1 w_hh
    bb = [lstm_ref[1, 8 + k] + lstm_ref[1, 12 + k] for k in range(4)]

    pre_i = wa[0] * xT + ba[0]                         # (s, N) register values
    pre_f = wa[1] * xT + ba[1]
    pre_g = wa[2] * xT + ba[2]
    pre_o = wa[3] * xT + ba[3]

    # First MLP layer folded into the recurrence: z1 = mw1 @ yT accumulated
    # as rank-1 updates (free filler under the serial EUP chain); no yT scratch,
    # no per-step masked stores, no (s,N) reload.
    z1 = jnp.zeros((H, N), jnp.float32)
    h1 = jnp.zeros((1, N), jnp.float32)
    c1 = jnp.zeros((1, N), jnp.float32)
    h2 = jnp.zeros((1, N), jnp.float32)
    c2 = jnp.zeros((1, N), jnp.float32)
    for t in range(s):                                 # fully unrolled (s small, static)
        # layer 0 (layer-1 step t and layer-0 step t+1 are independent -> the
        # LLO scheduler can interleave the two transcendental chains)
        ig = jax.nn.sigmoid(pre_i[t:t + 1, :] + ua[0] * h1)
        fg = jax.nn.sigmoid(pre_f[t:t + 1, :] + ua[1] * h1)
        gg = jnp.tanh(pre_g[t:t + 1, :] + ua[2] * h1)
        og = jax.nn.sigmoid(pre_o[t:t + 1, :] + ua[3] * h1)
        c1 = fg * c1 + ig * gg
        h1 = og * jnp.tanh(c1)
        # layer 1
        ig = jax.nn.sigmoid(wb[0] * h1 + bb[0] + ub[0] * h2)
        fg = jax.nn.sigmoid(wb[1] * h1 + bb[1] + ub[1] * h2)
        gg = jnp.tanh(wb[2] * h1 + bb[2] + ub[2] * h2)
        og = jax.nn.sigmoid(wb[3] * h1 + bb[3] + ub[3] * h2)
        c2 = fg * c2 + ig * gg
        h2 = og * jnp.tanh(c2)
        # rank-1 MLP update: z1 += mw1[:, t] ⊗ h2
        z1 = z1 + mw1_ref[:, t:t + 1] * h2

    # --- remaining MLP decoder, evaluated in transposed form so the result is
    # a lane-dense (1, N) row.
    z = jnp.maximum(z1 + mb1_ref[...], 0.0)                                  # (H, N)
    z = jnp.dot(mw2_ref[...], z, preferred_element_type=jnp.float32) + mb2_ref[...]
    z = jnp.maximum(z, 0.0)                                                  # (H/2, N)
    out_ref[...] = (jnp.dot(mw3_ref[...], z, preferred_element_type=jnp.float32)
                    + mlp_b3)                                                # (1, N)


# ---------------------------------------------------------------------------
# Wrappers.
# ---------------------------------------------------------------------------
def forward_windows(x_windows, kp):
    """Batched forward over G independent windows of the same graph.

    x_windows: (G, N, s) -> returns (G, N).  One grid step per window,
    dimension_semantics=("parallel",) so on v7x the two TensorCores split
    the batch (neutral on v5e/v6e).
    """
    G, N, s = x_windows.shape
    H = kp["mlp_w1"].shape[0]
    H2 = kp["mlp_w2"].shape[0]

    smem = pl.BlockSpec(memory_space=pltpu.MemorySpace.SMEM)

    def rep(shape):
        # grid-invariant VMEM operand: whole (small) array, same block each step
        return pl.BlockSpec(shape, lambda g: (0, 0))

    # NOTE: for large N the dense O(N^2) adjacency dominates VMEM; raise
    # vmem_limit_bytes via pltpu.CompilerParams and/or tile the GAT over row
    # blocks with an online softmax (esp. on v7x's 64 MiB VMEM).
    out = pl.pallas_call(
        fused_forward_kernel,
        out_shape=jax.ShapeDtypeStruct((G, 1, N), jnp.float32),
        grid=(G,),
        in_specs=[
            smem, smem, smem,
            pl.BlockSpec((None, N, s), lambda g: (g, 0, 0)),   # per-window input
            rep((s, 1)), rep((1, s)), rep((s, s)), rep((N, N)),
            rep((s, s)), rep((1, s)),
            rep((H, s)), rep((H, 1)), rep((H2, H)), rep((H2, 1)), rep((1, H2)),
        ],
        out_specs=pl.BlockSpec((None, 1, N), lambda g: (g, 0, 0)),
        compiler_params=pltpu.CompilerParams(
            dimension_semantics=("parallel",),
        ),
    )(
        kp["scal"], kp["gat_lin"], kp["lstm_p"],
        x_windows.astype(jnp.float32),
        kp["gat_v1"], kp["gat_v2r"], kp["eye_s"], kp["adj"],
        kp["gcn_Wt"], kp["gcn_b"],
        kp["mlp_w1"], kp["mlp_b1c"], kp["mlp_w2"], kp["mlp_b2c"], kp["mlp_w3"],
    )
    return out.reshape(G, N)


def proposed_model_forward(count, kp):
    """Original module interface: count (b, n, s) with b * n == graph nodes."""
    b, n, s = count.shape
    N = b * n
    return forward_windows(count.reshape(1, N, s), kp).reshape(b, n)


# ---------------------------------------------------------------------------
# Parameters (shapes follow the PyTorch __init__), offline folding & reference.
# ---------------------------------------------------------------------------
def make_params(key, N, s, H):
    """Raw parameters mirroring the PyTorch module."""
    ks = jax.random.split(key, 12)

    # GAT head 0: W (s,s), a (1,2s) xavier_normal(gain=1.414); head-mix Linear(1,1).
    std_w = 1.414 * (2.0 / (s + s)) ** 0.5
    gat_W = std_w * jax.random.normal(ks[0], (s, s), jnp.float32)
    std_a = 1.414 * (2.0 / (1 + 2 * s)) ** 0.5
    gat_a = std_a * jax.random.normal(ks[1], (1, 2 * s), jnp.float32)
    gat_lin = jax.random.uniform(ks[2], (2,), jnp.float32, -1.0, 1.0)   # [weight, bias]

    # Adjacency: ring + self loops (sparse values all 1.0) and the additive mask
    # (mask only used by the pure-JAX reference; the kernel fuses it).
    idx = jnp.arange(N)
    adj = jnp.eye(N) + jnp.eye(N)[(idx + 1) % N] + jnp.eye(N)[(idx - 1) % N]
    adj = jnp.clip(adj, 0.0, 1.0).astype(jnp.float32)
    mask = jnp.where(adj == 1.0, 0.0, -1e9).astype(jnp.float32)

    # GCN linear (s -> s)
    kg = 1.0 / (s ** 0.5)
    gcn_W = jax.random.uniform(ks[3], (s, s), jnp.float32, -kg, kg)
    gcn_b = jax.random.uniform(ks[4], (1, s), jnp.float32, -kg, kg)

    # LSTM: 2 layers, input_size = hidden_size = 1 -> 16 scalars per layer.
    lstm_p = jax.random.uniform(ks[5], (2, 16), jnp.float32, -1.0, 1.0)

    # MLP decoder: Linear(s,H) -> ReLU -> Linear(H,H//2) -> ReLU -> Linear(H//2,1)
    k1 = 1.0 / (s ** 0.5)
    mlp_w1 = jax.random.uniform(ks[6], (H, s), jnp.float32, -k1, k1)
    mlp_b1 = jax.random.uniform(ks[7], (1, H), jnp.float32, -k1, k1)
    k2 = 1.0 / (H ** 0.5)
    mlp_w2 = jax.random.uniform(ks[8], (H // 2, H), jnp.float32, -k2, k2)
    mlp_b2 = jax.random.uniform(ks[9], (1, H // 2), jnp.float32, -k2, k2)
    k3 = 1.0 / ((H // 2) ** 0.5)
    mlp_w3 = jax.random.uniform(ks[10], (1, H // 2), jnp.float32, -k3, k3)
    mlp_b3 = jax.random.uniform(ks[11], (1, 1), jnp.float32, -k3, k3)

    return dict(gat_W=gat_W, gat_a=gat_a, gat_lin=gat_lin, adj=adj, mask=mask,
                gcn_W=gcn_W, gcn_b=gcn_b, lstm_p=lstm_p,
                mlp_w1=mlp_w1, mlp_b1=mlp_b1, mlp_w2=mlp_w2, mlp_b2=mlp_b2,
                mlp_w3=mlp_w3, mlp_b3=mlp_b3)


def prepare_kernel_params(raw, alpha):
    """One-time offline folding of parameters into the layout the kernel consumes."""
    hi = lax.Precision.HIGHEST
    W = raw["gat_W"]
    a = raw["gat_a"]
    s = W.shape[0]
    a1 = a[:, :s].T                     # (s, 1)
    a2 = a[:, s:]                       # (1, s)
    return dict(
        scal=jnp.concatenate([jnp.asarray([alpha], jnp.float32),
                              raw["mlp_b3"].reshape(-1)]),
        gat_lin=raw["gat_lin"],
        lstm_p=raw["lstm_p"],
        gat_v1=jnp.matmul(W, a1, precision=hi),        # (s, 1) = W @ a1
        gat_v2r=jnp.matmul(a2, W.T, precision=hi),     # (1, s) = (W @ a2.T).T
        eye_s=jnp.eye(s, dtype=jnp.float32),
        adj=raw["adj"],
        gcn_Wt=raw["gcn_W"].T, gcn_b=raw["gcn_b"],
        mlp_w1=raw["mlp_w1"], mlp_b1c=raw["mlp_b1"].T,
        mlp_w2=raw["mlp_w2"], mlp_b2c=raw["mlp_b2"].T,
        mlp_w3=raw["mlp_w3"],
    )


def reference_forward(count, raw, alpha):
    """Pure-JAX mirror of the PyTorch module (dense GAT, eval-mode dropout)."""
    hi = lax.Precision.HIGHEST
    mm = functools.partial(jnp.matmul, precision=hi)
    b, n, s = count.shape
    N = b * n
    x = count.reshape(N, s)
    W, a, lin = raw["gat_W"], raw["gat_a"], raw["gat_lin"]
    a1, a2 = a[:, :s].T, a[:, s:]
    adj, mask = raw["adj"], raw["mask"]

    def gat(xx):
        h = mm(xx, W)
        e = mm(h, a1) + mm(h, a2.T).T                  # e[i, j] = f[i] + g[j]
        e = jnp.where(e > 0, e, 0.2 * e)
        score = adj * (lin[0] * e + lin[1]) + mask
        return jax.nn.softmax(score, axis=0)

    def gcn(xx):
        z = mm(gat(xx), xx)
        z = mm(z, raw["gcn_W"].T) + raw["gcn_b"]
        z = jnp.where(z > 0, z, 0.01 * z)
        return z * (1.0 - alpha) + xx * alpha

    conv2 = gcn(gcn(x))

    p = raw["lstm_p"]

    def lstm_layer(seq, l):                            # seq: (N, s), scalar features
        h = jnp.zeros((N,), jnp.float32)
        c = jnp.zeros((N,), jnp.float32)
        outs = []
        for t in range(s):
            xt = seq[:, t]
            i = jax.nn.sigmoid(p[l, 0] * xt + p[l, 8] + p[l, 4] * h + p[l, 12])
            f = jax.nn.sigmoid(p[l, 1] * xt + p[l, 9] + p[l, 5] * h + p[l, 13])
            g = jnp.tanh(p[l, 2] * xt + p[l, 10] + p[l, 6] * h + p[l, 14])
            o = jax.nn.sigmoid(p[l, 3] * xt + p[l, 11] + p[l, 7] * h + p[l, 15])
            c = f * c + i * g
            h = o * jnp.tanh(c)
            outs.append(h)
        return jnp.stack(outs, axis=1)                 # (N, s)

    y = lstm_layer(lstm_layer(conv2, 0), 1)
    z = jnp.maximum(mm(y, raw["mlp_w1"].T) + raw["mlp_b1"], 0.0)
    z = jnp.maximum(mm(z, raw["mlp_w2"].T) + raw["mlp_b2"], 0.0)
    out = mm(z, raw["mlp_w3"].T) + raw["mlp_b3"]
    return out.reshape(b, n)


if __name__ == "__main__":
    # Small config consistent with the module: seq_len = 16, MLP_hidden = 32, alpha = 0.5.
    b, n, s, H = 1, 8, 16, 32
    G = 4            # independent windows processed by one batched pallas_call
    alpha = 0.5
    N = b * n

    key = jax.random.PRNGKey(0)
    k_param, k_x = jax.random.split(key)
    raw = make_params(k_param, N, s, H)
    kp = prepare_kernel_params(raw, alpha)
    counts = jax.random.normal(k_x, (G, b, n, s), jnp.float32)

    # Batched call: one kernel launch, parallel grid over the G windows.
    fwd_batched = jax.jit(forward_windows)
    y_batched = fwd_batched(counts.reshape(G, N, s), kp)
    jax.block_until_ready(y_batched)
    assert y_batched.shape == (G, N)

    # Original single-window interface.
    fwd_single = jax.jit(proposed_model_forward)
    y_single = fwd_single(counts[0], kp)
    jax.block_until_ready(y_single)
    assert y_single.shape == (b, n)

    max_err = 0.0
    for gi in range(G):
        y_ref = reference_forward(counts[gi], raw, alpha)
        err = float(jnp.max(jnp.abs(y_batched[gi].reshape(b, n) - y_ref)))
        max_err = max(max_err, err)
    max_err = max(max_err,
                  float(jnp.max(jnp.abs(y_single
                                        - reference_forward(counts[0], raw, alpha)))))
    assert max_err < 2e-2, f"kernel/reference mismatch: max |diff| = {max_err}"
    print("KERNEL_OK")
</pallas_src>

<mosaic_0001>
module attributes {stable_mosaic.version = 11 : i64} {
  func.func @fused_forward_kernel(%arg0: i32, %arg1: memref<2xf32, #tpu.memory_space<smem>>, %arg2: memref<2xf32, #tpu.memory_space<smem>>, %arg3: memref<2x16xf32, #tpu.memory_space<smem>>, %arg4: memref<1x8x16xf32, #tpu.memory_space<vmem>>, %arg5: memref<16x1xf32, #tpu.memory_space<vmem>>, %arg6: memref<1x16xf32, #tpu.memory_space<vmem>>, %arg7: memref<16x16xf32, #tpu.memory_space<vmem>>, %arg8: memref<8x8xf32, #tpu.memory_space<vmem>>, %arg9: memref<16x16xf32, #tpu.memory_space<vmem>>, %arg10: memref<1x16xf32, #tpu.memory_space<vmem>>, %arg11: memref<32x16xf32, #tpu.memory_space<vmem>>, %arg12: memref<32x1xf32, #tpu.memory_space<vmem>>, %arg13: memref<16x32xf32, #tpu.memory_space<vmem>>, %arg14: memref<16x1xf32, #tpu.memory_space<vmem>>, %arg15: memref<1x16xf32, #tpu.memory_space<vmem>>, %arg16: memref<1x1x8xf32, #tpu.memory_space<vmem>>) attributes {dimension_semantics = [#tpu.dimension_semantics<parallel>], iteration_bounds = array<i64: 4>, scalar_prefetch = 0 : i64, scratch_operands = 0 : i64, tpu.core_type = #tpu.core_type<tc>, window_params = [{transform_indices = @transform_0, window_bounds = array<i64: 2>}, {transform_indices = @transform_1, window_bounds = array<i64: 2>}, {transform_indices = @transform_2, window_bounds = array<i64: 2, 16>}, {transform_indices = @transform_3, window_bounds = array<i64: 1, 8, 16>}, {pipeline_mode = #tpu.pipeline_mode<synchronous>, transform_indices = @transform_4, window_bounds = array<i64: 16, 1>}, {pipeline_mode = #tpu.pipeline_mode<synchronous>, transform_indices = @transform_5, window_bounds = array<i64: 1, 16>}, {pipeline_mode = #tpu.pipeline_mode<synchronous>, transform_indices = @transform_6, window_bounds = array<i64: 16, 16>}, {pipeline_mode = #tpu.pipeline_mode<synchronous>, transform_indices = @transform_7, window_bounds = array<i64: 8, 8>}, {pipeline_mode = #tpu.pipeline_mode<synchronous>, transform_indices = @transform_8, window_bounds = array<i64: 16, 16>}, {pipeline_mode = #tpu.pipeline_mode<synchronous>, transform_indices = @transform_9, window_bounds = array<i64: 1, 16>}, {pipeline_mode = #tpu.pipeline_mode<synchronous>, transform_indices = @transform_10, window_bounds = array<i64: 32, 16>}, {pipeline_mode = #tpu.pipeline_mode<synchronous>, transform_indices = @transform_11, window_bounds = array<i64: 32, 1>}, {pipeline_mode = #tpu.pipeline_mode<synchronous>, transform_indices = @transform_12, window_bounds = array<i64: 16, 32>}, {pipeline_mode = #tpu.pipeline_mode<synchronous>, transform_indices = @transform_13, window_bounds = array<i64: 16, 1>}, {pipeline_mode = #tpu.pipeline_mode<synchronous>, transform_indices = @transform_14, window_bounds = array<i64: 1, 16>}, {transform_indices = @transform_15, window_bounds = array<i64: 1, 1, 8>}]} {
    %c0 = arith.constant 0 : index
    %0 = memref.load %arg1[%c0] : memref<2xf32, #tpu.memory_space<smem>>
    %c1 = arith.constant 1 : index
    %1 = memref.load %arg1[%c1] : memref<2xf32, #tpu.memory_space<smem>>
    %c0_0 = arith.constant 0 : index
    %2 = memref.load %arg2[%c0_0] : memref<2xf32, #tpu.memory_space<smem>>
    %c1_1 = arith.constant 1 : index
    %3 = memref.load %arg2[%c1_1] : memref<2xf32, #tpu.memory_space<smem>>
    %c0_2 = arith.constant 0 : index
    %c0_3 = arith.constant 0 : index
    %4 = vector.load %arg5[%c0_2, %c0_3] : memref<16x1xf32, #tpu.memory_space<vmem>>, vector<16x1xf32>
    %c0_4 = arith.constant 0 : index
    %c0_5 = arith.constant 0 : index
    %5 = vector.load %arg6[%c0_4, %c0_5] : memref<1x16xf32, #tpu.memory_space<vmem>>, vector<1x16xf32>
    %c0_6 = arith.constant 0 : index
    %c0_7 = arith.constant 0 : index
    %6 = vector.load %arg8[%c0_6, %c0_7] : memref<8x8xf32, #tpu.memory_space<vmem>>, vector<8x8xf32>
    %c0_8 = arith.constant 0 : index
    %c0_9 = arith.constant 0 : index
    %7 = vector.load %arg9[%c0_8, %c0_9] : memref<16x16xf32, #tpu.memory_space<vmem>>, vector<16x16xf32>
    %c0_10 = arith.constant 0 : index
    %c0_11 = arith.constant 0 : index
    %8 = vector.load %arg10[%c0_10, %c0_11] : memref<1x16xf32, #tpu.memory_space<vmem>>, vector<1x16xf32>
    %c0_12 = arith.constant 0 : index
    %c0_13 = arith.constant 0 : index
    %c0_14 = arith.constant 0 : index
    %9 = vector.load %arg4[%c0_12, %c0_13, %c0_14] : memref<1x8x16xf32, #tpu.memory_space<vmem>>, vector<1x8x16xf32>
    %10 = vector.shape_cast %9 : vector<1x8x16xf32> to vector<8x16xf32>
    %cst = arith.constant dense<0.000000e+00> : vector<8x1xf32>
    %11 = tpu.matmul %10, %4, %cst {dimension_numbers = #tpu.dot_dimension_numbers<[1], [0], [0], [1], [0, 0, 1, 1], [], []>} : vector<8x16xf32>, vector<16x1xf32>, vector<8x1xf32> -> vector<8x1xf32>
    %cst_15 = arith.constant dense<0.000000e+00> : vector<1x8xf32>
    %12 = tpu.matmul %5, %10, %cst_15 {dimension_numbers = #tpu.dot_dimension_numbers<[1], [1], [0], [0], [0, 0, 1, 0], [], []>} : vector<1x16xf32>, vector<8x16xf32>, vector<1x8xf32> -> vector<1x8xf32>
    %13 = vector.broadcast %11 : vector<8x1xf32> to vector<8x8xf32>
    %14 = vector.broadcast %12 : vector<1x8xf32> to vector<8x8xf32>
    %15 = arith.addf %13, %14 : vector<8x8xf32>
    %cst_16 = arith.constant 2.000000e-01 : f32
    %16 = vector.broadcast %cst_16 : f32 to vector<8x8xf32>
    %17 = arith.mulf %16, %15 : vector<8x8xf32>
    %18 = arith.maximumf %15, %17 : vector<8x8xf32>
    %cst_17 = arith.constant 0.000000e+00 : f32
    %19 = vector.broadcast %cst_17 : f32 to vector<8x8xf32>
    %20 = arith.cmpf ogt, %6, %19 : vector<8x8xf32>
    %21 = vector.broadcast %2 : f32 to vector<8x8xf32>
    %22 = arith.mulf %21, %18 : vector<8x8xf32>
    %23 = vector.broadcast %3 : f32 to vector<8x8xf32>
    %24 = arith.addf %22, %23 : vector<8x8xf32>
    %cst_18 = arith.constant -1.000000e+09 : f32
    %25 = vector.broadcast %cst_18 : f32 to vector<8x8xf32>
    %26 = arith.select %20, %24, %25 : vector<8x8xi1>, vector<8x8xf32>
    %cst_19 = arith.constant dense<0xFF800000> : vector<8xf32>
    %27 = vector.multi_reduction <maximumf>, %26, %cst_19 [0] : vector<8x8xf32> to vector<8xf32>
    %28 = vector.shape_cast %27 : vector<8xf32> to vector<1x8xf32>
    %29 = vector.broadcast %28 : vector<1x8xf32> to vector<8x8xf32>
    %30 = arith.subf %26, %29 : vector<8x8xf32>
    %31 = math.exp %30 : vector<8x8xf32>
    %cst_20 = arith.constant dense<0.000000e+00> : vector<8xf32>
    %32 = vector.multi_reduction <add>, %31, %cst_20 [0] : vector<8x8xf32> to vector<8xf32>
    %33 = vector.shape_cast %32 : vector<8xf32> to vector<1x8xf32>
    %34 = tpu.reciprocal %33 {approx = true} : vector<1x8xf32> -> vector<1x8xf32>
    %35 = vector.broadcast %34 : vector<1x8xf32> to vector<8x8xf32>
    %36 = arith.mulf %31, %35 : vector<8x8xf32>
    %cst_21 = arith.constant dense<0.000000e+00> : vector<8x16xf32>
    %37 = tpu.matmul %36, %10, %cst_21 {dimension_numbers = #tpu.dot_dimension_numbers<[1], [0], [0], [1], [0, 0, 1, 1], [], []>} : vector<8x8xf32>, vector<8x16xf32>, vector<8x16xf32> -> vector<8x16xf32>
    %cst_22 = arith.constant dense<0.000000e+00> : vector<8x16xf32>
    %38 = tpu.matmul %37, %7, %cst_22 {dimension_numbers = #tpu.dot_dimension_numbers<[1], [0], [0], [1], [0, 0, 1, 1], [], []>} : vector<8x16xf32>, vector<16x16xf32>, vector<8x16xf32> -> vector<8x16xf32>
    %39 = vector.broadcast %8 : vector<1x16xf32> to vector<8x16xf32>
    %40 = arith.addf %38, %39 : vector<8x16xf32>
    %cst_23 = arith.constant 0.00999999977 : f32
    %41 = vector.broadcast %cst_23 : f32 to vector<8x16xf32>
    %42 = arith.mulf %41, %40 : vector<8x16xf32>
    %43 = arith.maximumf %40, %42 : vector<8x16xf32>
    %cst_24 = arith.constant 1.000000e+00 : f32
    %44 = arith.subf %cst_24, %0 : f32
    %45 = vector.broadcast %44 : f32 to vector<8x16xf32>
    %46 = arith.mulf %43, %45 : vector<8x16xf32>
    %47 = vector.broadcast %0 : f32 to vector<8x16xf32>
    %48 = arith.mulf %10, %47 : vector<8x16xf32>
    %49 = arith.addf %46, %48 : vector<8x16xf32>
    %cst_25 = arith.constant dense<0.000000e+00> : vector<8x1xf32>
    %50 = tpu.matmul %49, %4, %cst_25 {dimension_numbers = #tpu.dot_dimension_numbers<[1], [0], [0], [1], [0, 0, 1, 1], [], []>} : vector<8x16xf32>, vector<16x1xf32>, vector<8x1xf32> -> vector<8x1xf32>
    %cst_26 = arith.constant dense<0.000000e+00> : vector<1x8xf32>
    %51 = tpu.matmul %5, %49, %cst_26 {dimension_numbers = #tpu.dot_dimension_numbers<[1], [1], [0], [0], [0, 0, 1, 0], [], []>} : vector<1x16xf32>, vector<8x16xf32>, vector<1x8xf32> -> vector<1x8xf32>
    %52 = vector.broadcast %50 : vector<8x1xf32> to vector<8x8xf32>
    %53 = vector.broadcast %51 : vector<1x8xf32> to vector<8x8xf32>
    %54 = arith.addf %52, %53 : vector<8x8xf32>
    %cst_27 = arith.constant 2.000000e-01 : f32
    %55 = vector.broadcast %cst_27 : f32 to vector<8x8xf32>
    %56 = arith.mulf %55, %54 : vector<8x8xf32>
    %57 = arith.maximumf %54, %56 : vector<8x8xf32>
    %cst_28 = arith.constant 0.000000e+00 : f32
    %58 = vector.broadcast %cst_28 : f32 to vector<8x8xf32>
    %59 = arith.cmpf ogt, %6, %58 : vector<8x8xf32>
    %60 = vector.broadcast %2 : f32 to vector<8x8xf32>
    %61 = arith.mulf %60, %57 : vector<8x8xf32>
    %62 = vector.broadcast %3 : f32 to vector<8x8xf32>
    %63 = arith.addf %61, %62 : vector<8x8xf32>
    %cst_29 = arith.constant -1.000000e+09 : f32
    %64 = vector.broadcast %cst_29 : f32 to vector<8x8xf32>
    %65 = arith.select %59, %63, %64 : vector<8x8xi1>, vector<8x8xf32>
    %cst_30 = arith.constant dense<0xFF800000> : vector<8xf32>
    %66 = vector.multi_reduction <maximumf>, %65, %cst_30 [0] : vector<8x8xf32> to vector<8xf32>
    %67 = vector.shape_cast %66 : vector<8xf32> to vector<1x8xf32>
    %68 = vector.broadcast %67 : vector<1x8xf32> to vector<8x8xf32>
    %69 = arith.subf %65, %68 : vector<8x8xf32>
    %70 = math.exp %69 : vector<8x8xf32>
    %cst_31 = arith.constant dense<0.000000e+00> : vector<8xf32>
    %71 = vector.multi_reduction <add>, %70, %cst_31 [0] : vector<8x8xf32> to vector<8xf32>
    %72 = vector.shape_cast %71 : vector<8xf32> to vector<1x8xf32>
    %73 = tpu.reciprocal %72 {approx = true} : vector<1x8xf32> -> vector<1x8xf32>
    %74 = vector.broadcast %73 : vector<1x8xf32> to vector<8x8xf32>
    %75 = arith.mulf %70, %74 : vector<8x8xf32>
    %cst_32 = arith.constant dense<0.000000e+00> : vector<8x16xf32>
    %76 = tpu.matmul %75, %49, %cst_32 {dimension_numbers = #tpu.dot_dimension_numbers<[1], [0], [0], [1], [0, 0, 1, 1], [], []>} : vector<8x8xf32>, vector<8x16xf32>, vector<8x16xf32> -> vector<8x16xf32>
    %cst_33 = arith.constant dense<0.000000e+00> : vector<8x16xf32>
    %77 = tpu.matmul %76, %7, %cst_33 {dimension_numbers = #tpu.dot_dimension_numbers<[1], [0], [0], [1], [0, 0, 1, 1], [], []>} : vector<8x16xf32>, vector<16x16xf32>, vector<8x16xf32> -> vector<8x16xf32>
    %78 = vector.broadcast %8 : vector<1x16xf32> to vector<8x16xf32>
    %79 = arith.addf %77, %78 : vector<8x16xf32>
    %cst_34 = arith.constant 0.00999999977 : f32
    %80 = vector.broadcast %cst_34 : f32 to vector<8x16xf32>
    %81 = arith.mulf %80, %79 : vector<8x16xf32>
    %82 = arith.maximumf %79, %81 : vector<8x16xf32>
    %cst_35 = arith.constant 1.000000e+00 : f32
    %83 = arith.subf %cst_35, %0 : f32
    %84 = vector.broadcast %83 : f32 to vector<8x16xf32>
    %85 = arith.mulf %82, %84 : vector<8x16xf32>
    %86 = vector.broadcast %0 : f32 to vector<8x16xf32>
    %87 = arith.mulf %49, %86 : vector<8x16xf32>
    %88 = arith.addf %85, %87 : vector<8x16xf32>
    %c0_36 = arith.constant 0 : index
    %c0_37 = arith.constant 0 : index
    %89 = vector.load %arg7[%c0_36, %c0_37] : memref<16x16xf32, #tpu.memory_space<vmem>>, vector<16x16xf32>
    %cst_38 = arith.constant dense<0.000000e+00> : vector<16x8xf32>
    %90 = tpu.matmul %89, %88, %cst_38 {dimension_numbers = #tpu.dot_dimension_numbers<[1], [1], [0], [0], [0, 0, 1, 0], [], []>, precision = #tpu.contract_precision<fp32>} : vector<16x16xf32>, vector<8x16xf32>, vector<16x8xf32> -> vector<16x8xf32>
    %c0_39 = arith.constant 0 : index
    %c0_40 = arith.constant 0 : index
    %91 = memref.load %arg3[%c0_39, %c0_40] : memref<2x16xf32, #tpu.memory_space<smem>>
    %c0_41 = arith.constant 0 : index
    %c1_42 = arith.constant 1 : index
    %92 = memref.load %arg3[%c0_41, %c1_42] : memref<2x16xf32, #tpu.memory_space<smem>>
    %c0_43 = arith.constant 0 : index
    %c2 = arith.constant 2 : index
    %93 = memref.load %arg3[%c0_43, %c2] : memref<2x16xf32, #tpu.memory_space<smem>>
    %c0_44 = arith.constant 0 : index
    %c3 = arith.constant 3 : index
    %94 = memref.load %arg3[%c0_44, %c3] : memref<2x16xf32, #tpu.memory_space<smem>>
    %c0_45 = arith.constant 0 : index
    %c4 = arith.constant 4 : index
    %95 = memref.load %arg3[%c0_45, %c4] : memref<2x16xf32, #tpu.memory_space<smem>>
    %c0_46 = arith.constant 0 : index
    %c5 = arith.constant 5 : index
    %96 = memref.load %arg3[%c0_46, %c5] : memref<2x16xf32, #tpu.memory_space<smem>>
    %c0_47 = arith.constant 0 : index
    %c6 = arith.constant 6 : index
    %97 = memref.load %arg3[%c0_47, %c6] : memref<2x16xf32, #tpu.memory_space<smem>>
    %c0_48 = arith.constant 0 : index
    %c7 = arith.constant 7 : index
    %98 = memref.load %arg3[%c0_48, %c7] : memref<2x16xf32, #tpu.memory_space<smem>>
    %c0_49 = arith.constant 0 : index
    %c8 = arith.constant 8 : index
    %99 = memref.load %arg3[%c0_49, %c8] : memref<2x16xf32, #tpu.memory_space<smem>>
    %c0_50 = arith.constant 0 : index
    %c12 = arith.constant 12 : index
    %100 = memref.load %arg3[%c0_50, %c12] : memref<2x16xf32, #tpu.memory_space<smem>>
    %101 = arith.addf %99, %100 : f32
    %c0_51 = arith.constant 0 : index
    %c9 = arith.constant 9 : index
    %102 = memref.load %arg3[%c0_51, %c9] : memref<2x16xf32, #tpu.memory_space<smem>>
    %c0_52 = arith.constant 0 : index
    %c13 = arith.constant 13 : index
    %103 = memref.load %arg3[%c0_52, %c13] : memref<2x16xf32, #tpu.memory_space<smem>>
    %104 = arith.addf %102, %103 : f32
    %c0_53 = arith.constant 0 : index
    %c10 = arith.constant 10 : index
    %105 = memref.load %arg3[%c0_53, %c10] : memref<2x16xf32, #tpu.memory_space<smem>>
    %c0_54 = arith.constant 0 : index
    %c14 = arith.constant 14 : index
    %106 = memref.load %arg3[%c0_54, %c14] : memref<2x16xf32, #tpu.memory_space<smem>>
    %107 = arith.addf %105, %106 : f32
    %c0_55 = arith.constant 0 : index
    %c11 = arith.constant 11 : index
    %108 = memref.load %arg3[%c0_55, %c11] : memref<2x16xf32, #tpu.memory_space<smem>>
    %c0_56 = arith.constant 0 : index
    %c15 = arith.constant 15 : index
    %109 = memref.load %arg3[%c0_56, %c15] : memref<2x16xf32, #tpu.memory_space<smem>>
    %110 = arith.addf %108, %109 : f32
    %c1_57 = arith.constant 1 : index
    %c0_58 = arith.constant 0 : index
    %111 = memref.load %arg3[%c1_57, %c0_58] : memref<2x16xf32, #tpu.memory_space<smem>>
    %c1_59 = arith.constant 1 : index
    %c1_60 = arith.constant 1 : index
    %112 = memref.load %arg3[%c1_59, %c1_60] : memref<2x16xf32, #tpu.memory_space<smem>>
    %c1_61 = arith.constant 1 : index
    %c2_62 = arith.constant 2 : index
    %113 = memref.load %arg3[%c1_61, %c2_62] : memref<2x16xf32, #tpu.memory_space<smem>>
    %c1_63 = arith.constant 1 : index
    %c3_64 = arith.constant 3 : index
    %114 = memref.load %arg3[%c1_63, %c3_64] : memref<2x16xf32, #tpu.memory_space<smem>>
    %c1_65 = arith.constant 1 : index
    %c4_66 = arith.constant 4 : index
    %115 = memref.load %arg3[%c1_65, %c4_66] : memref<2x16xf32, #tpu.memory_space<smem>>
    %c1_67 = arith.constant 1 : index
    %c5_68 = arith.constant 5 : index
    %116 = memref.load %arg3[%c1_67, %c5_68] : memref<2x16xf32, #tpu.memory_space<smem>>
    %c1_69 = arith.constant 1 : index
    %c6_70 = arith.constant 6 : index
    %117 = memref.load %arg3[%c1_69, %c6_70] : memref<2x16xf32, #tpu.memory_space<smem>>
    %c1_71 = arith.constant 1 : index
    %c7_72 = arith.constant 7 : index
    %118 = memref.load %arg3[%c1_71, %c7_72] : memref<2x16xf32, #tpu.memory_space<smem>>
    %c1_73 = arith.constant 1 : index
    %c8_74 = arith.constant 8 : index
    %119 = memref.load %arg3[%c1_73, %c8_74] : memref<2x16xf32, #tpu.memory_space<smem>>
    %c1_75 = arith.constant 1 : index
    %c12_76 = arith.constant 12 : index
    %120 = memref.load %arg3[%c1_75, %c12_76] : memref<2x16xf32, #tpu.memory_space<smem>>
    %121 = arith.addf %119, %120 : f32
    %c1_77 = arith.constant 1 : index
    %c9_78 = arith.constant 9 : index
    %122 = memref.load %arg3[%c1_77, %c9_78] : memref<2x16xf32, #tpu.memory_space<smem>>
    %c1_79 = arith.constant 1 : index
    %c13_80 = arith.constant 13 : index
    %123 = memref.load %arg3[%c1_79, %c13_80] : memref<2x16xf32, #tpu.memory_space<smem>>
    %124 = arith.addf %122, %123 : f32
    %c1_81 = arith.constant 1 : index
    %c10_82 = arith.constant 10 : index
    %125 = memref.load %arg3[%c1_81, %c10_82] : memref<2x16xf32, #tpu.memory_space<smem>>
    %c1_83 = arith.constant 1 : index
    %c14_84 = arith.constant 14 : index
    %126 = memref.load %arg3[%c1_83, %c14_84] : memref<2x16xf32, #tpu.memory_space<smem>>
    %127 = arith.addf %125, %126 : f32
    %c1_85 = arith.constant 1 : index
    %c11_86 = arith.constant 11 : index
    %128 = memref.load %arg3[%c1_85, %c11_86] : memref<2x16xf32, #tpu.memory_space<smem>>
    %c1_87 = arith.constant 1 : index
    %c15_88 = arith.constant 15 : index
    %129 = memref.load %arg3[%c1_87, %c15_88] : memref<2x16xf32, #tpu.memory_space<smem>>
    %130 = arith.addf %128, %129 : f32
    %131 = vector.broadcast %91 : f32 to vector<16x8xf32>
    %132 = arith.mulf %131, %90 : vector<16x8xf32>
    %133 = vector.broadcast %101 : f32 to vector<16x8xf32>
    %134 = arith.addf %132, %133 : vector<16x8xf32>
    %135 = vector.broadcast %92 : f32 to vector<16x8xf32>
    %136 = arith.mulf %135, %90 : vector<16x8xf32>
    %137 = vector.broadcast %104 : f32 to vector<16x8xf32>
    %138 = arith.addf %136, %137 : vector<16x8xf32>
    %139 = vector.broadcast %93 : f32 to vector<16x8xf32>
    %140 = arith.mulf %139, %90 : vector<16x8xf32>
    %141 = vector.broadcast %107 : f32 to vector<16x8xf32>
    %142 = arith.addf %140, %141 : vector<16x8xf32>
    %143 = vector.broadcast %94 : f32 to vector<16x8xf32>
    %144 = arith.mulf %143, %90 : vector<16x8xf32>
    %145 = vector.broadcast %110 : f32 to vector<16x8xf32>
    %146 = arith.addf %144, %145 : vector<16x8xf32>
    %cst_89 = arith.constant 0.000000e+00 : f32
    %147 = vector.broadcast %cst_89 : f32 to vector<32x8xf32>
    %cst_90 = arith.constant 0.000000e+00 : f32
    %148 = vector.broadcast %cst_90 : f32 to vector<1x8xf32>
    %cst_91 = arith.constant 0.000000e+00 : f32
    %149 = vector.broadcast %cst_91 : f32 to vector<1x8xf32>
    %cst_92 = arith.constant 0.000000e+00 : f32
    %150 = vector.broadcast %cst_92 : f32 to vector<1x8xf32>
    %cst_93 = arith.constant 0.000000e+00 : f32
    %151 = vector.broadcast %cst_93 : f32 to vector<1x8xf32>
    %152 = vector.extract_strided_slice %134 {offsets = [0, 0], sizes = [1, 8], strides = [1, 1]} : vector<16x8xf32> to vector<1x8xf32>
    %153 = vector.broadcast %95 : f32 to vector<1x8xf32>
    %154 = arith.mulf %153, %148 : vector<1x8xf32>
    %155 = arith.addf %152, %154 : vector<1x8xf32>
    %156 = arith.negf %155 : vector<1x8xf32>
    %157 = math.exp %156 : vector<1x8xf32>
    %cst_94 = arith.constant 1.000000e+00 : f32
    %158 = vector.broadcast %cst_94 : f32 to vector<1x8xf32>
    %159 = arith.addf %158, %157 : vector<1x8xf32>
    %160 = arith.divf %158, %159 : vector<1x8xf32>
    %161 = vector.extract_strided_slice %138 {offsets = [0, 0], sizes = [1, 8], strides = [1, 1]} : vector<16x8xf32> to vector<1x8xf32>
    %162 = vector.broadcast %96 : f32 to vector<1x8xf32>
    %163 = arith.mulf %162, %148 : vector<1x8xf32>
    %164 = arith.addf %161, %163 : vector<1x8xf32>
    %165 = arith.negf %164 : vector<1x8xf32>
    %166 = math.exp %165 : vector<1x8xf32>
    %cst_95 = arith.constant 1.000000e+00 : f32
    %167 = vector.broadcast %cst_95 : f32 to vector<1x8xf32>
    %168 = arith.addf %167, %166 : vector<1x8xf32>
    %169 = arith.divf %167, %168 : vector<1x8xf32>
    %170 = vector.extract_strided_slice %142 {offsets = [0, 0], sizes = [1, 8], strides = [1, 1]} : vector<16x8xf32> to vector<1x8xf32>
    %171 = vector.broadcast %97 : f32 to vector<1x8xf32>
    %172 = arith.mulf %171, %148 : vector<1x8xf32>
    %173 = arith.addf %170, %172 : vector<1x8xf32>
    %174 = math.tanh %173 : vector<1x8xf32>
    %175 = vector.extract_strided_slice %146 {offsets = [0, 0], sizes = [1, 8], strides = [1, 1]} : vector<16x8xf32> to vector<1x8xf32>
    %176 = vector.broadcast %98 : f32 to vector<1x8xf32>
    %177 = arith.mulf %176, %148 : vector<1x8xf32>
    %178 = arith.addf %175, %177 : vector<1x8xf32>
    %179 = arith.negf %178 : vector<1x8xf32>
    %180 = math.exp %179 : vector<1x8xf32>
    %cst_96 = arith.constant 1.000000e+00 : f32
    %181 = vector.broadcast %cst_96 : f32 to vector<1x8xf32>
    %182 = arith.addf %181, %180 : vector<1x8xf32>
    %183 = arith.divf %181, %182 : vector<1x8xf32>
    %184 = arith.mulf %169, %149 : vector<1x8xf32>
    %185 = arith.mulf %160, %174 : vector<1x8xf32>
    %186 = arith.addf %184, %185 : vector<1x8xf32>
    %187 = math.tanh %186 : vector<1x8xf32>
    %188 = arith.mulf %183, %187 : vector<1x8xf32>
    %189 = vector.broadcast %111 : f32 to vector<1x8xf32>
    %190 = arith.mulf %189, %188 : vector<1x8xf32>
    %191 = vector.broadcast %121 : f32 to vector<1x8xf32>
    %192 = arith.addf %190, %191 : vector<1x8xf32>
    %193 = vector.broadcast %115 : f32 to vector<1x8xf32>
    %194 = arith.mulf %193, %150 : vector<1x8xf32>
    %195 = arith.addf %192, %194 : vector<1x8xf32>
    %196 = arith.negf %195 : vector<1x8xf32>
    %197 = math.exp %196 : vector<1x8xf32>
    %cst_97 = arith.constant 1.000000e+00 : f32
    %198 = vector.broadcast %cst_97 : f32 to vector<1x8xf32>
    %199 = arith.addf %198, %197 : vector<1x8xf32>
    %200 = arith.divf %198, %199 : vector<1x8xf32>
    %201 = vector.broadcast %112 : f32 to vector<1x8xf32>
    %202 = arith.mulf %201, %188 : vector<1x8xf32>
    %203 = vector.broadcast %124 : f32 to vector<1x8xf32>
    %204 = arith.addf %202, %203 : vector<1x8xf32>
    %205 = vector.broadcast %116 : f32 to vector<1x8xf32>
    %206 = arith.mulf %205, %150 : vector<1x8xf32>
    %207 = arith.addf %204, %206 : vector<1x8xf32>
    %208 = arith.negf %207 : vector<1x8xf32>
    %209 = math.exp %208 : vector<1x8xf32>
    %cst_98 = arith.constant 1.000000e+00 : f32
    %210 = vector.broadcast %cst_98 : f32 to vector<1x8xf32>
    %211 = arith.addf %210, %209 : vector<1x8xf32>
    %212 = arith.divf %210, %211 : vector<1x8xf32>
    %213 = vector.broadcast %113 : f32 to vector<1x8xf32>
    %214 = arith.mulf %213, %188 : vector<1x8xf32>
    %215 = vector.broadcast %127 : f32 to vector<1x8xf32>
    %216 = arith.addf %214, %215 : vector<1x8xf32>
    %217 = vector.broadcast %117 : f32 to vector<1x8xf32>
    %218 = arith.mulf %217, %150 : vector<1x8xf32>
    %219 = arith.addf %216, %218 : vector<1x8xf32>
    %220 = math.tanh %219 : vector<1x8xf32>
    %221 = vector.broadcast %114 : f32 to vector<1x8xf32>
    %222 = arith.mulf %221, %188 : vector<1x8xf32>
    %223 = vector.broadcast %130 : f32 to vector<1x8xf32>
    %224 = arith.addf %222, %223 : vector<1x8xf32>
    %225 = vector.broadcast %118 : f32 to vector<1x8xf32>
    %226 = arith.mulf %225, %150 : vector<1x8xf32>
    %227 = arith.addf %224, %226 : vector<1x8xf32>
    %228 = arith.negf %227 : vector<1x8xf32>
    %229 = math.exp %228 : vector<1x8xf32>
    %cst_99 = arith.constant 1.000000e+00 : f32
    %230 = vector.broadcast %cst_99 : f32 to vector<1x8xf32>
    %231 = arith.addf %230, %229 : vector<1x8xf32>
    %232 = arith.divf %230, %231 : vector<1x8xf32>
    %233 = arith.mulf %212, %151 : vector<1x8xf32>
    %234 = arith.mulf %200, %220 : vector<1x8xf32>
    %235 = arith.addf %233, %234 : vector<1x8xf32>
    %236 = math.tanh %235 : vector<1x8xf32>
    %237 = arith.mulf %232, %236 : vector<1x8xf32>
    %c0_100 = arith.constant 0 : index
    %c0_101 = arith.constant 0 : index
    %238 = vector.load %arg11[%c0_100, %c0_101] : memref<32x16xf32, #tpu.memory_space<vmem>>, vector<32x1xf32>
    %239 = vector.broadcast %238 : vector<32x1xf32> to vector<32x8xf32>
    %240 = vector.broadcast %237 : vector<1x8xf32> to vector<32x8xf32>
    %241 = arith.mulf %239, %240 : vector<32x8xf32>
    %242 = arith.addf %147, %241 : vector<32x8xf32>
    %243 = vector.extract_strided_slice %134 {offsets = [1, 0], sizes = [1, 8], strides = [1, 1]} : vector<16x8xf32> to vector<1x8xf32>
    %244 = vector.broadcast %95 : f32 to vector<1x8xf32>
    %245 = arith.mulf %244, %188 : vector<1x8xf32>
    %246 = arith.addf %243, %245 : vector<1x8xf32>
    %247 = arith.negf %246 : vector<1x8xf32>
    %248 = math.exp %247 : vector<1x8xf32>
    %cst_102 = arith.constant 1.000000e+00 : f32
    %249 = vector.broadcast %cst_102 : f32 to vector<1x8xf32>
    %250 = arith.addf %249, %248 : vector<1x8xf32>
    %251 = arith.divf %249, %250 : vector<1x8xf32>
    %252 = vector.extract_strided_slice %138 {offsets = [1, 0], sizes = [1, 8], strides = [1, 1]} : vector<16x8xf32> to vector<1x8xf32>
    %253 = vector.broadcast %96 : f32 to vector<1x8xf32>
    %254 = arith.mulf %253, %188 : vector<1x8xf32>
    %255 = arith.addf %252, %254 : vector<1x8xf32>
    %256 = arith.negf %255 : vector<1x8xf32>
    %257 = math.exp %256 : vector<1x8xf32>
    %cst_103 = arith.constant 1.000000e+00 : f32
    %258 = vector.broadcast %cst_103 : f32 to vector<1x8xf32>
    %259 = arith.addf %258, %257 : vector<1x8xf32>
    %260 = arith.divf %258, %259 : vector<1x8xf32>
    %261 = vector.extract_strided_slice %142 {offsets = [1, 0], sizes = [1, 8], strides = [1, 1]} : vector<16x8xf32> to vector<1x8xf32>
    %262 = vector.broadcast %97 : f32 to vector<1x8xf32>
    %263 = arith.mulf %262, %188 : vector<1x8xf32>
    %264 = arith.addf %261, %263 : vector<1x8xf32>
    %265 = math.tanh %264 : vector<1x8xf32>
    %266 = vector.extract_strided_slice %146 {offsets = [1, 0], sizes = [1, 8], strides = [1, 1]} : vector<16x8xf32> to vector<1x8xf32>
    %267 = vector.broadcast %98 : f32 to vector<1x8xf32>
    %268 = arith.mulf %267, %188 : vector<1x8xf32>
    %269 = arith.addf %266, %268 : vector<1x8xf32>
    %270 = arith.negf %269 : vector<1x8xf32>
    %271 = math.exp %270 : vector<1x8xf32>
    %cst_104 = arith.constant 1.000000e+00 : f32
    %272 = vector.broadcast %cst_104 : f32 to vector<1x8xf32>
    %273 = arith.addf %272, %271 : vector<1x8xf32>
    %274 = arith.divf %272, %273 : vector<1x8xf32>
    %275 = arith.mulf %260, %186 : vector<1x8xf32>
    %276 = arith.mulf %251, %265 : vector<1x8xf32>
    %277 = arith.addf %275, %276 : vector<1x8xf32>
    %278 = math.tanh %277 : vector<1x8xf32>
    %279 = arith.mulf %274, %278 : vector<1x8xf32>
    %280 = vector.broadcast %111 : f32 to vector<1x8xf32>
    %281 = arith.mulf %280, %279 : vector<1x8xf32>
    %282 = vector.broadcast %121 : f32 to vector<1x8xf32>
    %283 = arith.addf %281, %282 : vector<1x8xf32>
    %284 = vector.broadcast %115 : f32 to vector<1x8xf32>
    %285 = arith.mulf %284, %237 : vector<1x8xf32>
    %286 = arith.addf %283, %285 : vector<1x8xf32>
    %287 = arith.negf %286 : vector<1x8xf32>
    %288 = math.exp %287 : vector<1x8xf32>
    %cst_105 = arith.constant 1.000000e+00 : f32
    %289 = vector.broadcast %cst_105 : f32 to vector<1x8xf32>
    %290 = arith.addf %289, %288 : vector<1x8xf32>
    %291 = arith.divf %289, %290 : vector<1x8xf32>
    %292 = vector.broadcast %112 : f32 to vector<1x8xf32>
    %293 = arith.mulf %292, %279 : vector<1x8xf32>
    %294 = vector.broadcast %124 : f32 to vector<1x8xf32>
    %295 = arith.addf %293, %294 : vector<1x8xf32>
    %296 = vector.broadcast %116 : f32 to vector<1x8xf32>
    %297 = arith.mulf %296, %237 : vector<1x8xf32>
    %298 = arith.addf %295, %297 : vector<1x8xf32>
    %299 = arith.negf %298 : vector<1x8xf32>
    %300 = math.exp %299 : vector<1x8xf32>
    %cst_106 = arith.constant 1.000000e+00 : f32
    %301 = vector.broadcast %cst_106 : f32 to vector<1x8xf32>
    %302 = arith.addf %301, %300 : vector<1x8xf32>
    %303 = arith.divf %301, %302 : vector<1x8xf32>
    %304 = vector.broadcast %113 : f32 to vector<1x8xf32>
    %305 = arith.mulf %304, %279 : vector<1x8xf32>
    %306 = vector.broadcast %127 : f32 to vector<1x8xf32>
    %307 = arith.addf %305, %306 : vector<1x8xf32>
    %308 = vector.broadcast %117 : f32 to vector<1x8xf32>
    %309 = arith.mulf %308, %237 : vector<1x8xf32>
    %310 = arith.addf %307, %309 : vector<1x8xf32>
    %311 = math.tanh %310 : vector<1x8xf32>
    %312 = vector.broadcast %114 : f32 to vector<1x8xf32>
    %313 = arith.mulf %312, %279 : vector<1x8xf32>
    %314 = vector.broadcast %130 : f32 to vector<1x8xf32>
    %315 = arith.addf %313, %314 : vector<1x8xf32>
    %316 = vector.broadcast %118 : f32 to vector<1x8xf32>
    %317 = arith.mulf %316, %237 : vector<1x8xf32>
    %318 = arith.addf %315, %317 : vector<1x8xf32>
    %319 = arith.negf %318 : vector<1x8xf32>
    %320 = math.exp %319 : vector<1x8xf32>
    %cst_107 = arith.constant 1.000000e+00 : f32
    %321 = vector.broadcast %cst_107 : f32 to vector<1x8xf32>
    %322 = arith.addf %321, %320 : vector<1x8xf32>
    %323 = arith.divf %321, %322 : vector<1x8xf32>
    %324 = arith.mulf %303, %235 : vector<1x8xf32>
    %325 = arith.mulf %291, %311 : vector<1x8xf32>
    %326 = arith.addf %324, %325 : vector<1x8xf32>
    %327 = math.tanh %326 : vector<1x8xf32>
    %328 = arith.mulf %323, %327 : vector<1x8xf32>
    %c0_108 = arith.constant 0 : index
    %c1_109 = arith.constant 1 : index
    %329 = vector.load %arg11[%c0_108, %c1_109] : memref<32x16xf32, #tpu.memory_space<vmem>>, vector<32x1xf32>
    %330 = vector.broadcast %329 : vector<32x1xf32> to vector<32x8xf32>
    %331 = vector.broadcast %328 : vector<1x8xf32> to vector<32x8xf32>
    %332 = arith.mulf %330, %331 : vector<32x8xf32>
    %333 = arith.addf %242, %332 : vector<32x8xf32>
    %334 = vector.extract_strided_slice %134 {offsets = [2, 0], sizes = [1, 8], strides = [1, 1]} : vector<16x8xf32> to vector<1x8xf32>
    %335 = vector.broadcast %95 : f32 to vector<1x8xf32>
    %336 = arith.mulf %335, %279 : vector<1x8xf32>
    %337 = arith.addf %334, %336 : vector<1x8xf32>
    %338 = arith.negf %337 : vector<1x8xf32>
    %339 = math.exp %338 : vector<1x8xf32>
    %cst_110 = arith.constant 1.000000e+00 : f32
    %340 = vector.broadcast %cst_110 : f32 to vector<1x8xf32>
    %341 = arith.addf %340, %339 : vector<1x8xf32>
    %342 = arith.divf %340, %341 : vector<1x8xf32>
    %343 = vector.extract_strided_slice %138 {offsets = [2, 0], sizes = [1, 8], strides = [1, 1]} : vector<16x8xf32> to vector<1x8xf32>
    %344 = vector.broadcast %96 : f32 to vector<1x8xf32>
    %345 = arith.mulf %344, %279 : vector<1x8xf32>
    %346 = arith.addf %343, %345 : vector<1x8xf32>
    %347 = arith.negf %346 : vector<1x8xf32>
    %348 = math.exp %347 : vector<1x8xf32>
    %cst_111 = arith.constant 1.000000e+00 : f32
    %349 = vector.broadcast %cst_111 : f32 to vector<1x8xf32>
    %350 = arith.addf %349, %348 : vector<1x8xf32>
    %351 = arith.divf %349, %350 : vector<1x8xf32>
    %352 = vector.extract_strided_slice %142 {offsets = [2, 0], sizes = [1, 8], strides = [1, 1]} : vector<16x8xf32> to vector<1x8xf32>
    %353 = vector.broadcast %97 : f32 to vector<1x8xf32>
    %354 = arith.mulf %353, %279 : vector<1x8xf32>
    %355 = arith.addf %352, %354 : vector<1x8xf32>
    %356 = math.tanh %355 : vector<1x8xf32>
    %357 = vector.extract_strided_slice %146 {offsets = [2, 0], sizes = [1, 8], strides = [1, 1]} : vector<16x8xf32> to vector<1x8xf32>
    %358 = vector.broadcast %98 : f32 to vector<1x8xf32>
    %359 = arith.mulf %358, %279 : vector<1x8xf32>
    %360 = arith.addf %357, %359 : vector<1x8xf32>
    %361 = arith.negf %360 : vector<1x8xf32>
    %362 = math.exp %361 : vector<1x8xf32>
    %cst_112 = arith.constant 1.000000e+00 : f32
    %363 = vector.broadcast %cst_112 : f32 to vector<1x8xf32>
    %364 = arith.addf %363, %362 : vector<1x8xf32>
    %365 = arith.divf %363, %364 : vector<1x8xf32>
    %366 = arith.mulf %351, %277 : vector<1x8xf32>
    %367 = arith.mulf %342, %356 : vector<1x8xf32>
    %368 = arith.addf %366, %367 : vector<1x8xf32>
    %369 = math.tanh %368 : vector<1x8xf32>
    %370 = arith.mulf %365, %369 : vector<1x8xf32>
    %371 = vector.broadcast %111 : f32 to vector<1x8xf32>
    %372 = arith.mulf %371, %370 : vector<1x8xf32>
    %373 = vector.broadcast %121 : f32 to vector<1x8xf32>
    %374 = arith.addf %372, %373 : vector<1x8xf32>
    %375 = vector.broadcast %115 : f32 to vector<1x8xf32>
    %376 = arith.mulf %375, %328 : vector<1x8xf32>
    %377 = arith.addf %374, %376 : vector<1x8xf32>
    %378 = arith.negf %377 : vector<1x8xf32>
    %379 = math.exp %378 : vector<1x8xf32>
    %cst_113 = arith.constant 1.000000e+00 : f32
    %380 = vector.broadcast %cst_113 : f32 to vector<1x8xf32>
    %381 = arith.addf %380, %379 : vector<1x8xf32>
    %382 = arith.divf %380, %381 : vector<1x8xf32>
    %383 = vector.broadcast %112 : f32 to vector<1x8xf32>
    %384 = arith.mulf %383, %370 : vector<1x8xf32>
    %385 = vector.broadcast %124 : f32 to vector<1x8xf32>
    %386 = arith.addf %384, %385 : vector<1x8xf32>
    %387 = vector.broadcast %116 : f32 to vector<1x8xf32>
    %388 = arith.mulf %387, %328 : vector<1x8xf32>
    %389 = arith.addf %386, %388 : vector<1x8xf32>
    %390 = arith.negf %389 : vector<1x8xf32>
    %391 = math.exp %390 : vector<1x8xf32>
    %cst_114 = arith.constant 1.000000e+00 : f32
    %392 = vector.broadcast %cst_114 : f32 to vector<1x8xf32>
    %393 = arith.addf %392, %391 : vector<1x8xf32>
    %394 = arith.divf %392, %393 : vector<1x8xf32>
    %395 = vector.broadcast %113 : f32 to vector<1x8xf32>
    %396 = arith.mulf %395, %370 : vector<1x8xf32>
    %397 = vector.broadcast %127 : f32 to vector<1x8xf32>
    %398 = arith.addf %396, %397 : vector<1x8xf32>
    %399 = vector.broadcast %117 : f32 to vector<1x8xf32>
    %400 = arith.mulf %399, %328 : vector<1x8xf32>
    %401 = arith.addf %398, %400 : vector<1x8xf32>
    %402 = math.tanh %401 : vector<1x8xf32>
    %403 = vector.broadcast %114 : f32 to vector<1x8xf32>
    %404 = arith.mulf %403, %370 : vector<1x8xf32>
    %405 = vector.broadcast %130 : f32 to vector<1x8xf32>
    %406 = arith.addf %404, %405 : vector<1x8xf32>
    %407 = vector.broadcast %118 : f32 to vector<1x8xf32>
    %408 = arith.mulf %407, %328 : vector<1x8xf32>
    %409 = arith.addf %406, %408 : vector<1x8xf32>
    %410 = arith.negf %409 : vector<1x8xf32>
    %411 = math.exp %410 : vector<1x8xf32>
    %cst_115 = arith.constant 1.000000e+00 : f32
    %412 = vector.broadcast %cst_115 : f32 to vector<1x8xf32>
    %413 = arith.addf %412, %411 : vector<1x8xf32>
    %414 = arith.divf %412, %413 : vector<1x8xf32>
    %415 = arith.mulf %394, %326 : vector<1x8xf32>
    %416 = arith.mulf %382, %402 : vector<1x8xf32>
    %417 = arith.addf %415, %416 : vector<1x8xf32>
    %418 = math.tanh %417 : vector<1x8xf32>
    %419 = arith.mulf %414, %418 : vector<1x8xf32>
    %c0_116 = arith.constant 0 : index
    %c2_117 = arith.constant 2 : index
    %420 = vector.load %arg11[%c0_116, %c2_117] : memref<32x16xf32, #tpu.memory_space<vmem>>, vector<32x1xf32>
    %421 = vector.broadcast %420 : vector<32x1xf32> to vector<32x8xf32>
    %422 = vector.broadcast %419 : vector<1x8xf32> to vector<32x8xf32>
    %423 = arith.mulf %421, %422 : vector<32x8xf32>
    %424 = arith.addf %333, %423 : vector<32x8xf32>
    %425 = vector.extract_strided_slice %134 {offsets = [3, 0], sizes = [1, 8], strides = [1, 1]} : vector<16x8xf32> to vector<1x8xf32>
    %426 = vector.broadcast %95 : f32 to vector<1x8xf32>
    %427 = arith.mulf %426, %370 : vector<1x8xf32>
    %428 = arith.addf %425, %427 : vector<1x8xf32>
    %429 = arith.negf %428 : vector<1x8xf32>
    %430 = math.exp %429 : vector<1x8xf32>
    %cst_118 = arith.constant 1.000000e+00 : f32
    %431 = vector.broadcast %cst_118 : f32 to vector<1x8xf32>
    %432 = arith.addf %431, %430 : vector<1x8xf32>
    %433 = arith.divf %431, %432 : vector<1x8xf32>
    %434 = vector.extract_strided_slice %138 {offsets = [3, 0], sizes = [1, 8], strides = [1, 1]} : vector<16x8xf32> to vector<1x8xf32>
    %435 = vector.broadcast %96 : f32 to vector<1x8xf32>
    %436 = arith.mulf %435, %370 : vector<1x8xf32>
    %437 = arith.addf %434, %436 : vector<1x8xf32>
    %438 = arith.negf %437 : vector<1x8xf32>
    %439 = math.exp %438 : vector<1x8xf32>
    %cst_119 = arith.constant 1.000000e+00 : f32
    %440 = vector.broadcast %cst_119 : f32 to vector<1x8xf32>
    %441 = arith.addf %440, %439 : vector<1x8xf32>
    %442 = arith.divf %440, %441 : vector<1x8xf32>
    %443 = vector.extract_strided_slice %142 {offsets = [3, 0], sizes = [1, 8], strides = [1, 1]} : vector<16x8xf32> to vector<1x8xf32>
    %444 = vector.broadcast %97 : f32 to vector<1x8xf32>
    %445 = arith.mulf %444, %370 : vector<1x8xf32>
    %446 = arith.addf %443, %445 : vector<1x8xf32>
    %447 = math.tanh %446 : vector<1x8xf32>
    %448 = vector.extract_strided_slice %146 {offsets = [3, 0], sizes = [1, 8], strides = [1, 1]} : vector<16x8xf32> to vector<1x8xf32>
    %449 = vector.broadcast %98 : f32 to vector<1x8xf32>
    %450 = arith.mulf %449, %370 : vector<1x8xf32>
    %451 = arith.addf %448, %450 : vector<1x8xf32>
    %452 = arith.negf %451 : vector<1x8xf32>
    %453 = math.exp %452 : vector<1x8xf32>
    %cst_120 = arith.constant 1.000000e+00 : f32
    %454 = vector.broadcast %cst_120 : f32 to vector<1x8xf32>
    %455 = arith.addf %454, %453 : vector<1x8xf32>
    %456 = arith.divf %454, %455 : vector<1x8xf32>
    %457 = arith.mulf %442, %368 : vector<1x8xf32>
    %458 = arith.mulf %433, %447 : vector<1x8xf32>
    %459 = arith.addf %457, %458 : vector<1x8xf32>
    %460 = math.tanh %459 : vector<1x8xf32>
    %461 = arith.mulf %456, %460 : vector<1x8xf32>
    %462 = vector.broadcast %111 : f32 to vector<1x8xf32>
    %463 = arith.mulf %462, %461 : vector<1x8xf32>
    %464 = vector.broadcast %121 : f32 to vector<1x8xf32>
    %465 = arith.addf %463, %464 : vector<1x8xf32>
    %466 = vector.broadcast %115 : f32 to vector<1x8xf32>
    %467 = arith.mulf %466, %419 : vector<1x8xf32>
    %468 = arith.addf %465, %467 : vector<1x8xf32>
    %469 = arith.negf %468 : vector<1x8xf32>
    %470 = math.exp %469 : vector<1x8xf32>
    %cst_121 = arith.constant 1.000000e+00 : f32
    %471 = vector.broadcast %cst_121 : f32 to vector<1x8xf32>
    %472 = arith.addf %471, %470 : vector<1x8xf32>
    %473 = arith.divf %471, %472 : vector<1x8xf32>
    %474 = vector.broadcast %112 : f32 to vector<1x8xf32>
    %475 = arith.mulf %474, %461 : vector<1x8xf32>
    %476 = vector.broadcast %124 : f32 to vector<1x8xf32>
    %477 = arith.addf %475, %476 : vector<1x8xf32>
    %478 = vector.broadcast %116 : f32 to vector<1x8xf32>
    %479 = arith.mulf %478, %419 : vector<1x8xf32>
    %480 = arith.addf %477, %479 : vector<1x8xf32>
    %481 = arith.negf %480 : vector<1x8xf32>
    %482 = math.exp %481 : vector<1x8xf32>
    %cst_122 = arith.constant 1.000000e+00 : f32
    %483 = vector.broadcast %cst_122 : f32 to vector<1x8xf32>
    %484 = arith.addf %483, %482 : vector<1x8xf32>
    %485 = arith.divf %483, %484 : vector<1x8xf32>
    %486 = vector.broadcast %113 : f32 to vector<1x8xf32>
    %487 = arith.mulf %486, %461 : vector<1x8xf32>
    %488 = vector.broadcast %127 : f32 to vector<1x8xf32>
    %489 = arith.addf %487, %488 : vector<1x8xf32>
    %490 = vector.broadcast %117 : f32 to vector<1x8xf32>
    %491 = arith.mulf %490, %419 : vector<1x8xf32>
    %492 = arith.addf %489, %491 : vector<1x8xf32>
    %493 = math.tanh %492 : vector<1x8xf32>
    %494 = vector.broadcast %114 : f32 to vector<1x8xf32>
    %495 = arith.mulf %494, %461 : vector<1x8xf32>
    %496 = vector.broadcast %130 : f32 to vector<1x8xf32>
    %497 = arith.addf %495, %496 : vector<1x8xf32>
    %498 = vector.broadcast %118 : f32 to vector<1x8xf32>
    %499 = arith.mulf %498, %419 : vector<1x8xf32>
    %500 = arith.addf %497, %499 : vector<1x8xf32>
    %501 = arith.negf %500 : vector<1x8xf32>
    %502 = math.exp %501 : vector<1x8xf32>
    %cst_123 = arith.constant 1.000000e+00 : f32
    %503 = vector.broadcast %cst_123 : f32 to vector<1x8xf32>
    %504 = arith.addf %503, %502 : vector<1x8xf32>
    %505 = arith.divf %503, %504 : vector<1x8xf32>
    %506 = arith.mulf %485, %417 : vector<1x8xf32>
    %507 = arith.mulf %473, %493 : vector<1x8xf32>
    %508 = arith.addf %506, %507 : vector<1x8xf32>
    %509 = math.tanh %508 : vector<1x8xf32>
    %510 = arith.mulf %505, %509 : vector<1x8xf32>
    %c0_124 = arith.constant 0 : index
    %c3_125 = arith.constant 3 : index
    %511 = vector.load %arg11[%c0_124, %c3_125] : memref<32x16xf32, #tpu.memory_space<vmem>>, vector<32x1xf32>
    %512 = vector.broadcast %511 : vector<32x1xf32> to vector<32x8xf32>
    %513 = vector.broadcast %510 : vector<1x8xf32> to vector<32x8xf32>
    %514 = arith.mulf %512, %513 : vector<32x8xf32>
    %515 = arith.addf %424, %514 : vector<32x8xf32>
    %516 = vector.extract_strided_slice %134 {offsets = [4, 0], sizes = [1, 8], strides = [1, 1]} : vector<16x8xf32> to vector<1x8xf32>
    %517 = vector.broadcast %95 : f32 to vector<1x8xf32>
    %518 = arith.mulf %517, %461 : vector<1x8xf32>
    %519 = arith.addf %516, %518 : vector<1x8xf32>
    %520 = arith.negf %519 : vector<1x8xf32>
    %521 = math.exp %520 : vector<1x8xf32>
    %cst_126 = arith.constant 1.000000e+00 : f32
    %522 = vector.broadcast %cst_126 : f32 to vector<1x8xf32>
    %523 = arith.addf %522, %521 : vector<1x8xf32>
    %524 = arith.divf %522, %523 : vector<1x8xf32>
    %525 = vector.extract_strided_slice %138 {offsets = [4, 0], sizes = [1, 8], strides = [1, 1]} : vector<16x8xf32> to vector<1x8xf32>
    %526 = vector.broadcast %96 : f32 to vector<1x8xf32>
    %527 = arith.mulf %526, %461 : vector<1x8xf32>
    %528 = arith.addf %525, %527 : vector<1x8xf32>
    %529 = arith.negf %528 : vector<1x8xf32>
    %530 = math.exp %529 : vector<1x8xf32>
    %cst_127 = arith.constant 1.000000e+00 : f32
    %531 = vector.broadcast %cst_127 : f32 to vector<1x8xf32>
    %532 = arith.addf %531, %530 : vector<1x8xf32>
    %533 = arith.divf %531, %532 : vector<1x8xf32>
    %534 = vector.extract_strided_slice %142 {offsets = [4, 0], sizes = [1, 8], strides = [1, 1]} : vector<16x8xf32> to vector<1x8xf32>
    %535 = vector.broadcast %97 : f32 to vector<1x8xf32>
    %536 = arith.mulf %535, %461 : vector<1x8xf32>
    %537 = arith.addf %534, %536 : vector<1x8xf32>
    %538 = math.tanh %537 : vector<1x8xf32>
    %539 = vector.extract_strided_slice %146 {offsets = [4, 0], sizes = [1, 8], strides = [1, 1]} : vector<16x8xf32> to vector<1x8xf32>
    %540 = vector.broadcast %98 : f32 to vector<1x8xf32>
    %541 = arith.mulf %540, %461 : vector<1x8xf32>
    %542 = arith.addf %539, %541 : vector<1x8xf32>
    %543 = arith.negf %542 : vector<1x8xf32>
    %544 = math.exp %543 : vector<1x8xf32>
    %cst_128 = arith.constant 1.000000e+00 : f32
    %545 = vector.broadcast %cst_128 : f32 to vector<1x8xf32>
    %546 = arith.addf %545, %544 : vector<1x8xf32>
    %547 = arith.divf %545, %546 : vector<1x8xf32>
    %548 = arith.mulf %533, %459 : vector<1x8xf32>
    %549 = arith.mulf %524, %538 : vector<1x8xf32>
    %550 = arith.addf %548, %549 : vector<1x8xf32>
    %551 = math.tanh %550 : vector<1x8xf32>
    %552 = arith.mulf %547, %551 : vector<1x8xf32>
    %553 = vector.broadcast %111 : f32 to vector<1x8xf32>
    %554 = arith.mulf %553, %552 : vector<1x8xf32>
    %555 = vector.broadcast %121 : f32 to vector<1x8xf32>
    %556 = arith.addf %554, %555 : vector<1x8xf32>
    %557 = vector.broadcast %115 : f32 to vector<1x8xf32>
    %558 = arith.mulf %557, %510 : vector<1x8xf32>
    %559 = arith.addf %556, %558 : vector<1x8xf32>
    %560 = arith.negf %559 : vector<1x8xf32>
    %561 = math.exp %560 : vector<1x8xf32>
    %cst_129 = arith.constant 1.000000e+00 : f32
    %562 = vector.broadcast %cst_129 : f32 to vector<1x8xf32>
    %563 = arith.addf %562, %561 : vector<1x8xf32>
    %564 = arith.divf %562, %563 : vector<1x8xf32>
    %565 = vector.broadcast %112 : f32 to vector<1x8xf32>
    %566 = arith.mulf %565, %552 : vector<1x8xf32>
    %567 = vector.broadcast %124 : f32 to vector<1x8xf32>
    %568 = arith.addf %566, %567 : vector<1x8xf32>
    %569 = vector.broadcast %116 : f32 to vector<1x8xf32>
    %570 = arith.mulf %569, %510 : vector<1x8xf32>
    %571 = arith.addf %568, %570 : vector<1x8xf32>
    %572 = arith.negf %571 : vector<1x8xf32>
    %573 = math.exp %572 : vector<1x8xf32>
    %cst_130 = arith.constant 1.000000e+00 : f32
    %574 = vector.broadcast %cst_130 : f32 to vector<1x8xf32>
    %575 = arith.addf %574, %573 : vector<1x8xf32>
    %576 = arith.divf %574, %575 : vector<1x8xf32>
    %577 = vector.broadcast %113 : f32 to vector<1x8xf32>
    %578 = arith.mulf %577, %552 : vector<1x8xf32>
    %579 = vector.broadcast %127 : f32 to vector<1x8xf32>
    %580 = arith.addf %578, %579 : vector<1x8xf32>
    %581 = vector.broadcast %117 : f32 to vector<1x8xf32>
    %582 = arith.mulf %581, %510 : vector<1x8xf32>
    %583 = arith.addf %580, %582 : vector<1x8xf32>
    %584 = math.tanh %583 : vector<1x8xf32>
    %585 = vector.broadcast %114 : f32 to vector<1x8xf32>
    %586 = arith.mulf %585, %552 : vector<1x8xf32>
    %587 = vector.broadcast %130 : f32 to vector<1x8xf32>
    %588 = arith.addf %586, %587 : vector<1x8xf32>
    %589 = vector.broadcast %118 : f32 to vector<1x8xf32>
    %590 = arith.mulf %589, %510 : vector<1x8xf32>
    %591 = arith.addf %588, %590 : vector<1x8xf32>
    %592 = arith.negf %591 : vector<1x8xf32>
    %593 = math.exp %592 : vector<1x8xf32>
    %cst_131 = arith.constant 1.000000e+00 : f32
    %594 = vector.broadcast %cst_131 : f32 to vector<1x8xf32>
    %595 = arith.addf %594, %593 : vector<1x8xf32>
    %596 = arith.divf %594, %595 : vector<1x8xf32>
    %597 = arith.mulf %576, %508 : vector<1x8xf32>
    %598 = arith.mulf %564, %584 : vector<1x8xf32>
    %599 = arith.addf %597, %598 : vector<1x8xf32>
    %600 = math.tanh %599 : vector<1x8xf32>
    %601 = arith.mulf %596, %600 : vector<1x8xf32>
    %c0_132 = arith.constant 0 : index
    %c4_133 = arith.constant 4 : index
    %602 = vector.load %arg11[%c0_132, %c4_133] : memref<32x16xf32, #tpu.memory_space<vmem>>, vector<32x1xf32>
    %603 = vector.broadcast %602 : vector<32x1xf32> to vector<32x8xf32>
    %604 = vector.broadcast %601 : vector<1x8xf32> to vector<32x8xf32>
    %605 = arith.mulf %603, %604 : vector<32x8xf32>
    %606 = arith.addf %515, %605 : vector<32x8xf32>
    %607 = vector.extract_strided_slice %134 {offsets = [5, 0], sizes = [1, 8], strides = [1, 1]} : vector<16x8xf32> to vector<1x8xf32>
    %608 = vector.broadcast %95 : f32 to vector<1x8xf32>
    %609 = arith.mulf %608, %552 : vector<1x8xf32>
    %610 = arith.addf %607, %609 : vector<1x8xf32>
    %611 = arith.negf %610 : vector<1x8xf32>
    %612 = math.exp %611 : vector<1x8xf32>
    %cst_134 = arith.constant 1.000000e+00 : f32
    %613 = vector.broadcast %cst_134 : f32 to vector<1x8xf32>
    %614 = arith.addf %613, %612 : vector<1x8xf32>
    %615 = arith.divf %613, %614 : vector<1x8xf32>
    %616 = vector.extract_strided_slice %138 {offsets = [5, 0], sizes = [1, 8], strides = [1, 1]} : vector<16x8xf32> to vector<1x8xf32>
    %617 = vector.broadcast %96 : f32 to vector<1x8xf32>
    %618 = arith.mulf %617, %552 : vector<1x8xf32>
    %619 = arith.addf %616, %618 : vector<1x8xf32>
    %620 = arith.negf %619 : vector<1x8xf32>
    %621 = math.exp %620 : vector<1x8xf32>
    %cst_135 = arith.constant 1.000000e+00 : f32
    %622 = vector.broadcast %cst_135 : f32 to vector<1x8xf32>
    %623 = arith.addf %622, %621 : vector<1x8xf32>
    %624 = arith.divf %622, %623 : vector<1x8xf32>
    %625 = vector.extract_strided_slice %142 {offsets = [5, 0], sizes = [1, 8], strides = [1, 1]} : vector<16x8xf32> to vector<1x8xf32>
    %626 = vector.broadcast %97 : f32 to vector<1x8xf32>
    %627 = arith.mulf %626, %552 : vector<1x8xf32>
    %628 = arith.addf %625, %627 : vector<1x8xf32>
    %629 = math.tanh %628 : vector<1x8xf32>
    %630 = vector.extract_strided_slice %146 {offsets = [5, 0], sizes = [1, 8], strides = [1, 1]} : vector<16x8xf32> to vector<1x8xf32>
    %631 = vector.broadcast %98 : f32 to vector<1x8xf32>
    %632 = arith.mulf %631, %552 : vector<1x8xf32>
    %633 = arith.addf %630, %632 : vector<1x8xf32>
    %634 = arith.negf %633 : vector<1x8xf32>
    %635 = math.exp %634 : vector<1x8xf32>
    %cst_136 = arith.constant 1.000000e+00 : f32
    %636 = vector.broadcast %cst_136 : f32 to vector<1x8xf32>
    %637 = arith.addf %636, %635 : vector<1x8xf32>
    %638 = arith.divf %636, %637 : vector<1x8xf32>
    %639 = arith.mulf %624, %550 : vector<1x8xf32>
    %640 = arith.mulf %615, %629 : vector<1x8xf32>
    %641 = arith.addf %639, %640 : vector<1x8xf32>
    %642 = math.tanh %641 : vector<1x8xf32>
    %643 = arith.mulf %638, %642 : vector<1x8xf32>
    %644 = vector.broadcast %111 : f32 to vector<1x8xf32>
    %645 = arith.mulf %644, %643 : vector<1x8xf32>
    %646 = vector.broadcast %121 : f32 to vector<1x8xf32>
    %647 = arith.addf %645, %646 : vector<1x8xf32>
    %648 = vector.broadcast %115 : f32 to vector<1x8xf32>
    %649 = arith.mulf %648, %601 : vector<1x8xf32>
    %650 = arith.addf %647, %649 : vector<1x8xf32>
    %651 = arith.negf %650 : vector<1x8xf32>
    %652 = math.exp %651 : vector<1x8xf32>
    %cst_137 = arith.constant 1.000000e+00 : f32
    %653 = vector.broadcast %cst_137 : f32 to vector<1x8xf32>
    %654 = arith.addf %653, %652 : vector<1x8xf32>
    %655 = arith.divf %653, %654 : vector<1x8xf32>
    %656 = vector.broadcast %112 : f32 to vector<1x8xf32>
    %657 = arith.mulf %656, %643 : vector<1x8xf32>
    %658 = vector.broadcast %124 : f32 to vector<1x8xf32>
    %659 = arith.addf %657, %658 : vector<1x8xf32>
    %660 = vector.broadcast %116 : f32 to vector<1x8xf32>
    %661 = arith.mulf %660, %601 : vector<1x8xf32>
    %662 = arith.addf %659, %661 : vector<1x8xf32>
    %663 = arith.negf %662 : vector<1x8xf32>
    %664 = math.exp %663 : vector<1x8xf32>
    %cst_138 = arith.constant 1.000000e+00 : f32
    %665 = vector.broadcast %cst_138 : f32 to vector<1x8xf32>
    %666 = arith.addf %665, %664 : vector<1x8xf32>
    %667 = arith.divf %665, %666 : vector<1x8xf32>
    %668 = vector.broadcast %113 : f32 to vector<1x8xf32>
    %669 = arith.mulf %668, %643 : vector<1x8xf32>
    %670 = vector.broadcast %127 : f32 to vector<1x8xf32>
    %671 = arith.addf %669, %670 : vector<1x8xf32>
    %672 = vector.broadcast %117 : f32 to vector<1x8xf32>
    %673 = arith.mulf %672, %601 : vector<1x8xf32>
    %674 = arith.addf %671, %673 : vector<1x8xf32>
    %675 = math.tanh %674 : vector<1x8xf32>
    %676 = vector.broadcast %114 : f32 to vector<1x8xf32>
    %677 = arith.mulf %676, %643 : vector<1x8xf32>
    %678 = vector.broadcast %130 : f32 to vector<1x8xf32>
    %679 = arith.addf %677, %678 : vector<1x8xf32>
    %680 = vector.broadcast %118 : f32 to vector<1x8xf32>
    %681 = arith.mulf %680, %601 : vector<1x8xf32>
    %682 = arith.addf %679, %681 : vector<1x8xf32>
    %683 = arith.negf %682 : vector<1x8xf32>
    %684 = math.exp %683 : vector<1x8xf32>
    %cst_139 = arith.constant 1.000000e+00 : f32
    %685 = vector.broadcast %cst_139 : f32 to vector<1x8xf32>
    %686 = arith.addf %685, %684 : vector<1x8xf32>
    %687 = arith.divf %685, %686 : vector<1x8xf32>
    %688 = arith.mulf %667, %599 : vector<1x8xf32>
    %689 = arith.mulf %655, %675 : vector<1x8xf32>
    %690 = arith.addf %688, %689 : vector<1x8xf32>
    %691 = math.tanh %690 : vector<1x8xf32>
    %692 = arith.mulf %687, %691 : vector<1x8xf32>
    %c0_140 = arith.constant 0 : index
    %c5_141 = arith.constant 5 : index
    %693 = vector.load %arg11[%c0_140, %c5_141] : memref<32x16xf32, #tpu.memory_space<vmem>>, vector<32x1xf32>
    %694 = vector.broadcast %693 : vector<32x1xf32> to vector<32x8xf32>
    %695 = vector.broadcast %692 : vector<1x8xf32> to vector<32x8xf32>
    %696 = arith.mulf %694, %695 : vector<32x8xf32>
    %697 = arith.addf %606, %696 : vector<32x8xf32>
    %698 = vector.extract_strided_slice %134 {offsets = [6, 0], sizes = [1, 8], strides = [1, 1]} : vector<16x8xf32> to vector<1x8xf32>
    %699 = vector.broadcast %95 : f32 to vector<1x8xf32>
    %700 = arith.mulf %699, %643 : vector<1x8xf32>
    %701 = arith.addf %698, %700 : vector<1x8xf32>
    %702 = arith.negf %701 : vector<1x8xf32>
    %703 = math.exp %702 : vector<1x8xf32>
    %cst_142 = arith.constant 1.000000e+00 : f32
    %704 = vector.broadcast %cst_142 : f32 to vector<1x8xf32>
    %705 = arith.addf %704, %703 : vector<1x8xf32>
    %706 = arith.divf %704, %705 : vector<1x8xf32>
    %707 = vector.extract_strided_slice %138 {offsets = [6, 0], sizes = [1, 8], strides = [1, 1]} : vector<16x8xf32> to vector<1x8xf32>
    %708 = vector.broadcast %96 : f32 to vector<1x8xf32>
    %709 = arith.mulf %708, %643 : vector<1x8xf32>
    %710 = arith.addf %707, %709 : vector<1x8xf32>
    %711 = arith.negf %710 : vector<1x8xf32>
    %712 = math.exp %711 : vector<1x8xf32>
    %cst_143 = arith.constant 1.000000e+00 : f32
    %713 = vector.broadcast %cst_143 : f32 to vector<1x8xf32>
    %714 = arith.addf %713, %712 : vector<1x8xf32>
    %715 = arith.divf %713, %714 : vector<1x8xf32>
    %716 = vector.extract_strided_slice %142 {offsets = [6, 0], sizes = [1, 8], strides = [1, 1]} : vector<16x8xf32> to vector<1x8xf32>
    %717 = vector.broadcast %97 : f32 to vector<1x8xf32>
    %718 = arith.mulf %717, %643 : vector<1x8xf32>
    %719 = arith.addf %716, %718 : vector<1x8xf32>
    %720 = math.tanh %719 : vector<1x8xf32>
    %721 = vector.extract_strided_slice %146 {offsets = [6, 0], sizes = [1, 8], strides = [1, 1]} : vector<16x8xf32> to vector<1x8xf32>
    %722 = vector.broadcast %98 : f32 to vector<1x8xf32>
    %723 = arith.mulf %722, %643 : vector<1x8xf32>
    %724 = arith.addf %721, %723 : vector<1x8xf32>
    %725 = arith.negf %724 : vector<1x8xf32>
    %726 = math.exp %725 : vector<1x8xf32>
    %cst_144 = arith.constant 1.000000e+00 : f32
    %727 = vector.broadcast %cst_144 : f32 to vector<1x8xf32>
    %728 = arith.addf %727, %726 : vector<1x8xf32>
    %729 = arith.divf %727, %728 : vector<1x8xf32>
    %730 = arith.mulf %715, %641 : vector<1x8xf32>
    %731 = arith.mulf %706, %720 : vector<1x8xf32>
    %732 = arith.addf %730, %731 : vector<1x8xf32>
    %733 = math.tanh %732 : vector<1x8xf32>
    %734 = arith.mulf %729, %733 : vector<1x8xf32>
    %735 = vector.broadcast %111 : f32 to vector<1x8xf32>
    %736 = arith.mulf %735, %734 : vector<1x8xf32>
    %737 = vector.broadcast %121 : f32 to vector<1x8xf32>
    %738 = arith.addf %736, %737 : vector<1x8xf32>
    %739 = vector.broadcast %115 : f32 to vector<1x8xf32>
    %740 = arith.mulf %739, %692 : vector<1x8xf32>
    %741 = arith.addf %738, %740 : vector<1x8xf32>
    %742 = arith.negf %741 : vector<1x8xf32>
    %743 = math.exp %742 : vector<1x8xf32>
    %cst_145 = arith.constant 1.000000e+00 : f32
    %744 = vector.broadcast %cst_145 : f32 to vector<1x8xf32>
    %745 = arith.addf %744, %743 : vector<1x8xf32>
    %746 = arith.divf %744, %745 : vector<1x8xf32>
    %747 = vector.broadcast %112 : f32 to vector<1x8xf32>
    %748 = arith.mulf %747, %734 : vector<1x8xf32>
    %749 = vector.broadcast %124 : f32 to vector<1x8xf32>
    %750 = arith.addf %748, %749 : vector<1x8xf32>
    %751 = vector.broadcast %116 : f32 to vector<1x8xf32>
    %752 = arith.mulf %751, %692 : vector<1x8xf32>
    %753 = arith.addf %750, %752 : vector<1x8xf32>
    %754 = arith.negf %753 : vector<1x8xf32>
    %755 = math.exp %754 : vector<1x8xf32>
    %cst_146 = arith.constant 1.000000e+00 : f32
    %756 = vector.broadcast %cst_146 : f32 to vector<1x8xf32>
    %757 = arith.addf %756, %755 : vector<1x8xf32>
    %758 = arith.divf %756, %757 : vector<1x8xf32>
    %759 = vector.broadcast %113 : f32 to vector<1x8xf32>
    %760 = arith.mulf %759, %734 : vector<1x8xf32>
    %761 = vector.broadcast %127 : f32 to vector<1x8xf32>
    %762 = arith.addf %760, %761 : vector<1x8xf32>
    %763 = vector.broadcast %117 : f32 to vector<1x8xf32>
    %764 = arith.mulf %763, %692 : vector<1x8xf32>
    %765 = arith.addf %762, %764 : vector<1x8xf32>
    %766 = math.tanh %765 : vector<1x8xf32>
    %767 = vector.broadcast %114 : f32 to vector<1x8xf32>
    %768 = arith.mulf %767, %734 : vector<1x8xf32>
    %769 = vector.broadcast %130 : f32 to vector<1x8xf32>
    %770 = arith.addf %768, %769 : vector<1x8xf32>
    %771 = vector.broadcast %118 : f32 to vector<1x8xf32>
    %772 = arith.mulf %771, %692 : vector<1x8xf32>
    %773 = arith.addf %770, %772 : vector<1x8xf32>
    %774 = arith.negf %773 : vector<1x8xf32>
    %775 = math.exp %774 : vector<1x8xf32>
    %cst_147 = arith.constant 1.000000e+00 : f32
    %776 = vector.broadcast %cst_147 : f32 to vector<1x8xf32>
    %777 = arith.addf %776, %775 : vector<1x8xf32>
    %778 = arith.divf %776, %777 : vector<1x8xf32>
    %779 = arith.mulf %758, %690 : vector<1x8xf32>
    %780 = arith.mulf %746, %766 : vector<1x8xf32>
    %781 = arith.addf %779, %780 : vector<1x8xf32>
    %782 = math.tanh %781 : vector<1x8xf32>
    %783 = arith.mulf %778, %782 : vector<1x8xf32>
    %c0_148 = arith.constant 0 : index
    %c6_149 = arith.constant 6 : index
    %784 = vector.load %arg11[%c0_148, %c6_149] : memref<32x16xf32, #tpu.memory_space<vmem>>, vector<32x1xf32>
    %785 = vector.broadcast %784 : vector<32x1xf32> to vector<32x8xf32>
    %786 = vector.broadcast %783 : vector<1x8xf32> to vector<32x8xf32>
    %787 = arith.mulf %785, %786 : vector<32x8xf32>
    %788 = arith.addf %697, %787 : vector<32x8xf32>
    %789 = vector.extract_strided_slice %134 {offsets = [7, 0], sizes = [1, 8], strides = [1, 1]} : vector<16x8xf32> to vector<1x8xf32>
    %790 = vector.broadcast %95 : f32 to vector<1x8xf32>
    %791 = arith.mulf %790, %734 : vector<1x8xf32>
    %792 = arith.addf %789, %791 : vector<1x8xf32>
    %793 = arith.negf %792 : vector<1x8xf32>
    %794 = math.exp %793 : vector<1x8xf32>
    %cst_150 = arith.constant 1.000000e+00 : f32
    %795 = vector.broadcast %cst_150 : f32 to vector<1x8xf32>
    %796 = arith.addf %795, %794 : vector<1x8xf32>
    %797 = arith.divf %795, %796 : vector<1x8xf32>
    %798 = vector.extract_strided_slice %138 {offsets = [7, 0], sizes = [1, 8], strides = [1, 1]} : vector<16x8xf32> to vector<1x8xf32>
    %799 = vector.broadcast %96 : f32 to vector<1x8xf32>
    %800 = arith.mulf %799, %734 : vector<1x8xf32>
    %801 = arith.addf %798, %800 : vector<1x8xf32>
    %802 = arith.negf %801 : vector<1x8xf32>
    %803 = math.exp %802 : vector<1x8xf32>
    %cst_151 = arith.constant 1.000000e+00 : f32
    %804 = vector.broadcast %cst_151 : f32 to vector<1x8xf32>
    %805 = arith.addf %804, %803 : vector<1x8xf32>
    %806 = arith.divf %804, %805 : vector<1x8xf32>
    %807 = vector.extract_strided_slice %142 {offsets = [7, 0], sizes = [1, 8], strides = [1, 1]} : vector<16x8xf32> to vector<1x8xf32>
    %808 = vector.broadcast %97 : f32 to vector<1x8xf32>
    %809 = arith.mulf %808, %734 : vector<1x8xf32>
    %810 = arith.addf %807, %809 : vector<1x8xf32>
    %811 = math.tanh %810 : vector<1x8xf32>
    %812 = vector.extract_strided_slice %146 {offsets = [7, 0], sizes = [1, 8], strides = [1, 1]} : vector<16x8xf32> to vector<1x8xf32>
    %813 = vector.broadcast %98 : f32 to vector<1x8xf32>
    %814 = arith.mulf %813, %734 : vector<1x8xf32>
    %815 = arith.addf %812, %814 : vector<1x8xf32>
    %816 = arith.negf %815 : vector<1x8xf32>
    %817 = math.exp %816 : vector<1x8xf32>
    %cst_152 = arith.constant 1.000000e+00 : f32
    %818 = vector.broadcast %cst_152 : f32 to vector<1x8xf32>
    %819 = arith.addf %818, %817 : vector<1x8xf32>
    %820 = arith.divf %818, %819 : vector<1x8xf32>
    %821 = arith.mulf %806, %732 : vector<1x8xf32>
    %822 = arith.mulf %797, %811 : vector<1x8xf32>
    %823 = arith.addf %821, %822 : vector<1x8xf32>
    %824 = math.tanh %823 : vector<1x8xf32>
    %825 = arith.mulf %820, %824 : vector<1x8xf32>
    %826 = vector.broadcast %111 : f32 to vector<1x8xf32>
    %827 = arith.mulf %826, %825 : vector<1x8xf32>
    %828 = vector.broadcast %121 : f32 to vector<1x8xf32>
    %829 = arith.addf %827, %828 : vector<1x8xf32>
    %830 = vector.broadcast %115 : f32 to vector<1x8xf32>
    %831 = arith.mulf %830, %783 : vector<1x8xf32>
    %832 = arith.addf %829, %831 : vector<1x8xf32>
    %833 = arith.negf %832 : vector<1x8xf32>
    %834 = math.exp %833 : vector<1x8xf32>
    %cst_153 = arith.constant 1.000000e+00 : f32
    %835 = vector.broadcast %cst_153 : f32 to vector<1x8xf32>
    %836 = arith.addf %835, %834 : vector<1x8xf32>
    %837 = arith.divf %835, %836 : vector<1x8xf32>
    %838 = vector.broadcast %112 : f32 to vector<1x8xf32>
    %839 = arith.mulf %838, %825 : vector<1x8xf32>
    %840 = vector.broadcast %124 : f32 to vector<1x8xf32>
    %841 = arith.addf %839, %840 : vector<1x8xf32>
    %842 = vector.broadcast %116 : f32 to vector<1x8xf32>
    %843 = arith.mulf %842, %783 : vector<1x8xf32>
    %844 = arith.addf %841, %843 : vector<1x8xf32>
    %845 = arith.negf %844 : vector<1x8xf32>
    %846 = math.exp %845 : vector<1x8xf32>
    %cst_154 = arith.constant 1.000000e+00 : f32
    %847 = vector.broadcast %cst_154 : f32 to vector<1x8xf32>
    %848 = arith.addf %847, %846 : vector<1x8xf32>
    %849 = arith.divf %847, %848 : vector<1x8xf32>
    %850 = vector.broadcast %113 : f32 to vector<1x8xf32>
    %851 = arith.mulf %850, %825 : vector<1x8xf32>
    %852 = vector.broadcast %127 : f32 to vector<1x8xf32>
    %853 = arith.addf %851, %852 : vector<1x8xf32>
    %854 = vector.broadcast %117 : f32 to vector<1x8xf32>
    %855 = arith.mulf %854, %783 : vector<1x8xf32>
    %856 = arith.addf %853, %855 : vector<1x8xf32>
    %857 = math.tanh %856 : vector<1x8xf32>
    %858 = vector.broadcast %114 : f32 to vector<1x8xf32>
    %859 = arith.mulf %858, %825 : vector<1x8xf32>
    %860 = vector.broadcast %130 : f32 to vector<1x8xf32>
    %861 = arith.addf %859, %860 : vector<1x8xf32>
    %862 = vector.broadcast %118 : f32 to vector<1x8xf32>
    %863 = arith.mulf %862, %783 : vector<1x8xf32>
    %864 = arith.addf %861, %863 : vector<1x8xf32>
    %865 = arith.negf %864 : vector<1x8xf32>
    %866 = math.exp %865 : vector<1x8xf32>
    %cst_155 = arith.constant 1.000000e+00 : f32
    %867 = vector.broadcast %cst_155 : f32 to vector<1x8xf32>
    %868 = arith.addf %867, %866 : vector<1x8xf32>
    %869 = arith.divf %867, %868 : vector<1x8xf32>
    %870 = arith.mulf %849, %781 : vector<1x8xf32>
    %871 = arith.mulf %837, %857 : vector<1x8xf32>
    %872 = arith.addf %870, %871 : vector<1x8xf32>
    %873 = math.tanh %872 : vector<1x8xf32>
    %874 = arith.mulf %869, %873 : vector<1x8xf32>
    %c0_156 = arith.constant 0 : index
    %c7_157 = arith.constant 7 : index
    %875 = vector.load %arg11[%c0_156, %c7_157] : memref<32x16xf32, #tpu.memory_space<vmem>>, vector<32x1xf32>
    %876 = vector.broadcast %875 : vector<32x1xf32> to vector<32x8xf32>
    %877 = vector.broadcast %874 : vector<1x8xf32> to vector<32x8xf32>
    %878 = arith.mulf %876, %877 : vector<32x8xf32>
    %879 = arith.addf %788, %878 : vector<32x8xf32>
    %880 = vector.extract_strided_slice %134 {offsets = [8, 0], sizes = [1, 8], strides = [1, 1]} : vector<16x8xf32> to vector<1x8xf32>
    %881 = vector.broadcast %95 : f32 to vector<1x8xf32>
    %882 = arith.mulf %881, %825 : vector<1x8xf32>
    %883 = arith.addf %880, %882 : vector<1x8xf32>
    %884 = arith.negf %883 : vector<1x8xf32>
    %885 = math.exp %884 : vector<1x8xf32>
    %cst_158 = arith.constant 1.000000e+00 : f32
    %886 = vector.broadcast %cst_158 : f32 to vector<1x8xf32>
    %887 = arith.addf %886, %885 : vector<1x8xf32>
    %888 = arith.divf %886, %887 : vector<1x8xf32>
    %889 = vector.extract_strided_slice %138 {offsets = [8, 0], sizes = [1, 8], strides = [1, 1]} : vector<16x8xf32> to vector<1x8xf32>
    %890 = vector.broadcast %96 : f32 to vector<1x8xf32>
    %891 = arith.mulf %890, %825 : vector<1x8xf32>
    %892 = arith.addf %889, %891 : vector<1x8xf32>
    %893 = arith.negf %892 : vector<1x8xf32>
    %894 = math.exp %893 : vector<1x8xf32>
    %cst_159 = arith.constant 1.000000e+00 : f32
    %895 = vector.broadcast %cst_159 : f32 to vector<1x8xf32>
    %896 = arith.addf %895, %894 : vector<1x8xf32>
    %897 = arith.divf %895, %896 : vector<1x8xf32>
    %898 = vector.extract_strided_slice %142 {offsets = [8, 0], sizes = [1, 8], strides = [1, 1]} : vector<16x8xf32> to vector<1x8xf32>
    %899 = vector.broadcast %97 : f32 to vector<1x8xf32>
    %900 = arith.mulf %899, %825 : vector<1x8xf32>
    %901 = arith.addf %898, %900 : vector<1x8xf32>
    %902 = math.tanh %901 : vector<1x8xf32>
    %903 = vector.extract_strided_slice %146 {offsets = [8, 0], sizes = [1, 8], strides = [1, 1]} : vector<16x8xf32> to vector<1x8xf32>
    %904 = vector.broadcast %98 : f32 to vector<1x8xf32>
    %905 = arith.mulf %904, %825 : vector<1x8xf32>
    %906 = arith.addf %903, %905 : vector<1x8xf32>
    %907 = arith.negf %906 : vector<1x8xf32>
    %908 = math.exp %907 : vector<1x8xf32>
    %cst_160 = arith.constant 1.000000e+00 : f32
    %909 = vector.broadcast %cst_160 : f32 to vector<1x8xf32>
    %910 = arith.addf %909, %908 : vector<1x8xf32>
    %911 = arith.divf %909, %910 : vector<1x8xf32>
    %912 = arith.mulf %897, %823 : vector<1x8xf32>
    %913 = arith.mulf %888, %902 : vector<1x8xf32>
    %914 = arith.addf %912, %913 : vector<1x8xf32>
    %915 = math.tanh %914 : vector<1x8xf32>
    %916 = arith.mulf %911, %915 : vector<1x8xf32>
    %917 = vector.broadcast %111 : f32 to vector<1x8xf32>
    %918 = arith.mulf %917, %916 : vector<1x8xf32>
    %919 = vector.broadcast %121 : f32 to vector<1x8xf32>
    %920 = arith.addf %918, %919 : vector<1x8xf32>
    %921 = vector.broadcast %115 : f32 to vector<1x8xf32>
    %922 = arith.mulf %921, %874 : vector<1x8xf32>
    %923 = arith.addf %920, %922 : vector<1x8xf32>
    %924 = arith.negf %923 : vector<1x8xf32>
    %925 = math.exp %924 : vector<1x8xf32>
    %cst_161 = arith.constant 1.000000e+00 : f32
    %926 = vector.broadcast %cst_161 : f32 to vector<1x8xf32>
    %927 = arith.addf %926, %925 : vector<1x8xf32>
    %928 = arith.divf %926, %927 : vector<1x8xf32>
    %929 = vector.broadcast %112 : f32 to vector<1x8xf32>
    %930 = arith.mulf %929, %916 : vector<1x8xf32>
    %931 = vector.broadcast %124 : f32 to vector<1x8xf32>
    %932 = arith.addf %930, %931 : vector<1x8xf32>
    %933 = vector.broadcast %116 : f32 to vector<1x8xf32>
    %934 = arith.mulf %933, %874 : vector<1x8xf32>
    %935 = arith.addf %932, %934 : vector<1x8xf32>
    %936 = arith.negf %935 : vector<1x8xf32>
    %937 = math.exp %936 : vector<1x8xf32>
    %cst_162 = arith.constant 1.000000e+00 : f32
    %938 = vector.broadcast %cst_162 : f32 to vector<1x8xf32>
    %939 = arith.addf %938, %937 : vector<1x8xf32>
    %940 = arith.divf %938, %939 : vector<1x8xf32>
    %941 = vector.broadcast %113 : f32 to vector<1x8xf32>
    %942 = arith.mulf %941, %916 : vector<1x8xf32>
    %943 = vector.broadcast %127 : f32 to vector<1x8xf32>
    %944 = arith.addf %942, %943 : vector<1x8xf32>
    %945 = vector.broadcast %117 : f32 to vector<1x8xf32>
    %946 = arith.mulf %945, %874 : vector<1x8xf32>
    %947 = arith.addf %944, %946 : vector<1x8xf32>
    %948 = math.tanh %947 : vector<1x8xf32>
    %949 = vector.broadcast %114 : f32 to vector<1x8xf32>
    %950 = arith.mulf %949, %916 : vector<1x8xf32>
    %951 = vector.broadcast %130 : f32 to vector<1x8xf32>
    %952 = arith.addf %950, %951 : vector<1x8xf32>
    %953 = vector.broadcast %118 : f32 to vector<1x8xf32>
    %954 = arith.mulf %953, %874 : vector<1x8xf32>
    %955 = arith.addf %952, %954 : vector<1x8xf32>
    %956 = arith.negf %955 : vector<1x8xf32>
    %957 = math.exp %956 : vector<1x8xf32>
    %cst_163 = arith.constant 1.000000e+00 : f32
    %958 = vector.broadcast %cst_163 : f32 to vector<1x8xf32>
    %959 = arith.addf %958, %957 : vector<1x8xf32>
    %960 = arith.divf %958, %959 : vector<1x8xf32>
    %961 = arith.mulf %940, %872 : vector<1x8xf32>
    %962 = arith.mulf %928, %948 : vector<1x8xf32>
    %963 = arith.addf %961, %962 : vector<1x8xf32>
    %964 = math.tanh %963 : vector<1x8xf32>
    %965 = arith.mulf %960, %964 : vector<1x8xf32>
    %c0_164 = arith.constant 0 : index
    %c8_165 = arith.constant 8 : index
    %966 = vector.load %arg11[%c0_164, %c8_165] : memref<32x16xf32, #tpu.memory_space<vmem>>, vector<32x1xf32>
    %967 = vector.broadcast %966 : vector<32x1xf32> to vector<32x8xf32>
    %968 = vector.broadcast %965 : vector<1x8xf32> to vector<32x8xf32>
    %969 = arith.mulf %967, %968 : vector<32x8xf32>
    %970 = arith.addf %879, %969 : vector<32x8xf32>
    %971 = vector.extract_strided_slice %134 {offsets = [9, 0], sizes = [1, 8], strides = [1, 1]} : vector<16x8xf32> to vector<1x8xf32>
    %972 = vector.broadcast %95 : f32 to vector<1x8xf32>
    %973 = arith.mulf %972, %916 : vector<1x8xf32>
    %974 = arith.addf %971, %973 : vector<1x8xf32>
    %975 = arith.negf %974 : vector<1x8xf32>
    %976 = math.exp %975 : vector<1x8xf32>
    %cst_166 = arith.constant 1.000000e+00 : f32
    %977 = vector.broadcast %cst_166 : f32 to vector<1x8xf32>
    %978 = arith.addf %977, %976 : vector<1x8xf32>
    %979 = arith.divf %977, %978 : vector<1x8xf32>
    %980 = vector.extract_strided_slice %138 {offsets = [9, 0], sizes = [1, 8], strides = [1, 1]} : vector<16x8xf32> to vector<1x8xf32>
    %981 = vector.broadcast %96 : f32 to vector<1x8xf32>
    %982 = arith.mulf %981, %916 : vector<1x8xf32>
    %983 = arith.addf %980, %982 : vector<1x8xf32>
    %984 = arith.negf %983 : vector<1x8xf32>
    %985 = math.exp %984 : vector<1x8xf32>
    %cst_167 = arith.constant 1.000000e+00 : f32
    %986 = vector.broadcast %cst_167 : f32 to vector<1x8xf32>
    %987 = arith.addf %986, %985 : vector<1x8xf32>
    %988 = arith.divf %986, %987 : vector<1x8xf32>
    %989 = vector.extract_strided_slice %142 {offsets = [9, 0], sizes = [1, 8], strides = [1, 1]} : vector<16x8xf32> to vector<1x8xf32>
    %990 = vector.broadcast %97 : f32 to vector<1x8xf32>
    %991 = arith.mulf %990, %916 : vector<1x8xf32>
    %992 = arith.addf %989, %991 : vector<1x8xf32>
    %993 = math.tanh %992 : vector<1x8xf32>
    %994 = vector.extract_strided_slice %146 {offsets = [9, 0], sizes = [1, 8], strides = [1, 1]} : vector<16x8xf32> to vector<1x8xf32>
    %995 = vector.broadcast %98 : f32 to vector<1x8xf32>
    %996 = arith.mulf %995, %916 : vector<1x8xf32>
    %997 = arith.addf %994, %996 : vector<1x8xf32>
    %998 = arith.negf %997 : vector<1x8xf32>
    %999 = math.exp %998 : vector<1x8xf32>
    %cst_168 = arith.constant 1.000000e+00 : f32
    %1000 = vector.broadcast %cst_168 : f32 to vector<1x8xf32>
    %1001 = arith.addf %1000, %999 : vector<1x8xf32>
    %1002 = arith.divf %1000, %1001 : vector<1x8xf32>
    %1003 = arith.mulf %988, %914 : vector<1x8xf32>
    %1004 = arith.mulf %979, %993 : vector<1x8xf32>
    %1005 = arith.addf %1003, %1004 : vector<1x8xf32>
    %1006 = math.tanh %1005 : vector<1x8xf32>
    %1007 = arith.mulf %1002, %1006 : vector<1x8xf32>
    %1008 = vector.broadcast %111 : f32 to vector<1x8xf32>
    %1009 = arith.mulf %1008, %1007 : vector<1x8xf32>
    %1010 = vector.broadcast %121 : f32 to vector<1x8xf32>
    %1011 = arith.addf %1009, %1010 : vector<1x8xf32>
    %1012 = vector.broadcast %115 : f32 to vector<1x8xf32>
    %1013 = arith.mulf %1012, %965 : vector<1x8xf32>
    %1014 = arith.addf %1011, %1013 : vector<1x8xf32>
    %1015 = arith.negf %1014 : vector<1x8xf32>
    %1016 = math.exp %1015 : vector<1x8xf32>
    %cst_169 = arith.constant 1.000000e+00 : f32
    %1017 = vector.broadcast %cst_169 : f32 to vector<1x8xf32>
    %1018 = arith.addf %1017, %1016 : vector<1x8xf32>
    %1019 = arith.divf %1017, %1018 : vector<1x8xf32>
    %1020 = vector.broadcast %112 : f32 to vector<1x8xf32>
    %1021 = arith.mulf %1020, %1007 : vector<1x8xf32>
    %1022 = vector.broadcast %124 : f32 to vector<1x8xf32>
    %1023 = arith.addf %1021, %1022 : vector<1x8xf32>
    %1024 = vector.broadcast %116 : f32 to vector<1x8xf32>
    %1025 = arith.mulf %1024, %965 : vector<1x8xf32>
    %1026 = arith.addf %1023, %1025 : vector<1x8xf32>
    %1027 = arith.negf %1026 : vector<1x8xf32>
    %1028 = math.exp %1027 : vector<1x8xf32>
    %cst_170 = arith.constant 1.000000e+00 : f32
    %1029 = vector.broadcast %cst_170 : f32 to vector<1x8xf32>
    %1030 = arith.addf %1029, %1028 : vector<1x8xf32>
    %1031 = arith.divf %1029, %1030 : vector<1x8xf32>
    %1032 = vector.broadcast %113 : f32 to vector<1x8xf32>
    %1033 = arith.mulf %1032, %1007 : vector<1x8xf32>
    %1034 = vector.broadcast %127 : f32 to vector<1x8xf32>
    %1035 = arith.addf %1033, %1034 : vector<1x8xf32>
    %1036 = vector.broadcast %117 : f32 to vector<1x8xf32>
    %1037 = arith.mulf %1036, %965 : vector<1x8xf32>
    %1038 = arith.addf %1035, %1037 : vector<1x8xf32>
    %1039 = math.tanh %1038 : vector<1x8xf32>
    %1040 = vector.broadcast %114 : f32 to vector<1x8xf32>
    %1041 = arith.mulf %1040, %1007 : vector<1x8xf32>
    %1042 = vector.broadcast %130 : f32 to vector<1x8xf32>
    %1043 = arith.addf %1041, %1042 : vector<1x8xf32>
    %1044 = vector.broadcast %118 : f32 to vector<1x8xf32>
    %1045 = arith.mulf %1044, %965 : vector<1x8xf32>
    %1046 = arith.addf %1043, %1045 : vector<1x8xf32>
    %1047 = arith.negf %1046 : vector<1x8xf32>
    %1048 = math.exp %1047 : vector<1x8xf32>
    %cst_171 = arith.constant 1.000000e+00 : f32
    %1049 = vector.broadcast %cst_171 : f32 to vector<1x8xf32>
    %1050 = arith.addf %1049, %1048 : vector<1x8xf32>
    %1051 = arith.divf %1049, %1050 : vector<1x8xf32>
    %1052 = arith.mulf %1031, %963 : vector<1x8xf32>
    %1053 = arith.mulf %1019, %1039 : vector<1x8xf32>
    %1054 = arith.addf %1052, %1053 : vector<1x8xf32>
    %1055 = math.tanh %1054 : vector<1x8xf32>
    %1056 = arith.mulf %1051, %1055 : vector<1x8xf32>
    %c0_172 = arith.constant 0 : index
    %c9_173 = arith.constant 9 : index
    %1057 = vector.load %arg11[%c0_172, %c9_173] : memref<32x16xf32, #tpu.memory_space<vmem>>, vector<32x1xf32>
    %1058 = vector.broadcast %1057 : vector<32x1xf32> to vector<32x8xf32>
    %1059 = vector.broadcast %1056 : vector<1x8xf32> to vector<32x8xf32>
    %1060 = arith.mulf %1058, %1059 : vector<32x8xf32>
    %1061 = arith.addf %970, %1060 : vector<32x8xf32>
    %1062 = vector.extract_strided_slice %134 {offsets = [10, 0], sizes = [1, 8], strides = [1, 1]} : vector<16x8xf32> to vector<1x8xf32>
    %1063 = vector.broadcast %95 : f32 to vector<1x8xf32>
    %1064 = arith.mulf %1063, %1007 : vector<1x8xf32>
    %1065 = arith.addf %1062, %1064 : vector<1x8xf32>
    %1066 = arith.negf %1065 : vector<1x8xf32>
    %1067 = math.exp %1066 : vector<1x8xf32>
    %cst_174 = arith.constant 1.000000e+00 : f32
    %1068 = vector.broadcast %cst_174 : f32 to vector<1x8xf32>
    %1069 = arith.addf %1068, %1067 : vector<1x8xf32>
    %1070 = arith.divf %1068, %1069 : vector<1x8xf32>
    %1071 = vector.extract_strided_slice %138 {offsets = [10, 0], sizes = [1, 8], strides = [1, 1]} : vector<16x8xf32> to vector<1x8xf32>
    %1072 = vector.broadcast %96 : f32 to vector<1x8xf32>
    %1073 = arith.mulf %1072, %1007 : vector<1x8xf32>
    %1074 = arith.addf %1071, %1073 : vector<1x8xf32>
    %1075 = arith.negf %1074 : vector<1x8xf32>
    %1076 = math.exp %1075 : vector<1x8xf32>
    %cst_175 = arith.constant 1.000000e+00 : f32
    %1077 = vector.broadcast %cst_175 : f32 to vector<1x8xf32>
    %1078 = arith.addf %1077, %1076 : vector<1x8xf32>
    %1079 = arith.divf %1077, %1078 : vector<1x8xf32>
    %1080 = vector.extract_strided_slice %142 {offsets = [10, 0], sizes = [1, 8], strides = [1, 1]} : vector<16x8xf32> to vector<1x8xf32>
    %1081 = vector.broadcast %97 : f32 to vector<1x8xf32>
    %1082 = arith.mulf %1081, %1007 : vector<1x8xf32>
    %1083 = arith.addf %1080, %1082 : vector<1x8xf32>
    %1084 = math.tanh %1083 : vector<1x8xf32>
    %1085 = vector.extract_strided_slice %146 {offsets = [10, 0], sizes = [1, 8], strides = [1, 1]} : vector<16x8xf32> to vector<1x8xf32>
    %1086 = vector.broadcast %98 : f32 to vector<1x8xf32>
    %1087 = arith.mulf %1086, %1007 : vector<1x8xf32>
    %1088 = arith.addf %1085, %1087 : vector<1x8xf32>
    %1089 = arith.negf %1088 : vector<1x8xf32>
    %1090 = math.exp %1089 : vector<1x8xf32>
    %cst_176 = arith.constant 1.000000e+00 : f32
    %1091 = vector.broadcast %cst_176 : f32 to vector<1x8xf32>
    %1092 = arith.addf %1091, %1090 : vector<1x8xf32>
    %1093 = arith.divf %1091, %1092 : vector<1x8xf32>
    %1094 = arith.mulf %1079, %1005 : vector<1x8xf32>
    %1095 = arith.mulf %1070, %1084 : vector<1x8xf32>
    %1096 = arith.addf %1094, %1095 : vector<1x8xf32>
    %1097 = math.tanh %1096 : vector<1x8xf32>
    %1098 = arith.mulf %1093, %1097 : vector<1x8xf32>
    %1099 = vector.broadcast %111 : f32 to vector<1x8xf32>
    %1100 = arith.mulf %1099, %1098 : vector<1x8xf32>
    %1101 = vector.broadcast %121 : f32 to vector<1x8xf32>
    %1102 = arith.addf %1100, %1101 : vector<1x8xf32>
    %1103 = vector.broadcast %115 : f32 to vector<1x8xf32>
    %1104 = arith.mulf %1103, %1056 : vector<1x8xf32>
    %1105 = arith.addf %1102, %1104 : vector<1x8xf32>
    %1106 = arith.negf %1105 : vector<1x8xf32>
    %1107 = math.exp %1106 : vector<1x8xf32>
    %cst_177 = arith.constant 1.000000e+00 : f32
    %1108 = vector.broadcast %cst_177 : f32 to vector<1x8xf32>
    %1109 = arith.addf %1108, %1107 : vector<1x8xf32>
    %1110 = arith.divf %1108, %1109 : vector<1x8xf32>
    %1111 = vector.broadcast %112 : f32 to vector<1x8xf32>
    %1112 = arith.mulf %1111, %1098 : vector<1x8xf32>
    %1113 = vector.broadcast %124 : f32 to vector<1x8xf32>
    %1114 = arith.addf %1112, %1113 : vector<1x8xf32>
    %1115 = vector.broadcast %116 : f32 to vector<1x8xf32>
    %1116 = arith.mulf %1115, %1056 : vector<1x8xf32>
    %1117 = arith.addf %1114, %1116 : vector<1x8xf32>
    %1118 = arith.negf %1117 : vector<1x8xf32>
    %1119 = math.exp %1118 : vector<1x8xf32>
    %cst_178 = arith.constant 1.000000e+00 : f32
    %1120 = vector.broadcast %cst_178 : f32 to vector<1x8xf32>
    %1121 = arith.addf %1120, %1119 : vector<1x8xf32>
    %1122 = arith.divf %1120, %1121 : vector<1x8xf32>
    %1123 = vector.broadcast %113 : f32 to vector<1x8xf32>
    %1124 = arith.mulf %1123, %1098 : vector<1x8xf32>
    %1125 = vector.broadcast %127 : f32 to vector<1x8xf32>
    %1126 = arith.addf %1124, %1125 : vector<1x8xf32>
    %1127 = vector.broadcast %117 : f32 to vector<1x8xf32>
    %1128 = arith.mulf %1127, %1056 : vector<1x8xf32>
    %1129 = arith.addf %1126, %1128 : vector<1x8xf32>
    %1130 = math.tanh %1129 : vector<1x8xf32>
    %1131 = vector.broadcast %114 : f32 to vector<1x8xf32>
    %1132 = arith.mulf %1131, %1098 : vector<1x8xf32>
    %1133 = vector.broadcast %130 : f32 to vector<1x8xf32>
    %1134 = arith.addf %1132, %1133 : vector<1x8xf32>
    %1135 = vector.broadcast %118 : f32 to vector<1x8xf32>
    %1136 = arith.mulf %1135, %1056 : vector<1x8xf32>
    %1137 = arith.addf %1134, %1136 : vector<1x8xf32>
    %1138 = arith.negf %1137 : vector<1x8xf32>
    %1139 = math.exp %1138 : vector<1x8xf32>
    %cst_179 = arith.constant 1.000000e+00 : f32
    %1140 = vector.broadcast %cst_179 : f32 to vector<1x8xf32>
    %1141 = arith.addf %1140, %1139 : vector<1x8xf32>
    %1142 = arith.divf %1140, %1141 : vector<1x8xf32>
    %1143 = arith.mulf %1122, %1054 : vector<1x8xf32>
    %1144 = arith.mulf %1110, %1130 : vector<1x8xf32>
    %1145 = arith.addf %1143, %1144 : vector<1x8xf32>
    %1146 = math.tanh %1145 : vector<1x8xf32>
    %1147 = arith.mulf %1142, %1146 : vector<1x8xf32>
    %c0_180 = arith.constant 0 : index
    %c10_181 = arith.constant 10 : index
    %1148 = vector.load %arg11[%c0_180, %c10_181] : memref<32x16xf32, #tpu.memory_space<vmem>>, vector<32x1xf32>
    %1149 = vector.broadcast %1148 : vector<32x1xf32> to vector<32x8xf32>
    %1150 = vector.broadcast %1147 : vector<1x8xf32> to vector<32x8xf32>
    %1151 = arith.mulf %1149, %1150 : vector<32x8xf32>
    %1152 = arith.addf %1061, %1151 : vector<32x8xf32>
    %1153 = vector.extract_strided_slice %134 {offsets = [11, 0], sizes = [1, 8], strides = [1, 1]} : vector<16x8xf32> to vector<1x8xf32>
    %1154 = vector.broadcast %95 : f32 to vector<1x8xf32>
    %1155 = arith.mulf %1154, %1098 : vector<1x8xf32>
    %1156 = arith.addf %1153, %1155 : vector<1x8xf32>
    %1157 = arith.negf %1156 : vector<1x8xf32>
    %1158 = math.exp %1157 : vector<1x8xf32>
    %cst_182 = arith.constant 1.000000e+00 : f32
    %1159 = vector.broadcast %cst_182 : f32 to vector<1x8xf32>
    %1160 = arith.addf %1159, %1158 : vector<1x8xf32>
    %1161 = arith.divf %1159, %1160 : vector<1x8xf32>
    %1162 = vector.extract_strided_slice %138 {offsets = [11, 0], sizes = [1, 8], strides = [1, 1]} : vector<16x8xf32> to vector<1x8xf32>
    %1163 = vector.broadcast %96 : f32 to vector<1x8xf32>
    %1164 = arith.mulf %1163, %1098 : vector<1x8xf32>
    %1165 = arith.addf %1162, %1164 : vector<1x8xf32>
    %1166 = arith.negf %1165 : vector<1x8xf32>
    %1167 = math.exp %1166 : vector<1x8xf32>
    %cst_183 = arith.constant 1.000000e+00 : f32
    %1168 = vector.broadcast %cst_183 : f32 to vector<1x8xf32>
    %1169 = arith.addf %1168, %1167 : vector<1x8xf32>
    %1170 = arith.divf %1168, %1169 : vector<1x8xf32>
    %1171 = vector.extract_strided_slice %142 {offsets = [11, 0], sizes = [1, 8], strides = [1, 1]} : vector<16x8xf32> to vector<1x8xf32>
    %1172 = vector.broadcast %97 : f32 to vector<1x8xf32>
    %1173 = arith.mulf %1172, %1098 : vector<1x8xf32>
    %1174 = arith.addf %1171, %1173 : vector<1x8xf32>
    %1175 = math.tanh %1174 : vector<1x8xf32>
    %1176 = vector.extract_strided_slice %146 {offsets = [11, 0], sizes = [1, 8], strides = [1, 1]} : vector<16x8xf32> to vector<1x8xf32>
    %1177 = vector.broadcast %98 : f32 to vector<1x8xf32>
    %1178 = arith.mulf %1177, %1098 : vector<1x8xf32>
    %1179 = arith.addf %1176, %1178 : vector<1x8xf32>
    %1180 = arith.negf %1179 : vector<1x8xf32>
    %1181 = math.exp %1180 : vector<1x8xf32>
    %cst_184 = arith.constant 1.000000e+00 : f32
    %1182 = vector.broadcast %cst_184 : f32 to vector<1x8xf32>
    %1183 = arith.addf %1182, %1181 : vector<1x8xf32>
    %1184 = arith.divf %1182, %1183 : vector<1x8xf32>
    %1185 = arith.mulf %1170, %1096 : vector<1x8xf32>
    %1186 = arith.mulf %1161, %1175 : vector<1x8xf32>
    %1187 = arith.addf %1185, %1186 : vector<1x8xf32>
    %1188 = math.tanh %1187 : vector<1x8xf32>
    %1189 = arith.mulf %1184, %1188 : vector<1x8xf32>
    %1190 = vector.broadcast %111 : f32 to vector<1x8xf32>
    %1191 = arith.mulf %1190, %1189 : vector<1x8xf32>
    %1192 = vector.broadcast %121 : f32 to vector<1x8xf32>
    %1193 = arith.addf %1191, %1192 : vector<1x8xf32>
    %1194 = vector.broadcast %115 : f32 to vector<1x8xf32>
    %1195 = arith.mulf %1194, %1147 : vector<1x8xf32>
    %1196 = arith.addf %1193, %1195 : vector<1x8xf32>
    %1197 = arith.negf %1196 : vector<1x8xf32>
    %1198 = math.exp %1197 : vector<1x8xf32>
    %cst_185 = arith.constant 1.000000e+00 : f32
    %1199 = vector.broadcast %cst_185 : f32 to vector<1x8xf32>
    %1200 = arith.addf %1199, %1198 : vector<1x8xf32>
    %1201 = arith.divf %1199, %1200 : vector<1x8xf32>
    %1202 = vector.broadcast %112 : f32 to vector<1x8xf32>
    %1203 = arith.mulf %1202, %1189 : vector<1x8xf32>
    %1204 = vector.broadcast %124 : f32 to vector<1x8xf32>
    %1205 = arith.addf %1203, %1204 : vector<1x8xf32>
    %1206 = vector.broadcast %116 : f32 to vector<1x8xf32>
    %1207 = arith.mulf %1206, %1147 : vector<1x8xf32>
    %1208 = arith.addf %1205, %1207 : vector<1x8xf32>
    %1209 = arith.negf %1208 : vector<1x8xf32>
    %1210 = math.exp %1209 : vector<1x8xf32>
    %cst_186 = arith.constant 1.000000e+00 : f32
    %1211 = vector.broadcast %cst_186 : f32 to vector<1x8xf32>
    %1212 = arith.addf %1211, %1210 : vector<1x8xf32>
    %1213 = arith.divf %1211, %1212 : vector<1x8xf32>
    %1214 = vector.broadcast %113 : f32 to vector<1x8xf32>
    %1215 = arith.mulf %1214, %1189 : vector<1x8xf32>
    %1216 = vector.broadcast %127 : f32 to vector<1x8xf32>
    %1217 = arith.addf %1215, %1216 : vector<1x8xf32>
    %1218 = vector.broadcast %117 : f32 to vector<1x8xf32>
    %1219 = arith.mulf %1218, %1147 : vector<1x8xf32>
    %1220 = arith.addf %1217, %1219 : vector<1x8xf32>
    %1221 = math.tanh %1220 : vector<1x8xf32>
    %1222 = vector.broadcast %114 : f32 to vector<1x8xf32>
    %1223 = arith.mulf %1222, %1189 : vector<1x8xf32>
    %1224 = vector.broadcast %130 : f32 to vector<1x8xf32>
    %1225 = arith.addf %1223, %1224 : vector<1x8xf32>
    %1226 = vector.broadcast %118 : f32 to vector<1x8xf32>
    %1227 = arith.mulf %1226, %1147 : vector<1x8xf32>
    %1228 = arith.addf %1225, %1227 : vector<1x8xf32>
    %1229 = arith.negf %1228 : vector<1x8xf32>
    %1230 = math.exp %1229 : vector<1x8xf32>
    %cst_187 = arith.constant 1.000000e+00 : f32
    %1231 = vector.broadcast %cst_187 : f32 to vector<1x8xf32>
    %1232 = arith.addf %1231, %1230 : vector<1x8xf32>
    %1233 = arith.divf %1231, %1232 : vector<1x8xf32>
    %1234 = arith.mulf %1213, %1145 : vector<1x8xf32>
    %1235 = arith.mulf %1201, %1221 : vector<1x8xf32>
    %1236 = arith.addf %1234, %1235 : vector<1x8xf32>
    %1237 = math.tanh %1236 : vector<1x8xf32>
    %1238 = arith.mulf %1233, %1237 : vector<1x8xf32>
    %c0_188 = arith.constant 0 : index
    %c11_189 = arith.constant 11 : index
    %1239 = vector.load %arg11[%c0_188, %c11_189] : memref<32x16xf32, #tpu.memory_space<vmem>>, vector<32x1xf32>
    %1240 = vector.broadcast %1239 : vector<32x1xf32> to vector<32x8xf32>
    %1241 = vector.broadcast %1238 : vector<1x8xf32> to vector<32x8xf32>
    %1242 = arith.mulf %1240, %1241 : vector<32x8xf32>
    %1243 = arith.addf %1152, %1242 : vector<32x8xf32>
    %1244 = vector.extract_strided_slice %134 {offsets = [12, 0], sizes = [1, 8], strides = [1, 1]} : vector<16x8xf32> to vector<1x8xf32>
    %1245 = vector.broadcast %95 : f32 to vector<1x8xf32>
    %1246 = arith.mulf %1245, %1189 : vector<1x8xf32>
    %1247 = arith.addf %1244, %1246 : vector<1x8xf32>
    %1248 = arith.negf %1247 : vector<1x8xf32>
    %1249 = math.exp %1248 : vector<1x8xf32>
    %cst_190 = arith.constant 1.000000e+00 : f32
    %1250 = vector.broadcast %cst_190 : f32 to vector<1x8xf32>
    %1251 = arith.addf %1250, %1249 : vector<1x8xf32>
    %1252 = arith.divf %1250, %1251 : vector<1x8xf32>
    %1253 = vector.extract_strided_slice %138 {offsets = [12, 0], sizes = [1, 8], strides = [1, 1]} : vector<16x8xf32> to vector<1x8xf32>
    %1254 = vector.broadcast %96 : f32 to vector<1x8xf32>
    %1255 = arith.mulf %1254, %1189 : vector<1x8xf32>
    %1256 = arith.addf %1253, %1255 : vector<1x8xf32>
    %1257 = arith.negf %1256 : vector<1x8xf32>
    %1258 = math.exp %1257 : vector<1x8xf32>
    %cst_191 = arith.constant 1.000000e+00 : f32
    %1259 = vector.broadcast %cst_191 : f32 to vector<1x8xf32>
    %1260 = arith.addf %1259, %1258 : vector<1x8xf32>
    %1261 = arith.divf %1259, %1260 : vector<1x8xf32>
    %1262 = vector.extract_strided_slice %142 {offsets = [12, 0], sizes = [1, 8], strides = [1, 1]} : vector<16x8xf32> to vector<1x8xf32>
    %1263 = vector.broadcast %97 : f32 to vector<1x8xf32>
    %1264 = arith.mulf %1263, %1189 : vector<1x8xf32>
    %1265 = arith.addf %1262, %1264 : vector<1x8xf32>
    %1266 = math.tanh %1265 : vector<1x8xf32>
    %1267 = vector.extract_strided_slice %146 {offsets = [12, 0], sizes = [1, 8], strides = [1, 1]} : vector<16x8xf32> to vector<1x8xf32>
    %1268 = vector.broadcast %98 : f32 to vector<1x8xf32>
    %1269 = arith.mulf %1268, %1189 : vector<1x8xf32>
    %1270 = arith.addf %1267, %1269 : vector<1x8xf32>
    %1271 = arith.negf %1270 : vector<1x8xf32>
    %1272 = math.exp %1271 : vector<1x8xf32>
    %cst_192 = arith.constant 1.000000e+00 : f32
    %1273 = vector.broadcast %cst_192 : f32 to vector<1x8xf32>
    %1274 = arith.addf %1273, %1272 : vector<1x8xf32>
    %1275 = arith.divf %1273, %1274 : vector<1x8xf32>
    %1276 = arith.mulf %1261, %1187 : vector<1x8xf32>
    %1277 = arith.mulf %1252, %1266 : vector<1x8xf32>
    %1278 = arith.addf %1276, %1277 : vector<1x8xf32>
    %1279 = math.tanh %1278 : vector<1x8xf32>
    %1280 = arith.mulf %1275, %1279 : vector<1x8xf32>
    %1281 = vector.broadcast %111 : f32 to vector<1x8xf32>
    %1282 = arith.mulf %1281, %1280 : vector<1x8xf32>
    %1283 = vector.broadcast %121 : f32 to vector<1x8xf32>
    %1284 = arith.addf %1282, %1283 : vector<1x8xf32>
    %1285 = vector.broadcast %115 : f32 to vector<1x8xf32>
    %1286 = arith.mulf %1285, %1238 : vector<1x8xf32>
    %1287 = arith.addf %1284, %1286 : vector<1x8xf32>
    %1288 = arith.negf %1287 : vector<1x8xf32>
    %1289 = math.exp %1288 : vector<1x8xf32>
    %cst_193 = arith.constant 1.000000e+00 : f32
    %1290 = vector.broadcast %cst_193 : f32 to vector<1x8xf32>
    %1291 = arith.addf %1290, %1289 : vector<1x8xf32>
    %1292 = arith.divf %1290, %1291 : vector<1x8xf32>
    %1293 = vector.broadcast %112 : f32 to vector<1x8xf32>
    %1294 = arith.mulf %1293, %1280 : vector<1x8xf32>
    %1295 = vector.broadcast %124 : f32 to vector<1x8xf32>
    %1296 = arith.addf %1294, %1295 : vector<1x8xf32>
    %1297 = vector.broadcast %116 : f32 to vector<1x8xf32>
    %1298 = arith.mulf %1297, %1238 : vector<1x8xf32>
    %1299 = arith.addf %1296, %1298 : vector<1x8xf32>
    %1300 = arith.negf %1299 : vector<1x8xf32>
    %1301 = math.exp %1300 : vector<1x8xf32>
    %cst_194 = arith.constant 1.000000e+00 : f32
    %1302 = vector.broadcast %cst_194 : f32 to vector<1x8xf32>
    %1303 = arith.addf %1302, %1301 : vector<1x8xf32>
    %1304 = arith.divf %1302, %1303 : vector<1x8xf32>
    %1305 = vector.broadcast %113 : f32 to vector<1x8xf32>
    %1306 = arith.mulf %1305, %1280 : vector<1x8xf32>
    %1307 = vector.broadcast %127 : f32 to vector<1x8xf32>
    %1308 = arith.addf %1306, %1307 : vector<1x8xf32>
    %1309 = vector.broadcast %117 : f32 to vector<1x8xf32>
    %1310 = arith.mulf %1309, %1238 : vector<1x8xf32>
    %1311 = arith.addf %1308, %1310 : vector<1x8xf32>
    %1312 = math.tanh %1311 : vector<1x8xf32>
    %1313 = vector.broadcast %114 : f32 to vector<1x8xf32>
    %1314 = arith.mulf %1313, %1280 : vector<1x8xf32>
    %1315 = vector.broadcast %130 : f32 to vector<1x8xf32>
    %1316 = arith.addf %1314, %1315 : vector<1x8xf32>
    %1317 = vector.broadcast %118 : f32 to vector<1x8xf32>
    %1318 = arith.mulf %1317, %1238 : vector<1x8xf32>
    %1319 = arith.addf %1316, %1318 : vector<1x8xf32>
    %1320 = arith.negf %1319 : vector<1x8xf32>
    %1321 = math.exp %1320 : vector<1x8xf32>
    %cst_195 = arith.constant 1.000000e+00 : f32
    %1322 = vector.broadcast %cst_195 : f32 to vector<1x8xf32>
    %1323 = arith.addf %1322, %1321 : vector<1x8xf32>
    %1324 = arith.divf %1322, %1323 : vector<1x8xf32>
    %1325 = arith.mulf %1304, %1236 : vector<1x8xf32>
    %1326 = arith.mulf %1292, %1312 : vector<1x8xf32>
    %1327 = arith.addf %1325, %1326 : vector<1x8xf32>
    %1328 = math.tanh %1327 : vector<1x8xf32>
    %1329 = arith.mulf %1324, %1328 : vector<1x8xf32>
    %c0_196 = arith.constant 0 : index
    %c12_197 = arith.constant 12 : index
    %1330 = vector.load %arg11[%c0_196, %c12_197] : memref<32x16xf32, #tpu.memory_space<vmem>>, vector<32x1xf32>
    %1331 = vector.broadcast %1330 : vector<32x1xf32> to vector<32x8xf32>
    %1332 = vector.broadcast %1329 : vector<1x8xf32> to vector<32x8xf32>
    %1333 = arith.mulf %1331, %1332 : vector<32x8xf32>
    %1334 = arith.addf %1243, %1333 : vector<32x8xf32>
    %1335 = vector.extract_strided_slice %134 {offsets = [13, 0], sizes = [1, 8], strides = [1, 1]} : vector<16x8xf32> to vector<1x8xf32>
    %1336 = vector.broadcast %95 : f32 to vector<1x8xf32>
    %1337 = arith.mulf %1336, %1280 : vector<1x8xf32>
    %1338 = arith.addf %1335, %1337 : vector<1x8xf32>
    %1339 = arith.negf %1338 : vector<1x8xf32>
    %1340 = math.exp %1339 : vector<1x8xf32>
    %cst_198 = arith.constant 1.000000e+00 : f32
    %1341 = vector.broadcast %cst_198 : f32 to vector<1x8xf32>
    %1342 = arith.addf %1341, %1340 : vector<1x8xf32>
    %1343 = arith.divf %1341, %1342 : vector<1x8xf32>
    %1344 = vector.extract_strided_slice %138 {offsets = [13, 0], sizes = [1, 8], strides = [1, 1]} : vector<16x8xf32> to vector<1x8xf32>
    %1345 = vector.broadcast %96 : f32 to vector<1x8xf32>
    %1346 = arith.mulf %1345, %1280 : vector<1x8xf32>
    %1347 = arith.addf %1344, %1346 : vector<1x8xf32>
    %1348 = arith.negf %1347 : vector<1x8xf32>
    %1349 = math.exp %1348 : vector<1x8xf32>
    %cst_199 = arith.constant 1.000000e+00 : f32
    %1350 = vector.broadcast %cst_199 : f32 to vector<1x8xf32>
    %1351 = arith.addf %1350, %1349 : vector<1x8xf32>
    %1352 = arith.divf %1350, %1351 : vector<1x8xf32>
    %1353 = vector.extract_strided_slice %142 {offsets = [13, 0], sizes = [1, 8], strides = [1, 1]} : vector<16x8xf32> to vector<1x8xf32>
    %1354 = vector.broadcast %97 : f32 to vector<1x8xf32>
    %1355 = arith.mulf %1354, %1280 : vector<1x8xf32>
    %1356 = arith.addf %1353, %1355 : vector<1x8xf32>
    %1357 = math.tanh %1356 : vector<1x8xf32>
    %1358 = vector.extract_strided_slice %146 {offsets = [13, 0], sizes = [1, 8], strides = [1, 1]} : vector<16x8xf32> to vector<1x8xf32>
    %1359 = vector.broadcast %98 : f32 to vector<1x8xf32>
    %1360 = arith.mulf %1359, %1280 : vector<1x8xf32>
    %1361 = arith.addf %1358, %1360 : vector<1x8xf32>
    %1362 = arith.negf %1361 : vector<1x8xf32>
    %1363 = math.exp %1362 : vector<1x8xf32>
    %cst_200 = arith.constant 1.000000e+00 : f32
    %1364 = vector.broadcast %cst_200 : f32 to vector<1x8xf32>
    %1365 = arith.addf %1364, %1363 : vector<1x8xf32>
    %1366 = arith.divf %1364, %1365 : vector<1x8xf32>
    %1367 = arith.mulf %1352, %1278 : vector<1x8xf32>
    %1368 = arith.mulf %1343, %1357 : vector<1x8xf32>
    %1369 = arith.addf %1367, %1368 : vector<1x8xf32>
    %1370 = math.tanh %1369 : vector<1x8xf32>
    %1371 = arith.mulf %1366, %1370 : vector<1x8xf32>
    %1372 = vector.broadcast %111 : f32 to vector<1x8xf32>
    %1373 = arith.mulf %1372, %1371 : vector<1x8xf32>
    %1374 = vector.broadcast %121 : f32 to vector<1x8xf32>
    %1375 = arith.addf %1373, %1374 : vector<1x8xf32>
    %1376 = vector.broadcast %115 : f32 to vector<1x8xf32>
    %1377 = arith.mulf %1376, %1329 : vector<1x8xf32>
    %1378 = arith.addf %1375, %1377 : vector<1x8xf32>
    %1379 = arith.negf %1378 : vector<1x8xf32>
    %1380 = math.exp %1379 : vector<1x8xf32>
    %cst_201 = arith.constant 1.000000e+00 : f32
    %1381 = vector.broadcast %cst_201 : f32 to vector<1x8xf32>
    %1382 = arith.addf %1381, %1380 : vector<1x8xf32>
    %1383 = arith.divf %1381, %1382 : vector<1x8xf32>
    %1384 = vector.broadcast %112 : f32 to vector<1x8xf32>
    %1385 = arith.mulf %1384, %1371 : vector<1x8xf32>
    %1386 = vector.broadcast %124 : f32 to vector<1x8xf32>
    %1387 = arith.addf %1385, %1386 : vector<1x8xf32>
    %1388 = vector.broadcast %116 : f32 to vector<1x8xf32>
    %1389 = arith.mulf %1388, %1329 : vector<1x8xf32>
    %1390 = arith.addf %1387, %1389 : vector<1x8xf32>
    %1391 = arith.negf %1390 : vector<1x8xf32>
    %1392 = math.exp %1391 : vector<1x8xf32>
    %cst_202 = arith.constant 1.000000e+00 : f32
    %1393 = vector.broadcast %cst_202 : f32 to vector<1x8xf32>
    %1394 = arith.addf %1393, %1392 : vector<1x8xf32>
    %1395 = arith.divf %1393, %1394 : vector<1x8xf32>
    %1396 = vector.broadcast %113 : f32 to vector<1x8xf32>
    %1397 = arith.mulf %1396, %1371 : vector<1x8xf32>
    %1398 = vector.broadcast %127 : f32 to vector<1x8xf32>
    %1399 = arith.addf %1397, %1398 : vector<1x8xf32>
    %1400 = vector.broadcast %117 : f32 to vector<1x8xf32>
    %1401 = arith.mulf %1400, %1329 : vector<1x8xf32>
    %1402 = arith.addf %1399, %1401 : vector<1x8xf32>
    %1403 = math.tanh %1402 : vector<1x8xf32>
    %1404 = vector.broadcast %114 : f32 to vector<1x8xf32>
    %1405 = arith.mulf %1404, %1371 : vector<1x8xf32>
    %1406 = vector.broadcast %130 : f32 to vector<1x8xf32>
    %1407 = arith.addf %1405, %1406 : vector<1x8xf32>
    %1408 = vector.broadcast %118 : f32 to vector<1x8xf32>
    %1409 = arith.mulf %1408, %1329 : vector<1x8xf32>
    %1410 = arith.addf %1407, %1409 : vector<1x8xf32>
    %1411 = arith.negf %1410 : vector<1x8xf32>
    %1412 = math.exp %1411 : vector<1x8xf32>
    %cst_203 = arith.constant 1.000000e+00 : f32
    %1413 = vector.broadcast %cst_203 : f32 to vector<1x8xf32>
    %1414 = arith.addf %1413, %1412 : vector<1x8xf32>
    %1415 = arith.divf %1413, %1414 : vector<1x8xf32>
    %1416 = arith.mulf %1395, %1327 : vector<1x8xf32>
    %1417 = arith.mulf %1383, %1403 : vector<1x8xf32>
    %1418 = arith.addf %1416, %1417 : vector<1x8xf32>
    %1419 = math.tanh %1418 : vector<1x8xf32>
    %1420 = arith.mulf %1415, %1419 : vector<1x8xf32>
    %c0_204 = arith.constant 0 : index
    %c13_205 = arith.constant 13 : index
    %1421 = vector.load %arg11[%c0_204, %c13_205] : memref<32x16xf32, #tpu.memory_space<vmem>>, vector<32x1xf32>
    %1422 = vector.broadcast %1421 : vector<32x1xf32> to vector<32x8xf32>
    %1423 = vector.broadcast %1420 : vector<1x8xf32> to vector<32x8xf32>
    %1424 = arith.mulf %1422, %1423 : vector<32x8xf32>
    %1425 = arith.addf %1334, %1424 : vector<32x8xf32>
    %1426 = vector.extract_strided_slice %134 {offsets = [14, 0], sizes = [1, 8], strides = [1, 1]} : vector<16x8xf32> to vector<1x8xf32>
    %1427 = vector.broadcast %95 : f32 to vector<1x8xf32>
    %1428 = arith.mulf %1427, %1371 : vector<1x8xf32>
    %1429 = arith.addf %1426, %1428 : vector<1x8xf32>
    %1430 = arith.negf %1429 : vector<1x8xf32>
    %1431 = math.exp %1430 : vector<1x8xf32>
    %cst_206 = arith.constant 1.000000e+00 : f32
    %1432 = vector.broadcast %cst_206 : f32 to vector<1x8xf32>
    %1433 = arith.addf %1432, %1431 : vector<1x8xf32>
    %1434 = arith.divf %1432, %1433 : vector<1x8xf32>
    %1435 = vector.extract_strided_slice %138 {offsets = [14, 0], sizes = [1, 8], strides = [1, 1]} : vector<16x8xf32> to vector<1x8xf32>
    %1436 = vector.broadcast %96 : f32 to vector<1x8xf32>
    %1437 = arith.mulf %1436, %1371 : vector<1x8xf32>
    %1438 = arith.addf %1435, %1437 : vector<1x8xf32>
    %1439 = arith.negf %1438 : vector<1x8xf32>
    %1440 = math.exp %1439 : vector<1x8xf32>
    %cst_207 = arith.constant 1.000000e+00 : f32
    %1441 = vector.broadcast %cst_207 : f32 to vector<1x8xf32>
    %1442 = arith.addf %1441, %1440 : vector<1x8xf32>
    %1443 = arith.divf %1441, %1442 : vector<1x8xf32>
    %1444 = vector.extract_strided_slice %142 {offsets = [14, 0], sizes = [1, 8], strides = [1, 1]} : vector<16x8xf32> to vector<1x8xf32>
    %1445 = vector.broadcast %97 : f32 to vector<1x8xf32>
    %1446 = arith.mulf %1445, %1371 : vector<1x8xf32>
    %1447 = arith.addf %1444, %1446 : vector<1x8xf32>
    %1448 = math.tanh %1447 : vector<1x8xf32>
    %1449 = vector.extract_strided_slice %146 {offsets = [14, 0], sizes = [1, 8], strides = [1, 1]} : vector<16x8xf32> to vector<1x8xf32>
    %1450 = vector.broadcast %98 : f32 to vector<1x8xf32>
    %1451 = arith.mulf %1450, %1371 : vector<1x8xf32>
    %1452 = arith.addf %1449, %1451 : vector<1x8xf32>
    %1453 = arith.negf %1452 : vector<1x8xf32>
    %1454 = math.exp %1453 : vector<1x8xf32>
    %cst_208 = arith.constant 1.000000e+00 : f32
    %1455 = vector.broadcast %cst_208 : f32 to vector<1x8xf32>
    %1456 = arith.addf %1455, %1454 : vector<1x8xf32>
    %1457 = arith.divf %1455, %1456 : vector<1x8xf32>
    %1458 = arith.mulf %1443, %1369 : vector<1x8xf32>
    %1459 = arith.mulf %1434, %1448 : vector<1x8xf32>
    %1460 = arith.addf %1458, %1459 : vector<1x8xf32>
    %1461 = math.tanh %1460 : vector<1x8xf32>
    %1462 = arith.mulf %1457, %1461 : vector<1x8xf32>
    %1463 = vector.broadcast %111 : f32 to vector<1x8xf32>
    %1464 = arith.mulf %1463, %1462 : vector<1x8xf32>
    %1465 = vector.broadcast %121 : f32 to vector<1x8xf32>
    %1466 = arith.addf %1464, %1465 : vector<1x8xf32>
    %1467 = vector.broadcast %115 : f32 to vector<1x8xf32>
    %1468 = arith.mulf %1467, %1420 : vector<1x8xf32>
    %1469 = arith.addf %1466, %1468 : vector<1x8xf32>
    %1470 = arith.negf %1469 : vector<1x8xf32>
    %1471 = math.exp %1470 : vector<1x8xf32>
    %cst_209 = arith.constant 1.000000e+00 : f32
    %1472 = vector.broadcast %cst_209 : f32 to vector<1x8xf32>
    %1473 = arith.addf %1472, %1471 : vector<1x8xf32>
    %1474 = arith.divf %1472, %1473 : vector<1x8xf32>
    %1475 = vector.broadcast %112 : f32 to vector<1x8xf32>
    %1476 = arith.mulf %1475, %1462 : vector<1x8xf32>
    %1477 = vector.broadcast %124 : f32 to vector<1x8xf32>
    %1478 = arith.addf %1476, %1477 : vector<1x8xf32>
    %1479 = vector.broadcast %116 : f32 to vector<1x8xf32>
    %1480 = arith.mulf %1479, %1420 : vector<1x8xf32>
    %1481 = arith.addf %1478, %1480 : vector<1x8xf32>
    %1482 = arith.negf %1481 : vector<1x8xf32>
    %1483 = math.exp %1482 : vector<1x8xf32>
    %cst_210 = arith.constant 1.000000e+00 : f32
    %1484 = vector.broadcast %cst_210 : f32 to vector<1x8xf32>
    %1485 = arith.addf %1484, %1483 : vector<1x8xf32>
    %1486 = arith.divf %1484, %1485 : vector<1x8xf32>
    %1487 = vector.broadcast %113 : f32 to vector<1x8xf32>
    %1488 = arith.mulf %1487, %1462 : vector<1x8xf32>
    %1489 = vector.broadcast %127 : f32 to vector<1x8xf32>
    %1490 = arith.addf %1488, %1489 : vector<1x8xf32>
    %1491 = vector.broadcast %117 : f32 to vector<1x8xf32>
    %1492 = arith.mulf %1491, %1420 : vector<1x8xf32>
    %1493 = arith.addf %1490, %1492 : vector<1x8xf32>
    %1494 = math.tanh %1493 : vector<1x8xf32>
    %1495 = vector.broadcast %114 : f32 to vector<1x8xf32>
    %1496 = arith.mulf %1495, %1462 : vector<1x8xf32>
    %1497 = vector.broadcast %130 : f32 to vector<1x8xf32>
    %1498 = arith.addf %1496, %1497 : vector<1x8xf32>
    %1499 = vector.broadcast %118 : f32 to vector<1x8xf32>
    %1500 = arith.mulf %1499, %1420 : vector<1x8xf32>
    %1501 = arith.addf %1498, %1500 : vector<1x8xf32>
    %1502 = arith.negf %1501 : vector<1x8xf32>
    %1503 = math.exp %1502 : vector<1x8xf32>
    %cst_211 = arith.constant 1.000000e+00 : f32
    %1504 = vector.broadcast %cst_211 : f32 to vector<1x8xf32>
    %1505 = arith.addf %1504, %1503 : vector<1x8xf32>
    %1506 = arith.divf %1504, %1505 : vector<1x8xf32>
    %1507 = arith.mulf %1486, %1418 : vector<1x8xf32>
    %1508 = arith.mulf %1474, %1494 : vector<1x8xf32>
    %1509 = arith.addf %1507, %1508 : vector<1x8xf32>
    %1510 = math.tanh %1509 : vector<1x8xf32>
    %1511 = arith.mulf %1506, %1510 : vector<1x8xf32>
    %c0_212 = arith.constant 0 : index
    %c14_213 = arith.constant 14 : index
    %1512 = vector.load %arg11[%c0_212, %c14_213] : memref<32x16xf32, #tpu.memory_space<vmem>>, vector<32x1xf32>
    %1513 = vector.broadcast %1512 : vector<32x1xf32> to vector<32x8xf32>
    %1514 = vector.broadcast %1511 : vector<1x8xf32> to vector<32x8xf32>
    %1515 = arith.mulf %1513, %1514 : vector<32x8xf32>
    %1516 = arith.addf %1425, %1515 : vector<32x8xf32>
    %1517 = vector.extract_strided_slice %134 {offsets = [15, 0], sizes = [1, 8], strides = [1, 1]} : vector<16x8xf32> to vector<1x8xf32>
    %1518 = vector.broadcast %95 : f32 to vector<1x8xf32>
    %1519 = arith.mulf %1518, %1462 : vector<1x8xf32>
    %1520 = arith.addf %1517, %1519 : vector<1x8xf32>
    %1521 = arith.negf %1520 : vector<1x8xf32>
    %1522 = math.exp %1521 : vector<1x8xf32>
    %cst_214 = arith.constant 1.000000e+00 : f32
    %1523 = vector.broadcast %cst_214 : f32 to vector<1x8xf32>
    %1524 = arith.addf %1523, %1522 : vector<1x8xf32>
    %1525 = arith.divf %1523, %1524 : vector<1x8xf32>
    %1526 = vector.extract_strided_slice %138 {offsets = [15, 0], sizes = [1, 8], strides = [1, 1]} : vector<16x8xf32> to vector<1x8xf32>
    %1527 = vector.broadcast %96 : f32 to vector<1x8xf32>
    %1528 = arith.mulf %1527, %1462 : vector<1x8xf32>
    %1529 = arith.addf %1526, %1528 : vector<1x8xf32>
    %1530 = arith.negf %1529 : vector<1x8xf32>
    %1531 = math.exp %1530 : vector<1x8xf32>
    %cst_215 = arith.constant 1.000000e+00 : f32
    %1532 = vector.broadcast %cst_215 : f32 to vector<1x8xf32>
    %1533 = arith.addf %1532, %1531 : vector<1x8xf32>
    %1534 = arith.divf %1532, %1533 : vector<1x8xf32>
    %1535 = vector.extract_strided_slice %142 {offsets = [15, 0], sizes = [1, 8], strides = [1, 1]} : vector<16x8xf32> to vector<1x8xf32>
    %1536 = vector.broadcast %97 : f32 to vector<1x8xf32>
    %1537 = arith.mulf %1536, %1462 : vector<1x8xf32>
    %1538 = arith.addf %1535, %1537 : vector<1x8xf32>
    %1539 = math.tanh %1538 : vector<1x8xf32>
    %1540 = vector.extract_strided_slice %146 {offsets = [15, 0], sizes = [1, 8], strides = [1, 1]} : vector<16x8xf32> to vector<1x8xf32>
    %1541 = vector.broadcast %98 : f32 to vector<1x8xf32>
    %1542 = arith.mulf %1541, %1462 : vector<1x8xf32>
    %1543 = arith.addf %1540, %1542 : vector<1x8xf32>
    %1544 = arith.negf %1543 : vector<1x8xf32>
    %1545 = math.exp %1544 : vector<1x8xf32>
    %cst_216 = arith.constant 1.000000e+00 : f32
    %1546 = vector.broadcast %cst_216 : f32 to vector<1x8xf32>
    %1547 = arith.addf %1546, %1545 : vector<1x8xf32>
    %1548 = arith.divf %1546, %1547 : vector<1x8xf32>
    %1549 = arith.mulf %1534, %1460 : vector<1x8xf32>
    %1550 = arith.mulf %1525, %1539 : vector<1x8xf32>
    %1551 = arith.addf %1549, %1550 : vector<1x8xf32>
    %1552 = math.tanh %1551 : vector<1x8xf32>
    %1553 = arith.mulf %1548, %1552 : vector<1x8xf32>
    %1554 = vector.broadcast %111 : f32 to vector<1x8xf32>
    %1555 = arith.mulf %1554, %1553 : vector<1x8xf32>
    %1556 = vector.broadcast %121 : f32 to vector<1x8xf32>
    %1557 = arith.addf %1555, %1556 : vector<1x8xf32>
    %1558 = vector.broadcast %115 : f32 to vector<1x8xf32>
    %1559 = arith.mulf %1558, %1511 : vector<1x8xf32>
    %1560 = arith.addf %1557, %1559 : vector<1x8xf32>
    %1561 = arith.negf %1560 : vector<1x8xf32>
    %1562 = math.exp %1561 : vector<1x8xf32>
    %cst_217 = arith.constant 1.000000e+00 : f32
    %1563 = vector.broadcast %cst_217 : f32 to vector<1x8xf32>
    %1564 = arith.addf %1563, %1562 : vector<1x8xf32>
    %1565 = arith.divf %1563, %1564 : vector<1x8xf32>
    %1566 = vector.broadcast %112 : f32 to vector<1x8xf32>
    %1567 = arith.mulf %1566, %1553 : vector<1x8xf32>
    %1568 = vector.broadcast %124 : f32 to vector<1x8xf32>
    %1569 = arith.addf %1567, %1568 : vector<1x8xf32>
    %1570 = vector.broadcast %116 : f32 to vector<1x8xf32>
    %1571 = arith.mulf %1570, %1511 : vector<1x8xf32>
    %1572 = arith.addf %1569, %1571 : vector<1x8xf32>
    %1573 = arith.negf %1572 : vector<1x8xf32>
    %1574 = math.exp %1573 : vector<1x8xf32>
    %cst_218 = arith.constant 1.000000e+00 : f32
    %1575 = vector.broadcast %cst_218 : f32 to vector<1x8xf32>
    %1576 = arith.addf %1575, %1574 : vector<1x8xf32>
    %1577 = arith.divf %1575, %1576 : vector<1x8xf32>
    %1578 = vector.broadcast %113 : f32 to vector<1x8xf32>
    %1579 = arith.mulf %1578, %1553 : vector<1x8xf32>
    %1580 = vector.broadcast %127 : f32 to vector<1x8xf32>
    %1581 = arith.addf %1579, %1580 : vector<1x8xf32>
    %1582 = vector.broadcast %117 : f32 to vector<1x8xf32>
    %1583 = arith.mulf %1582, %1511 : vector<1x8xf32>
    %1584 = arith.addf %1581, %1583 : vector<1x8xf32>
    %1585 = math.tanh %1584 : vector<1x8xf32>
    %1586 = vector.broadcast %114 : f32 to vector<1x8xf32>
    %1587 = arith.mulf %1586, %1553 : vector<1x8xf32>
    %1588 = vector.broadcast %130 : f32 to vector<1x8xf32>
    %1589 = arith.addf %1587, %1588 : vector<1x8xf32>
    %1590 = vector.broadcast %118 : f32 to vector<1x8xf32>
    %1591 = arith.mulf %1590, %1511 : vector<1x8xf32>
    %1592 = arith.addf %1589, %1591 : vector<1x8xf32>
    %1593 = arith.negf %1592 : vector<1x8xf32>
    %1594 = math.exp %1593 : vector<1x8xf32>
    %cst_219 = arith.constant 1.000000e+00 : f32
    %1595 = vector.broadcast %cst_219 : f32 to vector<1x8xf32>
    %1596 = arith.addf %1595, %1594 : vector<1x8xf32>
    %1597 = arith.divf %1595, %1596 : vector<1x8xf32>
    %1598 = arith.mulf %1577, %1509 : vector<1x8xf32>
    %1599 = arith.mulf %1565, %1585 : vector<1x8xf32>
    %1600 = arith.addf %1598, %1599 : vector<1x8xf32>
    %1601 = math.tanh %1600 : vector<1x8xf32>
    %1602 = arith.mulf %1597, %1601 : vector<1x8xf32>
    %c0_220 = arith.constant 0 : index
    %c15_221 = arith.constant 15 : index
    %1603 = vector.load %arg11[%c0_220, %c15_221] : memref<32x16xf32, #tpu.memory_space<vmem>>, vector<32x1xf32>
    %1604 = vector.broadcast %1603 : vector<32x1xf32> to vector<32x8xf32>
    %1605 = vector.broadcast %1602 : vector<1x8xf32> to vector<32x8xf32>
    %1606 = arith.mulf %1604, %1605 : vector<32x8xf32>
    %1607 = arith.addf %1516, %1606 : vector<32x8xf32>
    %c0_222 = arith.constant 0 : index
    %c0_223 = arith.constant 0 : index
    %1608 = vector.load %arg12[%c0_222, %c0_223] : memref<32x1xf32, #tpu.memory_space<vmem>>, vector<32x1xf32>
    %1609 = vector.broadcast %1608 : vector<32x1xf32> to vector<32x8xf32>
    %1610 = arith.addf %1607, %1609 : vector<32x8xf32>
    %cst_224 = arith.constant 0.000000e+00 : f32
    %1611 = vector.broadcast %cst_224 : f32 to vector<32x8xf32>
    %1612 = arith.maximumf %1610, %1611 : vector<32x8xf32>
    %c0_225 = arith.constant 0 : index
    %c0_226 = arith.constant 0 : index
    %1613 = vector.load %arg13[%c0_225, %c0_226] : memref<16x32xf32, #tpu.memory_space<vmem>>, vector<16x32xf32>
    %cst_227 = arith.constant dense<0.000000e+00> : vector<16x8xf32>
    %1614 = tpu.matmul %1613, %1612, %cst_227 {dimension_numbers = #tpu.dot_dimension_numbers<[1], [0], [0], [1], [0, 0, 1, 1], [], []>} : vector<16x32xf32>, vector<32x8xf32>, vector<16x8xf32> -> vector<16x8xf32>
    %c0_228 = arith.constant 0 : index
    %c0_229 = arith.constant 0 : index
    %1615 = vector.load %arg14[%c0_228, %c0_229] : memref<16x1xf32, #tpu.memory_space<vmem>>, vector<16x1xf32>
    %1616 = vector.broadcast %1615 : vector<16x1xf32> to vector<16x8xf32>
    %1617 = arith.addf %1614, %1616 : vector<16x8xf32>
    %cst_230 = arith.constant 0.000000e+00 : f32
    %1618 = vector.broadcast %cst_230 : f32 to vector<16x8xf32>
    %1619 = arith.maximumf %1617, %1618 : vector<16x8xf32>
    %c0_231 = arith.constant 0 : index
    %c0_232 = arith.constant 0 : index
    %1620 = vector.load %arg15[%c0_231, %c0_232] : memref<1x16xf32, #tpu.memory_space<vmem>>, vector<1x16xf32>
    %cst_233 = arith.constant dense<0.000000e+00> : vector<1x8xf32>
    %1621 = tpu.matmul %1620, %1619, %cst_233 {dimension_numbers = #tpu.dot_dimension_numbers<[1], [0], [0], [1], [0, 0, 1, 1], [], []>} : vector<1x16xf32>, vector<16x8xf32>, vector<1x8xf32> -> vector<1x8xf32>
    %1622 = vector.broadcast %1 : f32 to vector<1x8xf32>
    %1623 = arith.addf %1621, %1622 : vector<1x8xf32>
    %c0_234 = arith.constant 0 : index
    %c0_235 = arith.constant 0 : index
    %c0_236 = arith.constant 0 : index
    %1624 = vector.load %arg16[%c0_234, %c0_235, %c0_236] : memref<1x1x8xf32, #tpu.memory_space<vmem>>, vector<1x1x8xf32>
    %1625 = vector.shape_cast %1624 : vector<1x1x8xf32> to vector<1x8xf32>
    %1626 = vector.shape_cast %1623 : vector<1x8xf32> to vector<1x1x8xf32>
    tpu.vector_store %arg16[%c0_234, %c0_235, %c0_236], %1626 {strides = array<i32>} : memref<1x1x8xf32, #tpu.memory_space<vmem>>, vector<1x1x8xf32>,
    return
  }
  func.func @transform_0(%arg0: i32) -> i32 {
    %c0_i32 = arith.constant 0 : i32
    %c0_i32_0 = arith.constant 0 : i32
    return %c0_i32 : i32
  }
  func.func @transform_1(%arg0: i32) -> i32 {
    %c0_i32 = arith.constant 0 : i32
    %c0_i32_0 = arith.constant 0 : i32
    return %c0_i32 : i32
  }
  func.func @transform_2(%arg0: i32) -> (i32, i32) {
    %c0_i32 = arith.constant 0 : i32
    %c0_i32_0 = arith.constant 0 : i32
    %c0_i32_1 = arith.constant 0 : i32
    return %c0_i32, %c0_i32_0 : i32, i32
  }
  func.func @transform_3(%arg0: i32) -> (i32, i32, i32) {
    %c0_i32 = arith.constant 0 : i32
    %c0_i32_0 = arith.constant 0 : i32
    %c0_i32_1 = arith.constant 0 : i32
    return %arg0, %c0_i32, %c0_i32_0 : i32, i32, i32
  }
  func.func @transform_4(%arg0: i32) -> (i32, i32) {
    %c0_i32 = arith.constant 0 : i32
    %c0_i32_0 = arith.constant 0 : i32
    %c0_i32_1 = arith.constant 0 : i32
    return %c0_i32, %c0_i32_0 : i32, i32
  }
  func.func @transform_5(%arg0: i32) -> (i32, i32) {
    %c0_i32 = arith.constant 0 : i32
    %c0_i32_0 = arith.constant 0 : i32
    %c0_i32_1 = arith.constant 0 : i32
    return %c0_i32, %c0_i32_0 : i32, i32
  }
  func.func @transform_6(%arg0: i32) -> (i32, i32) {
    %c0_i32 = arith.constant 0 : i32
    %c0_i32_0 = arith.constant 0 : i32
    %c0_i32_1 = arith.constant 0 : i32
    return %c0_i32, %c0_i32_0 : i32, i32
  }
  func.func @transform_7(%arg0: i32) -> (i32, i32) {
    %c0_i32 = arith.constant 0 : i32
    %c0_i32_0 = arith.constant 0 : i32
    %c0_i32_1 = arith.constant 0 : i32
    return %c0_i32, %c0_i32_0 : i32, i32
  }
  func.func @transform_8(%arg0: i32) -> (i32, i32) {
    %c0_i32 = arith.constant 0 : i32
    %c0_i32_0 = arith.constant 0 : i32
    %c0_i32_1 = arith.constant 0 : i32
    return %c0_i32, %c0_i32_0 : i32, i32
  }
  func.func @transform_9(%arg0: i32) -> (i32, i32) {
    %c0_i32 = arith.constant 0 : i32
    %c0_i32_0 = arith.constant 0 : i32
    %c0_i32_1 = arith.constant 0 : i32
    return %c0_i32, %c0_i32_0 : i32, i32
  }
  func.func @transform_10(%arg0: i32) -> (i32, i32) {
    %c0_i32 = arith.constant 0 : i32
    %c0_i32_0 = arith.constant 0 : i32
    %c0_i32_1 = arith.constant 0 : i32
    return %c0_i32, %c0_i32_0 : i32, i32
  }
  func.func @transform_11(%arg0: i32) -> (i32, i32) {
    %c0_i32 = arith.constant 0 : i32
    %c0_i32_0 = arith.constant 0 : i32
    %c0_i32_1 = arith.constant 0 : i32
    return %c0_i32, %c0_i32_0 : i32, i32
  }
  func.func @transform_12(%arg0: i32) -> (i32, i32) {
    %c0_i32 = arith.constant 0 : i32
    %c0_i32_0 = arith.constant 0 : i32
    %c0_i32_1 = arith.constant 0 : i32
    return %c0_i32, %c0_i32_0 : i32, i32
  }
  func.func @transform_13(%arg0: i32) -> (i32, i32) {
    %c0_i32 = arith.constant 0 : i32
    %c0_i32_0 = arith.constant 0 : i32
    %c0_i32_1 = arith.constant 0 : i32
    return %c0_i32, %c0_i32_0 : i32, i32
  }
  func.func @transform_14(%arg0: i32) -> (i32, i32) {
    %c0_i32 = arith.constant 0 : i32
    %c0_i32_0 = arith.constant 0 : i32
    %c0_i32_1 = arith.constant 0 : i32
    return %c0_i32, %c0_i32_0 : i32, i32
  }
  func.func @transform_15(%arg0: i32) -> (i32, i32, i32) {
    %c0_i32 = arith.constant 0 : i32
    %c0_i32_0 = arith.constant 0 : i32
    %c0_i32_1 = arith.constant 0 : i32
    return %arg0, %c0_i32, %c0_i32_0 : i32, i32, i32
  }
}

</mosaic_0001>

<llo_original>
// kernel: forward_windows.1
$region0: #{forward_windows.1}
  #allocation0 [shape = 'u32[]', space=smem, size = 0x4, offset = 0x4, fixed_abs, tag = 'smem constant byte address 0x4 - core index']
  #allocation1 [shape = 'u32[72,128]{1,0:T(1,128)}', space=vmem, size = 0x9000, scoped, tag = 'internal scratch']
  %s0 = inlined_call_operand.vmem [shape: f32[2], index: 0, kind: input, shape index: {}]
  %s1 = inlined_call_operand.vmem [shape: f32[2], index: 1, kind: input, shape index: {}]
  %s2 = inlined_call_operand.vmem [shape: f32[2,16], index: 2, kind: input, shape index: {}]
  %s3 = inlined_call_operand.vmem [shape: f32[4,8,16], index: 3, kind: input, shape index: {}]
  %s4 = inlined_call_operand.vmem [shape: f32[16,1], index: 4, kind: input, shape index: {}]
  %s5 = inlined_call_operand.vmem [shape: f32[1,16], index: 5, kind: input, shape index: {}]
  %s6 = inlined_call_operand.vmem [shape: f32[16,16], index: 6, kind: input, shape index: {}]
  %s7 = inlined_call_operand.vmem [shape: f32[8,8], index: 7, kind: input, shape index: {}]
  %s8 = inlined_call_operand.vmem [shape: f32[16,16], index: 8, kind: input, shape index: {}]
  %s9 = inlined_call_operand.vmem [shape: f32[1,16], index: 9, kind: input, shape index: {}]
  %s10 = inlined_call_operand.vmem [shape: f32[32,16], index: 10, kind: input, shape index: {}]
  %s11 = inlined_call_operand.vmem [shape: f32[32,1], index: 11, kind: input, shape index: {}]
  %s12 = inlined_call_operand.vmem [shape: f32[16,32], index: 12, kind: input, shape index: {}]
  %s13 = inlined_call_operand.vmem [shape: f32[16,1], index: 13, kind: input, shape index: {}]
  %s14 = inlined_call_operand.vmem [shape: f32[1,16], index: 14, kind: input, shape index: {}]
  %s15 = inlined_call_operand.hbm [shape: f32[4,1,8], index: 15, kind: output, shape index: {}]
  %s16 = sld [smem:[#allocation0]]
  $region105: #{forward_windows.1} parent=0
    _
  %s18 = ssub.s32 1, %s16
  %s19 = scalar_select 0, %s18, %s16
  $region1: #{forward_windows.1} parent=0
    #allocation2 [shape = 'u8[512]{0}', space=smem, size = 0x200, scoped, tag = 'input window, operand 0, single buffered']
    #allocation3 [shape = 's32[2]{0}', space=sflag, size = 0x8, scoped, tag = 'scoped memory for forward_windows.1']
    #allocation4 [shape = 's32[2]{0}', space=sflag, size = 0x8, scoped, tag = 'scoped memory for forward_windows.1']
    #allocation5 [shape = 'u8[512]{0}', space=smem, size = 0x200, scoped, tag = 'input window, operand 1, single buffered']
    #allocation6 [shape = 's32[1]{0}', space=sflag, size = 0x4, scoped, tag = 'scoped memory for forward_windows.1']
    #allocation7 [shape = 'u8[1024]{0}', space=smem, size = 0x400, scoped, tag = 'input window, operand 2, single buffered']
    #allocation8 [shape = 'u8[1024]{0}', space=vmem, size = 0x400, scoped, tag = 'output window, operand 0']
    %20 = vsyncpa [#allocation4], 0
    %21 = vsyncpa [#allocation6], 0
    %22 = vsyncpa [#allocation3], 0
    %s23 = scalar_lea.sflag [#allocation3], 1
    %24 = vsyncpa %s23, 0
    loop: start=0, step=1, limit=6
    $region2: #{forward_windows.1} parent=1 // loop_pre_header
      _
    $region3: #{forward_windows.1} parent=1 // loop_header
      %s26 = sphi 0, %s30
      %p27 = scmp.ge.s32.totalorder %s26, 6
      %s34 = sphi 0, %s34
      %s36 = sphi 0, %s34
      %s37 = sphi 0, %s36
      %s51 = sphi 0, %s37
      %s55 = sphi 0, %s55
      %s57 = sphi 0, %s55
      %s58 = sphi 0, %s57
      %s72 = sphi 0, %s58
      %s76 = sphi 0, %s76
      %s78 = sphi 0, %s76
      %s79 = sphi 0, %s78
      %s93 = sphi 0, %s79
      %s99 = sphi 0, %s101
      %s102 = sphi 0, %s99
      %s103 = sphi 0, %s102
      %s119 = sphi 0, %s103
      %s123 = sphi 0, %s123
      %s125 = sphi 0, %s123
      %s126 = sphi 0, %s125
      %s140 = sphi 0, %s126
      %s144 = sphi 0, %s144
      %s146 = sphi 0, %s144
      %s147 = sphi 0, %s146
      %s161 = sphi 0, %s147
      %s165 = sphi 0, %s165
      %s167 = sphi 0, %s165
      %s168 = sphi 0, %s167
      %s182 = sphi 0, %s168
      %s186 = sphi 0, %s186
      %s188 = sphi 0, %s186
      %s189 = sphi 0, %s188
      %s203 = sphi 0, %s189
      %s207 = sphi 0, %s207
      %s209 = sphi 0, %s207
      %s210 = sphi 0, %s209
      %s224 = sphi 0, %s210
      %s228 = sphi 0, %s228
      %s230 = sphi 0, %s228
      %s231 = sphi 0, %s230
      %s245 = sphi 0, %s231
      %s249 = sphi 0, %s249
      %s251 = sphi 0, %s249
      %s252 = sphi 0, %s251
      %s266 = sphi 0, %s252
      %s270 = sphi 0, %s270
      %s272 = sphi 0, %s270
      %s273 = sphi 0, %s272
      %s287 = sphi 0, %s273
      %s291 = sphi 0, %s291
      %s293 = sphi 0, %s291
      %s294 = sphi 0, %s293
      %s308 = sphi 0, %s294
      %s312 = sphi 0, %s312
      %s314 = sphi 0, %s312
      %s315 = sphi 0, %s314
      %s329 = sphi 0, %s315
      %s333 = sphi 0, %s333
      %s335 = sphi 0, %s333
      %s336 = sphi 0, %s335
      %s350 = sphi 0, %s336
      %s356 = sphi 0, %s358
      %s359 = sphi 0, %s356
      %s360 = sphi 0, %s359
      %s376 = sphi 0, %s360
    $region4: #{forward_windows.1} parent=1 // loop_header_branch
      %29 = sbr.rel (%p27) target = $region8
    $region5: #{forward_windows.1} parent=1 // loop_body
      %s31 = ssub.s32 %s26, 1
      %s32 = ssub.s32 %s26, 2
      %s33 = sadd.s32 %s26, 1
      %s35 = sadd.s32 %s34, 1
      %p38 = scmp.eq.s32.totalorder %s26, 3
      %p39 = scmp.ne.s32.totalorder %s34, %s36
      %p40 = scmp.eq.s32.totalorder %s26, 0
      %p41 = por %p39, %p40
      %p42 = scmp.ne.s32.totalorder %s34, %s36
      %p43 = scmp.eq.s32.totalorder %s31, 3
      %p44 = por %p42, %p43
      %p45 = scmp.ne.s32.totalorder %s36, %s37
      %p46 = scmp.eq.s32.totalorder %s31, 0
      %p47 = por %p45, %p46
      %p48 = scmp.ne.s32.totalorder %s36, %s37
      %p49 = scmp.eq.s32.totalorder %s32, 3
      %p50 = por %p48, %p49
      %p52 = scmp.ne.s32.totalorder %s37, %s51
      %p53 = scmp.eq.s32.totalorder %s32, 0
      %p54 = por %p52, %p53
      %s56 = sadd.s32 %s55, 1
      %p59 = scmp.eq.s32.totalorder %s26, 3
      %p60 = scmp.ne.s32.totalorder %s55, %s57
      %p61 = scmp.eq.s32.totalorder %s26, 0
      %p62 = por %p60, %p61
      %p63 = scmp.ne.s32.totalorder %s55, %s57
      %p64 = scmp.eq.s32.totalorder %s31, 3
      %p65 = por %p63, %p64
      %p66 = scmp.ne.s32.totalorder %s57, %s58
      %p67 = scmp.eq.s32.totalorder %s31, 0
      %p68 = por %p66, %p67
      %p69 = scmp.ne.s32.totalorder %s57, %s58
      %p70 = scmp.eq.s32.totalorder %s32, 3
      %p71 = por %p69, %p70
      %p73 = scmp.ne.s32.totalorder %s58, %s72
      %p74 = scmp.eq.s32.totalorder %s32, 0
      %p75 = por %p73, %p74
      %s77 = sadd.s32 %s76, 1
      %p80 = scmp.eq.s32.totalorder %s26, 3
      %p81 = scmp.ne.s32.totalorder %s76, %s78
      %p82 = scmp.eq.s32.totalorder %s26, 0
      %p83 = por %p81, %p82
      %p84 = scmp.ne.s32.totalorder %s76, %s78
      %p85 = scmp.eq.s32.totalorder %s31, 3
      %p86 = por %p84, %p85
      %p87 = scmp.ne.s32.totalorder %s78, %s79
      %p88 = scmp.eq.s32.totalorder %s31, 0
      %p89 = por %p87, %p88
      %p90 = scmp.ne.s32.totalorder %s78, %s79
      %p91 = scmp.eq.s32.totalorder %s32, 3
      %p92 = por %p90, %p91
      %p94 = scmp.ne.s32.totalorder %s79, %s93
      %p95 = scmp.eq.s32.totalorder %s32, 0
      %p96 = por %p94, %p95
      %s97 = ssub.s32 %s26, %s33
      %p98 = scmp.eq.s32.totalorder %s97, 0
      %s100 = sadd.s32 %s99, 1
      %s101 = scalar_select %p98, %s99, %s100
      %p104 = pneg %p98
      %p105 = scmp.eq.s32.totalorder %s26, 3
      %p106 = por %p104, %p105
      %p107 = scmp.ne.s32.totalorder %s99, %s102
      %p108 = scmp.eq.s32.totalorder %s26, 0
      %p109 = por %p107, %p108
      %p110 = scmp.ne.s32.totalorder %s99, %s102
      %p111 = scmp.eq.s32.totalorder %s31, 3
      %p112 = por %p110, %p111
      %p113 = scmp.ne.s32.totalorder %s102, %s103
      %p114 = scmp.eq.s32.totalorder %s31, 0
      %p115 = por %p113, %p114
      %p116 = scmp.ne.s32.totalorder %s102, %s103
      %p117 = scmp.eq.s32.totalorder %s32, 3
      %p118 = por %p116, %p117
      %p120 = scmp.ne.s32.totalorder %s103, %s119
      %p121 = scmp.eq.s32.totalorder %s32, 0
      %p122 = por %p120, %p121
      %s124 = sadd.s32 %s123, 1
      %p127 = scmp.eq.s32.totalorder %s26, 3
      %p128 = scmp.ne.s32.totalorder %s123, %s125
      %p129 = scmp.eq.s32.totalorder %s26, 0
      %p130 = por %p128, %p129
      %p131 = scmp.ne.s32.totalorder %s123, %s125
      %p132 = scmp.eq.s32.totalorder %s31, 3
      %p133 = por %p131, %p132
      %p134 = scmp.ne.s32.totalorder %s125, %s126
      %p135 = scmp.eq.s32.totalorder %s31, 0
      %p136 = por %p134, %p135
      %p137 = scmp.ne.s32.totalorder %s125, %s126
      %p138 = scmp.eq.s32.totalorder %s32, 3
      %p139 = por %p137, %p138
      %p141 = scmp.ne.s32.totalorder %s126, %s140
      %p142 = scmp.eq.s32.totalorder %s32, 0
      %p143 = por %p141, %p142
      %s145 = sadd.s32 %s144, 1
      %p148 = scmp.eq.s32.totalorder %s26, 3
      %p149 = scmp.ne.s32.totalorder %s144, %s146
      %p150 = scmp.eq.s32.totalorder %s26, 0
      %p151 = por %p149, %p150
      %p152 = scmp.ne.s32.totalorder %s144, %s146
      %p153 = scmp.eq.s32.totalorder %s31, 3
      %p154 = por %p152, %p153
      %p155 = scmp.ne.s32.totalorder %s146, %s147
      %p156 = scmp.eq.s32.totalorder %s31, 0
      %p157 = por %p155, %p156
      %p158 = scmp.ne.s32.totalorder %s146, %s147
      %p159 = scmp.eq.s32.totalorder %s32, 3
      %p160 = por %p158, %p159
      %p162 = scmp.ne.s32.totalorder %s147, %s161
      %p163 = scmp.eq.s32.totalorder %s32, 0
      %p164 = por %p162, %p163
      %s166 = sadd.s32 %s165, 1
      %p169 = scmp.eq.s32.totalorder %s26, 3
      %p170 = scmp.ne.s32.totalorder %s165, %s167
      %p171 = scmp.eq.s32.totalorder %s26, 0
      %p172 = por %p170, %p171
      %p173 = scmp.ne.s32.totalorder %s165, %s167
      %p174 = scmp.eq.s32.totalorder %s31, 3
      %p175 = por %p173, %p174
      %p176 = scmp.ne.s32.totalorder %s167, %s168
      %p177 = scmp.eq.s32.totalorder %s31, 0
      %p178 = por %p176, %p177
      %p179 = scmp.ne.s32.totalorder %s167, %s168
      %p180 = scmp.eq.s32.totalorder %s32, 3
      %p181 = por %p179, %p180
      %p183 = scmp.ne.s32.totalorder %s168, %s182
      %p184 = scmp.eq.s32.totalorder %s32, 0
      %p185 = por %p183, %p184
      %s187 = sadd.s32 %s186, 1
      %p190 = scmp.eq.s32.totalorder %s26, 3
      %p191 = scmp.ne.s32.totalorder %s186, %s188
      %p192 = scmp.eq.s32.totalorder %s26, 0
      %p193 = por %p191, %p192
      %p194 = scmp.ne.s32.totalorder %s186, %s188
      %p195 = scmp.eq.s32.totalorder %s31, 3
      %p196 = por %p194, %p195
      %p197 = scmp.ne.s32.totalorder %s188, %s189
      %p198 = scmp.eq.s32.totalorder %s31, 0
      %p199 = por %p197, %p198
      %p200 = scmp.ne.s32.totalorder %s188, %s189
      %p201 = scmp.eq.s32.totalorder %s32, 3
      %p202 = por %p200, %p201
      %p204 = scmp.ne.s32.totalorder %s189, %s203
      %p205 = scmp.eq.s32.totalorder %s32, 0
      %p206 = por %p204, %p205
      %s208 = sadd.s32 %s207, 1
      %p211 = scmp.eq.s32.totalorder %s26, 3
      %p212 = scmp.ne.s32.totalorder %s207, %s209
      %p213 = scmp.eq.s32.totalorder %s26, 0
      %p214 = por %p212, %p213
      %p215 = scmp.ne.s32.totalorder %s207, %s209
      %p216 = scmp.eq.s32.totalorder %s31, 3
      %p217 = por %p215, %p216
      %p218 = scmp.ne.s32.totalorder %s209, %s210
      %p219 = scmp.eq.s32.totalorder %s31, 0
      %p220 = por %p218, %p219
      %p221 = scmp.ne.s32.totalorder %s209, %s210
      %p222 = scmp.eq.s32.totalorder %s32, 3
      %p223 = por %p221, %p222
      %p225 = scmp.ne.s32.totalorder %s210, %s224
      %p226 = scmp.eq.s32.totalorder %s32, 0
      %p227 = por %p225, %p226
      %s229 = sadd.s32 %s228, 1
      %p232 = scmp.eq.s32.totalorder %s26, 3
      %p233 = scmp.ne.s32.totalorder %s228, %s230
      %p234 = scmp.eq.s32.totalorder %s26, 0
      %p235 = por %p233, %p234
      %p236 = scmp.ne.s32.totalorder %s228, %s230
      %p237 = scmp.eq.s32.totalorder %s31, 3
      %p238 = por %p236, %p237
      %p239 = scmp.ne.s32.totalorder %s230, %s231
      %p240 = scmp.eq.s32.totalorder %s31, 0
      %p241 = por %p239, %p240
      %p242 = scmp.ne.s32.totalorder %s230, %s231
      %p243 = scmp.eq.s32.totalorder %s32, 3
      %p244 = por %p242, %p243
      %p246 = scmp.ne.s32.totalorder %s231, %s245
      %p247 = scmp.eq.s32.totalorder %s32, 0
      %p248 = por %p246, %p247
      %s250 = sadd.s32 %s249, 1
      %p253 = scmp.eq.s32.totalorder %s26, 3
      %p254 = scmp.ne.s32.totalorder %s249, %s251
      %p255 = scmp.eq.s32.totalorder %s26, 0
      %p256 = por %p254, %p255
      %p257 = scmp.ne.s32.totalorder %s249, %s251
      %p258 = scmp.eq.s32.totalorder %s31, 3
      %p259 = por %p257, %p258
      %p260 = scmp.ne.s32.totalorder %s251, %s252
      %p261 = scmp.eq.s32.totalorder %s31, 0
      %p262 = por %p260, %p261
      %p263 = scmp.ne.s32.totalorder %s251, %s252
      %p264 = scmp.eq.s32.totalorder %s32, 3
      %p265 = por %p263, %p264
      %p267 = scmp.ne.s32.totalorder %s252, %s266
      %p268 = scmp.eq.s32.totalorder %s32, 0
      %p269 = por %p267, %p268
      %s271 = sadd.s32 %s270, 1
      %p274 = scmp.eq.s32.totalorder %s26, 3
      %p275 = scmp.ne.s32.totalorder %s270, %s272
      %p276 = scmp.eq.s32.totalorder %s26, 0
      %p277 = por %p275, %p276
      %p278 = scmp.ne.s32.totalorder %s270, %s272
      %p279 = scmp.eq.s32.totalorder %s31, 3
      %p280 = por %p278, %p279
      %p281 = scmp.ne.s32.totalorder %s272, %s273
      %p282 = scmp.eq.s32.totalorder %s31, 0
      %p283 = por %p281, %p282
      %p284 = scmp.ne.s32.totalorder %s272, %s273
      %p285 = scmp.eq.s32.totalorder %s32, 3
      %p286 = por %p284, %p285
      %p288 = scmp.ne.s32.totalorder %s273, %s287
      %p289 = scmp.eq.s32.totalorder %s32, 0
      %p290 = por %p288, %p289
      %s292 = sadd.s32 %s291, 1
      %p295 = scmp.eq.s32.totalorder %s26, 3
      %p296 = scmp.ne.s32.totalorder %s291, %s293
      %p297 = scmp.eq.s32.totalorder %s26, 0
      %p298 = por %p296, %p297
      %p299 = scmp.ne.s32.totalorder %s291, %s293
      %p300 = scmp.eq.s32.totalorder %s31, 3
      %p301 = por %p299, %p300
      %p302 = scmp.ne.s32.totalorder %s293, %s294
      %p303 = scmp.eq.s32.totalorder %s31, 0
      %p304 = por %p302, %p303
      %p305 = scmp.ne.s32.totalorder %s293, %s294
      %p306 = scmp.eq.s32.totalorder %s32, 3
      %p307 = por %p305, %p306
      %p309 = scmp.ne.s32.totalorder %s294, %s308
      %p310 = scmp.eq.s32.totalorder %s32, 0
      %p311 = por %p309, %p310
      %s313 = sadd.s32 %s312, 1
      %p316 = scmp.eq.s32.totalorder %s26, 3
      %p317 = scmp.ne.s32.totalorder %s312, %s314
      %p318 = scmp.eq.s32.totalorder %s26, 0
      %p319 = por %p317, %p318
      %p320 = scmp.ne.s32.totalorder %s312, %s314
      %p321 = scmp.eq.s32.totalorder %s31, 3
      %p322 = por %p320, %p321
      %p323 = scmp.ne.s32.totalorder %s314, %s315
      %p324 = scmp.eq.s32.totalorder %s31, 0
      %p325 = por %p323, %p324
      %p326 = scmp.ne.s32.totalorder %s314, %s315
      %p327 = scmp.eq.s32.totalorder %s32, 3
      %p328 = por %p326, %p327
      %p330 = scmp.ne.s32.totalorder %s315, %s329
      %p331 = scmp.eq.s32.totalorder %s32, 0
      %p332 = por %p330, %p331
      %s334 = sadd.s32 %s333, 1
      %p337 = scmp.eq.s32.totalorder %s26, 3
      %p338 = scmp.ne.s32.totalorder %s333, %s335
      %p339 = scmp.eq.s32.totalorder %s26, 0
      %p340 = por %p338, %p339
      %p341 = scmp.ne.s32.totalorder %s333, %s335
      %p342 = scmp.eq.s32.totalorder %s31, 3
      %p343 = por %p341, %p342
      %p344 = scmp.ne.s32.totalorder %s335, %s336
      %p345 = scmp.eq.s32.totalorder %s31, 0
      %p346 = por %p344, %p345
      %p347 = scmp.ne.s32.totalorder %s335, %s336
      %p348 = scmp.eq.s32.totalorder %s32, 3
      %p349 = por %p347, %p348
      %p351 = scmp.ne.s32.totalorder %s336, %s350
      %p352 = scmp.eq.s32.totalorder %s32, 0
      %p353 = por %p351, %p352
      %s354 = ssub.s32 %s26, %s33
      %p355 = scmp.eq.s32.totalorder %s354, 0
      %s357 = sadd.s32 %s356, 1
      %s358 = scalar_select %p355, %s356, %s357
      %p361 = pneg %p355
      %p362 = scmp.eq.s32.totalorder %s26, 3
      %p363 = por %p361, %p362
      %p364 = scmp.ne.s32.totalorder %s356, %s359
      %p365 = scmp.eq.s32.totalorder %s26, 0
      %p366 = por %p364, %p365
      %p367 = scmp.ne.s32.totalorder %s356, %s359
      %p368 = scmp.eq.s32.totalorder %s31, 3
      %p369 = por %p367, %p368
      %p370 = scmp.ne.s32.totalorder %s359, %s360
      %p371 = scmp.eq.s32.totalorder %s31, 0
      %p372 = por %p370, %p371
      %p373 = scmp.ne.s32.totalorder %s359, %s360
      %p374 = scmp.eq.s32.totalorder %s32, 3
      %p375 = por %p373, %p374
      %p377 = scmp.ne.s32.totalorder %s360, %s376
      %p378 = scmp.eq.s32.totalorder %s32, 0
      %p379 = por %p377, %p378
      %p380 = scmp.le.s32.totalorder 1, %s26
      %p381 = scmp.lt.s32.totalorder %s26, 5
      %p382 = pnand %p380, %p381
      %p383 = pneg %p382
      // Predicated region
      $region9: #{forward_windows.1} parent=5 // pred_check
        _
      $region10: #{forward_windows.1} parent=5 // pred_check_branch
        %385 = sbr.rel (%p382) target = $region12
      $region11: #{forward_windows.1} parent=5 // pred_region
        %s386 = ssub.s32 %s26, 1
        // Predicated region
        $region13: #{forward_windows.1} parent=11 // pred_check
          %p387 = pneg %p47
        $region14: #{forward_windows.1} parent=11 // pred_check_branch
          %389 = sbr.rel (%p387) target = $region16
        $region15: #{forward_windows.1} parent=11 // pred_region
          %391 = vsyncadd [#allocation4], 0
          %s393 = sshll.u32 %s0, 4
          %s394 = int_to_ptr.vmem [resolvable:$true] %s393
          %396 = dma.vmem_to_smem %s394, 16, [#allocation2], [#allocation4]
        $region16: #{forward_windows.1} parent=11 // pred_fallthru
          _
        // Predicated region
        $region17: #{forward_windows.1} parent=11 // pred_check
          %p397 = pneg %p68
        $region18: #{forward_windows.1} parent=11 // pred_check_branch
          %399 = sbr.rel (%p397) target = $region20
        $region19: #{forward_windows.1} parent=11 // pred_region
          %401 = vsyncadd [#allocation6], 0
          %s403 = sshll.u32 %s1, 4
          %s404 = int_to_ptr.vmem [resolvable:$true] %s403
          %406 = dma.vmem_to_smem %s404, 16, [#allocation5], [#allocation6]
        $region20: #{forward_windows.1} parent=11 // pred_fallthru
          _
        // Predicated region
        $region21: #{forward_windows.1} parent=11 // pred_check
          %p407 = pneg %p89
        $region22: #{forward_windows.1} parent=11 // pred_check_branch
          %409 = sbr.rel (%p407) target = $region24
        $region23: #{forward_windows.1} parent=11 // pred_region
          %411 = vsyncadd [#allocation6], 0
          %s413 = sshll.u32 %s2, 4
          %s414 = int_to_ptr.vmem [resolvable:$true] %s413
          %416 = dma.vmem_to_smem %s414, 32, [#allocation7], [#allocation6]
        $region24: #{forward_windows.1} parent=11 // pred_fallthru
          _
        // Predicated region
        $region25: #{forward_windows.1} parent=11 // pred_check
          %p417 = pneg %p136
        $region26: #{forward_windows.1} parent=11 // pred_check_branch
          %419 = sbr.rel (%p417) target = $region28
        $region27: #{forward_windows.1} parent=11 // pred_region
          _
        $region28: #{forward_windows.1} parent=11 // pred_fallthru
          _
        // Predicated region
        $region29: #{forward_windows.1} parent=11 // pred_check
          %p420 = pneg %p157
        $region30: #{forward_windows.1} parent=11 // pred_check_branch
          %422 = sbr.rel (%p420) target = $region32
        $region31: #{forward_windows.1} parent=11 // pred_region
          _
        $region32: #{forward_windows.1} parent=11 // pred_fallthru
          _
        // Predicated region
        $region33: #{forward_windows.1} parent=11 // pred_check
          %p423 = pneg %p178
        $region34: #{forward_windows.1} parent=11 // pred_check_branch
          %425 = sbr.rel (%p423) target = $region36
        $region35: #{forward_windows.1} parent=11 // pred_region
          _
        $region36: #{forward_windows.1} parent=11 // pred_fallthru
          _
        // Predicated region
        $region37: #{forward_windows.1} parent=11 // pred_check
          %p426 = pneg %p199
        $region38: #{forward_windows.1} parent=11 // pred_check_branch
          %428 = sbr.rel (%p426) target = $region40
        $region39: #{forward_windows.1} parent=11 // pred_region
          _
        $region40: #{forward_windows.1} parent=11 // pred_fallthru
          _
        // Predicated region
        $region41: #{forward_windows.1} parent=11 // pred_check
          %p429 = pneg %p220
        $region42: #{forward_windows.1} parent=11 // pred_check_branch
          %431 = sbr.rel (%p429) target = $region44
        $region43: #{forward_windows.1} parent=11 // pred_region
          _
        $region44: #{forward_windows.1} parent=11 // pred_fallthru
          _
        // Predicated region
        $region45: #{forward_windows.1} parent=11 // pred_check
          %p432 = pneg %p241
        $region46: #{forward_windows.1} parent=11 // pred_check_branch
          %434 = sbr.rel (%p432) target = $region48
        $region47: #{forward_windows.1} parent=11 // pred_region
          _
        $region48: #{forward_windows.1} parent=11 // pred_fallthru
          _
        // Predicated region
        $region49: #{forward_windows.1} parent=11 // pred_check
          %p435 = pneg %p262
        $region50: #{forward_windows.1} parent=11 // pred_check_branch
          %437 = sbr.rel (%p435) target = $region52
        $region51: #{forward_windows.1} parent=11 // pred_region
          _
        $region52: #{forward_windows.1} parent=11 // pred_fallthru
          _
        // Predicated region
        $region53: #{forward_windows.1} parent=11 // pred_check
          %p438 = pneg %p283
        $region54: #{forward_windows.1} parent=11 // pred_check_branch
          %440 = sbr.rel (%p438) target = $region56
        $region55: #{forward_windows.1} parent=11 // pred_region
          _
        $region56: #{forward_windows.1} parent=11 // pred_fallthru
          _
        // Predicated region
        $region57: #{forward_windows.1} parent=11 // pred_check
          %p441 = pneg %p304
        $region58: #{forward_windows.1} parent=11 // pred_check_branch
          %443 = sbr.rel (%p441) target = $region60
        $region59: #{forward_windows.1} parent=11 // pred_region
          _
        $region60: #{forward_windows.1} parent=11 // pred_fallthru
          _
        // Predicated region
        $region61: #{forward_windows.1} parent=11 // pred_check
          %p444 = pneg %p325
        $region62: #{forward_windows.1} parent=11 // pred_check_branch
          %446 = sbr.rel (%p444) target = $region64
        $region63: #{forward_windows.1} parent=11 // pred_region
          _
        $region64: #{forward_windows.1} parent=11 // pred_fallthru
          _
        // Predicated region
        $region65: #{forward_windows.1} parent=11 // pred_check
          %p447 = pneg %p346
        $region66: #{forward_windows.1} parent=11 // pred_check_branch
          %449 = sbr.rel (%p447) target = $region68
        $region67: #{forward_windows.1} parent=11 // pred_region
          _
        $region68: #{forward_windows.1} parent=11 // pred_fallthru
          _
      $region12: #{forward_windows.1} parent=5 // pred_fallthru
        _
      %p450 = scmp.lt.s32.totalorder %s26, 4
      // Predicated region
      $region69: #{forward_windows.1} parent=5 // pred_check
        %p451 = pneg %p450
      $region70: #{forward_windows.1} parent=5 // pred_check_branch
        %453 = sbr.rel (%p451) target = $region72
      $region71: #{forward_windows.1} parent=5 // pred_region
        // Predicated region
        $region73: #{forward_windows.1} parent=71 // pred_check
          %p454 = pneg %p109
        $region74: #{forward_windows.1} parent=71 // pred_check_branch
          %456 = sbr.rel (%p454) target = $region76
        $region75: #{forward_windows.1} parent=71 // pred_region
          %p457 = scmp.lt.s32.totalorder %s26, 3
          %s458 = scalar_select %p457, %s26, 3
          %s459 = smul.addr %s458, 8
          %s460 = scalar_lea.vmem %s3, %s459
        $region76: #{forward_windows.1} parent=71 // pred_fallthru
          _
      $region72: #{forward_windows.1} parent=5 // pred_fallthru
        _
      %p461 = scmp.le.s32.totalorder 1, %s26
      %p462 = scmp.lt.s32.totalorder %s26, 5
      %p463 = pnand %p461, %p462
      %p464 = pneg %p463
      // Predicated region
      $region77: #{forward_windows.1} parent=5 // pred_check
        _
      $region78: #{forward_windows.1} parent=5 // pred_check_branch
        %466 = sbr.rel (%p463) target = $region80
      $region79: #{forward_windows.1} parent=5 // pred_region
        %s467 = ssub.s32 %s26, 1
        // Predicated region
        $region81: #{forward_windows.1} parent=79 // pred_check
          %p468 = pneg %p47
        $region82: #{forward_windows.1} parent=79 // pred_check_branch
          %470 = sbr.rel (%p468) target = $region84
        $region83: #{forward_windows.1} parent=79 // pred_region
          %472 = dma.done [#allocation4], 16
        $region84: #{forward_windows.1} parent=79 // pred_fallthru
          _
        // Predicated region
        $region85: #{forward_windows.1} parent=79 // pred_check
          %p473 = pneg %p68
        $region86: #{forward_windows.1} parent=79 // pred_check_branch
          %475 = sbr.rel (%p473) target = $region88
        $region87: #{forward_windows.1} parent=79 // pred_region
          %477 = dma.done [#allocation6], 16
        $region88: #{forward_windows.1} parent=79 // pred_fallthru
          _
        // Predicated region
        $region89: #{forward_windows.1} parent=79 // pred_check
          %p478 = pneg %p89
        $region90: #{forward_windows.1} parent=79 // pred_check_branch
          %480 = sbr.rel (%p478) target = $region92
        $region91: #{forward_windows.1} parent=79 // pred_region
          %482 = dma.done [#allocation6], 32
        $region92: #{forward_windows.1} parent=79 // pred_fallthru
          _
        %483 = sfence
        %p484 = pneg %p47
        %p485 = pneg %p44
        %p486 = pneg %p68
        %p487 = pneg %p65
        %p488 = pneg %p89
        %p489 = pneg %p86
        %p490 = scmp.lt.s32.totalorder %s31, 3
        %s491 = scalar_select %p490, %s31, 3
        %s492 = smul.addr %s491, 8
        %s493 = scalar_lea.vmem %s3, %s492
        %p494 = pneg %p115
        %p495 = pneg %p112
        %p496 = pneg %p136
        %p497 = pneg %p133
        %p498 = pneg %p157
        %p499 = pneg %p154
        %p500 = pneg %p178
        %p501 = pneg %p175
        %p502 = pneg %p199
        %p503 = pneg %p196
        %p504 = pneg %p220
        %p505 = pneg %p217
        %p506 = pneg %p241
        %p507 = pneg %p238
        %p508 = pneg %p262
        %p509 = pneg %p259
        %p510 = pneg %p283
        %p511 = pneg %p280
        %p512 = pneg %p304
        %p513 = pneg %p301
        %p514 = pneg %p325
        %p515 = pneg %p322
        %p516 = pneg %p346
        %p517 = pneg %p343
        %p518 = pneg %p372
        %p519 = pneg %p369
        %s520 = sand.u32 %s359, 1
        %s521 = scalar_lea.sflag [#allocation3], %s520
        %s522 = sand.u32 %s359, 1
        %s523 = scalar_lea.vmem [#allocation8], %s522
        %p524 = scmp.lt.s32.totalorder %s31, 3
        %s525 = scalar_select %p524, %s31, 3
        %s526 = smul.addr %s525, 8
        %s527 = scalar_lea.vmem %s3, %s526
        %s528 = sld [smem:[#allocation2]]
        %s529 = sld [smem:[#allocation2 + $0x1]]
        %s530 = sld [smem:[#allocation5]]
        %s531 = sld [smem:[#allocation5 + $0x1]]
        %v532 = vld [vmem:[%s4] sm:$0xff]
        %v533 = vld [vmem:[%s4 + $0x8] sm:$0xff]
        %v534 = vld [vmem:[%s5] sm:$0x1]
        %v535 = vld [vmem:[%s7] sm:$0xff]
        %v536 = vld [vmem:[%s8] sm:$0xff]
        %v537 = vld [vmem:[%s8 + $0x8] sm:$0xff]
        %v538 = vld [vmem:[%s9] sm:$0x1]
        %v539 = vld [vmem:[%s527] sm:$0xff]
        %vm540 = vcmask 130048
        %v542 = vsel %vm540, %v539, 0
        %544 = vmatpush.msra.mxu0 0.0
        %545 = vmatpush.msra.mxu0 0.0
        %546 = vmatpush.msra.mxu0 0.0
        %547 = vmatpush.msra.mxu0 0.0
        %548 = vmatpush.msra.mxu0 0.0
        %549 = vmatpush.msra.mxu0 0.0
        %550 = vmatpush.msra.mxu0 0.0
        %551 = vmatpush.msra.mxu0 0.0
        %552 = vmatpush.msra.mxu0 0.0
        %553 = vmatpush.msra.mxu0 0.0
        %554 = vmatpush.msra.mxu0 0.0
        %555 = vmatpush.msra.mxu0 0.0
        %556 = vmatpush.msra.mxu0 0.0
        %557 = vmatpush.msra.mxu0 0.0
        %558 = vmatpush.msra.mxu0 %v533
        %559 = vmatpush.msra.mxu0 %v532
        %560 = vmatmul.f32.gmra.mxu0 %v542
        %v561 = vpop.f32.mrf.mxu0
        %v562 = vadd.f32 0.0, %v561
        %563 = vdwg.mxu0
        %v565 = vsel %vm540, %v534, 0
        %567 = vmatpush.xpose.msra.mxu0 0.0
        %568 = vmatpush.xpose.msra.mxu0 0.0
        %569 = vmatpush.xpose.msra.mxu0 0.0
        %570 = vmatpush.xpose.msra.mxu0 0.0
        %571 = vmatpush.xpose.msra.mxu0 0.0
        %572 = vmatpush.xpose.msra.mxu0 0.0
        %573 = vmatpush.xpose.msra.mxu0 0.0
        %574 = vmatpush.xpose.msra.mxu0 0.0
        %575 = vmatpush.xpose.msra.mxu0 0.0
        %576 = vmatpush.xpose.msra.mxu0 0.0
        %577 = vmatpush.xpose.msra.mxu0 0.0
        %578 = vmatpush.xpose.msra.mxu0 0.0
        %579 = vmatpush.xpose.msra.mxu0 0.0
        %580 = vmatpush.xpose.msra.mxu0 0.0
        %581 = vmatpush.xpose.msra.mxu0 0.0
        %582 = vmatpush.xpose.msra.mxu0 %v542
        %583 = vmatmul.f32.gmra.mxu0 %v565
        %v584 = vpop.f32.mrf.mxu0
        %v585 = vadd.f32 0.0, %v584
        %586 = vdwg.mxu0
        %588 = vset.pattern.permute.xlu0 0
        %589 = vperm.xlu0 %588, %v562
        %v590 = vpop.permute.xlu0 %589
        %v592 = vperm.slane %v585, 0
        %v593 = vadd.f32 %v590, %v592
        %v594 = vmul.f32 %v593, 0.2
        %v595 = vmax.f32 %v593, %v594
        %vm596 = vcmp.gt.f32.partialorder %v535, 0.0
        %v597 = vstv %s530
        %v598 = vmul.f32 %v597, %v595
        %v599 = vstv %s531
        %v600 = vadd.f32 %v598, %v599
        %v601 = vsel %vm596, %v600, -1e+09
        %vm602 = vcmask 64512
        %v603 = vsel %vm602, %v601, -inf
        %v604 = vrot.slane %v603, 4
        %v605 = vmax.f32 %v603, %v604
        %v606 = vrot.slane %v605, 2
        %v607 = vmax.f32 %v605, %v606
        %v608 = vrot.slane %v607, 1
        %v609 = vmax.f32 %v607, %v608
        %v610 = vsub.f32 %v601, %v609
        %v611 = vmul.f32 %v610, 1.442695
        %v612 = vpow.pop %v611
        %v613 = vsel %vm602, %v612, 0.0
        %v614 = vrot.slane %v613, 4
        %v615 = vadd.f32 %v613, %v614
        %v616 = vrot.slane %v615, 2
        %v617 = vadd.f32 %v615, %v616
        %v618 = vrot.slane %v617, 1
        %v619 = vadd.f32 %v617, %v618
        %v620 = vrcp.pop %v619
        %v621 = vmul.f32 %v612, %v620
        %v623 = vsel %vm602, %v621, 0
        %625 = vmatpush.msra.mxu0 0.0
        %626 = vmatpush.msra.mxu0 0.0
        %627 = vmatpush.msra.mxu0 0.0
        %628 = vmatpush.msra.mxu0 0.0
        %629 = vmatpush.msra.mxu0 0.0
        %630 = vmatpush.msra.mxu0 0.0
        %631 = vmatpush.msra.mxu0 0.0
        %632 = vmatpush.msra.mxu0 0.0
        %633 = vmatpush.msra.mxu0 0.0
        %634 = vmatpush.msra.mxu0 0.0
        %635 = vmatpush.msra.mxu0 0.0
        %636 = vmatpush.msra.mxu0 0.0
        %637 = vmatpush.msra.mxu0 0.0
        %638 = vmatpush.msra.mxu0 0.0
        %639 = vmatpush.msra.mxu0 0.0
        %640 = vmatpush.msra.mxu0 %v539
        %641 = vmatmul.f32.gmra.mxu0 %v623
        %v642 = vpop.f32.mrf.mxu0
        %v643 = vadd.f32 0.0, %v642
        %644 = vdwg.mxu0
        %v646 = vperm.slane %v538, 0
        %v649 = vsel %vm540, %v643, 0
        %651 = vmatpush.msra.mxu0 0.0
        %652 = vmatpush.msra.mxu0 0.0
        %653 = vmatpush.msra.mxu0 0.0
        %654 = vmatpush.msra.mxu0 0.0
        %655 = vmatpush.msra.mxu0 0.0
        %656 = vmatpush.msra.mxu0 0.0
        %657 = vmatpush.msra.mxu0 0.0
        %658 = vmatpush.msra.mxu0 0.0
        %659 = vmatpush.msra.mxu0 0.0
        %660 = vmatpush.msra.mxu0 0.0
        %661 = vmatpush.msra.mxu0 0.0
        %662 = vmatpush.msra.mxu0 0.0
        %663 = vmatpush.msra.mxu0 0.0
        %664 = vmatpush.msra.mxu0 0.0
        %665 = vmatpush.msra.mxu0 %v537
        %666 = vmatpush.msra.mxu0 %v536
        %667 = vmatmul.f32.gmra.mxu0 %v649
        %v668 = vpop.f32.mrf.mxu0
        %v669 = vadd.f32 %v646, %v668
        %670 = vdwg.mxu0
        %v671 = vmul.f32 %v669, 0.01
        %v672 = vmax.f32 %v669, %v671
        %s673 = ssub.f32 1.0, %s528
        %v674 = vstv %s673
        %v675 = vmul.f32 %v672, %v674
        %v676 = vstv %s528
        %v677 = vmul.f32 %v539, %v676
        %v678 = vadd.f32 %v675, %v677
        %v680 = vsel %vm540, %v678, 0
        %682 = vmatpush.msra.mxu0 0.0
        %683 = vmatpush.msra.mxu0 0.0
        %684 = vmatpush.msra.mxu0 0.0
        %685 = vmatpush.msra.mxu0 0.0
        %686 = vmatpush.msra.mxu0 0.0
        %687 = vmatpush.msra.mxu0 0.0
        %688 = vmatpush.msra.mxu0 0.0
        %689 = vmatpush.msra.mxu0 0.0
        %690 = vmatpush.msra.mxu0 0.0
        %691 = vmatpush.msra.mxu0 0.0
        %692 = vmatpush.msra.mxu0 0.0
        %693 = vmatpush.msra.mxu0 0.0
        %694 = vmatpush.msra.mxu0 0.0
        %695 = vmatpush.msra.mxu0 0.0
        %696 = vmatpush.msra.mxu0 %v533
        %697 = vmatpush.msra.mxu0 %v532
        %698 = vmatmul.f32.gmra.mxu0 %v680
        %v699 = vpop.f32.mrf.mxu0
        %v700 = vadd.f32 0.0, %v699
        %701 = vdwg.mxu0
        %702 = vmatpush.xpose.msra.mxu0 0.0
        %703 = vmatpush.xpose.msra.mxu0 0.0
        %704 = vmatpush.xpose.msra.mxu0 0.0
        %705 = vmatpush.xpose.msra.mxu0 0.0
        %706 = vmatpush.xpose.msra.mxu0 0.0
        %707 = vmatpush.xpose.msra.mxu0 0.0
        %708 = vmatpush.xpose.msra.mxu0 0.0
        %709 = vmatpush.xpose.msra.mxu0 0.0
        %710 = vmatpush.xpose.msra.mxu0 0.0
        %711 = vmatpush.xpose.msra.mxu0 0.0
        %712 = vmatpush.xpose.msra.mxu0 0.0
        %713 = vmatpush.xpose.msra.mxu0 0.0
        %714 = vmatpush.xpose.msra.mxu0 0.0
        %715 = vmatpush.xpose.msra.mxu0 0.0
        %716 = vmatpush.xpose.msra.mxu0 0.0
        %717 = vmatpush.xpose.msra.mxu0 %v680
        %718 = vmatmul.f32.gmra.mxu0 %v565
        %v719 = vpop.f32.mrf.mxu0
        %v720 = vadd.f32 0.0, %v719
        %721 = vdwg.mxu0
        %723 = vset.pattern.permute.xlu0 0
        %724 = vperm.xlu0 %723, %v700
        %v725 = vpop.permute.xlu0 %724
        %v727 = vperm.slane %v720, 0
        %v728 = vadd.f32 %v725, %v727
        %v729 = vmul.f32 %v728, 0.2
        %v730 = vmax.f32 %v728, %v729
        %v731 = vmul.f32 %v597, %v730
        %v732 = vadd.f32 %v731, %v599
        %v733 = vsel %vm596, %v732, -1e+09
        %v734 = vsel %vm602, %v733, -inf
        %v735 = vrot.slane %v734, 4
        %v736 = vmax.f32 %v734, %v735
        %v737 = vrot.slane %v736, 2
        %v738 = vmax.f32 %v736, %v737
        %v739 = vrot.slane %v738, 1
        %v740 = vmax.f32 %v738, %v739
        %v741 = vsub.f32 %v733, %v740
        %v742 = vmul.f32 %v741, 1.442695
        %v743 = vpow.pop %v742
        %v744 = vsel %vm602, %v743, 0.0
        %v745 = vrot.slane %v744, 4
        %v746 = vadd.f32 %v744, %v745
        %v747 = vrot.slane %v746, 2
        %v748 = vadd.f32 %v746, %v747
        %v749 = vrot.slane %v748, 1
        %v750 = vadd.f32 %v748, %v749
        %v751 = vrcp.pop %v750
        %v752 = vmul.f32 %v743, %v751
        %v754 = vsel %vm602, %v752, 0
        %756 = vmatpush.msra.mxu0 0.0
        %757 = vmatpush.msra.mxu0 0.0
        %758 = vmatpush.msra.mxu0 0.0
        %759 = vmatpush.msra.mxu0 0.0
        %760 = vmatpush.msra.mxu0 0.0
        %761 = vmatpush.msra.mxu0 0.0
        %762 = vmatpush.msra.mxu0 0.0
        %763 = vmatpush.msra.mxu0 0.0
        %764 = vmatpush.msra.mxu0 0.0
        %765 = vmatpush.msra.mxu0 0.0
        %766 = vmatpush.msra.mxu0 0.0
        %767 = vmatpush.msra.mxu0 0.0
        %768 = vmatpush.msra.mxu0 0.0
        %769 = vmatpush.msra.mxu0 0.0
        %770 = vmatpush.msra.mxu0 0.0
        %771 = vmatpush.msra.mxu0 %v678
        %772 = vmatmul.f32.gmra.mxu0 %v754
        %v773 = vpop.f32.mrf.mxu0
        %v774 = vadd.f32 0.0, %v773
        %775 = vdwg.mxu0
        %v777 = vsel %vm540, %v774, 0
        %779 = vmatpush.msra.mxu0 0.0
        %780 = vmatpush.msra.mxu0 0.0
        %781 = vmatpush.msra.mxu0 0.0
        %782 = vmatpush.msra.mxu0 0.0
        %783 = vmatpush.msra.mxu0 0.0
        %784 = vmatpush.msra.mxu0 0.0
        %785 = vmatpush.msra.mxu0 0.0
        %786 = vmatpush.msra.mxu0 0.0
        %787 = vmatpush.msra.mxu0 0.0
        %788 = vmatpush.msra.mxu0 0.0
        %789 = vmatpush.msra.mxu0 0.0
        %790 = vmatpush.msra.mxu0 0.0
        %791 = vmatpush.msra.mxu0 0.0
        %792 = vmatpush.msra.mxu0 0.0
        %793 = vmatpush.msra.mxu0 %v537
        %794 = vmatpush.msra.mxu0 %v536
        %795 = vmatmul.f32.gmra.mxu0 %v777
        %v796 = vpop.f32.mrf.mxu0
        %v797 = vadd.f32 %v646, %v796
        %798 = vdwg.mxu0
        %v799 = vmul.f32 %v797, 0.01
        %v800 = vmax.f32 %v797, %v799
        %v801 = vmul.f32 %v800, %v674
        %v802 = vmul.f32 %v678, %v676
        %v803 = vadd.f32 %v801, %v802
        %v804 = vld [vmem:[%s6] sm:$0xff]
        %v805 = vld [vmem:[%s6 + $0x8] sm:$0xff]
        %v807 = vsel %vm540, %v804, 0
        %v810 = vsel %vm540, %v805, 0
        %v813 = vsel %vm540, %v803, 0
        %815 = vmatpush.xpose.msra.mxu0 0.0
        %816 = vmatpush.xpose.msra.mxu0 0.0
        %817 = vmatpush.xpose.msra.mxu0 0.0
        %818 = vmatpush.xpose.msra.mxu0 0.0
        %819 = vmatpush.xpose.msra.mxu0 0.0
        %820 = vmatpush.xpose.msra.mxu0 0.0
        %821 = vmatpush.xpose.msra.mxu0 0.0
        %822 = vmatpush.xpose.msra.mxu0 0.0
        %823 = vmatpush.xpose.msra.mxu0 0.0
        %824 = vmatpush.xpose.msra.mxu0 0.0
        %825 = vmatpush.xpose.msra.mxu0 0.0
        %826 = vmatpush.xpose.msra.mxu0 0.0
        %827 = vmatpush.xpose.msra.mxu0 0.0
        %828 = vmatpush.xpose.msra.mxu0 0.0
        %829 = vmatpush.xpose.msra.mxu0 0.0
        %v830 = vand.u32 %v813, 4294901760
        %831 = vmatpush.xpose.msra.mxu0 %v830
        %v832 = vand.u32 %v807, 4294901760
        %v833 = vsub.f32 %v807, %v832
        %v834 = vand.u32 %v833, 4294901760
        %v835 = vsub.f32 %v833, %v834
        %v836 = vand.u32 %v835, 4294901760
        %837 = vmatmul.f32.gmra.mxu0 %v836
        %v838 = vpop.f32.mrf.mxu0
        %v839 = vadd.f32 0.0, %v838
        %v840 = vand.u32 %v810, 4294901760
        %v841 = vsub.f32 %v810, %v840
        %v842 = vand.u32 %v841, 4294901760
        %v843 = vsub.f32 %v841, %v842
        %v844 = vand.u32 %v843, 4294901760
        %845 = vmatmul.f32.gmra.mxu0 %v844
        %v846 = vpop.f32.mrf.mxu0
        %v847 = vadd.f32 0.0, %v846
        %848 = vdwg.mxu0
        %849 = vmatpush.xpose.msra.mxu0 0.0
        %850 = vmatpush.xpose.msra.mxu0 0.0
        %851 = vmatpush.xpose.msra.mxu0 0.0
        %852 = vmatpush.xpose.msra.mxu0 0.0
        %853 = vmatpush.xpose.msra.mxu0 0.0
        %854 = vmatpush.xpose.msra.mxu0 0.0
        %855 = vmatpush.xpose.msra.mxu0 0.0
        %856 = vmatpush.xpose.msra.mxu0 0.0
        %857 = vmatpush.xpose.msra.mxu0 0.0
        %858 = vmatpush.xpose.msra.mxu0 0.0
        %859 = vmatpush.xpose.msra.mxu0 0.0
        %860 = vmatpush.xpose.msra.mxu0 0.0
        %861 = vmatpush.xpose.msra.mxu0 0.0
        %862 = vmatpush.xpose.msra.mxu0 0.0
        %863 = vmatpush.xpose.msra.mxu0 0.0
        %v864 = vand.u32 %v813, 4294901760
        %v865 = vsub.f32 %v813, %v864
        %v866 = vand.u32 %v865, 4294901760
        %v867 = vsub.f32 %v865, %v866
        %v868 = vand.u32 %v867, 4294901760
        %869 = vmatpush.xpose.msra.mxu0 %v868
        %v870 = vand.u32 %v807, 4294901760
        %871 = vmatmul.f32.gmra.mxu0 %v870
        %v872 = vpop.f32.mrf.mxu0
        %v873 = vadd.f32 %v839, %v872
        %v874 = vand.u32 %v810, 4294901760
        %875 = vmatmul.f32.gmra.mxu0 %v874
        %v876 = vpop.f32.mrf.mxu0
        %v877 = vadd.f32 %v847, %v876
        %878 = vdwg.mxu0
        %879 = vmatpush.xpose.msra.mxu0 0.0
        %880 = vmatpush.xpose.msra.mxu0 0.0
        %881 = vmatpush.xpose.msra.mxu0 0.0
        %882 = vmatpush.xpose.msra.mxu0 0.0
        %883 = vmatpush.xpose.msra.mxu0 0.0
        %884 = vmatpush.xpose.msra.mxu0 0.0
        %885 = vmatpush.xpose.msra.mxu0 0.0
        %886 = vmatpush.xpose.msra.mxu0 0.0
        %887 = vmatpush.xpose.msra.mxu0 0.0
        %888 = vmatpush.xpose.msra.mxu0 0.0
        %889 = vmatpush.xpose.msra.mxu0 0.0
        %890 = vmatpush.xpose.msra.mxu0 0.0
        %891 = vmatpush.xpose.msra.mxu0 0.0
        %892 = vmatpush.xpose.msra.mxu0 0.0
        %893 = vmatpush.xpose.msra.mxu0 0.0
        %v894 = vand.u32 %v813, 4294901760
        %v895 = vsub.f32 %v813, %v894
        %896 = vmatpush.xpose.msra.mxu0 %v895
        %v897 = vand.u32 %v807, 4294901760
        %v898 = vsub.f32 %v807, %v897
        %899 = vmatmul.f32.gmra.mxu0 %v898
        %v900 = vpop.f32.mrf.mxu0
        %v901 = vadd.f32 %v873, %v900
        %v902 = vand.u32 %v810, 4294901760
        %v903 = vsub.f32 %v810, %v902
        %904 = vmatmul.f32.gmra.mxu0 %v903
        %v905 = vpop.f32.mrf.mxu0
        %v906 = vadd.f32 %v877, %v905
        %907 = vdwg.mxu0
        %908 = vmatpush.xpose.msra.mxu0 0.0
        %909 = vmatpush.xpose.msra.mxu0 0.0
        %910 = vmatpush.xpose.msra.mxu0 0.0
        %911 = vmatpush.xpose.msra.mxu0 0.0
        %912 = vmatpush.xpose.msra.mxu0 0.0
        %913 = vmatpush.xpose.msra.mxu0 0.0
        %914 = vmatpush.xpose.msra.mxu0 0.0
        %915 = vmatpush.xpose.msra.mxu0 0.0
        %916 = vmatpush.xpose.msra.mxu0 0.0
        %917 = vmatpush.xpose.msra.mxu0 0.0
        %918 = vmatpush.xpose.msra.mxu0 0.0
        %919 = vmatpush.xpose.msra.mxu0 0.0
        %920 = vmatpush.xpose.msra.mxu0 0.0
        %921 = vmatpush.xpose.msra.mxu0 0.0
        %922 = vmatpush.xpose.msra.mxu0 0.0
        %v923 = vand.u32 %v813, 4294901760
        %924 = vmatpush.xpose.msra.mxu0 %v923
        %v925 = vand.u32 %v807, 4294901760
        %v926 = vsub.f32 %v807, %v925
        %v927 = vand.u32 %v926, 4294901760
        %928 = vmatmul.f32.gmra.mxu0 %v927
        %v929 = vpop.f32.mrf.mxu0
        %v930 = vadd.f32 %v901, %v929
        %v931 = vand.u32 %v810, 4294901760
        %v932 = vsub.f32 %v810, %v931
        %v933 = vand.u32 %v932, 4294901760
        %934 = vmatmul.f32.gmra.mxu0 %v933
        %v935 = vpop.f32.mrf.mxu0
        %v936 = vadd.f32 %v906, %v935
        %937 = vdwg.mxu0
        %938 = vmatpush.xpose.msra.mxu0 0.0
        %939 = vmatpush.xpose.msra.mxu0 0.0
        %940 = vmatpush.xpose.msra.mxu0 0.0
        %941 = vmatpush.xpose.msra.mxu0 0.0
        %942 = vmatpush.xpose.msra.mxu0 0.0
        %943 = vmatpush.xpose.msra.mxu0 0.0
        %944 = vmatpush.xpose.msra.mxu0 0.0
        %945 = vmatpush.xpose.msra.mxu0 0.0
        %946 = vmatpush.xpose.msra.mxu0 0.0
        %947 = vmatpush.xpose.msra.mxu0 0.0
        %948 = vmatpush.xpose.msra.mxu0 0.0
        %949 = vmatpush.xpose.msra.mxu0 0.0
        %950 = vmatpush.xpose.msra.mxu0 0.0
        %951 = vmatpush.xpose.msra.mxu0 0.0
        %952 = vmatpush.xpose.msra.mxu0 0.0
        %v953 = vand.u32 %v813, 4294901760
        %v954 = vsub.f32 %v813, %v953
        %v955 = vand.u32 %v954, 4294901760
        %956 = vmatpush.xpose.msra.mxu0 %v955
        %v957 = vand.u32 %v807, 4294901760
        %958 = vmatmul.f32.gmra.mxu0 %v957
        %v959 = vpop.f32.mrf.mxu0
        %v960 = vadd.f32 %v930, %v959
        %v961 = vand.u32 %v810, 4294901760
        %962 = vmatmul.f32.gmra.mxu0 %v961
        %v963 = vpop.f32.mrf.mxu0
        %v964 = vadd.f32 %v936, %v963
        %965 = vdwg.mxu0
        %966 = vmatpush.xpose.msra.mxu0 0.0
        %967 = vmatpush.xpose.msra.mxu0 0.0
        %968 = vmatpush.xpose.msra.mxu0 0.0
        %969 = vmatpush.xpose.msra.mxu0 0.0
        %970 = vmatpush.xpose.msra.mxu0 0.0
        %971 = vmatpush.xpose.msra.mxu0 0.0
        %972 = vmatpush.xpose.msra.mxu0 0.0
        %973 = vmatpush.xpose.msra.mxu0 0.0
        %974 = vmatpush.xpose.msra.mxu0 0.0
        %975 = vmatpush.xpose.msra.mxu0 0.0
        %976 = vmatpush.xpose.msra.mxu0 0.0
        %977 = vmatpush.xpose.msra.mxu0 0.0
        %978 = vmatpush.xpose.msra.mxu0 0.0
        %979 = vmatpush.xpose.msra.mxu0 0.0
        %980 = vmatpush.xpose.msra.mxu0 0.0
        %v981 = vand.u32 %v813, 4294901760
        %982 = vmatpush.xpose.msra.mxu0 %v981
        %v983 = vand.u32 %v807, 4294901760
        %984 = vmatmul.f32.gmra.mxu0 %v983
        %v985 = vpop.f32.mrf.mxu0
        %v986 = vadd.f32 %v960, %v985
        %v987 = vand.u32 %v810, 4294901760
        %988 = vmatmul.f32.gmra.mxu0 %v987
        %v989 = vpop.f32.mrf.mxu0
        %v990 = vadd.f32 %v964, %v989
        %991 = vdwg.mxu0
        %s992 = sld [smem:[#allocation7]]
        %s993 = sld [smem:[#allocation7 + $0x1]]
        %s994 = sld [smem:[#allocation7 + $0x2]]
        %s995 = sld [smem:[#allocation7 + $0x3]]
        %s996 = sld [smem:[#allocation7 + $0x4]]
        %s997 = sld [smem:[#allocation7 + $0x5]]
        %s998 = sld [smem:[#allocation7 + $0x6]]
        %s999 = sld [smem:[#allocation7 + $0x7]]
        %s1000 = sld [smem:[#allocation7 + $0x8]]
        %s1001 = sld [smem:[#allocation7 + $0xc]]
        %s1002 = sadd.f32 %s1000, %s1001
        %s1003 = sld [smem:[#allocation7 + $0x9]]
        %s1004 = sld [smem:[#allocation7 + $0xd]]
        %s1005 = sadd.f32 %s1003, %s1004
        %s1006 = sld [smem:[#allocation7 + $0xa]]
        %s1007 = sld [smem:[#allocation7 + $0xe]]
        %s1008 = sadd.f32 %s1006, %s1007
        %s1009 = sld [smem:[#allocation7 + $0xb]]
        %s1010 = sld [smem:[#allocation7 + $0xf]]
        %s1011 = sadd.f32 %s1009, %s1010
        %s1012 = sld [smem:[#allocation7 + $0x80]]
        %s1013 = sld [smem:[#allocation7 + $0x81]]
        %s1014 = sld [smem:[#allocation7 + $0x82]]
        %s1015 = sld [smem:[#allocation7 + $0x83]]
        %s1016 = sld [smem:[#allocation7 + $0x84]]
        %s1017 = sld [smem:[#allocation7 + $0x85]]
        %s1018 = sld [smem:[#allocation7 + $0x86]]
        %s1019 = sld [smem:[#allocation7 + $0x87]]
        %s1020 = sld [smem:[#allocation7 + $0x88]]
        %s1021 = sld [smem:[#allocation7 + $0x8c]]
        %s1022 = sadd.f32 %s1020, %s1021
        %s1023 = sld [smem:[#allocation7 + $0x89]]
        %s1024 = sld [smem:[#allocation7 + $0x8d]]
        %s1025 = sadd.f32 %s1023, %s1024
        %s1026 = sld [smem:[#allocation7 + $0x8a]]
        %s1027 = sld [smem:[#allocation7 + $0x8e]]
        %s1028 = sadd.f32 %s1026, %s1027
        %s1029 = sld [smem:[#allocation7 + $0x8b]]
        %s1030 = sld [smem:[#allocation7 + $0x8f]]
        %s1031 = sadd.f32 %s1029, %s1030
        %v1032 = vstv %s992
        %v1033 = vmul.f32 %v1032, %v986
        %v1034 = vmul.f32 %v1032, %v990
        %v1035 = vstv %s1002
        %v1036 = vadd.f32 %v1033, %v1035
        %v1037 = vadd.f32 %v1034, %v1035
        %v1038 = vstv %s993
        %v1039 = vmul.f32 %v1038, %v986
        %v1040 = vmul.f32 %v1038, %v990
        %v1041 = vstv %s1005
        %v1042 = vadd.f32 %v1039, %v1041
        %v1043 = vadd.f32 %v1040, %v1041
        %v1044 = vstv %s994
        %v1045 = vmul.f32 %v1044, %v986
        %v1046 = vmul.f32 %v1044, %v990
        %v1047 = vstv %s1008
        %v1048 = vadd.f32 %v1045, %v1047
        %v1049 = vadd.f32 %v1046, %v1047
        %v1050 = vstv %s995
        %v1051 = vmul.f32 %v1050, %v986
        %v1052 = vmul.f32 %v1050, %v990
        %v1053 = vstv %s1011
        %v1054 = vadd.f32 %v1051, %v1053
        %v1055 = vadd.f32 %v1052, %v1053
        %v1056 = vstv %s996
        %v1057 = vmul.f32 %v1056, 0.0
        %v1058 = vadd.f32 %v1036, %v1057
        %v1059 = vxor.u32 %v1058, 2147483648
        %v1060 = vmul.f32 %v1059, 1.442695
        %v1061 = vpow.pop %v1060
        %v1062 = vadd.f32 %v1061, 1.0
        %v1063 = vrcp.pop %v1062
        %v1064 = vmul.f32 %v1062, %v1063
        %v1065 = vsub.f32 1.0, %v1064
        %v1066 = vmul.f32 %v1063, %v1065
        %v1067 = vadd.f32 %v1063, %v1066
        %vm1068 = vweird.f32 %v1062
        %vm1069 = vweird.f32 %v1063
        %vm1070 = vmor %vm1068, %vm1069
        %v1071 = vsel %vm1070, %v1063, %v1067
        %v1072 = vand.u32 2147483647, %v1062
        %vm1073 = vcmp.eq.f32.partialorder %v1072, 8.507059e+37
        %v1074 = vand.u32 %v1062, 2147483648
        %v1075 = vor.u32 1.1754944e-38, %v1074
        %v1076 = vsel %vm1073, %v1075, %v1071
        %v1077 = vmul.f32 1.0, %v1076
        %v1078 = vstv %s997
        %v1079 = vmul.f32 %v1078, 0.0
        %v1080 = vadd.f32 %v1042, %v1079
        %v1081 = vxor.u32 %v1080, 2147483648
        %v1082 = vmul.f32 %v1081, 1.442695
        %v1083 = vpow.pop %v1082
        %v1084 = vadd.f32 %v1083, 1.0
        %v1085 = vrcp.pop %v1084
        %v1086 = vmul.f32 %v1084, %v1085
        %v1087 = vsub.f32 1.0, %v1086
        %v1088 = vmul.f32 %v1085, %v1087
        %v1089 = vadd.f32 %v1085, %v1088
        %vm1090 = vweird.f32 %v1084
        %vm1091 = vweird.f32 %v1085
        %vm1092 = vmor %vm1090, %vm1091
        %v1093 = vsel %vm1092, %v1085, %v1089
        %v1094 = vand.u32 2147483647, %v1084
        %vm1095 = vcmp.eq.f32.partialorder %v1094, 8.507059e+37
        %v1096 = vand.u32 %v1084, 2147483648
        %v1097 = vor.u32 1.1754944e-38, %v1096
        %v1098 = vsel %vm1095, %v1097, %v1093
        %v1099 = vmul.f32 1.0, %v1098
        %v1100 = vstv %s998
        %v1101 = vmul.f32 %v1100, 0.0
        %v1102 = vadd.f32 %v1048, %v1101
        %v1103 = vtanh.pop %v1102
        %v1104 = vstv %s999
        %v1105 = vmul.f32 %v1104, 0.0
        %v1106 = vadd.f32 %v1054, %v1105
        %v1107 = vxor.u32 %v1106, 2147483648
        %v1108 = vmul.f32 %v1107, 1.442695
        %v1109 = vpow.pop %v1108
        %v1110 = vadd.f32 %v1109, 1.0
        %v1111 = vrcp.pop %v1110
        %v1112 = vmul.f32 %v1110, %v1111
        %v1113 = vsub.f32 1.0, %v1112
        %v1114 = vmul.f32 %v1111, %v1113
        %v1115 = vadd.f32 %v1111, %v1114
        %vm1116 = vweird.f32 %v1110
        %vm1117 = vweird.f32 %v1111
        %vm1118 = vmor %vm1116, %vm1117
        %v1119 = vsel %vm1118, %v1111, %v1115
        %v1120 = vand.u32 2147483647, %v1110
        %vm1121 = vcmp.eq.f32.partialorder %v1120, 8.507059e+37
        %v1122 = vand.u32 %v1110, 2147483648
        %v1123 = vor.u32 1.1754944e-38, %v1122
        %v1124 = vsel %vm1121, %v1123, %v1119
        %v1125 = vmul.f32 1.0, %v1124
        %v1126 = vmul.f32 %v1099, 0.0
        %v1127 = vmul.f32 %v1077, %v1103
        %v1128 = vadd.f32 %v1126, %v1127
        %v1129 = vtanh.pop %v1128
        %v1130 = vmul.f32 %v1125, %v1129
        %v1131 = vstv %s1012
        %v1132 = vmul.f32 %v1131, %v1130
        %v1133 = vstv %s1022
        %v1134 = vadd.f32 %v1132, %v1133
        %v1135 = vstv %s1016
        %v1136 = vmul.f32 %v1135, 0.0
        %v1137 = vadd.f32 %v1134, %v1136
        %v1138 = vxor.u32 %v1137, 2147483648
        %v1139 = vmul.f32 %v1138, 1.442695
        %v1140 = vpow.pop %v1139
        %v1141 = vadd.f32 %v1140, 1.0
        %v1142 = vrcp.pop %v1141
        %v1143 = vmul.f32 %v1141, %v1142
        %v1144 = vsub.f32 1.0, %v1143
        %v1145 = vmul.f32 %v1142, %v1144
        %v1146 = vadd.f32 %v1142, %v1145
        %vm1147 = vweird.f32 %v1141
        %vm1148 = vweird.f32 %v1142
        %vm1149 = vmor %vm1147, %vm1148
        %v1150 = vsel %vm1149, %v1142, %v1146
        %v1151 = vand.u32 2147483647, %v1141
        %vm1152 = vcmp.eq.f32.partialorder %v1151, 8.507059e+37
        %v1153 = vand.u32 %v1141, 2147483648
        %v1154 = vor.u32 1.1754944e-38, %v1153
        %v1155 = vsel %vm1152, %v1154, %v1150
        %v1156 = vmul.f32 1.0, %v1155
        %v1157 = vstv %s1013
        %v1158 = vmul.f32 %v1157, %v1130
        %v1159 = vstv %s1025
        %v1160 = vadd.f32 %v1158, %v1159
        %v1161 = vstv %s1017
        %v1162 = vmul.f32 %v1161, 0.0
        %v1163 = vadd.f32 %v1160, %v1162
        %v1164 = vxor.u32 %v1163, 2147483648
        %v1165 = vmul.f32 %v1164, 1.442695
        %v1166 = vpow.pop %v1165
        %v1167 = vadd.f32 %v1166, 1.0
        %v1168 = vrcp.pop %v1167
        %v1169 = vmul.f32 %v1167, %v1168
        %v1170 = vsub.f32 1.0, %v1169
        %v1171 = vmul.f32 %v1168, %v1170
        %v1172 = vadd.f32 %v1168, %v1171
        %vm1173 = vweird.f32 %v1167
        %vm1174 = vweird.f32 %v1168
        %vm1175 = vmor %vm1173, %vm1174
        %v1176 = vsel %vm1175, %v1168, %v1172
        %v1177 = vand.u32 2147483647, %v1167
        %vm1178 = vcmp.eq.f32.partialorder %v1177, 8.507059e+37
        %v1179 = vand.u32 %v1167, 2147483648
        %v1180 = vor.u32 1.1754944e-38, %v1179
        %v1181 = vsel %vm1178, %v1180, %v1176
        %v1182 = vmul.f32 1.0, %v1181
        %v1183 = vstv %s1014
        %v1184 = vmul.f32 %v1183, %v1130
        %v1185 = vstv %s1028
        %v1186 = vadd.f32 %v1184, %v1185
        %v1187 = vstv %s1018
        %v1188 = vmul.f32 %v1187, 0.0
        %v1189 = vadd.f32 %v1186, %v1188
        %v1190 = vtanh.pop %v1189
        %v1191 = vstv %s1015
        %v1192 = vmul.f32 %v1191, %v1130
        %v1193 = vstv %s1031
        %v1194 = vadd.f32 %v1192, %v1193
        %v1195 = vstv %s1019
        %v1196 = vmul.f32 %v1195, 0.0
        %v1197 = vadd.f32 %v1194, %v1196
        %v1198 = vxor.u32 %v1197, 2147483648
        %v1199 = vmul.f32 %v1198, 1.442695
        %v1200 = vpow.pop %v1199
        %v1201 = vadd.f32 %v1200, 1.0
        %v1202 = vrcp.pop %v1201
        %v1203 = vmul.f32 %v1201, %v1202
        %v1204 = vsub.f32 1.0, %v1203
        %v1205 = vmul.f32 %v1202, %v1204
        %v1206 = vadd.f32 %v1202, %v1205
        %vm1207 = vweird.f32 %v1201
        %vm1208 = vweird.f32 %v1202
        %vm1209 = vmor %vm1207, %vm1208
        %v1210 = vsel %vm1209, %v1202, %v1206
        %v1211 = vand.u32 2147483647, %v1201
        %vm1212 = vcmp.eq.f32.partialorder %v1211, 8.507059e+37
        %v1213 = vand.u32 %v1201, 2147483648
        %v1214 = vor.u32 1.1754944e-38, %v1213
        %v1215 = vsel %vm1212, %v1214, %v1210
        %v1216 = vmul.f32 1.0, %v1215
        %v1217 = vmul.f32 %v1182, 0.0
        %v1218 = vmul.f32 %v1156, %v1190
        %v1219 = vadd.f32 %v1217, %v1218
        %v1220 = vtanh.pop %v1219
        %v1221 = vmul.f32 %v1216, %v1220
        %v1222 = vld [vmem:[%s10] sm:$0xff]
        %v1223 = vld [vmem:[%s10 + $0x8] sm:$0xff]
        %v1224 = vld [vmem:[%s10 + $0x10] sm:$0xff]
        %v1225 = vld [vmem:[%s10 + $0x18] sm:$0xff]
        %1227 = vset.pattern.permute.xlu0 0
        %1228 = vperm.xlu0 %1227, %v1222
        %v1229 = vpop.permute.xlu0 %1228
        %1232 = vset.pattern.permute.xlu0 0
        %1233 = vperm.xlu0 %1232, %v1223
        %v1234 = vpop.permute.xlu0 %1233
        %1237 = vset.pattern.permute.xlu0 0
        %1238 = vperm.xlu0 %1237, %v1224
        %v1239 = vpop.permute.xlu0 %1238
        %1242 = vset.pattern.permute.xlu0 0
        %1243 = vperm.xlu0 %1242, %v1225
        %v1244 = vpop.permute.xlu0 %1243
        %v1246 = vperm.slane %v1221, 0
        %v1247 = vmul.f32 %v1229, %v1246
        %v1248 = vmul.f32 %v1234, %v1246
        %v1249 = vmul.f32 %v1239, %v1246
        %v1250 = vmul.f32 %v1244, %v1246
        %v1251 = vadd.f32 %v1247, 0.0
        %v1252 = vadd.f32 %v1248, 0.0
        %v1253 = vadd.f32 %v1249, 0.0
        %v1254 = vadd.f32 %v1250, 0.0
        %v1255 = vmul.f32 %v1056, %v1130
        %v1257 = vrot.slane %v1255, 7
        %v1259 = vadd.f32 %v1036, %v1257
        %v1260 = vxor.u32 %v1259, 2147483648
        %v1261 = vmul.f32 %v1260, 1.442695
        %v1262 = vpow.pop %v1261
        %v1263 = vadd.f32 %v1262, 1.0
        %v1264 = vrcp.pop %v1263
        %v1265 = vmul.f32 %v1263, %v1264
        %v1266 = vsub.f32 1.0, %v1265
        %v1267 = vmul.f32 %v1264, %v1266
        %v1268 = vadd.f32 %v1264, %v1267
        %vm1269 = vweird.f32 %v1263
        %vm1270 = vweird.f32 %v1264
        %vm1271 = vmor %vm1269, %vm1270
        %v1272 = vsel %vm1271, %v1264, %v1268
        %v1273 = vand.u32 2147483647, %v1263
        %vm1274 = vcmp.eq.f32.partialorder %v1273, 8.507059e+37
        %v1275 = vand.u32 %v1263, 2147483648
        %v1276 = vor.u32 1.1754944e-38, %v1275
        %v1277 = vsel %vm1274, %v1276, %v1272
        %v1278 = vmul.f32 1.0, %v1277
        %v1279 = vmul.f32 %v1078, %v1130
        %v1281 = vrot.slane %v1279, 7
        %v1283 = vadd.f32 %v1042, %v1281
        %v1284 = vxor.u32 %v1283, 2147483648
        %v1285 = vmul.f32 %v1284, 1.442695
        %v1286 = vpow.pop %v1285
        %v1287 = vadd.f32 %v1286, 1.0
        %v1288 = vrcp.pop %v1287
        %v1289 = vmul.f32 %v1287, %v1288
        %v1290 = vsub.f32 1.0, %v1289
        %v1291 = vmul.f32 %v1288, %v1290
        %v1292 = vadd.f32 %v1288, %v1291
        %vm1293 = vweird.f32 %v1287
        %vm1294 = vweird.f32 %v1288
        %vm1295 = vmor %vm1293, %vm1294
        %v1296 = vsel %vm1295, %v1288, %v1292
        %v1297 = vand.u32 2147483647, %v1287
        %vm1298 = vcmp.eq.f32.partialorder %v1297, 8.507059e+37
        %v1299 = vand.u32 %v1287, 2147483648
        %v1300 = vor.u32 1.1754944e-38, %v1299
        %v1301 = vsel %vm1298, %v1300, %v1296
        %v1302 = vmul.f32 1.0, %v1301
        %v1303 = vmul.f32 %v1100, %v1130
        %v1305 = vrot.slane %v1303, 7
        %v1307 = vadd.f32 %v1048, %v1305
        %v1308 = vtanh.pop %v1307
        %v1309 = vmul.f32 %v1104, %v1130
        %v1311 = vrot.slane %v1309, 7
        %v1313 = vadd.f32 %v1054, %v1311
        %v1314 = vxor.u32 %v1313, 2147483648
        %v1315 = vmul.f32 %v1314, 1.442695
        %v1316 = vpow.pop %v1315
        %v1317 = vadd.f32 %v1316, 1.0
        %v1318 = vrcp.pop %v1317
        %v1319 = vmul.f32 %v1317, %v1318
        %v1320 = vsub.f32 1.0, %v1319
        %v1321 = vmul.f32 %v1318, %v1320
        %v1322 = vadd.f32 %v1318, %v1321
        %vm1323 = vweird.f32 %v1317
        %vm1324 = vweird.f32 %v1318
        %vm1325 = vmor %vm1323, %vm1324
        %v1326 = vsel %vm1325, %v1318, %v1322
        %v1327 = vand.u32 2147483647, %v1317
        %vm1328 = vcmp.eq.f32.partialorder %v1327, 8.507059e+37
        %v1329 = vand.u32 %v1317, 2147483648
        %v1330 = vor.u32 1.1754944e-38, %v1329
        %v1331 = vsel %vm1328, %v1330, %v1326
        %v1332 = vmul.f32 1.0, %v1331
        %v1334 = vrot.slane %v1128, 7
        %v1336 = vmul.f32 %v1302, %v1334
        %v1337 = vmul.f32 %v1278, %v1308
        %v1338 = vadd.f32 %v1336, %v1337
        %v1339 = vtanh.pop %v1338
        %v1340 = vmul.f32 %v1332, %v1339
        %v1341 = vmul.f32 %v1131, %v1340
        %v1342 = vadd.f32 %v1341, %v1133
        %v1343 = vmul.f32 %v1135, %v1221
        %v1345 = vrot.slane %v1343, 7
        %v1347 = vadd.f32 %v1342, %v1345
        %v1348 = vxor.u32 %v1347, 2147483648
        %v1349 = vmul.f32 %v1348, 1.442695
        %v1350 = vpow.pop %v1349
        %v1351 = vadd.f32 %v1350, 1.0
        %v1352 = vrcp.pop %v1351
        %v1353 = vmul.f32 %v1351, %v1352
        %v1354 = vsub.f32 1.0, %v1353
        %v1355 = vmul.f32 %v1352, %v1354
        %v1356 = vadd.f32 %v1352, %v1355
        %vm1357 = vweird.f32 %v1351
        %vm1358 = vweird.f32 %v1352
        %vm1359 = vmor %vm1357, %vm1358
        %v1360 = vsel %vm1359, %v1352, %v1356
        %v1361 = vand.u32 2147483647, %v1351
        %vm1362 = vcmp.eq.f32.partialorder %v1361, 8.507059e+37
        %v1363 = vand.u32 %v1351, 2147483648
        %v1364 = vor.u32 1.1754944e-38, %v1363
        %v1365 = vsel %vm1362, %v1364, %v1360
        %v1366 = vmul.f32 1.0, %v1365
        %v1367 = vmul.f32 %v1157, %v1340
        %v1368 = vadd.f32 %v1367, %v1159
        %v1369 = vmul.f32 %v1161, %v1221
        %v1371 = vrot.slane %v1369, 7
        %v1373 = vadd.f32 %v1368, %v1371
        %v1374 = vxor.u32 %v1373, 2147483648
        %v1375 = vmul.f32 %v1374, 1.442695
        %v1376 = vpow.pop %v1375
        %v1377 = vadd.f32 %v1376, 1.0
        %v1378 = vrcp.pop %v1377
        %v1379 = vmul.f32 %v1377, %v1378
        %v1380 = vsub.f32 1.0, %v1379
        %v1381 = vmul.f32 %v1378, %v1380
        %v1382 = vadd.f32 %v1378, %v1381
        %vm1383 = vweird.f32 %v1377
        %vm1384 = vweird.f32 %v1378
        %vm1385 = vmor %vm1383, %vm1384
        %v1386 = vsel %vm1385, %v1378, %v1382
        %v1387 = vand.u32 2147483647, %v1377
        %vm1388 = vcmp.eq.f32.partialorder %v1387, 8.507059e+37
        %v1389 = vand.u32 %v1377, 2147483648
        %v1390 = vor.u32 1.1754944e-38, %v1389
        %v1391 = vsel %vm1388, %v1390, %v1386
        %v1392 = vmul.f32 1.0, %v1391
        %v1393 = vmul.f32 %v1183, %v1340
        %v1394 = vadd.f32 %v1393, %v1185
        %v1395 = vmul.f32 %v1187, %v1221
        %v1397 = vrot.slane %v1395, 7
        %v1399 = vadd.f32 %v1394, %v1397
        %v1400 = vtanh.pop %v1399
        %v1401 = vmul.f32 %v1191, %v1340
        %v1402 = vadd.f32 %v1401, %v1193
        %v1403 = vmul.f32 %v1195, %v1221
        %v1405 = vrot.slane %v1403, 7
        %v1407 = vadd.f32 %v1402, %v1405
        %v1408 = vxor.u32 %v1407, 2147483648
        %v1409 = vmul.f32 %v1408, 1.442695
        %v1410 = vpow.pop %v1409
        %v1411 = vadd.f32 %v1410, 1.0
        %v1412 = vrcp.pop %v1411
        %v1413 = vmul.f32 %v1411, %v1412
        %v1414 = vsub.f32 1.0, %v1413
        %v1415 = vmul.f32 %v1412, %v1414
        %v1416 = vadd.f32 %v1412, %v1415
        %vm1417 = vweird.f32 %v1411
        %vm1418 = vweird.f32 %v1412
        %vm1419 = vmor %vm1417, %vm1418
        %v1420 = vsel %vm1419, %v1412, %v1416
        %v1421 = vand.u32 2147483647, %v1411
        %vm1422 = vcmp.eq.f32.partialorder %v1421, 8.507059e+37
        %v1423 = vand.u32 %v1411, 2147483648
        %v1424 = vor.u32 1.1754944e-38, %v1423
        %v1425 = vsel %vm1422, %v1424, %v1420
        %v1426 = vmul.f32 1.0, %v1425
        %v1428 = vrot.slane %v1219, 7
        %v1430 = vmul.f32 %v1392, %v1428
        %v1431 = vmul.f32 %v1366, %v1400
        %v1432 = vadd.f32 %v1430, %v1431
        %v1433 = vtanh.pop %v1432
        %v1434 = vmul.f32 %v1426, %v1433
        %1435 = vset.pattern.permute.xlu0 1
        %1436 = vperm.xlu0 %1435, %v1222
        %v1437 = vpop.permute.xlu0 %1436
        %1439 = vset.pattern.permute.xlu0 1
        %1440 = vperm.xlu0 %1439, %v1223
        %v1441 = vpop.permute.xlu0 %1440
        %1443 = vset.pattern.permute.xlu0 1
        %1444 = vperm.xlu0 %1443, %v1224
        %v1445 = vpop.permute.xlu0 %1444
        %1447 = vset.pattern.permute.xlu0 1
        %1448 = vperm.xlu0 %1447, %v1225
        %v1449 = vpop.permute.xlu0 %1448
        %v1451 = vperm.slane %v1434, 1
        %v1452 = vmul.f32 %v1437, %v1451
        %v1453 = vmul.f32 %v1441, %v1451
        %v1454 = vmul.f32 %v1445, %v1451
        %v1455 = vmul.f32 %v1449, %v1451
        %v1456 = vadd.f32 %v1251, %v1452
        %v1457 = vadd.f32 %v1252, %v1453
        %v1458 = vadd.f32 %v1253, %v1454
        %v1459 = vadd.f32 %v1254, %v1455
        %v1460 = vmul.f32 %v1056, %v1340
        %v1462 = vrot.slane %v1460, 7
        %v1464 = vadd.f32 %v1036, %v1462
        %v1465 = vxor.u32 %v1464, 2147483648
        %v1466 = vmul.f32 %v1465, 1.442695
        %v1467 = vpow.pop %v1466
        %v1468 = vadd.f32 %v1467, 1.0
        %v1469 = vrcp.pop %v1468
        %v1470 = vmul.f32 %v1468, %v1469
        %v1471 = vsub.f32 1.0, %v1470
        %v1472 = vmul.f32 %v1469, %v1471
        %v1473 = vadd.f32 %v1469, %v1472
        %vm1474 = vweird.f32 %v1468
        %vm1475 = vweird.f32 %v1469
        %vm1476 = vmor %vm1474, %vm1475
        %v1477 = vsel %vm1476, %v1469, %v1473
        %v1478 = vand.u32 2147483647, %v1468
        %vm1479 = vcmp.eq.f32.partialorder %v1478, 8.507059e+37
        %v1480 = vand.u32 %v1468, 2147483648
        %v1481 = vor.u32 1.1754944e-38, %v1480
        %v1482 = vsel %vm1479, %v1481, %v1477
        %v1483 = vmul.f32 1.0, %v1482
        %v1484 = vmul.f32 %v1078, %v1340
        %v1486 = vrot.slane %v1484, 7
        %v1488 = vadd.f32 %v1042, %v1486
        %v1489 = vxor.u32 %v1488, 2147483648
        %v1490 = vmul.f32 %v1489, 1.442695
        %v1491 = vpow.pop %v1490
        %v1492 = vadd.f32 %v1491, 1.0
        %v1493 = vrcp.pop %v1492
        %v1494 = vmul.f32 %v1492, %v1493
        %v1495 = vsub.f32 1.0, %v1494
        %v1496 = vmul.f32 %v1493, %v1495
        %v1497 = vadd.f32 %v1493, %v1496
        %vm1498 = vweird.f32 %v1492
        %vm1499 = vweird.f32 %v1493
        %vm1500 = vmor %vm1498, %vm1499
        %v1501 = vsel %vm1500, %v1493, %v1497
        %v1502 = vand.u32 2147483647, %v1492
        %vm1503 = vcmp.eq.f32.partialorder %v1502, 8.507059e+37
        %v1504 = vand.u32 %v1492, 2147483648
        %v1505 = vor.u32 1.1754944e-38, %v1504
        %v1506 = vsel %vm1503, %v1505, %v1501
        %v1507 = vmul.f32 1.0, %v1506
        %v1508 = vmul.f32 %v1100, %v1340
        %v1510 = vrot.slane %v1508, 7
        %v1512 = vadd.f32 %v1048, %v1510
        %v1513 = vtanh.pop %v1512
        %v1514 = vmul.f32 %v1104, %v1340
        %v1516 = vrot.slane %v1514, 7
        %v1518 = vadd.f32 %v1054, %v1516
        %v1519 = vxor.u32 %v1518, 2147483648
        %v1520 = vmul.f32 %v1519, 1.442695
        %v1521 = vpow.pop %v1520
        %v1522 = vadd.f32 %v1521, 1.0
        %v1523 = vrcp.pop %v1522
        %v1524 = vmul.f32 %v1522, %v1523
        %v1525 = vsub.f32 1.0, %v1524
        %v1526 = vmul.f32 %v1523, %v1525
        %v1527 = vadd.f32 %v1523, %v1526
        %vm1528 = vweird.f32 %v1522
        %vm1529 = vweird.f32 %v1523
        %vm1530 = vmor %vm1528, %vm1529
        %v1531 = vsel %vm1530, %v1523, %v1527
        %v1532 = vand.u32 2147483647, %v1522
        %vm1533 = vcmp.eq.f32.partialorder %v1532, 8.507059e+37
        %v1534 = vand.u32 %v1522, 2147483648
        %v1535 = vor.u32 1.1754944e-38, %v1534
        %v1536 = vsel %vm1533, %v1535, %v1531
        %v1537 = vmul.f32 1.0, %v1536
        %v1539 = vrot.slane %v1338, 7
        %v1541 = vmul.f32 %v1507, %v1539
        %v1542 = vmul.f32 %v1483, %v1513
        %v1543 = vadd.f32 %v1541, %v1542
        %v1544 = vtanh.pop %v1543
        %v1545 = vmul.f32 %v1537, %v1544
        %v1546 = vmul.f32 %v1131, %v1545
        %v1547 = vadd.f32 %v1546, %v1133
        %v1548 = vmul.f32 %v1135, %v1434
        %v1550 = vrot.slane %v1548, 7
        %v1552 = vadd.f32 %v1547, %v1550
        %v1553 = vxor.u32 %v1552, 2147483648
        %v1554 = vmul.f32 %v1553, 1.442695
        %v1555 = vpow.pop %v1554
        %v1556 = vadd.f32 %v1555, 1.0
        %v1557 = vrcp.pop %v1556
        %v1558 = vmul.f32 %v1556, %v1557
        %v1559 = vsub.f32 1.0, %v1558
        %v1560 = vmul.f32 %v1557, %v1559
        %v1561 = vadd.f32 %v1557, %v1560
        %vm1562 = vweird.f32 %v1556
        %vm1563 = vweird.f32 %v1557
        %vm1564 = vmor %vm1562, %vm1563
        %v1565 = vsel %vm1564, %v1557, %v1561
        %v1566 = vand.u32 2147483647, %v1556
        %vm1567 = vcmp.eq.f32.partialorder %v1566, 8.507059e+37
        %v1568 = vand.u32 %v1556, 2147483648
        %v1569 = vor.u32 1.1754944e-38, %v1568
        %v1570 = vsel %vm1567, %v1569, %v1565
        %v1571 = vmul.f32 1.0, %v1570
        %v1572 = vmul.f32 %v1157, %v1545
        %v1573 = vadd.f32 %v1572, %v1159
        %v1574 = vmul.f32 %v1161, %v1434
        %v1576 = vrot.slane %v1574, 7
        %v1578 = vadd.f32 %v1573, %v1576
        %v1579 = vxor.u32 %v1578, 2147483648
        %v1580 = vmul.f32 %v1579, 1.442695
        %v1581 = vpow.pop %v1580
        %v1582 = vadd.f32 %v1581, 1.0
        %v1583 = vrcp.pop %v1582
        %v1584 = vmul.f32 %v1582, %v1583
        %v1585 = vsub.f32 1.0, %v1584
        %v1586 = vmul.f32 %v1583, %v1585
        %v1587 = vadd.f32 %v1583, %v1586
        %vm1588 = vweird.f32 %v1582
        %vm1589 = vweird.f32 %v1583
        %vm1590 = vmor %vm1588, %vm1589
        %v1591 = vsel %vm1590, %v1583, %v1587
        %v1592 = vand.u32 2147483647, %v1582
        %vm1593 = vcmp.eq.f32.partialorder %v1592, 8.507059e+37
        %v1594 = vand.u32 %v1582, 2147483648
        %v1595 = vor.u32 1.1754944e-38, %v1594
        %v1596 = vsel %vm1593, %v1595, %v1591
        %v1597 = vmul.f32 1.0, %v1596
        %v1598 = vmul.f32 %v1183, %v1545
        %v1599 = vadd.f32 %v1598, %v1185
        %v1600 = vmul.f32 %v1187, %v1434
        %v1602 = vrot.slane %v1600, 7
        %v1604 = vadd.f32 %v1599, %v1602
        %v1605 = vtanh.pop %v1604
        %v1606 = vmul.f32 %v1191, %v1545
        %v1607 = vadd.f32 %v1606, %v1193
        %v1608 = vmul.f32 %v1195, %v1434
        %v1610 = vrot.slane %v1608, 7
        %v1612 = vadd.f32 %v1607, %v1610
        %v1613 = vxor.u32 %v1612, 2147483648
        %v1614 = vmul.f32 %v1613, 1.442695
        %v1615 = vpow.pop %v1614
        %v1616 = vadd.f32 %v1615, 1.0
        %v1617 = vrcp.pop %v1616
        %v1618 = vmul.f32 %v1616, %v1617
        %v1619 = vsub.f32 1.0, %v1618
        %v1620 = vmul.f32 %v1617, %v1619
        %v1621 = vadd.f32 %v1617, %v1620
        %vm1622 = vweird.f32 %v1616
        %vm1623 = vweird.f32 %v1617
        %vm1624 = vmor %vm1622, %vm1623
        %v1625 = vsel %vm1624, %v1617, %v1621
        %v1626 = vand.u32 2147483647, %v1616
        %vm1627 = vcmp.eq.f32.partialorder %v1626, 8.507059e+37
        %v1628 = vand.u32 %v1616, 2147483648
        %v1629 = vor.u32 1.1754944e-38, %v1628
        %v1630 = vsel %vm1627, %v1629, %v1625
        %v1631 = vmul.f32 1.0, %v1630
        %v1633 = vrot.slane %v1432, 7
        %v1635 = vmul.f32 %v1597, %v1633
        %v1636 = vmul.f32 %v1571, %v1605
        %v1637 = vadd.f32 %v1635, %v1636
        %v1638 = vtanh.pop %v1637
        %v1639 = vmul.f32 %v1631, %v1638
        %1640 = vset.pattern.permute.xlu0 2
        %1641 = vperm.xlu0 %1640, %v1222
        %v1642 = vpop.permute.xlu0 %1641
        %1644 = vset.pattern.permute.xlu0 2
        %1645 = vperm.xlu0 %1644, %v1223
        %v1646 = vpop.permute.xlu0 %1645
        %1648 = vset.pattern.permute.xlu0 2
        %1649 = vperm.xlu0 %1648, %v1224
        %v1650 = vpop.permute.xlu0 %1649
        %1652 = vset.pattern.permute.xlu0 2
        %1653 = vperm.xlu0 %1652, %v1225
        %v1654 = vpop.permute.xlu0 %1653
        %v1656 = vperm.slane %v1639, 2
        %v1657 = vmul.f32 %v1642, %v1656
        %v1658 = vmul.f32 %v1646, %v1656
        %v1659 = vmul.f32 %v1650, %v1656
        %v1660 = vmul.f32 %v1654, %v1656
        %v1661 = vadd.f32 %v1456, %v1657
        %v1662 = vadd.f32 %v1457, %v1658
        %v1663 = vadd.f32 %v1458, %v1659
        %v1664 = vadd.f32 %v1459, %v1660
        %v1665 = vmul.f32 %v1056, %v1545
        %v1667 = vrot.slane %v1665, 7
        %v1669 = vadd.f32 %v1036, %v1667
        %v1670 = vxor.u32 %v1669, 2147483648
        %v1671 = vmul.f32 %v1670, 1.442695
        %v1672 = vpow.pop %v1671
        %v1673 = vadd.f32 %v1672, 1.0
        %v1674 = vrcp.pop %v1673
        %v1675 = vmul.f32 %v1673, %v1674
        %v1676 = vsub.f32 1.0, %v1675
        %v1677 = vmul.f32 %v1674, %v1676
        %v1678 = vadd.f32 %v1674, %v1677
        %vm1679 = vweird.f32 %v1673
        %vm1680 = vweird.f32 %v1674
        %vm1681 = vmor %vm1679, %vm1680
        %v1682 = vsel %vm1681, %v1674, %v1678
        %v1683 = vand.u32 2147483647, %v1673
        %vm1684 = vcmp.eq.f32.partialorder %v1683, 8.507059e+37
        %v1685 = vand.u32 %v1673, 2147483648
        %v1686 = vor.u32 1.1754944e-38, %v1685
        %v1687 = vsel %vm1684, %v1686, %v1682
        %v1688 = vmul.f32 1.0, %v1687
        %v1689 = vmul.f32 %v1078, %v1545
        %v1691 = vrot.slane %v1689, 7
        %v1693 = vadd.f32 %v1042, %v1691
        %v1694 = vxor.u32 %v1693, 2147483648
        %v1695 = vmul.f32 %v1694, 1.442695
        %v1696 = vpow.pop %v1695
        %v1697 = vadd.f32 %v1696, 1.0
        %v1698 = vrcp.pop %v1697
        %v1699 = vmul.f32 %v1697, %v1698
        %v1700 = vsub.f32 1.0, %v1699
        %v1701 = vmul.f32 %v1698, %v1700
        %v1702 = vadd.f32 %v1698, %v1701
        %vm1703 = vweird.f32 %v1697
        %vm1704 = vweird.f32 %v1698
        %vm1705 = vmor %vm1703, %vm1704
        %v1706 = vsel %vm1705, %v1698, %v1702
        %v1707 = vand.u32 2147483647, %v1697
        %vm1708 = vcmp.eq.f32.partialorder %v1707, 8.507059e+37
        %v1709 = vand.u32 %v1697, 2147483648
        %v1710 = vor.u32 1.1754944e-38, %v1709
        %v1711 = vsel %vm1708, %v1710, %v1706
        %v1712 = vmul.f32 1.0, %v1711
        %v1713 = vmul.f32 %v1100, %v1545
        %v1715 = vrot.slane %v1713, 7
        %v1717 = vadd.f32 %v1048, %v1715
        %v1718 = vtanh.pop %v1717
        %v1719 = vmul.f32 %v1104, %v1545
        %v1721 = vrot.slane %v1719, 7
        %v1723 = vadd.f32 %v1054, %v1721
        %v1724 = vxor.u32 %v1723, 2147483648
        %v1725 = vmul.f32 %v1724, 1.442695
        %v1726 = vpow.pop %v1725
        %v1727 = vadd.f32 %v1726, 1.0
        %v1728 = vrcp.pop %v1727
        %v1729 = vmul.f32 %v1727, %v1728
        %v1730 = vsub.f32 1.0, %v1729
        %v1731 = vmul.f32 %v1728, %v1730
        %v1732 = vadd.f32 %v1728, %v1731
        %vm1733 = vweird.f32 %v1727
        %vm1734 = vweird.f32 %v1728
        %vm1735 = vmor %vm1733, %vm1734
        %v1736 = vsel %vm1735, %v1728, %v1732
        %v1737 = vand.u32 2147483647, %v1727
        %vm1738 = vcmp.eq.f32.partialorder %v1737, 8.507059e+37
        %v1739 = vand.u32 %v1727, 2147483648
        %v1740 = vor.u32 1.1754944e-38, %v1739
        %v1741 = vsel %vm1738, %v1740, %v1736
        %v1742 = vmul.f32 1.0, %v1741
        %v1744 = vrot.slane %v1543, 7
        %v1746 = vmul.f32 %v1712, %v1744
        %v1747 = vmul.f32 %v1688, %v1718
        %v1748 = vadd.f32 %v1746, %v1747
        %v1749 = vtanh.pop %v1748
        %v1750 = vmul.f32 %v1742, %v1749
        %v1751 = vmul.f32 %v1131, %v1750
        %v1752 = vadd.f32 %v1751, %v1133
        %v1753 = vmul.f32 %v1135, %v1639
        %v1755 = vrot.slane %v1753, 7
        %v1757 = vadd.f32 %v1752, %v1755
        %v1758 = vxor.u32 %v1757, 2147483648
        %v1759 = vmul.f32 %v1758, 1.442695
        %v1760 = vpow.pop %v1759
        %v1761 = vadd.f32 %v1760, 1.0
        %v1762 = vrcp.pop %v1761
        %v1763 = vmul.f32 %v1761, %v1762
        %v1764 = vsub.f32 1.0, %v1763
        %v1765 = vmul.f32 %v1762, %v1764
        %v1766 = vadd.f32 %v1762, %v1765
        %vm1767 = vweird.f32 %v1761
        %vm1768 = vweird.f32 %v1762
        %vm1769 = vmor %vm1767, %vm1768
        %v1770 = vsel %vm1769, %v1762, %v1766
        %v1771 = vand.u32 2147483647, %v1761
        %vm1772 = vcmp.eq.f32.partialorder %v1771, 8.507059e+37
        %v1773 = vand.u32 %v1761, 2147483648
        %v1774 = vor.u32 1.1754944e-38, %v1773
        %v1775 = vsel %vm1772, %v1774, %v1770
        %v1776 = vmul.f32 1.0, %v1775
        %v1777 = vmul.f32 %v1157, %v1750
        %v1778 = vadd.f32 %v1777, %v1159
        %v1779 = vmul.f32 %v1161, %v1639
        %v1781 = vrot.slane %v1779, 7
        %v1783 = vadd.f32 %v1778, %v1781
        %v1784 = vxor.u32 %v1783, 2147483648
        %v1785 = vmul.f32 %v1784, 1.442695
        %v1786 = vpow.pop %v1785
        %v1787 = vadd.f32 %v1786, 1.0
        %v1788 = vrcp.pop %v1787
        %v1789 = vmul.f32 %v1787, %v1788
        %v1790 = vsub.f32 1.0, %v1789
        %v1791 = vmul.f32 %v1788, %v1790
        %v1792 = vadd.f32 %v1788, %v1791
        %vm1793 = vweird.f32 %v1787
        %vm1794 = vweird.f32 %v1788
        %vm1795 = vmor %vm1793, %vm1794
        %v1796 = vsel %vm1795, %v1788, %v1792
        %v1797 = vand.u32 2147483647, %v1787
        %vm1798 = vcmp.eq.f32.partialorder %v1797, 8.507059e+37
        %v1799 = vand.u32 %v1787, 2147483648
        %v1800 = vor.u32 1.1754944e-38, %v1799
        %v1801 = vsel %vm1798, %v1800, %v1796
        %v1802 = vmul.f32 1.0, %v1801
        %v1803 = vmul.f32 %v1183, %v1750
        %v1804 = vadd.f32 %v1803, %v1185
        %v1805 = vmul.f32 %v1187, %v1639
        %v1807 = vrot.slane %v1805, 7
        %v1809 = vadd.f32 %v1804, %v1807
        %v1810 = vtanh.pop %v1809
        %v1811 = vmul.f32 %v1191, %v1750
        %v1812 = vadd.f32 %v1811, %v1193
        %v1813 = vmul.f32 %v1195, %v1639
        %v1815 = vrot.slane %v1813, 7
        %v1817 = vadd.f32 %v1812, %v1815
        %v1818 = vxor.u32 %v1817, 2147483648
        %v1819 = vmul.f32 %v1818, 1.442695
        %v1820 = vpow.pop %v1819
        %v1821 = vadd.f32 %v1820, 1.0
        %v1822 = vrcp.pop %v1821
        %v1823 = vmul.f32 %v1821, %v1822
        %v1824 = vsub.f32 1.0, %v1823
        %v1825 = vmul.f32 %v1822, %v1824
        %v1826 = vadd.f32 %v1822, %v1825
        %vm1827 = vweird.f32 %v1821
        %vm1828 = vweird.f32 %v1822
        %vm1829 = vmor %vm1827, %vm1828
        %v1830 = vsel %vm1829, %v1822, %v1826
        %v1831 = vand.u32 2147483647, %v1821
        %vm1832 = vcmp.eq.f32.partialorder %v1831, 8.507059e+37
        %v1833 = vand.u32 %v1821, 2147483648
        %v1834 = vor.u32 1.1754944e-38, %v1833
        %v1835 = vsel %vm1832, %v1834, %v1830
        %v1836 = vmul.f32 1.0, %v1835
        %v1838 = vrot.slane %v1637, 7
        %v1840 = vmul.f32 %v1802, %v1838
        %v1841 = vmul.f32 %v1776, %v1810
        %v1842 = vadd.f32 %v1840, %v1841
        %v1843 = vtanh.pop %v1842
        %v1844 = vmul.f32 %v1836, %v1843
        %1845 = vset.pattern.permute.xlu0 3
        %1846 = vperm.xlu0 %1845, %v1222
        %v1847 = vpop.permute.xlu0 %1846
        %1849 = vset.pattern.permute.xlu0 3
        %1850 = vperm.xlu0 %1849, %v1223
        %v1851 = vpop.permute.xlu0 %1850
        %1853 = vset.pattern.permute.xlu0 3
        %1854 = vperm.xlu0 %1853, %v1224
        %v1855 = vpop.permute.xlu0 %1854
        %1857 = vset.pattern.permute.xlu0 3
        %1858 = vperm.xlu0 %1857, %v1225
        %v1859 = vpop.permute.xlu0 %1858
        %v1861 = vperm.slane %v1844, 3
        %v1862 = vmul.f32 %v1847, %v1861
        %v1863 = vmul.f32 %v1851, %v1861
        %v1864 = vmul.f32 %v1855, %v1861
        %v1865 = vmul.f32 %v1859, %v1861
        %v1866 = vadd.f32 %v1661, %v1862
        %v1867 = vadd.f32 %v1662, %v1863
        %v1868 = vadd.f32 %v1663, %v1864
        %v1869 = vadd.f32 %v1664, %v1865
        %v1870 = vmul.f32 %v1056, %v1750
        %v1872 = vrot.slane %v1870, 7
        %v1874 = vadd.f32 %v1036, %v1872
        %v1875 = vxor.u32 %v1874, 2147483648
        %v1876 = vmul.f32 %v1875, 1.442695
        %v1877 = vpow.pop %v1876
        %v1878 = vadd.f32 %v1877, 1.0
        %v1879 = vrcp.pop %v1878
        %v1880 = vmul.f32 %v1878, %v1879
        %v1881 = vsub.f32 1.0, %v1880
        %v1882 = vmul.f32 %v1879, %v1881
        %v1883 = vadd.f32 %v1879, %v1882
        %vm1884 = vweird.f32 %v1878
        %vm1885 = vweird.f32 %v1879
        %vm1886 = vmor %vm1884, %vm1885
        %v1887 = vsel %vm1886, %v1879, %v1883
        %v1888 = vand.u32 2147483647, %v1878
        %vm1889 = vcmp.eq.f32.partialorder %v1888, 8.507059e+37
        %v1890 = vand.u32 %v1878, 2147483648
        %v1891 = vor.u32 1.1754944e-38, %v1890
        %v1892 = vsel %vm1889, %v1891, %v1887
        %v1893 = vmul.f32 1.0, %v1892
        %v1894 = vmul.f32 %v1078, %v1750
        %v1896 = vrot.slane %v1894, 7
        %v1898 = vadd.f32 %v1042, %v1896
        %v1899 = vxor.u32 %v1898, 2147483648
        %v1900 = vmul.f32 %v1899, 1.442695
        %v1901 = vpow.pop %v1900
        %v1902 = vadd.f32 %v1901, 1.0
        %v1903 = vrcp.pop %v1902
        %v1904 = vmul.f32 %v1902, %v1903
        %v1905 = vsub.f32 1.0, %v1904
        %v1906 = vmul.f32 %v1903, %v1905
        %v1907 = vadd.f32 %v1903, %v1906
        %vm1908 = vweird.f32 %v1902
        %vm1909 = vweird.f32 %v1903
        %vm1910 = vmor %vm1908, %vm1909
        %v1911 = vsel %vm1910, %v1903, %v1907
        %v1912 = vand.u32 2147483647, %v1902
        %vm1913 = vcmp.eq.f32.partialorder %v1912, 8.507059e+37
        %v1914 = vand.u32 %v1902, 2147483648
        %v1915 = vor.u32 1.1754944e-38, %v1914
        %v1916 = vsel %vm1913, %v1915, %v1911
        %v1917 = vmul.f32 1.0, %v1916
        %v1918 = vmul.f32 %v1100, %v1750
        %v1920 = vrot.slane %v1918, 7
        %v1922 = vadd.f32 %v1048, %v1920
        %v1923 = vtanh.pop %v1922
        %v1924 = vmul.f32 %v1104, %v1750
        %v1926 = vrot.slane %v1924, 7
        %v1928 = vadd.f32 %v1054, %v1926
        %v1929 = vxor.u32 %v1928, 2147483648
        %v1930 = vmul.f32 %v1929, 1.442695
        %v1931 = vpow.pop %v1930
        %v1932 = vadd.f32 %v1931, 1.0
        %v1933 = vrcp.pop %v1932
        %v1934 = vmul.f32 %v1932, %v1933
        %v1935 = vsub.f32 1.0, %v1934
        %v1936 = vmul.f32 %v1933, %v1935
        %v1937 = vadd.f32 %v1933, %v1936
        %vm1938 = vweird.f32 %v1932
        %vm1939 = vweird.f32 %v1933
        %vm1940 = vmor %vm1938, %vm1939
        %v1941 = vsel %vm1940, %v1933, %v1937
        %v1942 = vand.u32 2147483647, %v1932
        %vm1943 = vcmp.eq.f32.partialorder %v1942, 8.507059e+37
        %v1944 = vand.u32 %v1932, 2147483648
        %v1945 = vor.u32 1.1754944e-38, %v1944
        %v1946 = vsel %vm1943, %v1945, %v1941
        %v1947 = vmul.f32 1.0, %v1946
        %v1949 = vrot.slane %v1748, 7
        %v1951 = vmul.f32 %v1917, %v1949
        %v1952 = vmul.f32 %v1893, %v1923
        %v1953 = vadd.f32 %v1951, %v1952
        %v1954 = vtanh.pop %v1953
        %v1955 = vmul.f32 %v1947, %v1954
        %v1956 = vmul.f32 %v1131, %v1955
        %v1957 = vadd.f32 %v1956, %v1133
        %v1958 = vmul.f32 %v1135, %v1844
        %v1960 = vrot.slane %v1958, 7
        %v1962 = vadd.f32 %v1957, %v1960
        %v1963 = vxor.u32 %v1962, 2147483648
        %v1964 = vmul.f32 %v1963, 1.442695
        %v1965 = vpow.pop %v1964
        %v1966 = vadd.f32 %v1965, 1.0
        %v1967 = vrcp.pop %v1966
        %v1968 = vmul.f32 %v1966, %v1967
        %v1969 = vsub.f32 1.0, %v1968
        %v1970 = vmul.f32 %v1967, %v1969
        %v1971 = vadd.f32 %v1967, %v1970
        %vm1972 = vweird.f32 %v1966
        %vm1973 = vweird.f32 %v1967
        %vm1974 = vmor %vm1972, %vm1973
        %v1975 = vsel %vm1974, %v1967, %v1971
        %v1976 = vand.u32 2147483647, %v1966
        %vm1977 = vcmp.eq.f32.partialorder %v1976, 8.507059e+37
        %v1978 = vand.u32 %v1966, 2147483648
        %v1979 = vor.u32 1.1754944e-38, %v1978
        %v1980 = vsel %vm1977, %v1979, %v1975
        %v1981 = vmul.f32 1.0, %v1980
        %v1982 = vmul.f32 %v1157, %v1955
        %v1983 = vadd.f32 %v1982, %v1159
        %v1984 = vmul.f32 %v1161, %v1844
        %v1986 = vrot.slane %v1984, 7
        %v1988 = vadd.f32 %v1983, %v1986
        %v1989 = vxor.u32 %v1988, 2147483648
        %v1990 = vmul.f32 %v1989, 1.442695
        %v1991 = vpow.pop %v1990
        %v1992 = vadd.f32 %v1991, 1.0
        %v1993 = vrcp.pop %v1992
        %v1994 = vmul.f32 %v1992, %v1993
        %v1995 = vsub.f32 1.0, %v1994
        %v1996 = vmul.f32 %v1993, %v1995
        %v1997 = vadd.f32 %v1993, %v1996
        %vm1998 = vweird.f32 %v1992
        %vm1999 = vweird.f32 %v1993
        %vm2000 = vmor %vm1998, %vm1999
        %v2001 = vsel %vm2000, %v1993, %v1997
        %v2002 = vand.u32 2147483647, %v1992
        %vm2003 = vcmp.eq.f32.partialorder %v2002, 8.507059e+37
        %v2004 = vand.u32 %v1992, 2147483648
        %v2005 = vor.u32 1.1754944e-38, %v2004
        %v2006 = vsel %vm2003, %v2005, %v2001
        %v2007 = vmul.f32 1.0, %v2006
        %v2008 = vmul.f32 %v1183, %v1955
        %v2009 = vadd.f32 %v2008, %v1185
        %v2010 = vmul.f32 %v1187, %v1844
        %v2012 = vrot.slane %v2010, 7
        %v2014 = vadd.f32 %v2009, %v2012
        %v2015 = vtanh.pop %v2014
        %v2016 = vmul.f32 %v1191, %v1955
        %v2017 = vadd.f32 %v2016, %v1193
        %v2018 = vmul.f32 %v1195, %v1844
        %v2020 = vrot.slane %v2018, 7
        %v2022 = vadd.f32 %v2017, %v2020
        %v2023 = vxor.u32 %v2022, 2147483648
        %v2024 = vmul.f32 %v2023, 1.442695
        %v2025 = vpow.pop %v2024
        %v2026 = vadd.f32 %v2025, 1.0
        %v2027 = vrcp.pop %v2026
        %v2028 = vmul.f32 %v2026, %v2027
        %v2029 = vsub.f32 1.0, %v2028
        %v2030 = vmul.f32 %v2027, %v2029
        %v2031 = vadd.f32 %v2027, %v2030
        %vm2032 = vweird.f32 %v2026
        %vm2033 = vweird.f32 %v2027
        %vm2034 = vmor %vm2032, %vm2033
        %v2035 = vsel %vm2034, %v2027, %v2031
        %v2036 = vand.u32 2147483647, %v2026
        %vm2037 = vcmp.eq.f32.partialorder %v2036, 8.507059e+37
        %v2038 = vand.u32 %v2026, 2147483648
        %v2039 = vor.u32 1.1754944e-38, %v2038
        %v2040 = vsel %vm2037, %v2039, %v2035
        %v2041 = vmul.f32 1.0, %v2040
        %v2043 = vrot.slane %v1842, 7
        %v2045 = vmul.f32 %v2007, %v2043
        %v2046 = vmul.f32 %v1981, %v2015
        %v2047 = vadd.f32 %v2045, %v2046
        %v2048 = vtanh.pop %v2047
        %v2049 = vmul.f32 %v2041, %v2048
        %2050 = vset.pattern.permute.xlu0 4
        %2051 = vperm.xlu0 %2050, %v1222
        %v2052 = vpop.permute.xlu0 %2051
        %2054 = vset.pattern.permute.xlu0 4
        %2055 = vperm.xlu0 %2054, %v1223
        %v2056 = vpop.permute.xlu0 %2055
        %2058 = vset.pattern.permute.xlu0 4
        %2059 = vperm.xlu0 %2058, %v1224
        %v2060 = vpop.permute.xlu0 %2059
        %2062 = vset.pattern.permute.xlu0 4
        %2063 = vperm.xlu0 %2062, %v1225
        %v2064 = vpop.permute.xlu0 %2063
        %v2066 = vperm.slane %v2049, 4
        %v2067 = vmul.f32 %v2052, %v2066
        %v2068 = vmul.f32 %v2056, %v2066
        %v2069 = vmul.f32 %v2060, %v2066
        %v2070 = vmul.f32 %v2064, %v2066
        %v2071 = vadd.f32 %v1866, %v2067
        %v2072 = vadd.f32 %v1867, %v2068
        %v2073 = vadd.f32 %v1868, %v2069
        %v2074 = vadd.f32 %v1869, %v2070
        %v2075 = vmul.f32 %v1056, %v1955
        %v2077 = vrot.slane %v2075, 7
        %v2079 = vadd.f32 %v1036, %v2077
        %v2080 = vxor.u32 %v2079, 2147483648
        %v2081 = vmul.f32 %v2080, 1.442695
        %v2082 = vpow.pop %v2081
        %v2083 = vadd.f32 %v2082, 1.0
        %v2084 = vrcp.pop %v2083
        %v2085 = vmul.f32 %v2083, %v2084
        %v2086 = vsub.f32 1.0, %v2085
        %v2087 = vmul.f32 %v2084, %v2086
        %v2088 = vadd.f32 %v2084, %v2087
        %vm2089 = vweird.f32 %v2083
        %vm2090 = vweird.f32 %v2084
        %vm2091 = vmor %vm2089, %vm2090
        %v2092 = vsel %vm2091, %v2084, %v2088
        %v2093 = vand.u32 2147483647, %v2083
        %vm2094 = vcmp.eq.f32.partialorder %v2093, 8.507059e+37
        %v2095 = vand.u32 %v2083, 2147483648
        %v2096 = vor.u32 1.1754944e-38, %v2095
        %v2097 = vsel %vm2094, %v2096, %v2092
        %v2098 = vmul.f32 1.0, %v2097
        %v2099 = vmul.f32 %v1078, %v1955
        %v2101 = vrot.slane %v2099, 7
        %v2103 = vadd.f32 %v1042, %v2101
        %v2104 = vxor.u32 %v2103, 2147483648
        %v2105 = vmul.f32 %v2104, 1.442695
        %v2106 = vpow.pop %v2105
        %v2107 = vadd.f32 %v2106, 1.0
        %v2108 = vrcp.pop %v2107
        %v2109 = vmul.f32 %v2107, %v2108
        %v2110 = vsub.f32 1.0, %v2109
        %v2111 = vmul.f32 %v2108, %v2110
        %v2112 = vadd.f32 %v2108, %v2111
        %vm2113 = vweird.f32 %v2107
        %vm2114 = vweird.f32 %v2108
        %vm2115 = vmor %vm2113, %vm2114
        %v2116 = vsel %vm2115, %v2108, %v2112
        %v2117 = vand.u32 2147483647, %v2107
        %vm2118 = vcmp.eq.f32.partialorder %v2117, 8.507059e+37
        %v2119 = vand.u32 %v2107, 2147483648
        %v2120 = vor.u32 1.1754944e-38, %v2119
        %v2121 = vsel %vm2118, %v2120, %v2116
        %v2122 = vmul.f32 1.0, %v2121
        %v2123 = vmul.f32 %v1100, %v1955
        %v2125 = vrot.slane %v2123, 7
        %v2127 = vadd.f32 %v1048, %v2125
        %v2128 = vtanh.pop %v2127
        %v2129 = vmul.f32 %v1104, %v1955
        %v2131 = vrot.slane %v2129, 7
        %v2133 = vadd.f32 %v1054, %v2131
        %v2134 = vxor.u32 %v2133, 2147483648
        %v2135 = vmul.f32 %v2134, 1.442695
        %v2136 = vpow.pop %v2135
        %v2137 = vadd.f32 %v2136, 1.0
        %v2138 = vrcp.pop %v2137
        %v2139 = vmul.f32 %v2137, %v2138
        %v2140 = vsub.f32 1.0, %v2139
        %v2141 = vmul.f32 %v2138, %v2140
        %v2142 = vadd.f32 %v2138, %v2141
        %vm2143 = vweird.f32 %v2137
        %vm2144 = vweird.f32 %v2138
        %vm2145 = vmor %vm2143, %vm2144
        %v2146 = vsel %vm2145, %v2138, %v2142
        %v2147 = vand.u32 2147483647, %v2137
        %vm2148 = vcmp.eq.f32.partialorder %v2147, 8.507059e+37
        %v2149 = vand.u32 %v2137, 2147483648
        %v2150 = vor.u32 1.1754944e-38, %v2149
        %v2151 = vsel %vm2148, %v2150, %v2146
        %v2152 = vmul.f32 1.0, %v2151
        %v2154 = vrot.slane %v1953, 7
        %v2156 = vmul.f32 %v2122, %v2154
        %v2157 = vmul.f32 %v2098, %v2128
        %v2158 = vadd.f32 %v2156, %v2157
        %v2159 = vtanh.pop %v2158
        %v2160 = vmul.f32 %v2152, %v2159
        %v2161 = vmul.f32 %v1131, %v2160
        %v2162 = vadd.f32 %v2161, %v1133
        %v2163 = vmul.f32 %v1135, %v2049
        %v2165 = vrot.slane %v2163, 7
        %v2167 = vadd.f32 %v2162, %v2165
        %v2168 = vxor.u32 %v2167, 2147483648
        %v2169 = vmul.f32 %v2168, 1.442695
        %v2170 = vpow.pop %v2169
        %v2171 = vadd.f32 %v2170, 1.0
        %v2172 = vrcp.pop %v2171
        %v2173 = vmul.f32 %v2171, %v2172
        %v2174 = vsub.f32 1.0, %v2173
        %v2175 = vmul.f32 %v2172, %v2174
        %v2176 = vadd.f32 %v2172, %v2175
        %vm2177 = vweird.f32 %v2171
        %vm2178 = vweird.f32 %v2172
        %vm2179 = vmor %vm2177, %vm2178
        %v2180 = vsel %vm2179, %v2172, %v2176
        %v2181 = vand.u32 2147483647, %v2171
        %vm2182 = vcmp.eq.f32.partialorder %v2181, 8.507059e+37
        %v2183 = vand.u32 %v2171, 2147483648
        %v2184 = vor.u32 1.1754944e-38, %v2183
        %v2185 = vsel %vm2182, %v2184, %v2180
        %v2186 = vmul.f32 1.0, %v2185
        %v2187 = vmul.f32 %v1157, %v2160
        %v2188 = vadd.f32 %v2187, %v1159
        %v2189 = vmul.f32 %v1161, %v2049
        %v2191 = vrot.slane %v2189, 7
        %v2193 = vadd.f32 %v2188, %v2191
        %v2194 = vxor.u32 %v2193, 2147483648
        %v2195 = vmul.f32 %v2194, 1.442695
        %v2196 = vpow.pop %v2195
        %v2197 = vadd.f32 %v2196, 1.0
        %v2198 = vrcp.pop %v2197
        %v2199 = vmul.f32 %v2197, %v2198
        %v2200 = vsub.f32 1.0, %v2199
        %v2201 = vmul.f32 %v2198, %v2200
        %v2202 = vadd.f32 %v2198, %v2201
        %vm2203 = vweird.f32 %v2197
        %vm2204 = vweird.f32 %v2198
        %vm2205 = vmor %vm2203, %vm2204
        %v2206 = vsel %vm2205, %v2198, %v2202
        %v2207 = vand.u32 2147483647, %v2197
        %vm2208 = vcmp.eq.f32.partialorder %v2207, 8.507059e+37
        %v2209 = vand.u32 %v2197, 2147483648
        %v2210 = vor.u32 1.1754944e-38, %v2209
        %v2211 = vsel %vm2208, %v2210, %v2206
        %v2212 = vmul.f32 1.0, %v2211
        %v2213 = vmul.f32 %v1183, %v2160
        %v2214 = vadd.f32 %v2213, %v1185
        %v2215 = vmul.f32 %v1187, %v2049
        %v2217 = vrot.slane %v2215, 7
        %v2219 = vadd.f32 %v2214, %v2217
        %v2220 = vtanh.pop %v2219
        %v2221 = vmul.f32 %v1191, %v2160
        %v2222 = vadd.f32 %v2221, %v1193
        %v2223 = vmul.f32 %v1195, %v2049
        %v2225 = vrot.slane %v2223, 7
        %v2227 = vadd.f32 %v2222, %v2225
        %v2228 = vxor.u32 %v2227, 2147483648
        %v2229 = vmul.f32 %v2228, 1.442695
        %v2230 = vpow.pop %v2229
        %v2231 = vadd.f32 %v2230, 1.0
        %v2232 = vrcp.pop %v2231
        %v2233 = vmul.f32 %v2231, %v2232
        %v2234 = vsub.f32 1.0, %v2233
        %v2235 = vmul.f32 %v2232, %v2234
        %v2236 = vadd.f32 %v2232, %v2235
        %vm2237 = vweird.f32 %v2231
        %vm2238 = vweird.f32 %v2232
        %vm2239 = vmor %vm2237, %vm2238
        %v2240 = vsel %vm2239, %v2232, %v2236
        %v2241 = vand.u32 2147483647, %v2231
        %vm2242 = vcmp.eq.f32.partialorder %v2241, 8.507059e+37
        %v2243 = vand.u32 %v2231, 2147483648
        %v2244 = vor.u32 1.1754944e-38, %v2243
        %v2245 = vsel %vm2242, %v2244, %v2240
        %v2246 = vmul.f32 1.0, %v2245
        %v2248 = vrot.slane %v2047, 7
        %v2250 = vmul.f32 %v2212, %v2248
        %v2251 = vmul.f32 %v2186, %v2220
        %v2252 = vadd.f32 %v2250, %v2251
        %v2253 = vtanh.pop %v2252
        %v2254 = vmul.f32 %v2246, %v2253
        %2255 = vset.pattern.permute.xlu0 5
        %2256 = vperm.xlu0 %2255, %v1222
        %v2257 = vpop.permute.xlu0 %2256
        %2259 = vset.pattern.permute.xlu0 5
        %2260 = vperm.xlu0 %2259, %v1223
        %v2261 = vpop.permute.xlu0 %2260
        %2263 = vset.pattern.permute.xlu0 5
        %2264 = vperm.xlu0 %2263, %v1224
        %v2265 = vpop.permute.xlu0 %2264
        %2267 = vset.pattern.permute.xlu0 5
        %2268 = vperm.xlu0 %2267, %v1225
        %v2269 = vpop.permute.xlu0 %2268
        %v2271 = vperm.slane %v2254, 5
        %v2272 = vmul.f32 %v2257, %v2271
        %v2273 = vmul.f32 %v2261, %v2271
        %v2274 = vmul.f32 %v2265, %v2271
        %v2275 = vmul.f32 %v2269, %v2271
        %v2276 = vadd.f32 %v2071, %v2272
        %v2277 = vadd.f32 %v2072, %v2273
        %v2278 = vadd.f32 %v2073, %v2274
        %v2279 = vadd.f32 %v2074, %v2275
        %v2280 = vmul.f32 %v1056, %v2160
        %v2282 = vrot.slane %v2280, 7
        %v2284 = vadd.f32 %v1036, %v2282
        %v2285 = vxor.u32 %v2284, 2147483648
        %v2286 = vmul.f32 %v2285, 1.442695
        %v2287 = vpow.pop %v2286
        %v2288 = vadd.f32 %v2287, 1.0
        %v2289 = vrcp.pop %v2288
        %v2290 = vmul.f32 %v2288, %v2289
        %v2291 = vsub.f32 1.0, %v2290
        %v2292 = vmul.f32 %v2289, %v2291
        %v2293 = vadd.f32 %v2289, %v2292
        %vm2294 = vweird.f32 %v2288
        %vm2295 = vweird.f32 %v2289
        %vm2296 = vmor %vm2294, %vm2295
        %v2297 = vsel %vm2296, %v2289, %v2293
        %v2298 = vand.u32 2147483647, %v2288
        %vm2299 = vcmp.eq.f32.partialorder %v2298, 8.507059e+37
        %v2300 = vand.u32 %v2288, 2147483648
        %v2301 = vor.u32 1.1754944e-38, %v2300
        %v2302 = vsel %vm2299, %v2301, %v2297
        %v2303 = vmul.f32 1.0, %v2302
        %v2304 = vmul.f32 %v1078, %v2160
        %v2306 = vrot.slane %v2304, 7
        %v2308 = vadd.f32 %v1042, %v2306
        %v2309 = vxor.u32 %v2308, 2147483648
        %v2310 = vmul.f32 %v2309, 1.442695
        %v2311 = vpow.pop %v2310
        %v2312 = vadd.f32 %v2311, 1.0
        %v2313 = vrcp.pop %v2312
        %v2314 = vmul.f32 %v2312, %v2313
        %v2315 = vsub.f32 1.0, %v2314
        %v2316 = vmul.f32 %v2313, %v2315
        %v2317 = vadd.f32 %v2313, %v2316
        %vm2318 = vweird.f32 %v2312
        %vm2319 = vweird.f32 %v2313
        %vm2320 = vmor %vm2318, %vm2319
        %v2321 = vsel %vm2320, %v2313, %v2317
        %v2322 = vand.u32 2147483647, %v2312
        %vm2323 = vcmp.eq.f32.partialorder %v2322, 8.507059e+37
        %v2324 = vand.u32 %v2312, 2147483648
        %v2325 = vor.u32 1.1754944e-38, %v2324
        %v2326 = vsel %vm2323, %v2325, %v2321
        %v2327 = vmul.f32 1.0, %v2326
        %v2328 = vmul.f32 %v1100, %v2160
        %v2330 = vrot.slane %v2328, 7
        %v2332 = vadd.f32 %v1048, %v2330
        %v2333 = vtanh.pop %v2332
        %v2334 = vmul.f32 %v1104, %v2160
        %v2336 = vrot.slane %v2334, 7
        %v2338 = vadd.f32 %v1054, %v2336
        %v2339 = vxor.u32 %v2338, 2147483648
        %v2340 = vmul.f32 %v2339, 1.442695
        %v2341 = vpow.pop %v2340
        %v2342 = vadd.f32 %v2341, 1.0
        %v2343 = vrcp.pop %v2342
        %v2344 = vmul.f32 %v2342, %v2343
        %v2345 = vsub.f32 1.0, %v2344
        %v2346 = vmul.f32 %v2343, %v2345
        %v2347 = vadd.f32 %v2343, %v2346
        %vm2348 = vweird.f32 %v2342
        %vm2349 = vweird.f32 %v2343
        %vm2350 = vmor %vm2348, %vm2349
        %v2351 = vsel %vm2350, %v2343, %v2347
        %v2352 = vand.u32 2147483647, %v2342
        %vm2353 = vcmp.eq.f32.partialorder %v2352, 8.507059e+37
        %v2354 = vand.u32 %v2342, 2147483648
        %v2355 = vor.u32 1.1754944e-38, %v2354
        %v2356 = vsel %vm2353, %v2355, %v2351
        %v2357 = vmul.f32 1.0, %v2356
        %v2359 = vrot.slane %v2158, 7
        %v2361 = vmul.f32 %v2327, %v2359
        %v2362 = vmul.f32 %v2303, %v2333
        %v2363 = vadd.f32 %v2361, %v2362
        %v2364 = vtanh.pop %v2363
        %v2365 = vmul.f32 %v2357, %v2364
        %v2366 = vmul.f32 %v1131, %v2365
        %v2367 = vadd.f32 %v2366, %v1133
        %v2368 = vmul.f32 %v1135, %v2254
        %v2370 = vrot.slane %v2368, 7
        %v2372 = vadd.f32 %v2367, %v2370
        %v2373 = vxor.u32 %v2372, 2147483648
        %v2374 = vmul.f32 %v2373, 1.442695
        %v2375 = vpow.pop %v2374
        %v2376 = vadd.f32 %v2375, 1.0
        %v2377 = vrcp.pop %v2376
        %v2378 = vmul.f32 %v2376, %v2377
        %v2379 = vsub.f32 1.0, %v2378
        %v2380 = vmul.f32 %v2377, %v2379
        %v2381 = vadd.f32 %v2377, %v2380
        %vm2382 = vweird.f32 %v2376
        %vm2383 = vweird.f32 %v2377
        %vm2384 = vmor %vm2382, %vm2383
        %v2385 = vsel %vm2384, %v2377, %v2381
        %v2386 = vand.u32 2147483647, %v2376
        %vm2387 = vcmp.eq.f32.partialorder %v2386, 8.507059e+37
        %v2388 = vand.u32 %v2376, 2147483648
        %v2389 = vor.u32 1.1754944e-38, %v2388
        %v2390 = vsel %vm2387, %v2389, %v2385
        %v2391 = vmul.f32 1.0, %v2390
        %v2392 = vmul.f32 %v1157, %v2365
        %v2393 = vadd.f32 %v2392, %v1159
        %v2394 = vmul.f32 %v1161, %v2254
        %v2396 = vrot.slane %v2394, 7
        %v2398 = vadd.f32 %v2393, %v2396
        %v2399 = vxor.u32 %v2398, 2147483648
        %v2400 = vmul.f32 %v2399, 1.442695
        %v2401 = vpow.pop %v2400
        %v2402 = vadd.f32 %v2401, 1.0
        %v2403 = vrcp.pop %v2402
        %v2404 = vmul.f32 %v2402, %v2403
        %v2405 = vsub.f32 1.0, %v2404
        %v2406 = vmul.f32 %v2403, %v2405
        %v2407 = vadd.f32 %v2403, %v2406
        %vm2408 = vweird.f32 %v2402
        %vm2409 = vweird.f32 %v2403
        %vm2410 = vmor %vm2408, %vm2409
        %v2411 = vsel %vm2410, %v2403, %v2407
        %v2412 = vand.u32 2147483647, %v2402
        %vm2413 = vcmp.eq.f32.partialorder %v2412, 8.507059e+37
        %v2414 = vand.u32 %v2402, 2147483648
        %v2415 = vor.u32 1.1754944e-38, %v2414
        %v2416 = vsel %vm2413, %v2415, %v2411
        %v2417 = vmul.f32 1.0, %v2416
        %v2418 = vmul.f32 %v1183, %v2365
        %v2419 = vadd.f32 %v2418, %v1185
        %v2420 = vmul.f32 %v1187, %v2254
        %v2422 = vrot.slane %v2420, 7
        %v2424 = vadd.f32 %v2419, %v2422
        %v2425 = vtanh.pop %v2424
        %v2426 = vmul.f32 %v1191, %v2365
        %v2427 = vadd.f32 %v2426, %v1193
        %v2428 = vmul.f32 %v1195, %v2254
        %v2430 = vrot.slane %v2428, 7
        %v2432 = vadd.f32 %v2427, %v2430
        %v2433 = vxor.u32 %v2432, 2147483648
        %v2434 = vmul.f32 %v2433, 1.442695
        %v2435 = vpow.pop %v2434
        %v2436 = vadd.f32 %v2435, 1.0
        %v2437 = vrcp.pop %v2436
        %v2438 = vmul.f32 %v2436, %v2437
        %v2439 = vsub.f32 1.0, %v2438
        %v2440 = vmul.f32 %v2437, %v2439
        %v2441 = vadd.f32 %v2437, %v2440
        %vm2442 = vweird.f32 %v2436
        %vm2443 = vweird.f32 %v2437
        %vm2444 = vmor %vm2442, %vm2443
        %v2445 = vsel %vm2444, %v2437, %v2441
        %v2446 = vand.u32 2147483647, %v2436
        %vm2447 = vcmp.eq.f32.partialorder %v2446, 8.507059e+37
        %v2448 = vand.u32 %v2436, 2147483648
        %v2449 = vor.u32 1.1754944e-38, %v2448
        %v2450 = vsel %vm2447, %v2449, %v2445
        %v2451 = vmul.f32 1.0, %v2450
        %v2453 = vrot.slane %v2252, 7
        %v2455 = vmul.f32 %v2417, %v2453
        %v2456 = vmul.f32 %v2391, %v2425
        %v2457 = vadd.f32 %v2455, %v2456
        %v2458 = vtanh.pop %v2457
        %v2459 = vmul.f32 %v2451, %v2458
        %2460 = vset.pattern.permute.xlu0 6
        %2461 = vperm.xlu0 %2460, %v1222
        %v2462 = vpop.permute.xlu0 %2461
        %2464 = vset.pattern.permute.xlu0 6
        %2465 = vperm.xlu0 %2464, %v1223
        %v2466 = vpop.permute.xlu0 %2465
        %2468 = vset.pattern.permute.xlu0 6
        %2469 = vperm.xlu0 %2468, %v1224
        %v2470 = vpop.permute.xlu0 %2469
        %2472 = vset.pattern.permute.xlu0 6
        %2473 = vperm.xlu0 %2472, %v1225
        %v2474 = vpop.permute.xlu0 %2473
        %v2476 = vperm.slane %v2459, 6
        %v2477 = vmul.f32 %v2462, %v2476
        %v2478 = vmul.f32 %v2466, %v2476
        %v2479 = vmul.f32 %v2470, %v2476
        %v2480 = vmul.f32 %v2474, %v2476
        %v2481 = vadd.f32 %v2276, %v2477
        %v2482 = vadd.f32 %v2277, %v2478
        %v2483 = vadd.f32 %v2278, %v2479
        %v2484 = vadd.f32 %v2279, %v2480
        %v2485 = vmul.f32 %v1056, %v2365
        %v2487 = vrot.slane %v2485, 7
        %v2489 = vadd.f32 %v1036, %v2487
        %v2490 = vxor.u32 %v2489, 2147483648
        %v2491 = vmul.f32 %v2490, 1.442695
        %v2492 = vpow.pop %v2491
        %v2493 = vadd.f32 %v2492, 1.0
        %v2494 = vrcp.pop %v2493
        %v2495 = vmul.f32 %v2493, %v2494
        %v2496 = vsub.f32 1.0, %v2495
        %v2497 = vmul.f32 %v2494, %v2496
        %v2498 = vadd.f32 %v2494, %v2497
        %vm2499 = vweird.f32 %v2493
        %vm2500 = vweird.f32 %v2494
        %vm2501 = vmor %vm2499, %vm2500
        %v2502 = vsel %vm2501, %v2494, %v2498
        %v2503 = vand.u32 2147483647, %v2493
        %vm2504 = vcmp.eq.f32.partialorder %v2503, 8.507059e+37
        %v2505 = vand.u32 %v2493, 2147483648
        %v2506 = vor.u32 1.1754944e-38, %v2505
        %v2507 = vsel %vm2504, %v2506, %v2502
        %v2508 = vmul.f32 1.0, %v2507
        %v2509 = vmul.f32 %v1078, %v2365
        %v2511 = vrot.slane %v2509, 7
        %v2513 = vadd.f32 %v1042, %v2511
        %v2514 = vxor.u32 %v2513, 2147483648
        %v2515 = vmul.f32 %v2514, 1.442695
        %v2516 = vpow.pop %v2515
        %v2517 = vadd.f32 %v2516, 1.0
        %v2518 = vrcp.pop %v2517
        %v2519 = vmul.f32 %v2517, %v2518
        %v2520 = vsub.f32 1.0, %v2519
        %v2521 = vmul.f32 %v2518, %v2520
        %v2522 = vadd.f32 %v2518, %v2521
        %vm2523 = vweird.f32 %v2517
        %vm2524 = vweird.f32 %v2518
        %vm2525 = vmor %vm2523, %vm2524
        %v2526 = vsel %vm2525, %v2518, %v2522
        %v2527 = vand.u32 2147483647, %v2517
        %vm2528 = vcmp.eq.f32.partialorder %v2527, 8.507059e+37
        %v2529 = vand.u32 %v2517, 2147483648
        %v2530 = vor.u32 1.1754944e-38, %v2529
        %v2531 = vsel %vm2528, %v2530, %v2526
        %v2532 = vmul.f32 1.0, %v2531
        %v2533 = vmul.f32 %v1100, %v2365
        %v2535 = vrot.slane %v2533, 7
        %v2537 = vadd.f32 %v1048, %v2535
        %v2538 = vtanh.pop %v2537
        %v2539 = vmul.f32 %v1104, %v2365
        %v2541 = vrot.slane %v2539, 7
        %v2543 = vadd.f32 %v1054, %v2541
        %v2544 = vxor.u32 %v2543, 2147483648
        %v2545 = vmul.f32 %v2544, 1.442695
        %v2546 = vpow.pop %v2545
        %v2547 = vadd.f32 %v2546, 1.0
        %v2548 = vrcp.pop %v2547
        %v2549 = vmul.f32 %v2547, %v2548
        %v2550 = vsub.f32 1.0, %v2549
        %v2551 = vmul.f32 %v2548, %v2550
        %v2552 = vadd.f32 %v2548, %v2551
        %vm2553 = vweird.f32 %v2547
        %vm2554 = vweird.f32 %v2548
        %vm2555 = vmor %vm2553, %vm2554
        %v2556 = vsel %vm2555, %v2548, %v2552
        %v2557 = vand.u32 2147483647, %v2547
        %vm2558 = vcmp.eq.f32.partialorder %v2557, 8.507059e+37
        %v2559 = vand.u32 %v2547, 2147483648
        %v2560 = vor.u32 1.1754944e-38, %v2559
        %v2561 = vsel %vm2558, %v2560, %v2556
        %v2562 = vmul.f32 1.0, %v2561
        %v2564 = vrot.slane %v2363, 7
        %v2566 = vmul.f32 %v2532, %v2564
        %v2567 = vmul.f32 %v2508, %v2538
        %v2568 = vadd.f32 %v2566, %v2567
        %v2569 = vtanh.pop %v2568
        %v2570 = vmul.f32 %v2562, %v2569
        %v2571 = vmul.f32 %v1131, %v2570
        %v2572 = vadd.f32 %v2571, %v1133
        %v2573 = vmul.f32 %v1135, %v2459
        %v2575 = vrot.slane %v2573, 7
        %v2577 = vadd.f32 %v2572, %v2575
        %v2578 = vxor.u32 %v2577, 2147483648
        %v2579 = vmul.f32 %v2578, 1.442695
        %v2580 = vpow.pop %v2579
        %v2581 = vadd.f32 %v2580, 1.0
        %v2582 = vrcp.pop %v2581
        %v2583 = vmul.f32 %v2581, %v2582
        %v2584 = vsub.f32 1.0, %v2583
        %v2585 = vmul.f32 %v2582, %v2584
        %v2586 = vadd.f32 %v2582, %v2585
        %vm2587 = vweird.f32 %v2581
        %vm2588 = vweird.f32 %v2582
        %vm2589 = vmor %vm2587, %vm2588
        %v2590 = vsel %vm2589, %v2582, %v2586
        %v2591 = vand.u32 2147483647, %v2581
        %vm2592 = vcmp.eq.f32.partialorder %v2591, 8.507059e+37
        %v2593 = vand.u32 %v2581, 2147483648
        %v2594 = vor.u32 1.1754944e-38, %v2593
        %v2595 = vsel %vm2592, %v2594, %v2590
        %v2596 = vmul.f32 1.0, %v2595
        %v2597 = vmul.f32 %v1157, %v2570
        %v2598 = vadd.f32 %v2597, %v1159
        %v2599 = vmul.f32 %v1161, %v2459
        %v2601 = vrot.slane %v2599, 7
        %v2603 = vadd.f32 %v2598, %v2601
        %v2604 = vxor.u32 %v2603, 2147483648
        %v2605 = vmul.f32 %v2604, 1.442695
        %v2606 = vpow.pop %v2605
        %v2607 = vadd.f32 %v2606, 1.0
        %v2608 = vrcp.pop %v2607
        %v2609 = vmul.f32 %v2607, %v2608
        %v2610 = vsub.f32 1.0, %v2609
        %v2611 = vmul.f32 %v2608, %v2610
        %v2612 = vadd.f32 %v2608, %v2611
        %vm2613 = vweird.f32 %v2607
        %vm2614 = vweird.f32 %v2608
        %vm2615 = vmor %vm2613, %vm2614
        %v2616 = vsel %vm2615, %v2608, %v2612
        %v2617 = vand.u32 2147483647, %v2607
        %vm2618 = vcmp.eq.f32.partialorder %v2617, 8.507059e+37
        %v2619 = vand.u32 %v2607, 2147483648
        %v2620 = vor.u32 1.1754944e-38, %v2619
        %v2621 = vsel %vm2618, %v2620, %v2616
        %v2622 = vmul.f32 1.0, %v2621
        %v2623 = vmul.f32 %v1183, %v2570
        %v2624 = vadd.f32 %v2623, %v1185
        %v2625 = vmul.f32 %v1187, %v2459
        %v2627 = vrot.slane %v2625, 7
        %v2629 = vadd.f32 %v2624, %v2627
        %v2630 = vtanh.pop %v2629
        %v2631 = vmul.f32 %v1191, %v2570
        %v2632 = vadd.f32 %v2631, %v1193
        %v2633 = vmul.f32 %v1195, %v2459
        %v2635 = vrot.slane %v2633, 7
        %v2637 = vadd.f32 %v2632, %v2635
        %v2638 = vxor.u32 %v2637, 2147483648
        %v2639 = vmul.f32 %v2638, 1.442695
        %v2640 = vpow.pop %v2639
        %v2641 = vadd.f32 %v2640, 1.0
        %v2642 = vrcp.pop %v2641
        %v2643 = vmul.f32 %v2641, %v2642
        %v2644 = vsub.f32 1.0, %v2643
        %v2645 = vmul.f32 %v2642, %v2644
        %v2646 = vadd.f32 %v2642, %v2645
        %vm2647 = vweird.f32 %v2641
        %vm2648 = vweird.f32 %v2642
        %vm2649 = vmor %vm2647, %vm2648
        %v2650 = vsel %vm2649, %v2642, %v2646
        %v2651 = vand.u32 2147483647, %v2641
        %vm2652 = vcmp.eq.f32.partialorder %v2651, 8.507059e+37
        %v2653 = vand.u32 %v2641, 2147483648
        %v2654 = vor.u32 1.1754944e-38, %v2653
        %v2655 = vsel %vm2652, %v2654, %v2650
        %v2656 = vmul.f32 1.0, %v2655
        %v2658 = vrot.slane %v2457, 7
        %v2660 = vmul.f32 %v2622, %v2658
        %v2661 = vmul.f32 %v2596, %v2630
        %v2662 = vadd.f32 %v2660, %v2661
        %v2663 = vtanh.pop %v2662
        %v2664 = vmul.f32 %v2656, %v2663
        %2665 = vset.pattern.permute.xlu0 7
        %2666 = vperm.xlu0 %2665, %v1222
        %v2667 = vpop.permute.xlu0 %2666
        %2669 = vset.pattern.permute.xlu0 7
        %2670 = vperm.xlu0 %2669, %v1223
        %v2671 = vpop.permute.xlu0 %2670
        %2673 = vset.pattern.permute.xlu0 7
        %2674 = vperm.xlu0 %2673, %v1224
        %v2675 = vpop.permute.xlu0 %2674
        %2677 = vset.pattern.permute.xlu0 7
        %2678 = vperm.xlu0 %2677, %v1225
        %v2679 = vpop.permute.xlu0 %2678
        %v2681 = vperm.slane %v2664, 7
        %v2682 = vmul.f32 %v2667, %v2681
        %v2683 = vmul.f32 %v2671, %v2681
        %v2684 = vmul.f32 %v2675, %v2681
        %v2685 = vmul.f32 %v2679, %v2681
        %v2686 = vadd.f32 %v2481, %v2682
        %v2687 = vadd.f32 %v2482, %v2683
        %v2688 = vadd.f32 %v2483, %v2684
        %v2689 = vadd.f32 %v2484, %v2685
        %v2690 = vmul.f32 %v1056, %v2570
        %v2692 = vrot.slane %v2690, 7
        %v2694 = vadd.f32 %v1037, %v2692
        %v2695 = vxor.u32 %v2694, 2147483648
        %v2696 = vmul.f32 %v2695, 1.442695
        %v2697 = vpow.pop %v2696
        %v2698 = vadd.f32 %v2697, 1.0
        %v2699 = vrcp.pop %v2698
        %v2700 = vmul.f32 %v2698, %v2699
        %v2701 = vsub.f32 1.0, %v2700
        %v2702 = vmul.f32 %v2699, %v2701
        %v2703 = vadd.f32 %v2699, %v2702
        %vm2704 = vweird.f32 %v2698
        %vm2705 = vweird.f32 %v2699
        %vm2706 = vmor %vm2704, %vm2705
        %v2707 = vsel %vm2706, %v2699, %v2703
        %v2708 = vand.u32 2147483647, %v2698
        %vm2709 = vcmp.eq.f32.partialorder %v2708, 8.507059e+37
        %v2710 = vand.u32 %v2698, 2147483648
        %v2711 = vor.u32 1.1754944e-38, %v2710
        %v2712 = vsel %vm2709, %v2711, %v2707
        %v2713 = vmul.f32 1.0, %v2712
        %v2714 = vmul.f32 %v1078, %v2570
        %v2716 = vrot.slane %v2714, 7
        %v2718 = vadd.f32 %v1043, %v2716
        %v2719 = vxor.u32 %v2718, 2147483648
        %v2720 = vmul.f32 %v2719, 1.442695
        %v2721 = vpow.pop %v2720
        %v2722 = vadd.f32 %v2721, 1.0
        %v2723 = vrcp.pop %v2722
        %v2724 = vmul.f32 %v2722, %v2723
        %v2725 = vsub.f32 1.0, %v2724
        %v2726 = vmul.f32 %v2723, %v2725
        %v2727 = vadd.f32 %v2723, %v2726
        %vm2728 = vweird.f32 %v2722
        %vm2729 = vweird.f32 %v2723
        %vm2730 = vmor %vm2728, %vm2729
        %v2731 = vsel %vm2730, %v2723, %v2727
        %v2732 = vand.u32 2147483647, %v2722
        %vm2733 = vcmp.eq.f32.partialorder %v2732, 8.507059e+37
        %v2734 = vand.u32 %v2722, 2147483648
        %v2735 = vor.u32 1.1754944e-38, %v2734
        %v2736 = vsel %vm2733, %v2735, %v2731
        %v2737 = vmul.f32 1.0, %v2736
        %v2738 = vmul.f32 %v1100, %v2570
        %v2740 = vrot.slane %v2738, 7
        %v2742 = vadd.f32 %v1049, %v2740
        %v2743 = vtanh.pop %v2742
        %v2744 = vmul.f32 %v1104, %v2570
        %v2746 = vrot.slane %v2744, 7
        %v2748 = vadd.f32 %v1055, %v2746
        %v2749 = vxor.u32 %v2748, 2147483648
        %v2750 = vmul.f32 %v2749, 1.442695
        %v2751 = vpow.pop %v2750
        %v2752 = vadd.f32 %v2751, 1.0
        %v2753 = vrcp.pop %v2752
        %v2754 = vmul.f32 %v2752, %v2753
        %v2755 = vsub.f32 1.0, %v2754
        %v2756 = vmul.f32 %v2753, %v2755
        %v2757 = vadd.f32 %v2753, %v2756
        %vm2758 = vweird.f32 %v2752
        %vm2759 = vweird.f32 %v2753
        %vm2760 = vmor %vm2758, %vm2759
        %v2761 = vsel %vm2760, %v2753, %v2757
        %v2762 = vand.u32 2147483647, %v2752
        %vm2763 = vcmp.eq.f32.partialorder %v2762, 8.507059e+37
        %v2764 = vand.u32 %v2752, 2147483648
        %v2765 = vor.u32 1.1754944e-38, %v2764
        %v2766 = vsel %vm2763, %v2765, %v2761
        %v2767 = vmul.f32 1.0, %v2766
        %v2769 = vrot.slane %v2568, 7
        %v2771 = vmul.f32 %v2737, %v2769
        %v2772 = vmul.f32 %v2713, %v2743
        %v2773 = vadd.f32 %v2771, %v2772
        %v2774 = vtanh.pop %v2773
        %v2775 = vmul.f32 %v2767, %v2774
        %v2776 = vmul.f32 %v1131, %v2775
        %v2777 = vadd.f32 %v2776, %v1133
        %v2778 = vmul.f32 %v1135, %v2664
        %v2780 = vrot.slane %v2778, 7
        %v2782 = vadd.f32 %v2777, %v2780
        %v2783 = vxor.u32 %v2782, 2147483648
        %v2784 = vmul.f32 %v2783, 1.442695
        %v2785 = vpow.pop %v2784
        %v2786 = vadd.f32 %v2785, 1.0
        %v2787 = vrcp.pop %v2786
        %v2788 = vmul.f32 %v2786, %v2787
        %v2789 = vsub.f32 1.0, %v2788
        %v2790 = vmul.f32 %v2787, %v2789
        %v2791 = vadd.f32 %v2787, %v2790
        %vm2792 = vweird.f32 %v2786
        %vm2793 = vweird.f32 %v2787
        %vm2794 = vmor %vm2792, %vm2793
        %v2795 = vsel %vm2794, %v2787, %v2791
        %v2796 = vand.u32 2147483647, %v2786
        %vm2797 = vcmp.eq.f32.partialorder %v2796, 8.507059e+37
        %v2798 = vand.u32 %v2786, 2147483648
        %v2799 = vor.u32 1.1754944e-38, %v2798
        %v2800 = vsel %vm2797, %v2799, %v2795
        %v2801 = vmul.f32 1.0, %v2800
        %v2802 = vmul.f32 %v1157, %v2775
        %v2803 = vadd.f32 %v2802, %v1159
        %v2804 = vmul.f32 %v1161, %v2664
        %v2806 = vrot.slane %v2804, 7
        %v2808 = vadd.f32 %v2803, %v2806
        %v2809 = vxor.u32 %v2808, 2147483648
        %v2810 = vmul.f32 %v2809, 1.442695
        %v2811 = vpow.pop %v2810
        %v2812 = vadd.f32 %v2811, 1.0
        %v2813 = vrcp.pop %v2812
        %v2814 = vmul.f32 %v2812, %v2813
        %v2815 = vsub.f32 1.0, %v2814
        %v2816 = vmul.f32 %v2813, %v2815
        %v2817 = vadd.f32 %v2813, %v2816
        %vm2818 = vweird.f32 %v2812
        %vm2819 = vweird.f32 %v2813
        %vm2820 = vmor %vm2818, %vm2819
        %v2821 = vsel %vm2820, %v2813, %v2817
        %v2822 = vand.u32 2147483647, %v2812
        %vm2823 = vcmp.eq.f32.partialorder %v2822, 8.507059e+37
        %v2824 = vand.u32 %v2812, 2147483648
        %v2825 = vor.u32 1.1754944e-38, %v2824
        %v2826 = vsel %vm2823, %v2825, %v2821
        %v2827 = vmul.f32 1.0, %v2826
        %v2828 = vmul.f32 %v1183, %v2775
        %v2829 = vadd.f32 %v2828, %v1185
        %v2830 = vmul.f32 %v1187, %v2664
        %v2832 = vrot.slane %v2830, 7
        %v2834 = vadd.f32 %v2829, %v2832
        %v2835 = vtanh.pop %v2834
        %v2836 = vmul.f32 %v1191, %v2775
        %v2837 = vadd.f32 %v2836, %v1193
        %v2838 = vmul.f32 %v1195, %v2664
        %v2840 = vrot.slane %v2838, 7
        %v2842 = vadd.f32 %v2837, %v2840
        %v2843 = vxor.u32 %v2842, 2147483648
        %v2844 = vmul.f32 %v2843, 1.442695
        %v2845 = vpow.pop %v2844
        %v2846 = vadd.f32 %v2845, 1.0
        %v2847 = vrcp.pop %v2846
        %v2848 = vmul.f32 %v2846, %v2847
        %v2849 = vsub.f32 1.0, %v2848
        %v2850 = vmul.f32 %v2847, %v2849
        %v2851 = vadd.f32 %v2847, %v2850
        %vm2852 = vweird.f32 %v2846
        %vm2853 = vweird.f32 %v2847
        %vm2854 = vmor %vm2852, %vm2853
        %v2855 = vsel %vm2854, %v2847, %v2851
        %v2856 = vand.u32 2147483647, %v2846
        %vm2857 = vcmp.eq.f32.partialorder %v2856, 8.507059e+37
        %v2858 = vand.u32 %v2846, 2147483648
        %v2859 = vor.u32 1.1754944e-38, %v2858
        %v2860 = vsel %vm2857, %v2859, %v2855
        %v2861 = vmul.f32 1.0, %v2860
        %v2863 = vrot.slane %v2662, 7
        %v2865 = vmul.f32 %v2827, %v2863
        %v2866 = vmul.f32 %v2801, %v2835
        %v2867 = vadd.f32 %v2865, %v2866
        %v2868 = vtanh.pop %v2867
        %v2869 = vmul.f32 %v2861, %v2868
        %2870 = vset.pattern.permute.xlu0 8
        %2871 = vperm.xlu0 %2870, %v1222
        %v2872 = vpop.permute.xlu0 %2871
        %2874 = vset.pattern.permute.xlu0 8
        %2875 = vperm.xlu0 %2874, %v1223
        %v2876 = vpop.permute.xlu0 %2875
        %2878 = vset.pattern.permute.xlu0 8
        %2879 = vperm.xlu0 %2878, %v1224
        %v2880 = vpop.permute.xlu0 %2879
        %2882 = vset.pattern.permute.xlu0 8
        %2883 = vperm.xlu0 %2882, %v1225
        %v2884 = vpop.permute.xlu0 %2883
        %v2886 = vperm.slane %v2869, 0
        %v2887 = vmul.f32 %v2872, %v2886
        %v2888 = vmul.f32 %v2876, %v2886
        %v2889 = vmul.f32 %v2880, %v2886
        %v2890 = vmul.f32 %v2884, %v2886
        %v2891 = vadd.f32 %v2686, %v2887
        %v2892 = vadd.f32 %v2687, %v2888
        %v2893 = vadd.f32 %v2688, %v2889
        %v2894 = vadd.f32 %v2689, %v2890
        %v2895 = vmul.f32 %v1056, %v2775
        %v2897 = vrot.slane %v2895, 7
        %v2899 = vadd.f32 %v1037, %v2897
        %v2900 = vxor.u32 %v2899, 2147483648
        %v2901 = vmul.f32 %v2900, 1.442695
        %v2902 = vpow.pop %v2901
        %v2903 = vadd.f32 %v2902, 1.0
        %v2904 = vrcp.pop %v2903
        %v2905 = vmul.f32 %v2903, %v2904
        %v2906 = vsub.f32 1.0, %v2905
        %v2907 = vmul.f32 %v2904, %v2906
        %v2908 = vadd.f32 %v2904, %v2907
        %vm2909 = vweird.f32 %v2903
        %vm2910 = vweird.f32 %v2904
        %vm2911 = vmor %vm2909, %vm2910
        %v2912 = vsel %vm2911, %v2904, %v2908
        %v2913 = vand.u32 2147483647, %v2903
        %vm2914 = vcmp.eq.f32.partialorder %v2913, 8.507059e+37
        %v2915 = vand.u32 %v2903, 2147483648
        %v2916 = vor.u32 1.1754944e-38, %v2915
        %v2917 = vsel %vm2914, %v2916, %v2912
        %v2918 = vmul.f32 1.0, %v2917
        %v2919 = vmul.f32 %v1078, %v2775
        %v2921 = vrot.slane %v2919, 7
        %v2923 = vadd.f32 %v1043, %v2921
        %v2924 = vxor.u32 %v2923, 2147483648
        %v2925 = vmul.f32 %v2924, 1.442695
        %v2926 = vpow.pop %v2925
        %v2927 = vadd.f32 %v2926, 1.0
        %v2928 = vrcp.pop %v2927
        %v2929 = vmul.f32 %v2927, %v2928
        %v2930 = vsub.f32 1.0, %v2929
        %v2931 = vmul.f32 %v2928, %v2930
        %v2932 = vadd.f32 %v2928, %v2931
        %vm2933 = vweird.f32 %v2927
        %vm2934 = vweird.f32 %v2928
        %vm2935 = vmor %vm2933, %vm2934
        %v2936 = vsel %vm2935, %v2928, %v2932
        %v2937 = vand.u32 2147483647, %v2927
        %vm2938 = vcmp.eq.f32.partialorder %v2937, 8.507059e+37
        %v2939 = vand.u32 %v2927, 2147483648
        %v2940 = vor.u32 1.1754944e-38, %v2939
        %v2941 = vsel %vm2938, %v2940, %v2936
        %v2942 = vmul.f32 1.0, %v2941
        %v2943 = vmul.f32 %v1100, %v2775
        %v2945 = vrot.slane %v2943, 7
        %v2947 = vadd.f32 %v1049, %v2945
        %v2948 = vtanh.pop %v2947
        %v2949 = vmul.f32 %v1104, %v2775
        %v2951 = vrot.slane %v2949, 7
        %v2953 = vadd.f32 %v1055, %v2951
        %v2954 = vxor.u32 %v2953, 2147483648
        %v2955 = vmul.f32 %v2954, 1.442695
        %v2956 = vpow.pop %v2955
        %v2957 = vadd.f32 %v2956, 1.0
        %v2958 = vrcp.pop %v2957
        %v2959 = vmul.f32 %v2957, %v2958
        %v2960 = vsub.f32 1.0, %v2959
        %v2961 = vmul.f32 %v2958, %v2960
        %v2962 = vadd.f32 %v2958, %v2961
        %vm2963 = vweird.f32 %v2957
        %vm2964 = vweird.f32 %v2958
        %vm2965 = vmor %vm2963, %vm2964
        %v2966 = vsel %vm2965, %v2958, %v2962
        %v2967 = vand.u32 2147483647, %v2957
        %vm2968 = vcmp.eq.f32.partialorder %v2967, 8.507059e+37
        %v2969 = vand.u32 %v2957, 2147483648
        %v2970 = vor.u32 1.1754944e-38, %v2969
        %v2971 = vsel %vm2968, %v2970, %v2966
        %v2972 = vmul.f32 1.0, %v2971
        %v2974 = vrot.slane %v2773, 7
        %v2976 = vmul.f32 %v2942, %v2974
        %v2977 = vmul.f32 %v2918, %v2948
        %v2978 = vadd.f32 %v2976, %v2977
        %v2979 = vtanh.pop %v2978
        %v2980 = vmul.f32 %v2972, %v2979
        %v2981 = vmul.f32 %v1131, %v2980
        %v2982 = vadd.f32 %v2981, %v1133
        %v2983 = vmul.f32 %v1135, %v2869
        %v2985 = vrot.slane %v2983, 7
        %v2987 = vadd.f32 %v2982, %v2985
        %v2988 = vxor.u32 %v2987, 2147483648
        %v2989 = vmul.f32 %v2988, 1.442695
        %v2990 = vpow.pop %v2989
        %v2991 = vadd.f32 %v2990, 1.0
        %v2992 = vrcp.pop %v2991
        %v2993 = vmul.f32 %v2991, %v2992
        %v2994 = vsub.f32 1.0, %v2993
        %v2995 = vmul.f32 %v2992, %v2994
        %v2996 = vadd.f32 %v2992, %v2995
        %vm2997 = vweird.f32 %v2991
        %vm2998 = vweird.f32 %v2992
        %vm2999 = vmor %vm2997, %vm2998
        %v3000 = vsel %vm2999, %v2992, %v2996
        %v3001 = vand.u32 2147483647, %v2991
        %vm3002 = vcmp.eq.f32.partialorder %v3001, 8.507059e+37
        %v3003 = vand.u32 %v2991, 2147483648
        %v3004 = vor.u32 1.1754944e-38, %v3003
        %v3005 = vsel %vm3002, %v3004, %v3000
        %v3006 = vmul.f32 1.0, %v3005
        %v3007 = vmul.f32 %v1157, %v2980
        %v3008 = vadd.f32 %v3007, %v1159
        %v3009 = vmul.f32 %v1161, %v2869
        %v3011 = vrot.slane %v3009, 7
        %v3013 = vadd.f32 %v3008, %v3011
        %v3014 = vxor.u32 %v3013, 2147483648
        %v3015 = vmul.f32 %v3014, 1.442695
        %v3016 = vpow.pop %v3015
        %v3017 = vadd.f32 %v3016, 1.0
        %v3018 = vrcp.pop %v3017
        %v3019 = vmul.f32 %v3017, %v3018
        %v3020 = vsub.f32 1.0, %v3019
        %v3021 = vmul.f32 %v3018, %v3020
        %v3022 = vadd.f32 %v3018, %v3021
        %vm3023 = vweird.f32 %v3017
        %vm3024 = vweird.f32 %v3018
        %vm3025 = vmor %vm3023, %vm3024
        %v3026 = vsel %vm3025, %v3018, %v3022
        %v3027 = vand.u32 2147483647, %v3017
        %vm3028 = vcmp.eq.f32.partialorder %v3027, 8.507059e+37
        %v3029 = vand.u32 %v3017, 2147483648
        %v3030 = vor.u32 1.1754944e-38, %v3029
        %v3031 = vsel %vm3028, %v3030, %v3026
        %v3032 = vmul.f32 1.0, %v3031
        %v3033 = vmul.f32 %v1183, %v2980
        %v3034 = vadd.f32 %v3033, %v1185
        %v3035 = vmul.f32 %v1187, %v2869
        %v3037 = vrot.slane %v3035, 7
        %v3039 = vadd.f32 %v3034, %v3037
        %v3040 = vtanh.pop %v3039
        %v3041 = vmul.f32 %v1191, %v2980
        %v3042 = vadd.f32 %v3041, %v1193
        %v3043 = vmul.f32 %v1195, %v2869
        %v3045 = vrot.slane %v3043, 7
        %v3047 = vadd.f32 %v3042, %v3045
        %v3048 = vxor.u32 %v3047, 2147483648
        %v3049 = vmul.f32 %v3048, 1.442695
        %v3050 = vpow.pop %v3049
        %v3051 = vadd.f32 %v3050, 1.0
        %v3052 = vrcp.pop %v3051
        %v3053 = vmul.f32 %v3051, %v3052
        %v3054 = vsub.f32 1.0, %v3053
        %v3055 = vmul.f32 %v3052, %v3054
        %v3056 = vadd.f32 %v3052, %v3055
        %vm3057 = vweird.f32 %v3051
        %vm3058 = vweird.f32 %v3052
        %vm3059 = vmor %vm3057, %vm3058
        %v3060 = vsel %vm3059, %v3052, %v3056
        %v3061 = vand.u32 2147483647, %v3051
        %vm3062 = vcmp.eq.f32.partialorder %v3061, 8.507059e+37
        %v3063 = vand.u32 %v3051, 2147483648
        %v3064 = vor.u32 1.1754944e-38, %v3063
        %v3065 = vsel %vm3062, %v3064, %v3060
        %v3066 = vmul.f32 1.0, %v3065
        %v3068 = vrot.slane %v2867, 7
        %v3070 = vmul.f32 %v3032, %v3068
        %v3071 = vmul.f32 %v3006, %v3040
        %v3072 = vadd.f32 %v3070, %v3071
        %v3073 = vtanh.pop %v3072
        %v3074 = vmul.f32 %v3066, %v3073
        %3075 = vset.pattern.permute.xlu0 9
        %3076 = vperm.xlu0 %3075, %v1222
        %v3077 = vpop.permute.xlu0 %3076
        %3079 = vset.pattern.permute.xlu0 9
        %3080 = vperm.xlu0 %3079, %v1223
        %v3081 = vpop.permute.xlu0 %3080
        %3083 = vset.pattern.permute.xlu0 9
        %3084 = vperm.xlu0 %3083, %v1224
        %v3085 = vpop.permute.xlu0 %3084
        %3087 = vset.pattern.permute.xlu0 9
        %3088 = vperm.xlu0 %3087, %v1225
        %v3089 = vpop.permute.xlu0 %3088
        %v3091 = vperm.slane %v3074, 1
        %v3092 = vmul.f32 %v3077, %v3091
        %v3093 = vmul.f32 %v3081, %v3091
        %v3094 = vmul.f32 %v3085, %v3091
        %v3095 = vmul.f32 %v3089, %v3091
        %v3096 = vadd.f32 %v2891, %v3092
        %v3097 = vadd.f32 %v2892, %v3093
        %v3098 = vadd.f32 %v2893, %v3094
        %v3099 = vadd.f32 %v2894, %v3095
        %v3100 = vmul.f32 %v1056, %v2980
        %v3102 = vrot.slane %v3100, 7
        %v3104 = vadd.f32 %v1037, %v3102
        %v3105 = vxor.u32 %v3104, 2147483648
        %v3106 = vmul.f32 %v3105, 1.442695
        %v3107 = vpow.pop %v3106
        %v3108 = vadd.f32 %v3107, 1.0
        %v3109 = vrcp.pop %v3108
        %v3110 = vmul.f32 %v3108, %v3109
        %v3111 = vsub.f32 1.0, %v3110
        %v3112 = vmul.f32 %v3109, %v3111
        %v3113 = vadd.f32 %v3109, %v3112
        %vm3114 = vweird.f32 %v3108
        %vm3115 = vweird.f32 %v3109
        %vm3116 = vmor %vm3114, %vm3115
        %v3117 = vsel %vm3116, %v3109, %v3113
        %v3118 = vand.u32 2147483647, %v3108
        %vm3119 = vcmp.eq.f32.partialorder %v3118, 8.507059e+37
        %v3120 = vand.u32 %v3108, 2147483648
        %v3121 = vor.u32 1.1754944e-38, %v3120
        %v3122 = vsel %vm3119, %v3121, %v3117
        %v3123 = vmul.f32 1.0, %v3122
        %v3124 = vmul.f32 %v1078, %v2980
        %v3126 = vrot.slane %v3124, 7
        %v3128 = vadd.f32 %v1043, %v3126
        %v3129 = vxor.u32 %v3128, 2147483648
        %v3130 = vmul.f32 %v3129, 1.442695
        %v3131 = vpow.pop %v3130
        %v3132 = vadd.f32 %v3131, 1.0
        %v3133 = vrcp.pop %v3132
        %v3134 = vmul.f32 %v3132, %v3133
        %v3135 = vsub.f32 1.0, %v3134
        %v3136 = vmul.f32 %v3133, %v3135
        %v3137 = vadd.f32 %v3133, %v3136
        %vm3138 = vweird.f32 %v3132
        %vm3139 = vweird.f32 %v3133
        %vm3140 = vmor %vm3138, %vm3139
        %v3141 = vsel %vm3140, %v3133, %v3137
        %v3142 = vand.u32 2147483647, %v3132
        %vm3143 = vcmp.eq.f32.partialorder %v3142, 8.507059e+37
        %v3144 = vand.u32 %v3132, 2147483648
        %v3145 = vor.u32 1.1754944e-38, %v3144
        %v3146 = vsel %vm3143, %v3145, %v3141
        %v3147 = vmul.f32 1.0, %v3146
        %v3148 = vmul.f32 %v1100, %v2980
        %v3150 = vrot.slane %v3148, 7
        %v3152 = vadd.f32 %v1049, %v3150
        %v3153 = vtanh.pop %v3152
        %v3154 = vmul.f32 %v1104, %v2980
        %v3156 = vrot.slane %v3154, 7
        %v3158 = vadd.f32 %v1055, %v3156
        %v3159 = vxor.u32 %v3158, 2147483648
        %v3160 = vmul.f32 %v3159, 1.442695
        %v3161 = vpow.pop %v3160
        %v3162 = vadd.f32 %v3161, 1.0
        %v3163 = vrcp.pop %v3162
        %v3164 = vmul.f32 %v3162, %v3163
        %v3165 = vsub.f32 1.0, %v3164
        %v3166 = vmul.f32 %v3163, %v3165
        %v3167 = vadd.f32 %v3163, %v3166
        %vm3168 = vweird.f32 %v3162
        %vm3169 = vweird.f32 %v3163
        %vm3170 = vmor %vm3168, %vm3169
        %v3171 = vsel %vm3170, %v3163, %v3167
        %v3172 = vand.u32 2147483647, %v3162
        %vm3173 = vcmp.eq.f32.partialorder %v3172, 8.507059e+37
        %v3174 = vand.u32 %v3162, 2147483648
        %v3175 = vor.u32 1.1754944e-38, %v3174
        %v3176 = vsel %vm3173, %v3175, %v3171
        %v3177 = vmul.f32 1.0, %v3176
        %v3179 = vrot.slane %v2978, 7
        %v3181 = vmul.f32 %v3147, %v3179
        %v3182 = vmul.f32 %v3123, %v3153
        %v3183 = vadd.f32 %v3181, %v3182
        %v3184 = vtanh.pop %v3183
        %v3185 = vmul.f32 %v3177, %v3184
        %v3186 = vmul.f32 %v1131, %v3185
        %v3187 = vadd.f32 %v3186, %v1133
        %v3188 = vmul.f32 %v1135, %v3074
        %v3190 = vrot.slane %v3188, 7
        %v3192 = vadd.f32 %v3187, %v3190
        %v3193 = vxor.u32 %v3192, 2147483648
        %v3194 = vmul.f32 %v3193, 1.442695
        %v3195 = vpow.pop %v3194
        %v3196 = vadd.f32 %v3195, 1.0
        %v3197 = vrcp.pop %v3196
        %v3198 = vmul.f32 %v3196, %v3197
        %v3199 = vsub.f32 1.0, %v3198
        %v3200 = vmul.f32 %v3197, %v3199
        %v3201 = vadd.f32 %v3197, %v3200
        %vm3202 = vweird.f32 %v3196
        %vm3203 = vweird.f32 %v3197
        %vm3204 = vmor %vm3202, %vm3203
        %v3205 = vsel %vm3204, %v3197, %v3201
        %v3206 = vand.u32 2147483647, %v3196
        %vm3207 = vcmp.eq.f32.partialorder %v3206, 8.507059e+37
        %v3208 = vand.u32 %v3196, 2147483648
        %v3209 = vor.u32 1.1754944e-38, %v3208
        %v3210 = vsel %vm3207, %v3209, %v3205
        %v3211 = vmul.f32 1.0, %v3210
        %v3212 = vmul.f32 %v1157, %v3185
        %v3213 = vadd.f32 %v3212, %v1159
        %v3214 = vmul.f32 %v1161, %v3074
        %v3216 = vrot.slane %v3214, 7
        %v3218 = vadd.f32 %v3213, %v3216
        %v3219 = vxor.u32 %v3218, 2147483648
        %v3220 = vmul.f32 %v3219, 1.442695
        %v3221 = vpow.pop %v3220
        %v3222 = vadd.f32 %v3221, 1.0
        %v3223 = vrcp.pop %v3222
        %v3224 = vmul.f32 %v3222, %v3223
        %v3225 = vsub.f32 1.0, %v3224
        %v3226 = vmul.f32 %v3223, %v3225
        %v3227 = vadd.f32 %v3223, %v3226
        %vm3228 = vweird.f32 %v3222
        %vm3229 = vweird.f32 %v3223
        %vm3230 = vmor %vm3228, %vm3229
        %v3231 = vsel %vm3230, %v3223, %v3227
        %v3232 = vand.u32 2147483647, %v3222
        %vm3233 = vcmp.eq.f32.partialorder %v3232, 8.507059e+37
        %v3234 = vand.u32 %v3222, 2147483648
        %v3235 = vor.u32 1.1754944e-38, %v3234
        %v3236 = vsel %vm3233, %v3235, %v3231
        %v3237 = vmul.f32 1.0, %v3236
        %v3238 = vmul.f32 %v1183, %v3185
        %v3239 = vadd.f32 %v3238, %v1185
        %v3240 = vmul.f32 %v1187, %v3074
        %v3242 = vrot.slane %v3240, 7
        %v3244 = vadd.f32 %v3239, %v3242
        %v3245 = vtanh.pop %v3244
        %v3246 = vmul.f32 %v1191, %v3185
        %v3247 = vadd.f32 %v3246, %v1193
        %v3248 = vmul.f32 %v1195, %v3074
        %v3250 = vrot.slane %v3248, 7
        %v3252 = vadd.f32 %v3247, %v3250
        %v3253 = vxor.u32 %v3252, 2147483648
        %v3254 = vmul.f32 %v3253, 1.442695
        %v3255 = vpow.pop %v3254
        %v3256 = vadd.f32 %v3255, 1.0
        %v3257 = vrcp.pop %v3256
        %v3258 = vmul.f32 %v3256, %v3257
        %v3259 = vsub.f32 1.0, %v3258
        %v3260 = vmul.f32 %v3257, %v3259
        %v3261 = vadd.f32 %v3257, %v3260
        %vm3262 = vweird.f32 %v3256
        %vm3263 = vweird.f32 %v3257
        %vm3264 = vmor %vm3262, %vm3263
        %v3265 = vsel %vm3264, %v3257, %v3261
        %v3266 = vand.u32 2147483647, %v3256
        %vm3267 = vcmp.eq.f32.partialorder %v3266, 8.507059e+37
        %v3268 = vand.u32 %v3256, 2147483648
        %v3269 = vor.u32 1.1754944e-38, %v3268
        %v3270 = vsel %vm3267, %v3269, %v3265
        %v3271 = vmul.f32 1.0, %v3270
        %v3273 = vrot.slane %v3072, 7
        %v3275 = vmul.f32 %v3237, %v3273
        %v3276 = vmul.f32 %v3211, %v3245
        %v3277 = vadd.f32 %v3275, %v3276
        %v3278 = vtanh.pop %v3277
        %v3279 = vmul.f32 %v3271, %v3278
        %3280 = vset.pattern.permute.xlu0 10
        %3281 = vperm.xlu0 %3280, %v1222
        %v3282 = vpop.permute.xlu0 %3281
        %3284 = vset.pattern.permute.xlu0 10
        %3285 = vperm.xlu0 %3284, %v1223
        %v3286 = vpop.permute.xlu0 %3285
        %3288 = vset.pattern.permute.xlu0 10
        %3289 = vperm.xlu0 %3288, %v1224
        %v3290 = vpop.permute.xlu0 %3289
        %3292 = vset.pattern.permute.xlu0 10
        %3293 = vperm.xlu0 %3292, %v1225
        %v3294 = vpop.permute.xlu0 %3293
        %v3296 = vperm.slane %v3279, 2
        %v3297 = vmul.f32 %v3282, %v3296
        %v3298 = vmul.f32 %v3286, %v3296
        %v3299 = vmul.f32 %v3290, %v3296
        %v3300 = vmul.f32 %v3294, %v3296
        %v3301 = vadd.f32 %v3096, %v3297
        %v3302 = vadd.f32 %v3097, %v3298
        %v3303 = vadd.f32 %v3098, %v3299
        %v3304 = vadd.f32 %v3099, %v3300
        %v3305 = vmul.f32 %v1056, %v3185
        %v3307 = vrot.slane %v3305, 7
        %v3309 = vadd.f32 %v1037, %v3307
        %v3310 = vxor.u32 %v3309, 2147483648
        %v3311 = vmul.f32 %v3310, 1.442695
        %v3312 = vpow.pop %v3311
        %v3313 = vadd.f32 %v3312, 1.0
        %v3314 = vrcp.pop %v3313
        %v3315 = vmul.f32 %v3313, %v3314
        %v3316 = vsub.f32 1.0, %v3315
        %v3317 = vmul.f32 %v3314, %v3316
        %v3318 = vadd.f32 %v3314, %v3317
        %vm3319 = vweird.f32 %v3313
        %vm3320 = vweird.f32 %v3314
        %vm3321 = vmor %vm3319, %vm3320
        %v3322 = vsel %vm3321, %v3314, %v3318
        %v3323 = vand.u32 2147483647, %v3313
        %vm3324 = vcmp.eq.f32.partialorder %v3323, 8.507059e+37
        %v3325 = vand.u32 %v3313, 2147483648
        %v3326 = vor.u32 1.1754944e-38, %v3325
        %v3327 = vsel %vm3324, %v3326, %v3322
        %v3328 = vmul.f32 1.0, %v3327
        %v3329 = vmul.f32 %v1078, %v3185
        %v3331 = vrot.slane %v3329, 7
        %v3333 = vadd.f32 %v1043, %v3331
        %v3334 = vxor.u32 %v3333, 2147483648
        %v3335 = vmul.f32 %v3334, 1.442695
        %v3336 = vpow.pop %v3335
        %v3337 = vadd.f32 %v3336, 1.0
        %v3338 = vrcp.pop %v3337
        %v3339 = vmul.f32 %v3337, %v3338
        %v3340 = vsub.f32 1.0, %v3339
        %v3341 = vmul.f32 %v3338, %v3340
        %v3342 = vadd.f32 %v3338, %v3341
        %vm3343 = vweird.f32 %v3337
        %vm3344 = vweird.f32 %v3338
        %vm3345 = vmor %vm3343, %vm3344
        %v3346 = vsel %vm3345, %v3338, %v3342
        %v3347 = vand.u32 2147483647, %v3337
        %vm3348 = vcmp.eq.f32.partialorder %v3347, 8.507059e+37
        %v3349 = vand.u32 %v3337, 2147483648
        %v3350 = vor.u32 1.1754944e-38, %v3349
        %v3351 = vsel %vm3348, %v3350, %v3346
        %v3352 = vmul.f32 1.0, %v3351
        %v3353 = vmul.f32 %v1100, %v3185
        %v3355 = vrot.slane %v3353, 7
        %v3357 = vadd.f32 %v1049, %v3355
        %v3358 = vtanh.pop %v3357
        %v3359 = vmul.f32 %v1104, %v3185
        %v3361 = vrot.slane %v3359, 7
        %v3363 = vadd.f32 %v1055, %v3361
        %v3364 = vxor.u32 %v3363, 2147483648
        %v3365 = vmul.f32 %v3364, 1.442695
        %v3366 = vpow.pop %v3365
        %v3367 = vadd.f32 %v3366, 1.0
        %v3368 = vrcp.pop %v3367
        %v3369 = vmul.f32 %v3367, %v3368
        %v3370 = vsub.f32 1.0, %v3369
        %v3371 = vmul.f32 %v3368, %v3370
        %v3372 = vadd.f32 %v3368, %v3371
        %vm3373 = vweird.f32 %v3367
        %vm3374 = vweird.f32 %v3368
        %vm3375 = vmor %vm3373, %vm3374
        %v3376 = vsel %vm3375, %v3368, %v3372
        %v3377 = vand.u32 2147483647, %v3367
        %vm3378 = vcmp.eq.f32.partialorder %v3377, 8.507059e+37
        %v3379 = vand.u32 %v3367, 2147483648
        %v3380 = vor.u32 1.1754944e-38, %v3379
        %v3381 = vsel %vm3378, %v3380, %v3376
        %v3382 = vmul.f32 1.0, %v3381
        %v3384 = vrot.slane %v3183, 7
        %v3386 = vmul.f32 %v3352, %v3384
        %v3387 = vmul.f32 %v3328, %v3358
        %v3388 = vadd.f32 %v3386, %v3387
        %v3389 = vtanh.pop %v3388
        %v3390 = vmul.f32 %v3382, %v3389
        %v3391 = vmul.f32 %v1131, %v3390
        %v3392 = vadd.f32 %v3391, %v1133
        %v3393 = vmul.f32 %v1135, %v3279
        %v3395 = vrot.slane %v3393, 7
        %v3397 = vadd.f32 %v3392, %v3395
        %v3398 = vxor.u32 %v3397, 2147483648
        %v3399 = vmul.f32 %v3398, 1.442695
        %v3400 = vpow.pop %v3399
        %v3401 = vadd.f32 %v3400, 1.0
        %v3402 = vrcp.pop %v3401
        %v3403 = vmul.f32 %v3401, %v3402
        %v3404 = vsub.f32 1.0, %v3403
        %v3405 = vmul.f32 %v3402, %v3404
        %v3406 = vadd.f32 %v3402, %v3405
        %vm3407 = vweird.f32 %v3401
        %vm3408 = vweird.f32 %v3402
        %vm3409 = vmor %vm3407, %vm3408
        %v3410 = vsel %vm3409, %v3402, %v3406
        %v3411 = vand.u32 2147483647, %v3401
        %vm3412 = vcmp.eq.f32.partialorder %v3411, 8.507059e+37
        %v3413 = vand.u32 %v3401, 2147483648
        %v3414 = vor.u32 1.1754944e-38, %v3413
        %v3415 = vsel %vm3412, %v3414, %v3410
        %v3416 = vmul.f32 1.0, %v3415
        %v3417 = vmul.f32 %v1157, %v3390
        %v3418 = vadd.f32 %v3417, %v1159
        %v3419 = vmul.f32 %v1161, %v3279
        %v3421 = vrot.slane %v3419, 7
        %v3423 = vadd.f32 %v3418, %v3421
        %v3424 = vxor.u32 %v3423, 2147483648
        %v3425 = vmul.f32 %v3424, 1.442695
        %v3426 = vpow.pop %v3425
        %v3427 = vadd.f32 %v3426, 1.0
        %v3428 = vrcp.pop %v3427
        %v3429 = vmul.f32 %v3427, %v3428
        %v3430 = vsub.f32 1.0, %v3429
        %v3431 = vmul.f32 %v3428, %v3430
        %v3432 = vadd.f32 %v3428, %v3431
        %vm3433 = vweird.f32 %v3427
        %vm3434 = vweird.f32 %v3428
        %vm3435 = vmor %vm3433, %vm3434
        %v3436 = vsel %vm3435, %v3428, %v3432
        %v3437 = vand.u32 2147483647, %v3427
        %vm3438 = vcmp.eq.f32.partialorder %v3437, 8.507059e+37
        %v3439 = vand.u32 %v3427, 2147483648
        %v3440 = vor.u32 1.1754944e-38, %v3439
        %v3441 = vsel %vm3438, %v3440, %v3436
        %v3442 = vmul.f32 1.0, %v3441
        %v3443 = vmul.f32 %v1183, %v3390
        %v3444 = vadd.f32 %v3443, %v1185
        %v3445 = vmul.f32 %v1187, %v3279
        %v3447 = vrot.slane %v3445, 7
        %v3449 = vadd.f32 %v3444, %v3447
        %v3450 = vtanh.pop %v3449
        %v3451 = vmul.f32 %v1191, %v3390
        %v3452 = vadd.f32 %v3451, %v1193
        %v3453 = vmul.f32 %v1195, %v3279
        %v3455 = vrot.slane %v3453, 7
        %v3457 = vadd.f32 %v3452, %v3455
        %v3458 = vxor.u32 %v3457, 2147483648
        %v3459 = vmul.f32 %v3458, 1.442695
        %v3460 = vpow.pop %v3459
        %v3461 = vadd.f32 %v3460, 1.0
        %v3462 = vrcp.pop %v3461
        %v3463 = vmul.f32 %v3461, %v3462
        %v3464 = vsub.f32 1.0, %v3463
        %v3465 = vmul.f32 %v3462, %v3464
        %v3466 = vadd.f32 %v3462, %v3465
        %vm3467 = vweird.f32 %v3461
        %vm3468 = vweird.f32 %v3462
        %vm3469 = vmor %vm3467, %vm3468
        %v3470 = vsel %vm3469, %v3462, %v3466
        %v3471 = vand.u32 2147483647, %v3461
        %vm3472 = vcmp.eq.f32.partialorder %v3471, 8.507059e+37
        %v3473 = vand.u32 %v3461, 2147483648
        %v3474 = vor.u32 1.1754944e-38, %v3473
        %v3475 = vsel %vm3472, %v3474, %v3470
        %v3476 = vmul.f32 1.0, %v3475
        %v3478 = vrot.slane %v3277, 7
        %v3480 = vmul.f32 %v3442, %v3478
        %v3481 = vmul.f32 %v3416, %v3450
        %v3482 = vadd.f32 %v3480, %v3481
        %v3483 = vtanh.pop %v3482
        %v3484 = vmul.f32 %v3476, %v3483
        %3485 = vset.pattern.permute.xlu0 11
        %3486 = vperm.xlu0 %3485, %v1222
        %v3487 = vpop.permute.xlu0 %3486
        %3489 = vset.pattern.permute.xlu0 11
        %3490 = vperm.xlu0 %3489, %v1223
        %v3491 = vpop.permute.xlu0 %3490
        %3493 = vset.pattern.permute.xlu0 11
        %3494 = vperm.xlu0 %3493, %v1224
        %v3495 = vpop.permute.xlu0 %3494
        %3497 = vset.pattern.permute.xlu0 11
        %3498 = vperm.xlu0 %3497, %v1225
        %v3499 = vpop.permute.xlu0 %3498
        %v3501 = vperm.slane %v3484, 3
        %v3502 = vmul.f32 %v3487, %v3501
        %v3503 = vmul.f32 %v3491, %v3501
        %v3504 = vmul.f32 %v3495, %v3501
        %v3505 = vmul.f32 %v3499, %v3501
        %v3506 = vadd.f32 %v3301, %v3502
        %v3507 = vadd.f32 %v3302, %v3503
        %v3508 = vadd.f32 %v3303, %v3504
        %v3509 = vadd.f32 %v3304, %v3505
        %v3510 = vmul.f32 %v1056, %v3390
        %v3512 = vrot.slane %v3510, 7
        %v3514 = vadd.f32 %v1037, %v3512
        %v3515 = vxor.u32 %v3514, 2147483648
        %v3516 = vmul.f32 %v3515, 1.442695
        %v3517 = vpow.pop %v3516
        %v3518 = vadd.f32 %v3517, 1.0
        %v3519 = vrcp.pop %v3518
        %v3520 = vmul.f32 %v3518, %v3519
        %v3521 = vsub.f32 1.0, %v3520
        %v3522 = vmul.f32 %v3519, %v3521
        %v3523 = vadd.f32 %v3519, %v3522
        %vm3524 = vweird.f32 %v3518
        %vm3525 = vweird.f32 %v3519
        %vm3526 = vmor %vm3524, %vm3525
        %v3527 = vsel %vm3526, %v3519, %v3523
        %v3528 = vand.u32 2147483647, %v3518
        %vm3529 = vcmp.eq.f32.partialorder %v3528, 8.507059e+37
        %v3530 = vand.u32 %v3518, 2147483648
        %v3531 = vor.u32 1.1754944e-38, %v3530
        %v3532 = vsel %vm3529, %v3531, %v3527
        %v3533 = vmul.f32 1.0, %v3532
        %v3534 = vmul.f32 %v1078, %v3390
        %v3536 = vrot.slane %v3534, 7
        %v3538 = vadd.f32 %v1043, %v3536
        %v3539 = vxor.u32 %v3538, 2147483648
        %v3540 = vmul.f32 %v3539, 1.442695
        %v3541 = vpow.pop %v3540
        %v3542 = vadd.f32 %v3541, 1.0
        %v3543 = vrcp.pop %v3542
        %v3544 = vmul.f32 %v3542, %v3543
        %v3545 = vsub.f32 1.0, %v3544
        %v3546 = vmul.f32 %v3543, %v3545
        %v3547 = vadd.f32 %v3543, %v3546
        %vm3548 = vweird.f32 %v3542
        %vm3549 = vweird.f32 %v3543
        %vm3550 = vmor %vm3548, %vm3549
        %v3551 = vsel %vm3550, %v3543, %v3547
        %v3552 = vand.u32 2147483647, %v3542
        %vm3553 = vcmp.eq.f32.partialorder %v3552, 8.507059e+37
        %v3554 = vand.u32 %v3542, 2147483648
        %v3555 = vor.u32 1.1754944e-38, %v3554
        %v3556 = vsel %vm3553, %v3555, %v3551
        %v3557 = vmul.f32 1.0, %v3556
        %v3558 = vmul.f32 %v1100, %v3390
        %v3560 = vrot.slane %v3558, 7
        %v3562 = vadd.f32 %v1049, %v3560
        %v3563 = vtanh.pop %v3562
        %v3564 = vmul.f32 %v1104, %v3390
        %v3566 = vrot.slane %v3564, 7
        %v3568 = vadd.f32 %v1055, %v3566
        %v3569 = vxor.u32 %v3568, 2147483648
        %v3570 = vmul.f32 %v3569, 1.442695
        %v3571 = vpow.pop %v3570
        %v3572 = vadd.f32 %v3571, 1.0
        %v3573 = vrcp.pop %v3572
        %v3574 = vmul.f32 %v3572, %v3573
        %v3575 = vsub.f32 1.0, %v3574
        %v3576 = vmul.f32 %v3573, %v3575
        %v3577 = vadd.f32 %v3573, %v3576
        %vm3578 = vweird.f32 %v3572
        %vm3579 = vweird.f32 %v3573
        %vm3580 = vmor %vm3578, %vm3579
        %v3581 = vsel %vm3580, %v3573, %v3577
        %v3582 = vand.u32 2147483647, %v3572
        %vm3583 = vcmp.eq.f32.partialorder %v3582, 8.507059e+37
        %v3584 = vand.u32 %v3572, 2147483648
        %v3585 = vor.u32 1.1754944e-38, %v3584
        %v3586 = vsel %vm3583, %v3585, %v3581
        %v3587 = vmul.f32 1.0, %v3586
        %v3589 = vrot.slane %v3388, 7
        %v3591 = vmul.f32 %v3557, %v3589
        %v3592 = vmul.f32 %v3533, %v3563
        %v3593 = vadd.f32 %v3591, %v3592
        %v3594 = vtanh.pop %v3593
        %v3595 = vmul.f32 %v3587, %v3594
        %v3596 = vmul.f32 %v1131, %v3595
        %v3597 = vadd.f32 %v3596, %v1133
        %v3598 = vmul.f32 %v1135, %v3484
        %v3600 = vrot.slane %v3598, 7
        %v3602 = vadd.f32 %v3597, %v3600
        %v3603 = vxor.u32 %v3602, 2147483648
        %v3604 = vmul.f32 %v3603, 1.442695
        %v3605 = vpow.pop %v3604
        %v3606 = vadd.f32 %v3605, 1.0
        %v3607 = vrcp.pop %v3606
        %v3608 = vmul.f32 %v3606, %v3607
        %v3609 = vsub.f32 1.0, %v3608
        %v3610 = vmul.f32 %v3607, %v3609
        %v3611 = vadd.f32 %v3607, %v3610
        %vm3612 = vweird.f32 %v3606
        %vm3613 = vweird.f32 %v3607
        %vm3614 = vmor %vm3612, %vm3613
        %v3615 = vsel %vm3614, %v3607, %v3611
        %v3616 = vand.u32 2147483647, %v3606
        %vm3617 = vcmp.eq.f32.partialorder %v3616, 8.507059e+37
        %v3618 = vand.u32 %v3606, 2147483648
        %v3619 = vor.u32 1.1754944e-38, %v3618
        %v3620 = vsel %vm3617, %v3619, %v3615
        %v3621 = vmul.f32 1.0, %v3620
        %v3622 = vmul.f32 %v1157, %v3595
        %v3623 = vadd.f32 %v3622, %v1159
        %v3624 = vmul.f32 %v1161, %v3484
        %v3626 = vrot.slane %v3624, 7
        %v3628 = vadd.f32 %v3623, %v3626
        %v3629 = vxor.u32 %v3628, 2147483648
        %v3630 = vmul.f32 %v3629, 1.442695
        %v3631 = vpow.pop %v3630
        %v3632 = vadd.f32 %v3631, 1.0
        %v3633 = vrcp.pop %v3632
        %v3634 = vmul.f32 %v3632, %v3633
        %v3635 = vsub.f32 1.0, %v3634
        %v3636 = vmul.f32 %v3633, %v3635
        %v3637 = vadd.f32 %v3633, %v3636
        %vm3638 = vweird.f32 %v3632
        %vm3639 = vweird.f32 %v3633
        %vm3640 = vmor %vm3638, %vm3639
        %v3641 = vsel %vm3640, %v3633, %v3637
        %v3642 = vand.u32 2147483647, %v3632
        %vm3643 = vcmp.eq.f32.partialorder %v3642, 8.507059e+37
        %v3644 = vand.u32 %v3632, 2147483648
        %v3645 = vor.u32 1.1754944e-38, %v3644
        %v3646 = vsel %vm3643, %v3645, %v3641
        %v3647 = vmul.f32 1.0, %v3646
        %v3648 = vmul.f32 %v1183, %v3595
        %v3649 = vadd.f32 %v3648, %v1185
        %v3650 = vmul.f32 %v1187, %v3484
        %v3652 = vrot.slane %v3650, 7
        %v3654 = vadd.f32 %v3649, %v3652
        %v3655 = vtanh.pop %v3654
        %v3656 = vmul.f32 %v1191, %v3595
        %v3657 = vadd.f32 %v3656, %v1193
        %v3658 = vmul.f32 %v1195, %v3484
        %v3660 = vrot.slane %v3658, 7
        %v3662 = vadd.f32 %v3657, %v3660
        %v3663 = vxor.u32 %v3662, 2147483648
        %v3664 = vmul.f32 %v3663, 1.442695
        %v3665 = vpow.pop %v3664
        %v3666 = vadd.f32 %v3665, 1.0
        %v3667 = vrcp.pop %v3666
        %v3668 = vmul.f32 %v3666, %v3667
        %v3669 = vsub.f32 1.0, %v3668
        %v3670 = vmul.f32 %v3667, %v3669
        %v3671 = vadd.f32 %v3667, %v3670
        %vm3672 = vweird.f32 %v3666
        %vm3673 = vweird.f32 %v3667
        %vm3674 = vmor %vm3672, %vm3673
        %v3675 = vsel %vm3674, %v3667, %v3671
        %v3676 = vand.u32 2147483647, %v3666
        %vm3677 = vcmp.eq.f32.partialorder %v3676, 8.507059e+37
        %v3678 = vand.u32 %v3666, 2147483648
        %v3679 = vor.u32 1.1754944e-38, %v3678
        %v3680 = vsel %vm3677, %v3679, %v3675
        %v3681 = vmul.f32 1.0, %v3680
        %v3683 = vrot.slane %v3482, 7
        %v3685 = vmul.f32 %v3647, %v3683
        %v3686 = vmul.f32 %v3621, %v3655
        %v3687 = vadd.f32 %v3685, %v3686
        %v3688 = vtanh.pop %v3687
        %v3689 = vmul.f32 %v3681, %v3688
        %3690 = vset.pattern.permute.xlu0 12
        %3691 = vperm.xlu0 %3690, %v1222
        %v3692 = vpop.permute.xlu0 %3691
        %3694 = vset.pattern.permute.xlu0 12
        %3695 = vperm.xlu0 %3694, %v1223
        %v3696 = vpop.permute.xlu0 %3695
        %3698 = vset.pattern.permute.xlu0 12
        %3699 = vperm.xlu0 %3698, %v1224
        %v3700 = vpop.permute.xlu0 %3699
        %3702 = vset.pattern.permute.xlu0 12
        %3703 = vperm.xlu0 %3702, %v1225
        %v3704 = vpop.permute.xlu0 %3703
        %v3706 = vperm.slane %v3689, 4
        %v3707 = vmul.f32 %v3692, %v3706
        %v3708 = vmul.f32 %v3696, %v3706
        %v3709 = vmul.f32 %v3700, %v3706
        %v3710 = vmul.f32 %v3704, %v3706
        %v3711 = vadd.f32 %v3506, %v3707
        %v3712 = vadd.f32 %v3507, %v3708
        %v3713 = vadd.f32 %v3508, %v3709
        %v3714 = vadd.f32 %v3509, %v3710
        %v3715 = vmul.f32 %v1056, %v3595
        %v3717 = vrot.slane %v3715, 7
        %v3719 = vadd.f32 %v1037, %v3717
        %v3720 = vxor.u32 %v3719, 2147483648
        %v3721 = vmul.f32 %v3720, 1.442695
        %v3722 = vpow.pop %v3721
        %v3723 = vadd.f32 %v3722, 1.0
        %v3724 = vrcp.pop %v3723
        %v3725 = vmul.f32 %v3723, %v3724
        %v3726 = vsub.f32 1.0, %v3725
        %v3727 = vmul.f32 %v3724, %v3726
        %v3728 = vadd.f32 %v3724, %v3727
        %vm3729 = vweird.f32 %v3723
        %vm3730 = vweird.f32 %v3724
        %vm3731 = vmor %vm3729, %vm3730
        %v3732 = vsel %vm3731, %v3724, %v3728
        %v3733 = vand.u32 2147483647, %v3723
        %vm3734 = vcmp.eq.f32.partialorder %v3733, 8.507059e+37
        %v3735 = vand.u32 %v3723, 2147483648
        %v3736 = vor.u32 1.1754944e-38, %v3735
        %v3737 = vsel %vm3734, %v3736, %v3732
        %v3738 = vmul.f32 1.0, %v3737
        %v3739 = vmul.f32 %v1078, %v3595
        %v3741 = vrot.slane %v3739, 7
        %v3743 = vadd.f32 %v1043, %v3741
        %v3744 = vxor.u32 %v3743, 2147483648
        %v3745 = vmul.f32 %v3744, 1.442695
        %v3746 = vpow.pop %v3745
        %v3747 = vadd.f32 %v3746, 1.0
        %v3748 = vrcp.pop %v3747
        %v3749 = vmul.f32 %v3747, %v3748
        %v3750 = vsub.f32 1.0, %v3749
        %v3751 = vmul.f32 %v3748, %v3750
        %v3752 = vadd.f32 %v3748, %v3751
        %vm3753 = vweird.f32 %v3747
        %vm3754 = vweird.f32 %v3748
        %vm3755 = vmor %vm3753, %vm3754
        %v3756 = vsel %vm3755, %v3748, %v3752
        %v3757 = vand.u32 2147483647, %v3747
        %vm3758 = vcmp.eq.f32.partialorder %v3757, 8.507059e+37
        %v3759 = vand.u32 %v3747, 2147483648
        %v3760 = vor.u32 1.1754944e-38, %v3759
        %v3761 = vsel %vm3758, %v3760, %v3756
        %v3762 = vmul.f32 1.0, %v3761
        %v3763 = vmul.f32 %v1100, %v3595
        %v3765 = vrot.slane %v3763, 7
        %v3767 = vadd.f32 %v1049, %v3765
        %v3768 = vtanh.pop %v3767
        %v3769 = vmul.f32 %v1104, %v3595
        %v3771 = vrot.slane %v3769, 7
        %v3773 = vadd.f32 %v1055, %v3771
        %v3774 = vxor.u32 %v3773, 2147483648
        %v3775 = vmul.f32 %v3774, 1.442695
        %v3776 = vpow.pop %v3775
        %v3777 = vadd.f32 %v3776, 1.0
        %v3778 = vrcp.pop %v3777
        %v3779 = vmul.f32 %v3777, %v3778
        %v3780 = vsub.f32 1.0, %v3779
        %v3781 = vmul.f32 %v3778, %v3780
        %v3782 = vadd.f32 %v3778, %v3781
        %vm3783 = vweird.f32 %v3777
        %vm3784 = vweird.f32 %v3778
        %vm3785 = vmor %vm3783, %vm3784
        %v3786 = vsel %vm3785, %v3778, %v3782
        %v3787 = vand.u32 2147483647, %v3777
        %vm3788 = vcmp.eq.f32.partialorder %v3787, 8.507059e+37
        %v3789 = vand.u32 %v3777, 2147483648
        %v3790 = vor.u32 1.1754944e-38, %v3789
        %v3791 = vsel %vm3788, %v3790, %v3786
        %v3792 = vmul.f32 1.0, %v3791
        %v3794 = vrot.slane %v3593, 7
        %v3796 = vmul.f32 %v3762, %v3794
        %v3797 = vmul.f32 %v3738, %v3768
        %v3798 = vadd.f32 %v3796, %v3797
        %v3799 = vtanh.pop %v3798
        %v3800 = vmul.f32 %v3792, %v3799
        %v3801 = vmul.f32 %v1131, %v3800
        %v3802 = vadd.f32 %v3801, %v1133
        %v3803 = vmul.f32 %v1135, %v3689
        %v3805 = vrot.slane %v3803, 7
        %v3807 = vadd.f32 %v3802, %v3805
        %v3808 = vxor.u32 %v3807, 2147483648
        %v3809 = vmul.f32 %v3808, 1.442695
        %v3810 = vpow.pop %v3809
        %v3811 = vadd.f32 %v3810, 1.0
        %v3812 = vrcp.pop %v3811
        %v3813 = vmul.f32 %v3811, %v3812
        %v3814 = vsub.f32 1.0, %v3813
        %v3815 = vmul.f32 %v3812, %v3814
        %v3816 = vadd.f32 %v3812, %v3815
        %vm3817 = vweird.f32 %v3811
        %vm3818 = vweird.f32 %v3812
        %vm3819 = vmor %vm3817, %vm3818
        %v3820 = vsel %vm3819, %v3812, %v3816
        %v3821 = vand.u32 2147483647, %v3811
        %vm3822 = vcmp.eq.f32.partialorder %v3821, 8.507059e+37
        %v3823 = vand.u32 %v3811, 2147483648
        %v3824 = vor.u32 1.1754944e-38, %v3823
        %v3825 = vsel %vm3822, %v3824, %v3820
        %v3826 = vmul.f32 1.0, %v3825
        %v3827 = vmul.f32 %v1157, %v3800
        %v3828 = vadd.f32 %v3827, %v1159
        %v3829 = vmul.f32 %v1161, %v3689
        %v3831 = vrot.slane %v3829, 7
        %v3833 = vadd.f32 %v3828, %v3831
        %v3834 = vxor.u32 %v3833, 2147483648
        %v3835 = vmul.f32 %v3834, 1.442695
        %v3836 = vpow.pop %v3835
        %v3837 = vadd.f32 %v3836, 1.0
        %v3838 = vrcp.pop %v3837
        %v3839 = vmul.f32 %v3837, %v3838
        %v3840 = vsub.f32 1.0, %v3839
        %v3841 = vmul.f32 %v3838, %v3840
        %v3842 = vadd.f32 %v3838, %v3841
        %vm3843 = vweird.f32 %v3837
        %vm3844 = vweird.f32 %v3838
        %vm3845 = vmor %vm3843, %vm3844
        %v3846 = vsel %vm3845, %v3838, %v3842
        %v3847 = vand.u32 2147483647, %v3837
        %vm3848 = vcmp.eq.f32.partialorder %v3847, 8.507059e+37
        %v3849 = vand.u32 %v3837, 2147483648
        %v3850 = vor.u32 1.1754944e-38, %v3849
        %v3851 = vsel %vm3848, %v3850, %v3846
        %v3852 = vmul.f32 1.0, %v3851
        %v3853 = vmul.f32 %v1183, %v3800
        %v3854 = vadd.f32 %v3853, %v1185
        %v3855 = vmul.f32 %v1187, %v3689
        %v3857 = vrot.slane %v3855, 7
        %v3859 = vadd.f32 %v3854, %v3857
        %v3860 = vtanh.pop %v3859
        %v3861 = vmul.f32 %v1191, %v3800
        %v3862 = vadd.f32 %v3861, %v1193
        %v3863 = vmul.f32 %v1195, %v3689
        %v3865 = vrot.slane %v3863, 7
        %v3867 = vadd.f32 %v3862, %v3865
        %v3868 = vxor.u32 %v3867, 2147483648
        %v3869 = vmul.f32 %v3868, 1.442695
        %v3870 = vpow.pop %v3869
        %v3871 = vadd.f32 %v3870, 1.0
        %v3872 = vrcp.pop %v3871
        %v3873 = vmul.f32 %v3871, %v3872
        %v3874 = vsub.f32 1.0, %v3873
        %v3875 = vmul.f32 %v3872, %v3874
        %v3876 = vadd.f32 %v3872, %v3875
        %vm3877 = vweird.f32 %v3871
        %vm3878 = vweird.f32 %v3872
        %vm3879 = vmor %vm3877, %vm3878
        %v3880 = vsel %vm3879, %v3872, %v3876
        %v3881 = vand.u32 2147483647, %v3871
        %vm3882 = vcmp.eq.f32.partialorder %v3881, 8.507059e+37
        %v3883 = vand.u32 %v3871, 2147483648
        %v3884 = vor.u32 1.1754944e-38, %v3883
        %v3885 = vsel %vm3882, %v3884, %v3880
        %v3886 = vmul.f32 1.0, %v3885
        %v3888 = vrot.slane %v3687, 7
        %v3890 = vmul.f32 %v3852, %v3888
        %v3891 = vmul.f32 %v3826, %v3860
        %v3892 = vadd.f32 %v3890, %v3891
        %v3893 = vtanh.pop %v3892
        %v3894 = vmul.f32 %v3886, %v3893
        %3895 = vset.pattern.permute.xlu0 13
        %3896 = vperm.xlu0 %3895, %v1222
        %v3897 = vpop.permute.xlu0 %3896
        %3899 = vset.pattern.permute.xlu0 13
        %3900 = vperm.xlu0 %3899, %v1223
        %v3901 = vpop.permute.xlu0 %3900
        %3903 = vset.pattern.permute.xlu0 13
        %3904 = vperm.xlu0 %3903, %v1224
        %v3905 = vpop.permute.xlu0 %3904
        %3907 = vset.pattern.permute.xlu0 13
        %3908 = vperm.xlu0 %3907, %v1225
        %v3909 = vpop.permute.xlu0 %3908
        %v3911 = vperm.slane %v3894, 5
        %v3912 = vmul.f32 %v3897, %v3911
        %v3913 = vmul.f32 %v3901, %v3911
        %v3914 = vmul.f32 %v3905, %v3911
        %v3915 = vmul.f32 %v3909, %v3911
        %v3916 = vadd.f32 %v3711, %v3912
        %v3917 = vadd.f32 %v3712, %v3913
        %v3918 = vadd.f32 %v3713, %v3914
        %v3919 = vadd.f32 %v3714, %v3915
        %v3920 = vmul.f32 %v1056, %v3800
        %v3922 = vrot.slane %v3920, 7
        %v3924 = vadd.f32 %v1037, %v3922
        %v3925 = vxor.u32 %v3924, 2147483648
        %v3926 = vmul.f32 %v3925, 1.442695
        %v3927 = vpow.pop %v3926
        %v3928 = vadd.f32 %v3927, 1.0
        %v3929 = vrcp.pop %v3928
        %v3930 = vmul.f32 %v3928, %v3929
        %v3931 = vsub.f32 1.0, %v3930
        %v3932 = vmul.f32 %v3929, %v3931
        %v3933 = vadd.f32 %v3929, %v3932
        %vm3934 = vweird.f32 %v3928
        %vm3935 = vweird.f32 %v3929
        %vm3936 = vmor %vm3934, %vm3935
        %v3937 = vsel %vm3936, %v3929, %v3933
        %v3938 = vand.u32 2147483647, %v3928
        %vm3939 = vcmp.eq.f32.partialorder %v3938, 8.507059e+37
        %v3940 = vand.u32 %v3928, 2147483648
        %v3941 = vor.u32 1.1754944e-38, %v3940
        %v3942 = vsel %vm3939, %v3941, %v3937
        %v3943 = vmul.f32 1.0, %v3942
        %v3944 = vmul.f32 %v1078, %v3800
        %v3946 = vrot.slane %v3944, 7
        %v3948 = vadd.f32 %v1043, %v3946
        %v3949 = vxor.u32 %v3948, 2147483648
        %v3950 = vmul.f32 %v3949, 1.442695
        %v3951 = vpow.pop %v3950
        %v3952 = vadd.f32 %v3951, 1.0
        %v3953 = vrcp.pop %v3952
        %v3954 = vmul.f32 %v3952, %v3953
        %v3955 = vsub.f32 1.0, %v3954
        %v3956 = vmul.f32 %v3953, %v3955
        %v3957 = vadd.f32 %v3953, %v3956
        %vm3958 = vweird.f32 %v3952
        %vm3959 = vweird.f32 %v3953
        %vm3960 = vmor %vm3958, %vm3959
        %v3961 = vsel %vm3960, %v3953, %v3957
        %v3962 = vand.u32 2147483647, %v3952
        %vm3963 = vcmp.eq.f32.partialorder %v3962, 8.507059e+37
        %v3964 = vand.u32 %v3952, 2147483648
        %v3965 = vor.u32 1.1754944e-38, %v3964
        %v3966 = vsel %vm3963, %v3965, %v3961
        %v3967 = vmul.f32 1.0, %v3966
        %v3968 = vmul.f32 %v1100, %v3800
        %v3970 = vrot.slane %v3968, 7
        %v3972 = vadd.f32 %v1049, %v3970
        %v3973 = vtanh.pop %v3972
        %v3974 = vmul.f32 %v1104, %v3800
        %v3976 = vrot.slane %v3974, 7
        %v3978 = vadd.f32 %v1055, %v3976
        %v3979 = vxor.u32 %v3978, 2147483648
        %v3980 = vmul.f32 %v3979, 1.442695
        %v3981 = vpow.pop %v3980
        %v3982 = vadd.f32 %v3981, 1.0
        %v3983 = vrcp.pop %v3982
        %v3984 = vmul.f32 %v3982, %v3983
        %v3985 = vsub.f32 1.0, %v3984
        %v3986 = vmul.f32 %v3983, %v3985
        %v3987 = vadd.f32 %v3983, %v3986
        %vm3988 = vweird.f32 %v3982
        %vm3989 = vweird.f32 %v3983
        %vm3990 = vmor %vm3988, %vm3989
        %v3991 = vsel %vm3990, %v3983, %v3987
        %v3992 = vand.u32 2147483647, %v3982
        %vm3993 = vcmp.eq.f32.partialorder %v3992, 8.507059e+37
        %v3994 = vand.u32 %v3982, 2147483648
        %v3995 = vor.u32 1.1754944e-38, %v3994
        %v3996 = vsel %vm3993, %v3995, %v3991
        %v3997 = vmul.f32 1.0, %v3996
        %v3999 = vrot.slane %v3798, 7
        %v4001 = vmul.f32 %v3967, %v3999
        %v4002 = vmul.f32 %v3943, %v3973
        %v4003 = vadd.f32 %v4001, %v4002
        %v4004 = vtanh.pop %v4003
        %v4005 = vmul.f32 %v3997, %v4004
        %v4006 = vmul.f32 %v1131, %v4005
        %v4007 = vadd.f32 %v4006, %v1133
        %v4008 = vmul.f32 %v1135, %v3894
        %v4010 = vrot.slane %v4008, 7
        %v4012 = vadd.f32 %v4007, %v4010
        %v4013 = vxor.u32 %v4012, 2147483648
        %v4014 = vmul.f32 %v4013, 1.442695
        %v4015 = vpow.pop %v4014
        %v4016 = vadd.f32 %v4015, 1.0
        %v4017 = vrcp.pop %v4016
        %v4018 = vmul.f32 %v4016, %v4017
        %v4019 = vsub.f32 1.0, %v4018
        %v4020 = vmul.f32 %v4017, %v4019
        %v4021 = vadd.f32 %v4017, %v4020
        %vm4022 = vweird.f32 %v4016
        %vm4023 = vweird.f32 %v4017
        %vm4024 = vmor %vm4022, %vm4023
        %v4025 = vsel %vm4024, %v4017, %v4021
        %v4026 = vand.u32 2147483647, %v4016
        %vm4027 = vcmp.eq.f32.partialorder %v4026, 8.507059e+37
        %v4028 = vand.u32 %v4016, 2147483648
        %v4029 = vor.u32 1.1754944e-38, %v4028
        %v4030 = vsel %vm4027, %v4029, %v4025
        %v4031 = vmul.f32 1.0, %v4030
        %v4032 = vmul.f32 %v1157, %v4005
        %v4033 = vadd.f32 %v4032, %v1159
        %v4034 = vmul.f32 %v1161, %v3894
        %v4036 = vrot.slane %v4034, 7
        %v4038 = vadd.f32 %v4033, %v4036
        %v4039 = vxor.u32 %v4038, 2147483648
        %v4040 = vmul.f32 %v4039, 1.442695
        %v4041 = vpow.pop %v4040
        %v4042 = vadd.f32 %v4041, 1.0
        %v4043 = vrcp.pop %v4042
        %v4044 = vmul.f32 %v4042, %v4043
        %v4045 = vsub.f32 1.0, %v4044
        %v4046 = vmul.f32 %v4043, %v4045
        %v4047 = vadd.f32 %v4043, %v4046
        %vm4048 = vweird.f32 %v4042
        %vm4049 = vweird.f32 %v4043
        %vm4050 = vmor %vm4048, %vm4049
        %v4051 = vsel %vm4050, %v4043, %v4047
        %v4052 = vand.u32 2147483647, %v4042
        %vm4053 = vcmp.eq.f32.partialorder %v4052, 8.507059e+37
        %v4054 = vand.u32 %v4042, 2147483648
        %v4055 = vor.u32 1.1754944e-38, %v4054
        %v4056 = vsel %vm4053, %v4055, %v4051
        %v4057 = vmul.f32 1.0, %v4056
        %v4058 = vmul.f32 %v1183, %v4005
        %v4059 = vadd.f32 %v4058, %v1185
        %v4060 = vmul.f32 %v1187, %v3894
        %v4062 = vrot.slane %v4060, 7
        %v4064 = vadd.f32 %v4059, %v4062
        %v4065 = vtanh.pop %v4064
        %v4066 = vmul.f32 %v1191, %v4005
        %v4067 = vadd.f32 %v4066, %v1193
        %v4068 = vmul.f32 %v1195, %v3894
        %v4070 = vrot.slane %v4068, 7
        %v4072 = vadd.f32 %v4067, %v4070
        %v4073 = vxor.u32 %v4072, 2147483648
        %v4074 = vmul.f32 %v4073, 1.442695
        %v4075 = vpow.pop %v4074
        %v4076 = vadd.f32 %v4075, 1.0
        %v4077 = vrcp.pop %v4076
        %v4078 = vmul.f32 %v4076, %v4077
        %v4079 = vsub.f32 1.0, %v4078
        %v4080 = vmul.f32 %v4077, %v4079
        %v4081 = vadd.f32 %v4077, %v4080
        %vm4082 = vweird.f32 %v4076
        %vm4083 = vweird.f32 %v4077
        %vm4084 = vmor %vm4082, %vm4083
        %v4085 = vsel %vm4084, %v4077, %v4081
        %v4086 = vand.u32 2147483647, %v4076
        %vm4087 = vcmp.eq.f32.partialorder %v4086, 8.507059e+37
        %v4088 = vand.u32 %v4076, 2147483648
        %v4089 = vor.u32 1.1754944e-38, %v4088
        %v4090 = vsel %vm4087, %v4089, %v4085
        %v4091 = vmul.f32 1.0, %v4090
        %v4093 = vrot.slane %v3892, 7
        %v4095 = vmul.f32 %v4057, %v4093
        %v4096 = vmul.f32 %v4031, %v4065
        %v4097 = vadd.f32 %v4095, %v4096
        %v4098 = vtanh.pop %v4097
        %v4099 = vmul.f32 %v4091, %v4098
        %4100 = vset.pattern.permute.xlu0 14
        %4101 = vperm.xlu0 %4100, %v1222
        %v4102 = vpop.permute.xlu0 %4101
        %4104 = vset.pattern.permute.xlu0 14
        %4105 = vperm.xlu0 %4104, %v1223
        %v4106 = vpop.permute.xlu0 %4105
        %4108 = vset.pattern.permute.xlu0 14
        %4109 = vperm.xlu0 %4108, %v1224
        %v4110 = vpop.permute.xlu0 %4109
        %4112 = vset.pattern.permute.xlu0 14
        %4113 = vperm.xlu0 %4112, %v1225
        %v4114 = vpop.permute.xlu0 %4113
        %v4116 = vperm.slane %v4099, 6
        %v4117 = vmul.f32 %v4102, %v4116
        %v4118 = vmul.f32 %v4106, %v4116
        %v4119 = vmul.f32 %v4110, %v4116
        %v4120 = vmul.f32 %v4114, %v4116
        %v4121 = vadd.f32 %v3916, %v4117
        %v4122 = vadd.f32 %v3917, %v4118
        %v4123 = vadd.f32 %v3918, %v4119
        %v4124 = vadd.f32 %v3919, %v4120
        %v4125 = vmul.f32 %v1056, %v4005
        %v4127 = vrot.slane %v4125, 7
        %v4129 = vadd.f32 %v1037, %v4127
        %v4130 = vxor.u32 %v4129, 2147483648
        %v4131 = vmul.f32 %v4130, 1.442695
        %v4132 = vpow.pop %v4131
        %v4133 = vadd.f32 %v4132, 1.0
        %v4134 = vrcp.pop %v4133
        %v4135 = vmul.f32 %v4133, %v4134
        %v4136 = vsub.f32 1.0, %v4135
        %v4137 = vmul.f32 %v4134, %v4136
        %v4138 = vadd.f32 %v4134, %v4137
        %vm4139 = vweird.f32 %v4133
        %vm4140 = vweird.f32 %v4134
        %vm4141 = vmor %vm4139, %vm4140
        %v4142 = vsel %vm4141, %v4134, %v4138
        %v4143 = vand.u32 2147483647, %v4133
        %vm4144 = vcmp.eq.f32.partialorder %v4143, 8.507059e+37
        %v4145 = vand.u32 %v4133, 2147483648
        %v4146 = vor.u32 1.1754944e-38, %v4145
        %v4147 = vsel %vm4144, %v4146, %v4142
        %v4148 = vmul.f32 1.0, %v4147
        %v4149 = vmul.f32 %v1078, %v4005
        %v4151 = vrot.slane %v4149, 7
        %v4153 = vadd.f32 %v1043, %v4151
        %v4154 = vxor.u32 %v4153, 2147483648
        %v4155 = vmul.f32 %v4154, 1.442695
        %v4156 = vpow.pop %v4155
        %v4157 = vadd.f32 %v4156, 1.0
        %v4158 = vrcp.pop %v4157
        %v4159 = vmul.f32 %v4157, %v4158
        %v4160 = vsub.f32 1.0, %v4159
        %v4161 = vmul.f32 %v4158, %v4160
        %v4162 = vadd.f32 %v4158, %v4161
        %vm4163 = vweird.f32 %v4157
        %vm4164 = vweird.f32 %v4158
        %vm4165 = vmor %vm4163, %vm4164
        %v4166 = vsel %vm4165, %v4158, %v4162
        %v4167 = vand.u32 2147483647, %v4157
        %vm4168 = vcmp.eq.f32.partialorder %v4167, 8.507059e+37
        %v4169 = vand.u32 %v4157, 2147483648
        %v4170 = vor.u32 1.1754944e-38, %v4169
        %v4171 = vsel %vm4168, %v4170, %v4166
        %v4172 = vmul.f32 1.0, %v4171
        %v4173 = vmul.f32 %v1100, %v4005
        %v4175 = vrot.slane %v4173, 7
        %v4177 = vadd.f32 %v1049, %v4175
        %v4178 = vtanh.pop %v4177
        %v4179 = vmul.f32 %v1104, %v4005
        %v4181 = vrot.slane %v4179, 7
        %v4183 = vadd.f32 %v1055, %v4181
        %v4184 = vxor.u32 %v4183, 2147483648
        %v4185 = vmul.f32 %v4184, 1.442695
        %v4186 = vpow.pop %v4185
        %v4187 = vadd.f32 %v4186, 1.0
        %v4188 = vrcp.pop %v4187
        %v4189 = vmul.f32 %v4187, %v4188
        %v4190 = vsub.f32 1.0, %v4189
        %v4191 = vmul.f32 %v4188, %v4190
        %v4192 = vadd.f32 %v4188, %v4191
        %vm4193 = vweird.f32 %v4187
        %vm4194 = vweird.f32 %v4188
        %vm4195 = vmor %vm4193, %vm4194
        %v4196 = vsel %vm4195, %v4188, %v4192
        %v4197 = vand.u32 2147483647, %v4187
        %vm4198 = vcmp.eq.f32.partialorder %v4197, 8.507059e+37
        %v4199 = vand.u32 %v4187, 2147483648
        %v4200 = vor.u32 1.1754944e-38, %v4199
        %v4201 = vsel %vm4198, %v4200, %v4196
        %v4202 = vmul.f32 1.0, %v4201
        %v4204 = vrot.slane %v4003, 7
        %v4206 = vmul.f32 %v4172, %v4204
        %v4207 = vmul.f32 %v4148, %v4178
        %v4208 = vadd.f32 %v4206, %v4207
        %v4209 = vtanh.pop %v4208
        %v4210 = vmul.f32 %v4202, %v4209
        %v4211 = vmul.f32 %v1131, %v4210
        %v4212 = vadd.f32 %v4211, %v1133
        %v4213 = vmul.f32 %v1135, %v4099
        %v4215 = vrot.slane %v4213, 7
        %v4217 = vadd.f32 %v4212, %v4215
        %v4218 = vxor.u32 %v4217, 2147483648
        %v4219 = vmul.f32 %v4218, 1.442695
        %v4220 = vpow.pop %v4219
        %v4221 = vadd.f32 %v4220, 1.0
        %v4222 = vrcp.pop %v4221
        %v4223 = vmul.f32 %v4221, %v4222
        %v4224 = vsub.f32 1.0, %v4223
        %v4225 = vmul.f32 %v4222, %v4224
        %v4226 = vadd.f32 %v4222, %v4225
        %vm4227 = vweird.f32 %v4221
        %vm4228 = vweird.f32 %v4222
        %vm4229 = vmor %vm4227, %vm4228
        %v4230 = vsel %vm4229, %v4222, %v4226
        %v4231 = vand.u32 2147483647, %v4221
        %vm4232 = vcmp.eq.f32.partialorder %v4231, 8.507059e+37
        %v4233 = vand.u32 %v4221, 2147483648
        %v4234 = vor.u32 1.1754944e-38, %v4233
        %v4235 = vsel %vm4232, %v4234, %v4230
        %v4236 = vmul.f32 1.0, %v4235
        %v4237 = vmul.f32 %v1157, %v4210
        %v4238 = vadd.f32 %v4237, %v1159
        %v4239 = vmul.f32 %v1161, %v4099
        %v4241 = vrot.slane %v4239, 7
        %v4243 = vadd.f32 %v4238, %v4241
        %v4244 = vxor.u32 %v4243, 2147483648
        %v4245 = vmul.f32 %v4244, 1.442695
        %v4246 = vpow.pop %v4245
        %v4247 = vadd.f32 %v4246, 1.0
        %v4248 = vrcp.pop %v4247
        %v4249 = vmul.f32 %v4247, %v4248
        %v4250 = vsub.f32 1.0, %v4249
        %v4251 = vmul.f32 %v4248, %v4250
        %v4252 = vadd.f32 %v4248, %v4251
        %vm4253 = vweird.f32 %v4247
        %vm4254 = vweird.f32 %v4248
        %vm4255 = vmor %vm4253, %vm4254
        %v4256 = vsel %vm4255, %v4248, %v4252
        %v4257 = vand.u32 2147483647, %v4247
        %vm4258 = vcmp.eq.f32.partialorder %v4257, 8.507059e+37
        %v4259 = vand.u32 %v4247, 2147483648
        %v4260 = vor.u32 1.1754944e-38, %v4259
        %v4261 = vsel %vm4258, %v4260, %v4256
        %v4262 = vmul.f32 1.0, %v4261
        %v4263 = vmul.f32 %v1183, %v4210
        %v4264 = vadd.f32 %v4263, %v1185
        %v4265 = vmul.f32 %v1187, %v4099
        %v4267 = vrot.slane %v4265, 7
        %v4269 = vadd.f32 %v4264, %v4267
        %v4270 = vtanh.pop %v4269
        %v4271 = vmul.f32 %v1191, %v4210
        %v4272 = vadd.f32 %v4271, %v1193
        %v4273 = vmul.f32 %v1195, %v4099
        %v4275 = vrot.slane %v4273, 7
        %v4277 = vadd.f32 %v4272, %v4275
        %v4278 = vxor.u32 %v4277, 2147483648
        %v4279 = vmul.f32 %v4278, 1.442695
        %v4280 = vpow.pop %v4279
        %v4281 = vadd.f32 %v4280, 1.0
        %v4282 = vrcp.pop %v4281
        %v4283 = vmul.f32 %v4281, %v4282
        %v4284 = vsub.f32 1.0, %v4283
        %v4285 = vmul.f32 %v4282, %v4284
        %v4286 = vadd.f32 %v4282, %v4285
        %vm4287 = vweird.f32 %v4281
        %vm4288 = vweird.f32 %v4282
        %vm4289 = vmor %vm4287, %vm4288
        %v4290 = vsel %vm4289, %v4282, %v4286
        %v4291 = vand.u32 2147483647, %v4281
        %vm4292 = vcmp.eq.f32.partialorder %v4291, 8.507059e+37
        %v4293 = vand.u32 %v4281, 2147483648
        %v4294 = vor.u32 1.1754944e-38, %v4293
        %v4295 = vsel %vm4292, %v4294, %v4290
        %v4296 = vmul.f32 1.0, %v4295
        %v4298 = vrot.slane %v4097, 7
        %v4300 = vmul.f32 %v4262, %v4298
        %v4301 = vmul.f32 %v4236, %v4270
        %v4302 = vadd.f32 %v4300, %v4301
        %v4303 = vtanh.pop %v4302
        %v4304 = vmul.f32 %v4296, %v4303
        %4305 = vset.pattern.permute.xlu0 15
        %4306 = vperm.xlu0 %4305, %v1222
        %v4307 = vpop.permute.xlu0 %4306
        %4309 = vset.pattern.permute.xlu0 15
        %4310 = vperm.xlu0 %4309, %v1223
        %v4311 = vpop.permute.xlu0 %4310
        %4313 = vset.pattern.permute.xlu0 15
        %4314 = vperm.xlu0 %4313, %v1224
        %v4315 = vpop.permute.xlu0 %4314
        %4317 = vset.pattern.permute.xlu0 15
        %4318 = vperm.xlu0 %4317, %v1225
        %v4319 = vpop.permute.xlu0 %4318
        %v4321 = vperm.slane %v4304, 7
        %v4322 = vmul.f32 %v4307, %v4321
        %v4323 = vmul.f32 %v4311, %v4321
        %v4324 = vmul.f32 %v4315, %v4321
        %v4325 = vmul.f32 %v4319, %v4321
        %v4326 = vadd.f32 %v4121, %v4322
        %v4327 = vadd.f32 %v4122, %v4323
        %v4328 = vadd.f32 %v4123, %v4324
        %v4329 = vadd.f32 %v4124, %v4325
        %v4330 = vld [vmem:[%s11] sm:$0xff]
        %v4331 = vld [vmem:[%s11 + $0x8] sm:$0xff]
        %v4332 = vld [vmem:[%s11 + $0x10] sm:$0xff]
        %v4333 = vld [vmem:[%s11 + $0x18] sm:$0xff]
        %4335 = vset.pattern.permute.xlu0 0
        %4336 = vperm.xlu0 %4335, %v4330
        %v4337 = vpop.permute.xlu0 %4336
        %4340 = vset.pattern.permute.xlu0 0
        %4341 = vperm.xlu0 %4340, %v4331
        %v4342 = vpop.permute.xlu0 %4341
        %4345 = vset.pattern.permute.xlu0 0
        %4346 = vperm.xlu0 %4345, %v4332
        %v4347 = vpop.permute.xlu0 %4346
        %4350 = vset.pattern.permute.xlu0 0
        %4351 = vperm.xlu0 %4350, %v4333
        %v4352 = vpop.permute.xlu0 %4351
        %v4354 = vadd.f32 %v4326, %v4337
        %v4355 = vadd.f32 %v4327, %v4342
        %v4356 = vadd.f32 %v4328, %v4347
        %v4357 = vadd.f32 %v4329, %v4352
        %v4358 = vmax.f32 %v4354, 0.0
        %v4359 = vmax.f32 %v4355, 0.0
        %v4360 = vmax.f32 %v4356, 0.0
        %v4361 = vmax.f32 %v4357, 0.0
        %v4362 = vld [vmem:[%s12] sm:$0xff]
        %v4363 = vld [vmem:[%s12 + $0x8] sm:$0xff]
        %v4364 = vld [vmem:[%s13] sm:$0xff]
        %v4365 = vld [vmem:[%s13 + $0x8] sm:$0xff]
        %4367 = vset.pattern.permute.xlu0 0
        %4368 = vperm.xlu0 %4367, %v4364
        %v4369 = vpop.permute.xlu0 %4368
        %4372 = vset.pattern.permute.xlu0 0
        %4373 = vperm.xlu0 %4372, %v4365
        %v4374 = vpop.permute.xlu0 %4373
        %vm4376 = vcmask 261120
        %v4378 = vsel %vm4376, %v4362, 0
        %v4381 = vsel %vm4376, %v4363, 0
        %4383 = vmatpush.msra.mxu0 0.0
        %4384 = vmatpush.msra.mxu0 0.0
        %4385 = vmatpush.msra.mxu0 0.0
        %4386 = vmatpush.msra.mxu0 0.0
        %4387 = vmatpush.msra.mxu0 0.0
        %4388 = vmatpush.msra.mxu0 0.0
        %4389 = vmatpush.msra.mxu0 0.0
        %4390 = vmatpush.msra.mxu0 0.0
        %4391 = vmatpush.msra.mxu0 0.0
        %4392 = vmatpush.msra.mxu0 0.0
        %4393 = vmatpush.msra.mxu0 0.0
        %4394 = vmatpush.msra.mxu0 0.0
        %4395 = vmatpush.msra.mxu0 %v4361
        %4396 = vmatpush.msra.mxu0 %v4360
        %4397 = vmatpush.msra.mxu0 %v4359
        %4398 = vmatpush.msra.mxu0 %v4358
        %4399 = vmatmul.f32.gmra.mxu0 %v4378
        %v4400 = vpop.f32.mrf.mxu0
        %v4401 = vadd.f32 %v4369, %v4400
        %4402 = vmatmul.f32.gmra.mxu0 %v4381
        %v4403 = vpop.f32.mrf.mxu0
        %v4404 = vadd.f32 %v4374, %v4403
        %4405 = vdwg.mxu0
        %v4406 = vmax.f32 %v4401, 0.0
        %v4407 = vmax.f32 %v4404, 0.0
        %v4408 = vld [vmem:[%s14] sm:$0x1]
        %v4409 = vstv %s529
        %v4411 = vsel %vm540, %v4408, 0
        %4413 = vmatpush.msra.mxu0 0.0
        %4414 = vmatpush.msra.mxu0 0.0
        %4415 = vmatpush.msra.mxu0 0.0
        %4416 = vmatpush.msra.mxu0 0.0
        %4417 = vmatpush.msra.mxu0 0.0
        %4418 = vmatpush.msra.mxu0 0.0
        %4419 = vmatpush.msra.mxu0 0.0
        %4420 = vmatpush.msra.mxu0 0.0
        %4421 = vmatpush.msra.mxu0 0.0
        %4422 = vmatpush.msra.mxu0 0.0
        %4423 = vmatpush.msra.mxu0 0.0
        %4424 = vmatpush.msra.mxu0 0.0
        %4425 = vmatpush.msra.mxu0 0.0
        %4426 = vmatpush.msra.mxu0 0.0
        %4427 = vmatpush.msra.mxu0 %v4407
        %4428 = vmatpush.msra.mxu0 %v4406
        %4429 = vmatmul.f32.gmra.mxu0 %v4411
        %v4430 = vpop.f32.mrf.mxu0
        %v4431 = vadd.f32 %v4409, %v4430
        %4432 = vdwg.mxu0
        %vm4433 = vcmask 57344
        %4434 = vst.msk [vmem:[%s523] sm:$0x1] %vm4433, %v4431
        %s4435 = sand.u32 %s359, 1
        %s4436 = scalar_lea.sflag [#allocation3], %s4435
        %s4437 = sand.u32 %s359, 1
        %s4438 = scalar_lea.vmem [#allocation8], %s4437
        // Predicated region
        $region93: #{forward_windows.1} parent=79 // pred_check
          %p4439 = pneg %p369
        $region94: #{forward_windows.1} parent=79 // pred_check_branch
          %4441 = sbr.rel (%p4439) target = $region96
        $region95: #{forward_windows.1} parent=79 // pred_region
          %4443 = vsyncadd %s4436, 0
          %s4444 = scalar_lea.hbm %s15, %s31
          %s4446 = sshll.u32 %s4438, 4
          %s4447 = int_to_ptr.vmem [resolvable:$true] %s4446
          %s4448 = sshll.u32 %s4444, 4
          %s4449 = int_to_ptr.hbm [resolvable:$true] %s4448
          %4451 = dma.vmem_to_hbm [thread:$0]  %s4447, 16, %s4449, %s4436
        $region96: #{forward_windows.1} parent=79 // pred_fallthru
          _
      $region80: #{forward_windows.1} parent=5 // pred_fallthru
        _
      %p4452 = scmp.le.s32.totalorder 2, %s26
      // Predicated region
      $region97: #{forward_windows.1} parent=5 // pred_check
        %p4453 = pneg %p4452
      $region98: #{forward_windows.1} parent=5 // pred_check_branch
        %4455 = sbr.rel (%p4453) target = $region100
      $region99: #{forward_windows.1} parent=5 // pred_region
        %s4456 = ssub.s32 %s26, 2
        // Predicated region
        $region101: #{forward_windows.1} parent=99 // pred_check
          %p4457 = pneg %p375
        $region102: #{forward_windows.1} parent=99 // pred_check_branch
          %4459 = sbr.rel (%p4457) target = $region104
        $region103: #{forward_windows.1} parent=99 // pred_region
          %s4460 = sand.u32 %s360, 1
          %s4461 = scalar_lea.sflag [#allocation3], %s4460
          %s4462 = sand.u32 %s360, 1
          %s4463 = scalar_lea.vmem [#allocation8], %s4462
          %4465 = dma.done %s4461, 16
        $region104: #{forward_windows.1} parent=99 // pred_fallthru
          _
      $region100: #{forward_windows.1} parent=5 // pred_fallthru
        _
    $region6: #{forward_windows.1} parent=1 // loop_footer
      %s30 = sadd.s32 1, %s26
    $region7: #{forward_windows.1} parent=1 // loop_footer_branch
      %25 = sbr.rel target = $region3
    $region8: #{forward_windows.1} parent=1 // loop_exit
      _
    %4466 = vsyncpa [#allocation3], 1
    %s4467 = scalar_lea.sflag [#allocation3], 1
    %4468 = vsyncpa %s4467, 1
    %4469 = vsyncpa [#allocation4], 1
    %s4470 = scalar_lea.sflag [#allocation4], 1
    %4471 = vsyncpa %s4470, 1
    %4472 = vsyncpa [#allocation6], 1

</llo_original>
